<compile_context>
chip_gen: v7x
topology: tpu7x:2x2x1
jax: 0.10.0
libtpu: 0.0.40
codegen_flags: <defaults>
</compile_context>

<pallas_src>
import functools

import numpy as np

import jax
import jax.numpy as jnp
from jax import lax
from jax.experimental import pallas as pl
from jax.experimental.pallas import tpu as pltpu

NEG_SLOPE = 0.2
BN_EPS = 1e-5
KW = 4
PADW = 1
TAPS = KW * KW
SLACK = 8          # extra zero rows so "garbage-column" tap slices stay in bounds


# ---------------------------------------------------------------------------
# Static tap table: for each of the 16 conv taps, which plane of the prepared
# input buffer to read and at which flattened row offset the contiguous
# [m_rows, cin] slice starts.
# ---------------------------------------------------------------------------
def _tap_table(stride, wrow):
    taps = []
    for ki in range(KW):
        for kj in range(KW):
            if stride == 2:
                q = 2 * (ki % 2) + (kj % 2)          # (row parity, col parity)
                start = (ki // 2) * wrow + (kj // 2)
            else:
                q = 0
                start = ki * wrow + kj
            taps.append((q, start))
    return taps


# ---------------------------------------------------------------------------
# Per-layer kernel: 16 contiguous slices -> lane concat -> ONE GEMM -> epilogue.
# ---------------------------------------------------------------------------
def _make_conv_kernel(kind, stride, m_rows, wrow):
    taps = _tap_table(stride, wrow)

    def _gemm(in_ref, w_ref):
        # in_ref block: [1, P, S, cin]; each tap is a contiguous row range of
        # one plane -> [m_rows, cin].  Concatenate along lanes -> [m_rows, 16*cin]
        # (lane-dense K for the MXU) and run a single bf16 GEMM with f32 acc.
        cols = [in_ref[0, q, start:start + m_rows, :] for q, start in taps]
        patch = jnp.concatenate(cols, axis=-1).astype(jnp.bfloat16)
        return jnp.dot(patch, w_ref[...], preferred_element_type=jnp.float32)

    def _lrelu(y):
        return jnp.where(y > 0, y, NEG_SLOPE * y)

    if kind == "first":
        def kernel(in_ref, w_ref, b_ref, out_ref):
            y = _lrelu(_gemm(in_ref, w_ref) + b_ref[...])
            out_ref[0, :, :] = y
    elif kind == "bn":
        def kernel(in_ref, w_ref, mask_ref, out_ref, sums_ref):
            y = _lrelu(_gemm(in_ref, w_ref))
            out_ref[0, :, :] = y
            # Per-image partial BN statistics over *valid* output columns only
            # (mask kills the garbage pseudo-columns).  Finalized in wrapper.
            ym = y * mask_ref[...]
            sums_ref[0, 0:1, :] = jnp.sum(ym, axis=0, keepdims=True)
            sums_ref[0, 1:2, :] = jnp.sum(ym * ym, axis=0, keepdims=True)
    else:  # "last": conv + bias + sigmoid
        def kernel(in_ref, w_ref, b_ref, out_ref):
            y = _gemm(in_ref, w_ref) + b_ref[...]
            out_ref[0, :, :] = jax.nn.sigmoid(y)
    return kernel


# ---------------------------------------------------------------------------
# Wrapper-side input preparation (cheap relayout, ~1.1x bytes, no im2col).
# ---------------------------------------------------------------------------
def _prep_input(act_nhwc, stride):
    """Pad spatially (p=1) and, for stride-2, split into 2x2 parity planes.

    Returns [N, P, S, C] with P=4 (stride 2) or P=1 (stride 1); S = flattened
    padded spatial rows (+SLACK zero rows).  With this layout every 4x4-conv
    tap is one contiguous row range of one plane inside the kernel.
    """
    xp = jnp.pad(act_nhwc, ((0, 0), (PADW, PADW), (PADW, PADW), (0, 0)))
    n, hp, wp, c = xp.shape
    if stride == 2:
        assert hp % 2 == 0 and wp % 2 == 0
        hh, wh = hp // 2, wp // 2
        b = xp.reshape(n, hh, 2, wh, 2, c).transpose(0, 2, 4, 1, 3, 5)
        b = b.reshape(n, 4, hh * wh, c)
    else:
        b = xp.reshape(n, 1, hp * wp, c)
    return jnp.pad(b, ((0, 0), (0, 0), (0, SLACK), (0, 0)))


# ---------------------------------------------------------------------------
# One conv layer = one pallas_call (grid over batch, "parallel").
# ---------------------------------------------------------------------------
def _run_layer(layer, act):
    n, h, w, cin = act.shape
    s = layer["stride"]
    ho = (h + 2 * PADW - KW) // s + 1
    wo = (w + 2 * PADW - KW) // s + 1
    wrow = (w + 2 * PADW) // 2 if s == 2 else (w + 2 * PADW)   # pseudo-cols / row
    m_rows = ho * wrow
    cout = layer["w"].shape[3]

    # Pad Cin to a multiple of 8 (zero channels / zero weight rows -> exact result).
    cin_p = -(-cin // 8) * 8
    w_hwio = layer["w"]
    if cin_p != cin:
        act = jnp.pad(act, ((0, 0), (0, 0), (0, 0), (0, cin_p - cin)))
        w_hwio = jnp.pad(w_hwio, ((0, 0), (0, 0), (0, cin_p - cin), (0, 0)))

    buf = _prep_input(act, s)                                   # [N, P, S, cin_p] f32
    p, srows = buf.shape[1], buf.shape[2]
    w2d = w_hwio.reshape(TAPS * cin_p, cout).astype(jnp.bfloat16)

    kind = {"lrelu_bias": "first", "lrelu_bn": "bn", "sigmoid_bias": "last"}[layer["kind"]]
    kernel = _make_conv_kernel(kind, s, m_rows, wrow)

    in_specs = [pl.BlockSpec((1, p, srows, cin_p), lambda i: (i, 0, 0, 0)),
                pl.BlockSpec((TAPS * cin_p, cout), lambda i: (0, 0))]  # resident
    inputs = [buf, w2d]
    act_shape = jax.ShapeDtypeStruct((n, m_rows, cout), jnp.float32)
    act_spec = pl.BlockSpec((1, m_rows, cout), lambda i: (i, 0, 0))

    if kind == "bn":
        mask = jnp.asarray((np.arange(m_rows) % wrow < wo)
                           .astype(np.float32).reshape(m_rows, 1))
        in_specs.append(pl.BlockSpec((m_rows, 1), lambda i: (0, 0)))   # resident
        inputs.append(mask)
        out_shape = (act_shape, jax.ShapeDtypeStruct((n, 2, cout), jnp.float32))
        out_specs = (act_spec, pl.BlockSpec((1, 2, cout), lambda i: (i, 0, 0)))
    else:
        in_specs.append(pl.BlockSpec((1, cout), lambda i: (0, 0)))     # resident
        inputs.append(layer["b"].reshape(1, cout).astype(jnp.float32))
        out_shape = act_shape
        out_specs = act_spec

    res = pl.pallas_call(
        kernel,
        out_shape=out_shape,
        grid=(n,),
        in_specs=in_specs,
        out_specs=out_specs,
        compiler_params=pltpu.CompilerParams(dimension_semantics=("parallel",)),
    )(*inputs)

    if kind == "bn":
        raw, sums = res
    else:
        raw, sums = res, None

    # Drop the garbage pseudo-columns (j >= Wo) of each output row.
    y = raw.reshape(n, ho, wrow, cout)[:, :, :wo, :]

    if kind == "bn":
        # Finalize exact global batch statistics from per-image partial sums
        # and apply the per-channel affine (thin XLA glue; see TODO in header).
        total = jnp.sum(sums, axis=0)                           # [2, cout]
        cnt = float(n * ho * wo)
        mean = total[0] / cnt
        var = total[1] / cnt - mean * mean                      # biased var (PyTorch)
        scale = layer["gamma"] * lax.rsqrt(var + BN_EPS)
        shift = layer["beta"] - mean * scale
        y = y * scale + shift
    return y


def discriminator_forward(params, x_nchw):
    act = jnp.transpose(x_nchw, (0, 2, 3, 1)).astype(jnp.float32)     # NCHW -> NHWC
    for layer in params:
        act = _run_layer(layer, act)
    return jnp.transpose(act, (0, 3, 1, 2))                           # NHWC -> NCHW


# ---------------------------------------------------------------------------
# Parameter construction (deterministic, synthetic weights).
# ---------------------------------------------------------------------------
def init_discriminator_params(key, input_nc, ndf=8, n_layers=3):
    keys = iter(jax.random.split(key, 4 * (n_layers + 2)))

    def conv_w(cin, cout):
        return 0.05 * jax.random.normal(next(keys), (KW, KW, cin, cout), jnp.float32)

    layers = []
    layers.append(dict(kind="lrelu_bias", stride=2,
                       w=conv_w(input_nc, ndf),
                       b=0.05 * jax.random.normal(next(keys), (ndf,), jnp.float32)))
    nf_mult = 1
    for n in range(1, n_layers):
        nf_prev, nf_mult = nf_mult, min(2 ** n, 8)
        cout = ndf * nf_mult
        layers.append(dict(kind="lrelu_bn", stride=2,
                           w=conv_w(ndf * nf_prev, cout),
                           gamma=1.0 + 0.1 * jax.random.normal(next(keys), (cout,), jnp.float32),
                           beta=0.1 * jax.random.normal(next(keys), (cout,), jnp.float32)))
    nf_prev, nf_mult = nf_mult, min(2 ** n_layers, 8)
    cout = ndf * nf_mult
    layers.append(dict(kind="lrelu_bn", stride=1,
                       w=conv_w(ndf * nf_prev, cout),
                       gamma=1.0 + 0.1 * jax.random.normal(next(keys), (cout,), jnp.float32),
                       beta=0.1 * jax.random.normal(next(keys), (cout,), jnp.float32)))
    layers.append(dict(kind="sigmoid_bias", stride=1,
                       w=conv_w(cout, 1),
                       b=0.05 * jax.random.normal(next(keys), (1,), jnp.float32)))
    return layers


# ---------------------------------------------------------------------------
# Pure-JAX f32 reference (sanity check against the Pallas path).
# ---------------------------------------------------------------------------
def _reference_forward(params, x_nchw):
    dn = ("NHWC", "HWIO", "NHWC")
    x = jnp.transpose(x_nchw, (0, 2, 3, 1)).astype(jnp.float32)
    for layer in params:
        s = layer["stride"]
        y = lax.conv_general_dilated(x, layer["w"], (s, s),
                                     [(PADW, PADW), (PADW, PADW)],
                                     dimension_numbers=dn,
                                     precision=lax.Precision.HIGHEST)
        if layer["kind"] in ("lrelu_bias", "sigmoid_bias"):
            y = y + layer["b"]
        if layer["kind"] in ("lrelu_bias", "lrelu_bn"):
            y = jnp.where(y > 0, y, NEG_SLOPE * y)
        if layer["kind"] == "lrelu_bn":
            mean = jnp.mean(y, axis=(0, 1, 2), keepdims=True)
            var = jnp.mean(jnp.square(y - mean), axis=(0, 1, 2), keepdims=True)
            y = layer["gamma"] * (y - mean) * lax.rsqrt(var + BN_EPS) + layer["beta"]
        if layer["kind"] == "sigmoid_bias":
            y = jax.nn.sigmoid(y)
        x = y
    return jnp.transpose(x, (0, 3, 1, 2))


if __name__ == "__main__":
    key = jax.random.PRNGKey(0)
    k_param, k_x = jax.random.split(key)

    batch, input_nc, spatial = 2, 3, 32   # 32x32 keeps all 5 convs spatially valid
    ndf, n_layers = 8, 3

    params = init_discriminator_params(k_param, input_nc, ndf=ndf, n_layers=n_layers)
    x = jax.random.normal(k_x, (batch, input_nc, spatial, spatial), jnp.float32)

    fwd = jax.jit(functools.partial(discriminator_forward, params))
    out = jax.block_until_ready(fwd(x))

    ref = jax.block_until_ready(_reference_forward(params, x))
    assert out.shape == ref.shape == (batch, 1, 2, 2), out.shape
    max_err = float(jnp.max(jnp.abs(out - ref)))
    # bf16 MXU operands vs. f32 HIGHEST reference -> slightly looser tolerance.
    assert jnp.allclose(out, ref, atol=4e-2, rtol=4e-2), max_err

    print("KERNEL_OK")
</pallas_src>

<mosaic_0001>
module attributes {stable_mosaic.version = 11 : i64} {
  func.func @kernel(%arg0: i32, %arg1: memref<1x4x297x8xf32, #tpu.memory_space<vmem>>, %arg2: memref<128x8xbf16, #tpu.memory_space<vmem>>, %arg3: memref<1x8xf32, #tpu.memory_space<vmem>>, %arg4: memref<1x272x8xf32, #tpu.memory_space<vmem>>) attributes {dimension_semantics = [#tpu.dimension_semantics<parallel>], iteration_bounds = array<i64: 2>, scalar_prefetch = 0 : i64, scratch_operands = 0 : i64, tpu.core_type = #tpu.core_type<tc>, window_params = [{transform_indices = @transform_0, window_bounds = array<i64: 1, 4, 297, 8>}, {pipeline_mode = #tpu.pipeline_mode<synchronous>, transform_indices = @transform_1, window_bounds = array<i64: 128, 8>}, {pipeline_mode = #tpu.pipeline_mode<synchronous>, transform_indices = @transform_2, window_bounds = array<i64: 1, 8>}, {transform_indices = @transform_3, window_bounds = array<i64: 1, 272, 8>}]} {
    %c0 = arith.constant 0 : index
    %c0_0 = arith.constant 0 : index
    %c0_1 = arith.constant 0 : index
    %c0_2 = arith.constant 0 : index
    %0 = vector.load %arg1[%c0, %c0_0, %c0_1, %c0_2] : memref<1x4x297x8xf32, #tpu.memory_space<vmem>>, vector<1x1x272x8xf32>
    %1 = vector.shape_cast %0 : vector<1x1x272x8xf32> to vector<272x8xf32>
    %c0_3 = arith.constant 0 : index
    %c1 = arith.constant 1 : index
    %c0_4 = arith.constant 0 : index
    %c0_5 = arith.constant 0 : index
    %2 = vector.load %arg1[%c0_3, %c1, %c0_4, %c0_5] : memref<1x4x297x8xf32, #tpu.memory_space<vmem>>, vector<1x1x272x8xf32>
    %3 = vector.shape_cast %2 : vector<1x1x272x8xf32> to vector<272x8xf32>
    %c0_6 = arith.constant 0 : index
    %c0_7 = arith.constant 0 : index
    %c1_8 = arith.constant 1 : index
    %c0_9 = arith.constant 0 : index
    %4 = vector.load %arg1[%c0_6, %c0_7, %c1_8, %c0_9] : memref<1x4x297x8xf32, #tpu.memory_space<vmem>>, vector<1x1x272x8xf32>
    %5 = vector.shape_cast %4 : vector<1x1x272x8xf32> to vector<272x8xf32>
    %c0_10 = arith.constant 0 : index
    %c1_11 = arith.constant 1 : index
    %c1_12 = arith.constant 1 : index
    %c0_13 = arith.constant 0 : index
    %6 = vector.load %arg1[%c0_10, %c1_11, %c1_12, %c0_13] : memref<1x4x297x8xf32, #tpu.memory_space<vmem>>, vector<1x1x272x8xf32>
    %7 = vector.shape_cast %6 : vector<1x1x272x8xf32> to vector<272x8xf32>
    %c0_14 = arith.constant 0 : index
    %c2 = arith.constant 2 : index
    %c0_15 = arith.constant 0 : index
    %c0_16 = arith.constant 0 : index
    %8 = vector.load %arg1[%c0_14, %c2, %c0_15, %c0_16] : memref<1x4x297x8xf32, #tpu.memory_space<vmem>>, vector<1x1x272x8xf32>
    %9 = vector.shape_cast %8 : vector<1x1x272x8xf32> to vector<272x8xf32>
    %c0_17 = arith.constant 0 : index
    %c3 = arith.constant 3 : index
    %c0_18 = arith.constant 0 : index
    %c0_19 = arith.constant 0 : index
    %10 = vector.load %arg1[%c0_17, %c3, %c0_18, %c0_19] : memref<1x4x297x8xf32, #tpu.memory_space<vmem>>, vector<1x1x272x8xf32>
    %11 = vector.shape_cast %10 : vector<1x1x272x8xf32> to vector<272x8xf32>
    %c0_20 = arith.constant 0 : index
    %c2_21 = arith.constant 2 : index
    %c1_22 = arith.constant 1 : index
    %c0_23 = arith.constant 0 : index
    %12 = vector.load %arg1[%c0_20, %c2_21, %c1_22, %c0_23] : memref<1x4x297x8xf32, #tpu.memory_space<vmem>>, vector<1x1x272x8xf32>
    %13 = vector.shape_cast %12 : vector<1x1x272x8xf32> to vector<272x8xf32>
    %c0_24 = arith.constant 0 : index
    %c3_25 = arith.constant 3 : index
    %c1_26 = arith.constant 1 : index
    %c0_27 = arith.constant 0 : index
    %14 = vector.load %arg1[%c0_24, %c3_25, %c1_26, %c0_27] : memref<1x4x297x8xf32, #tpu.memory_space<vmem>>, vector<1x1x272x8xf32>
    %15 = vector.shape_cast %14 : vector<1x1x272x8xf32> to vector<272x8xf32>
    %c0_28 = arith.constant 0 : index
    %c0_29 = arith.constant 0 : index
    %c17 = arith.constant 17 : index
    %c0_30 = arith.constant 0 : index
    %16 = vector.load %arg1[%c0_28, %c0_29, %c17, %c0_30] : memref<1x4x297x8xf32, #tpu.memory_space<vmem>>, vector<1x1x272x8xf32>
    %17 = vector.shape_cast %16 : vector<1x1x272x8xf32> to vector<272x8xf32>
    %c0_31 = arith.constant 0 : index
    %c1_32 = arith.constant 1 : index
    %c17_33 = arith.constant 17 : index
    %c0_34 = arith.constant 0 : index
    %18 = vector.load %arg1[%c0_31, %c1_32, %c17_33, %c0_34] : memref<1x4x297x8xf32, #tpu.memory_space<vmem>>, vector<1x1x272x8xf32>
    %19 = vector.shape_cast %18 : vector<1x1x272x8xf32> to vector<272x8xf32>
    %c0_35 = arith.constant 0 : index
    %c0_36 = arith.constant 0 : index
    %c18 = arith.constant 18 : index
    %c0_37 = arith.constant 0 : index
    %20 = vector.load %arg1[%c0_35, %c0_36, %c18, %c0_37] : memref<1x4x297x8xf32, #tpu.memory_space<vmem>>, vector<1x1x272x8xf32>
    %21 = vector.shape_cast %20 : vector<1x1x272x8xf32> to vector<272x8xf32>
    %c0_38 = arith.constant 0 : index
    %c1_39 = arith.constant 1 : index
    %c18_40 = arith.constant 18 : index
    %c0_41 = arith.constant 0 : index
    %22 = vector.load %arg1[%c0_38, %c1_39, %c18_40, %c0_41] : memref<1x4x297x8xf32, #tpu.memory_space<vmem>>, vector<1x1x272x8xf32>
    %23 = vector.shape_cast %22 : vector<1x1x272x8xf32> to vector<272x8xf32>
    %c0_42 = arith.constant 0 : index
    %c2_43 = arith.constant 2 : index
    %c17_44 = arith.constant 17 : index
    %c0_45 = arith.constant 0 : index
    %24 = vector.load %arg1[%c0_42, %c2_43, %c17_44, %c0_45] : memref<1x4x297x8xf32, #tpu.memory_space<vmem>>, vector<1x1x272x8xf32>
    %25 = vector.shape_cast %24 : vector<1x1x272x8xf32> to vector<272x8xf32>
    %c0_46 = arith.constant 0 : index
    %c3_47 = arith.constant 3 : index
    %c17_48 = arith.constant 17 : index
    %c0_49 = arith.constant 0 : index
    %26 = vector.load %arg1[%c0_46, %c3_47, %c17_48, %c0_49] : memref<1x4x297x8xf32, #tpu.memory_space<vmem>>, vector<1x1x272x8xf32>
    %27 = vector.shape_cast %26 : vector<1x1x272x8xf32> to vector<272x8xf32>
    %c0_50 = arith.constant 0 : index
    %c2_51 = arith.constant 2 : index
    %c18_52 = arith.constant 18 : index
    %c0_53 = arith.constant 0 : index
    %28 = vector.load %arg1[%c0_50, %c2_51, %c18_52, %c0_53] : memref<1x4x297x8xf32, #tpu.memory_space<vmem>>, vector<1x1x272x8xf32>
    %29 = vector.shape_cast %28 : vector<1x1x272x8xf32> to vector<272x8xf32>
    %c0_54 = arith.constant 0 : index
    %c3_55 = arith.constant 3 : index
    %c18_56 = arith.constant 18 : index
    %c0_57 = arith.constant 0 : index
    %30 = vector.load %arg1[%c0_54, %c3_55, %c18_56, %c0_57] : memref<1x4x297x8xf32, #tpu.memory_space<vmem>>, vector<1x1x272x8xf32>
    %31 = vector.shape_cast %30 : vector<1x1x272x8xf32> to vector<272x8xf32>
    %32 = tpu.concatenate %1, %3, %5, %7, %9, %11, %13, %15, %17, %19, %21, %23, %25, %27, %29, %31 in 1 : vector<272x8xf32>, vector<272x8xf32>, vector<272x8xf32>, vector<272x8xf32>, vector<272x8xf32>, vector<272x8xf32>, vector<272x8xf32>, vector<272x8xf32>, vector<272x8xf32>, vector<272x8xf32>, vector<272x8xf32>, vector<272x8xf32>, vector<272x8xf32>, vector<272x8xf32>, vector<272x8xf32>, vector<272x8xf32> -> vector<272x128xf32>
    %33 = arith.truncf %32 : vector<272x128xf32> to vector<272x128xbf16>
    %c0_58 = arith.constant 0 : index
    %c0_59 = arith.constant 0 : index
    %34 = vector.load %arg2[%c0_58, %c0_59] : memref<128x8xbf16, #tpu.memory_space<vmem>>, vector<128x8xbf16>
    %cst = arith.constant dense<0.000000e+00> : vector<272x8xf32>
    %35 = tpu.matmul %33, %34, %cst {dimension_numbers = #tpu.dot_dimension_numbers<[1], [0], [0], [1], [0, 0, 1, 1], [], []>} : vector<272x128xbf16>, vector<128x8xbf16>, vector<272x8xf32> -> vector<272x8xf32>
    %c0_60 = arith.constant 0 : index
    %c0_61 = arith.constant 0 : index
    %36 = vector.load %arg3[%c0_60, %c0_61] : memref<1x8xf32, #tpu.memory_space<vmem>>, vector<1x8xf32>
    %37 = vector.broadcast %36 : vector<1x8xf32> to vector<272x8xf32>
    %38 = arith.addf %35, %37 : vector<272x8xf32>
    %cst_62 = arith.constant 0.000000e+00 : f32
    %39 = vector.broadcast %cst_62 : f32 to vector<272x8xf32>
    %40 = arith.cmpf ogt, %38, %39 : vector<272x8xf32>
    %cst_63 = arith.constant 2.000000e-01 : f32
    %41 = vector.broadcast %cst_63 : f32 to vector<272x8xf32>
    %42 = arith.mulf %41, %38 : vector<272x8xf32>
    %43 = arith.select %40, %38, %42 : vector<272x8xi1>, vector<272x8xf32>
    %c0_64 = arith.constant 0 : index
    %c0_65 = arith.constant 0 : index
    %c0_66 = arith.constant 0 : index
    %44 = vector.load %arg4[%c0_64, %c0_65, %c0_66] : memref<1x272x8xf32, #tpu.memory_space<vmem>>, vector<1x272x8xf32>
    %45 = vector.shape_cast %44 : vector<1x272x8xf32> to vector<272x8xf32>
    %46 = vector.shape_cast %43 : vector<272x8xf32> to vector<1x272x8xf32>
    tpu.vector_store %arg4[%c0_64, %c0_65, %c0_66], %46 {strides = array<i32>} : memref<1x272x8xf32, #tpu.memory_space<vmem>>, vector<1x272x8xf32>,
    return
  }
  func.func @transform_0(%arg0: i32) -> (i32, i32, i32, i32) {
    %c0_i32 = arith.constant 0 : i32
    %c0_i32_0 = arith.constant 0 : i32
    %c0_i32_1 = arith.constant 0 : i32
    %c0_i32_2 = arith.constant 0 : i32
    return %arg0, %c0_i32, %c0_i32_0, %c0_i32_1 : i32, i32, i32, i32
  }
  func.func @transform_1(%arg0: i32) -> (i32, i32) {
    %c0_i32 = arith.constant 0 : i32
    %c0_i32_0 = arith.constant 0 : i32
    %c0_i32_1 = arith.constant 0 : i32
    return %c0_i32, %c0_i32_0 : i32, i32
  }
  func.func @transform_2(%arg0: i32) -> (i32, i32) {
    %c0_i32 = arith.constant 0 : i32
    %c0_i32_0 = arith.constant 0 : i32
    %c0_i32_1 = arith.constant 0 : i32
    return %c0_i32, %c0_i32_0 : i32, i32
  }
  func.func @transform_3(%arg0: i32) -> (i32, i32, i32) {
    %c0_i32 = arith.constant 0 : i32
    %c0_i32_0 = arith.constant 0 : i32
    %c0_i32_1 = arith.constant 0 : i32
    return %arg0, %c0_i32, %c0_i32_0 : i32, i32, i32
  }
}

module attributes {stable_mosaic.version = 11 : i64} {
  func.func @kernel(%arg0: i32, %arg1: memref<1x4x89x8xf32, #tpu.memory_space<vmem>>, %arg2: memref<128x16xbf16, #tpu.memory_space<vmem>>, %arg3: memref<72x1xf32, #tpu.memory_space<vmem>>, %arg4: memref<1x72x16xf32, #tpu.memory_space<vmem>>, %arg5: memref<1x2x16xf32, #tpu.memory_space<vmem>>) attributes {dimension_semantics = [#tpu.dimension_semantics<parallel>], iteration_bounds = array<i64: 2>, scalar_prefetch = 0 : i64, scratch_operands = 0 : i64, tpu.core_type = #tpu.core_type<tc>, window_params = [{transform_indices = @transform_0, window_bounds = array<i64: 1, 4, 89, 8>}, {pipeline_mode = #tpu.pipeline_mode<synchronous>, transform_indices = @transform_1, window_bounds = array<i64: 128, 16>}, {pipeline_mode = #tpu.pipeline_mode<synchronous>, transform_indices = @transform_2, window_bounds = array<i64: 72, 1>}, {transform_indices = @transform_3, window_bounds = array<i64: 1, 72, 16>}, {transform_indices = @transform_4, window_bounds = array<i64: 1, 2, 16>}]} {
    %c0 = arith.constant 0 : index
    %c0_0 = arith.constant 0 : index
    %c0_1 = arith.constant 0 : index
    %c0_2 = arith.constant 0 : index
    %0 = vector.load %arg1[%c0, %c0_0, %c0_1, %c0_2] : memref<1x4x89x8xf32, #tpu.memory_space<vmem>>, vector<1x1x72x8xf32>
    %1 = vector.shape_cast %0 : vector<1x1x72x8xf32> to vector<72x8xf32>
    %c0_3 = arith.constant 0 : index
    %c1 = arith.constant 1 : index
    %c0_4 = arith.constant 0 : index
    %c0_5 = arith.constant 0 : index
    %2 = vector.load %arg1[%c0_3, %c1, %c0_4, %c0_5] : memref<1x4x89x8xf32, #tpu.memory_space<vmem>>, vector<1x1x72x8xf32>
    %3 = vector.shape_cast %2 : vector<1x1x72x8xf32> to vector<72x8xf32>
    %c0_6 = arith.constant 0 : index
    %c0_7 = arith.constant 0 : index
    %c1_8 = arith.constant 1 : index
    %c0_9 = arith.constant 0 : index
    %4 = vector.load %arg1[%c0_6, %c0_7, %c1_8, %c0_9] : memref<1x4x89x8xf32, #tpu.memory_space<vmem>>, vector<1x1x72x8xf32>
    %5 = vector.shape_cast %4 : vector<1x1x72x8xf32> to vector<72x8xf32>
    %c0_10 = arith.constant 0 : index
    %c1_11 = arith.constant 1 : index
    %c1_12 = arith.constant 1 : index
    %c0_13 = arith.constant 0 : index
    %6 = vector.load %arg1[%c0_10, %c1_11, %c1_12, %c0_13] : memref<1x4x89x8xf32, #tpu.memory_space<vmem>>, vector<1x1x72x8xf32>
    %7 = vector.shape_cast %6 : vector<1x1x72x8xf32> to vector<72x8xf32>
    %c0_14 = arith.constant 0 : index
    %c2 = arith.constant 2 : index
    %c0_15 = arith.constant 0 : index
    %c0_16 = arith.constant 0 : index
    %8 = vector.load %arg1[%c0_14, %c2, %c0_15, %c0_16] : memref<1x4x89x8xf32, #tpu.memory_space<vmem>>, vector<1x1x72x8xf32>
    %9 = vector.shape_cast %8 : vector<1x1x72x8xf32> to vector<72x8xf32>
    %c0_17 = arith.constant 0 : index
    %c3 = arith.constant 3 : index
    %c0_18 = arith.constant 0 : index
    %c0_19 = arith.constant 0 : index
    %10 = vector.load %arg1[%c0_17, %c3, %c0_18, %c0_19] : memref<1x4x89x8xf32, #tpu.memory_space<vmem>>, vector<1x1x72x8xf32>
    %11 = vector.shape_cast %10 : vector<1x1x72x8xf32> to vector<72x8xf32>
    %c0_20 = arith.constant 0 : index
    %c2_21 = arith.constant 2 : index
    %c1_22 = arith.constant 1 : index
    %c0_23 = arith.constant 0 : index
    %12 = vector.load %arg1[%c0_20, %c2_21, %c1_22, %c0_23] : memref<1x4x89x8xf32, #tpu.memory_space<vmem>>, vector<1x1x72x8xf32>
    %13 = vector.shape_cast %12 : vector<1x1x72x8xf32> to vector<72x8xf32>
    %c0_24 = arith.constant 0 : index
    %c3_25 = arith.constant 3 : index
    %c1_26 = arith.constant 1 : index
    %c0_27 = arith.constant 0 : index
    %14 = vector.load %arg1[%c0_24, %c3_25, %c1_26, %c0_27] : memref<1x4x89x8xf32, #tpu.memory_space<vmem>>, vector<1x1x72x8xf32>
    %15 = vector.shape_cast %14 : vector<1x1x72x8xf32> to vector<72x8xf32>
    %c0_28 = arith.constant 0 : index
    %c0_29 = arith.constant 0 : index
    %c9 = arith.constant 9 : index
    %c0_30 = arith.constant 0 : index
    %16 = vector.load %arg1[%c0_28, %c0_29, %c9, %c0_30] : memref<1x4x89x8xf32, #tpu.memory_space<vmem>>, vector<1x1x72x8xf32>
    %17 = vector.shape_cast %16 : vector<1x1x72x8xf32> to vector<72x8xf32>
    %c0_31 = arith.constant 0 : index
    %c1_32 = arith.constant 1 : index
    %c9_33 = arith.constant 9 : index
    %c0_34 = arith.constant 0 : index
    %18 = vector.load %arg1[%c0_31, %c1_32, %c9_33, %c0_34] : memref<1x4x89x8xf32, #tpu.memory_space<vmem>>, vector<1x1x72x8xf32>
    %19 = vector.shape_cast %18 : vector<1x1x72x8xf32> to vector<72x8xf32>
    %c0_35 = arith.constant 0 : index
    %c0_36 = arith.constant 0 : index
    %c10 = arith.constant 10 : index
    %c0_37 = arith.constant 0 : index
    %20 = vector.load %arg1[%c0_35, %c0_36, %c10, %c0_37] : memref<1x4x89x8xf32, #tpu.memory_space<vmem>>, vector<1x1x72x8xf32>
    %21 = vector.shape_cast %20 : vector<1x1x72x8xf32> to vector<72x8xf32>
    %c0_38 = arith.constant 0 : index
    %c1_39 = arith.constant 1 : index
    %c10_40 = arith.constant 10 : index
    %c0_41 = arith.constant 0 : index
    %22 = vector.load %arg1[%c0_38, %c1_39, %c10_40, %c0_41] : memref<1x4x89x8xf32, #tpu.memory_space<vmem>>, vector<1x1x72x8xf32>
    %23 = vector.shape_cast %22 : vector<1x1x72x8xf32> to vector<72x8xf32>
    %c0_42 = arith.constant 0 : index
    %c2_43 = arith.constant 2 : index
    %c9_44 = arith.constant 9 : index
    %c0_45 = arith.constant 0 : index
    %24 = vector.load %arg1[%c0_42, %c2_43, %c9_44, %c0_45] : memref<1x4x89x8xf32, #tpu.memory_space<vmem>>, vector<1x1x72x8xf32>
    %25 = vector.shape_cast %24 : vector<1x1x72x8xf32> to vector<72x8xf32>
    %c0_46 = arith.constant 0 : index
    %c3_47 = arith.constant 3 : index
    %c9_48 = arith.constant 9 : index
    %c0_49 = arith.constant 0 : index
    %26 = vector.load %arg1[%c0_46, %c3_47, %c9_48, %c0_49] : memref<1x4x89x8xf32, #tpu.memory_space<vmem>>, vector<1x1x72x8xf32>
    %27 = vector.shape_cast %26 : vector<1x1x72x8xf32> to vector<72x8xf32>
    %c0_50 = arith.constant 0 : index
    %c2_51 = arith.constant 2 : index
    %c10_52 = arith.constant 10 : index
    %c0_53 = arith.constant 0 : index
    %28 = vector.load %arg1[%c0_50, %c2_51, %c10_52, %c0_53] : memref<1x4x89x8xf32, #tpu.memory_space<vmem>>, vector<1x1x72x8xf32>
    %29 = vector.shape_cast %28 : vector<1x1x72x8xf32> to vector<72x8xf32>
    %c0_54 = arith.constant 0 : index
    %c3_55 = arith.constant 3 : index
    %c10_56 = arith.constant 10 : index
    %c0_57 = arith.constant 0 : index
    %30 = vector.load %arg1[%c0_54, %c3_55, %c10_56, %c0_57] : memref<1x4x89x8xf32, #tpu.memory_space<vmem>>, vector<1x1x72x8xf32>
    %31 = vector.shape_cast %30 : vector<1x1x72x8xf32> to vector<72x8xf32>
    %32 = tpu.concatenate %1, %3, %5, %7, %9, %11, %13, %15, %17, %19, %21, %23, %25, %27, %29, %31 in 1 : vector<72x8xf32>, vector<72x8xf32>, vector<72x8xf32>, vector<72x8xf32>, vector<72x8xf32>, vector<72x8xf32>, vector<72x8xf32>, vector<72x8xf32>, vector<72x8xf32>, vector<72x8xf32>, vector<72x8xf32>, vector<72x8xf32>, vector<72x8xf32>, vector<72x8xf32>, vector<72x8xf32>, vector<72x8xf32> -> vector<72x128xf32>
    %33 = arith.truncf %32 : vector<72x128xf32> to vector<72x128xbf16>
    %c0_58 = arith.constant 0 : index
    %c0_59 = arith.constant 0 : index
    %34 = vector.load %arg2[%c0_58, %c0_59] : memref<128x16xbf16, #tpu.memory_space<vmem>>, vector<128x16xbf16>
    %cst = arith.constant dense<0.000000e+00> : vector<72x16xf32>
    %35 = tpu.matmul %33, %34, %cst {dimension_numbers = #tpu.dot_dimension_numbers<[1], [0], [0], [1], [0, 0, 1, 1], [], []>} : vector<72x128xbf16>, vector<128x16xbf16>, vector<72x16xf32> -> vector<72x16xf32>
    %cst_60 = arith.constant 0.000000e+00 : f32
    %36 = vector.broadcast %cst_60 : f32 to vector<72x16xf32>
    %37 = arith.cmpf ogt, %35, %36 : vector<72x16xf32>
    %cst_61 = arith.constant 2.000000e-01 : f32
    %38 = vector.broadcast %cst_61 : f32 to vector<72x16xf32>
    %39 = arith.mulf %38, %35 : vector<72x16xf32>
    %40 = arith.select %37, %35, %39 : vector<72x16xi1>, vector<72x16xf32>
    %c0_62 = arith.constant 0 : index
    %c0_63 = arith.constant 0 : index
    %c0_64 = arith.constant 0 : index
    %41 = vector.load %arg4[%c0_62, %c0_63, %c0_64] : memref<1x72x16xf32, #tpu.memory_space<vmem>>, vector<1x72x16xf32>
    %42 = vector.shape_cast %41 : vector<1x72x16xf32> to vector<72x16xf32>
    %43 = vector.shape_cast %40 : vector<72x16xf32> to vector<1x72x16xf32>
    tpu.vector_store %arg4[%c0_62, %c0_63, %c0_64], %43 {strides = array<i32>} : memref<1x72x16xf32, #tpu.memory_space<vmem>>, vector<1x72x16xf32>,
    %c0_65 = arith.constant 0 : index
    %c0_66 = arith.constant 0 : index
    %44 = vector.load %arg3[%c0_65, %c0_66] : memref<72x1xf32, #tpu.memory_space<vmem>>, vector<72x1xf32>
    %45 = vector.broadcast %44 : vector<72x1xf32> to vector<72x16xf32>
    %46 = arith.mulf %40, %45 : vector<72x16xf32>
    %cst_67 = arith.constant dense<0.000000e+00> : vector<16xf32>
    %47 = vector.multi_reduction <add>, %46, %cst_67 [0] : vector<72x16xf32> to vector<16xf32>
    %48 = vector.shape_cast %47 : vector<16xf32> to vector<1x16xf32>
    %c0_68 = arith.constant 0 : index
    %c0_69 = arith.constant 0 : index
    %c0_70 = arith.constant 0 : index
    %49 = vector.load %arg5[%c0_68, %c0_69, %c0_70] : memref<1x2x16xf32, #tpu.memory_space<vmem>>, vector<1x1x16xf32>
    %50 = vector.shape_cast %49 : vector<1x1x16xf32> to vector<1x16xf32>
    %51 = vector.shape_cast %48 : vector<1x16xf32> to vector<1x1x16xf32>
    tpu.vector_store %arg5[%c0_68, %c0_69, %c0_70], %51 {strides = array<i32>} : memref<1x2x16xf32, #tpu.memory_space<vmem>>, vector<1x1x16xf32>,
    %52 = arith.mulf %46, %46 : vector<72x16xf32>
    %cst_71 = arith.constant dense<0.000000e+00> : vector<16xf32>
    %53 = vector.multi_reduction <add>, %52, %cst_71 [0] : vector<72x16xf32> to vector<16xf32>
    %54 = vector.shape_cast %53 : vector<16xf32> to vector<1x16xf32>
    %c0_72 = arith.constant 0 : index
    %c1_73 = arith.constant 1 : index
    %c0_74 = arith.constant 0 : index
    %55 = vector.load %arg5[%c0_72, %c1_73, %c0_74] : memref<1x2x16xf32, #tpu.memory_space<vmem>>, vector<1x1x16xf32>
    %56 = vector.shape_cast %55 : vector<1x1x16xf32> to vector<1x16xf32>
    %57 = vector.shape_cast %54 : vector<1x16xf32> to vector<1x1x16xf32>
    tpu.vector_store %arg5[%c0_72, %c1_73, %c0_74], %57 {strides = array<i32>} : memref<1x2x16xf32, #tpu.memory_space<vmem>>, vector<1x1x16xf32>,
    return
  }
  func.func @transform_0(%arg0: i32) -> (i32, i32, i32, i32) {
    %c0_i32 = arith.constant 0 : i32
    %c0_i32_0 = arith.constant 0 : i32
    %c0_i32_1 = arith.constant 0 : i32
    %c0_i32_2 = arith.constant 0 : i32
    return %arg0, %c0_i32, %c0_i32_0, %c0_i32_1 : i32, i32, i32, i32
  }
  func.func @transform_1(%arg0: i32) -> (i32, i32) {
    %c0_i32 = arith.constant 0 : i32
    %c0_i32_0 = arith.constant 0 : i32
    %c0_i32_1 = arith.constant 0 : i32
    return %c0_i32, %c0_i32_0 : i32, i32
  }
  func.func @transform_2(%arg0: i32) -> (i32, i32) {
    %c0_i32 = arith.constant 0 : i32
    %c0_i32_0 = arith.constant 0 : i32
    %c0_i32_1 = arith.constant 0 : i32
    return %c0_i32, %c0_i32_0 : i32, i32
  }
  func.func @transform_3(%arg0: i32) -> (i32, i32, i32) {
    %c0_i32 = arith.constant 0 : i32
    %c0_i32_0 = arith.constant 0 : i32
    %c0_i32_1 = arith.constant 0 : i32
    return %arg0, %c0_i32, %c0_i32_0 : i32, i32, i32
  }
  func.func @transform_4(%arg0: i32) -> (i32, i32, i32) {
    %c0_i32 = arith.constant 0 : i32
    %c0_i32_0 = arith.constant 0 : i32
    %c0_i32_1 = arith.constant 0 : i32
    return %arg0, %c0_i32, %c0_i32_0 : i32, i32, i32
  }
}

module attributes {stable_mosaic.version = 11 : i64} {
  func.func @kernel(%arg0: i32, %arg1: memref<1x4x33x16xf32, #tpu.memory_space<vmem>>, %arg2: memref<256x32xbf16, #tpu.memory_space<vmem>>, %arg3: memref<20x1xf32, #tpu.memory_space<vmem>>, %arg4: memref<1x20x32xf32, #tpu.memory_space<vmem>>, %arg5: memref<1x2x32xf32, #tpu.memory_space<vmem>>) attributes {dimension_semantics = [#tpu.dimension_semantics<parallel>], iteration_bounds = array<i64: 2>, scalar_prefetch = 0 : i64, scratch_operands = 0 : i64, tpu.core_type = #tpu.core_type<tc>, window_params = [{transform_indices = @transform_0, window_bounds = array<i64: 1, 4, 33, 16>}, {pipeline_mode = #tpu.pipeline_mode<synchronous>, transform_indices = @transform_1, window_bounds = array<i64: 256, 32>}, {pipeline_mode = #tpu.pipeline_mode<synchronous>, transform_indices = @transform_2, window_bounds = array<i64: 20, 1>}, {transform_indices = @transform_3, window_bounds = array<i64: 1, 20, 32>}, {transform_indices = @transform_4, window_bounds = array<i64: 1, 2, 32>}]} {
    %c0 = arith.constant 0 : index
    %c0_0 = arith.constant 0 : index
    %c0_1 = arith.constant 0 : index
    %c0_2 = arith.constant 0 : index
    %0 = vector.load %arg1[%c0, %c0_0, %c0_1, %c0_2] : memref<1x4x33x16xf32, #tpu.memory_space<vmem>>, vector<1x1x20x16xf32>
    %1 = vector.shape_cast %0 : vector<1x1x20x16xf32> to vector<20x16xf32>
    %c0_3 = arith.constant 0 : index
    %c1 = arith.constant 1 : index
    %c0_4 = arith.constant 0 : index
    %c0_5 = arith.constant 0 : index
    %2 = vector.load %arg1[%c0_3, %c1, %c0_4, %c0_5] : memref<1x4x33x16xf32, #tpu.memory_space<vmem>>, vector<1x1x20x16xf32>
    %3 = vector.shape_cast %2 : vector<1x1x20x16xf32> to vector<20x16xf32>
    %c0_6 = arith.constant 0 : index
    %c0_7 = arith.constant 0 : index
    %c1_8 = arith.constant 1 : index
    %c0_9 = arith.constant 0 : index
    %4 = vector.load %arg1[%c0_6, %c0_7, %c1_8, %c0_9] : memref<1x4x33x16xf32, #tpu.memory_space<vmem>>, vector<1x1x20x16xf32>
    %5 = vector.shape_cast %4 : vector<1x1x20x16xf32> to vector<20x16xf32>
    %c0_10 = arith.constant 0 : index
    %c1_11 = arith.constant 1 : index
    %c1_12 = arith.constant 1 : index
    %c0_13 = arith.constant 0 : index
    %6 = vector.load %arg1[%c0_10, %c1_11, %c1_12, %c0_13] : memref<1x4x33x16xf32, #tpu.memory_space<vmem>>, vector<1x1x20x16xf32>
    %7 = vector.shape_cast %6 : vector<1x1x20x16xf32> to vector<20x16xf32>
    %c0_14 = arith.constant 0 : index
    %c2 = arith.constant 2 : index
    %c0_15 = arith.constant 0 : index
    %c0_16 = arith.constant 0 : index
    %8 = vector.load %arg1[%c0_14, %c2, %c0_15, %c0_16] : memref<1x4x33x16xf32, #tpu.memory_space<vmem>>, vector<1x1x20x16xf32>
    %9 = vector.shape_cast %8 : vector<1x1x20x16xf32> to vector<20x16xf32>
    %c0_17 = arith.constant 0 : index
    %c3 = arith.constant 3 : index
    %c0_18 = arith.constant 0 : index
    %c0_19 = arith.constant 0 : index
    %10 = vector.load %arg1[%c0_17, %c3, %c0_18, %c0_19] : memref<1x4x33x16xf32, #tpu.memory_space<vmem>>, vector<1x1x20x16xf32>
    %11 = vector.shape_cast %10 : vector<1x1x20x16xf32> to vector<20x16xf32>
    %c0_20 = arith.constant 0 : index
    %c2_21 = arith.constant 2 : index
    %c1_22 = arith.constant 1 : index
    %c0_23 = arith.constant 0 : index
    %12 = vector.load %arg1[%c0_20, %c2_21, %c1_22, %c0_23] : memref<1x4x33x16xf32, #tpu.memory_space<vmem>>, vector<1x1x20x16xf32>
    %13 = vector.shape_cast %12 : vector<1x1x20x16xf32> to vector<20x16xf32>
    %c0_24 = arith.constant 0 : index
    %c3_25 = arith.constant 3 : index
    %c1_26 = arith.constant 1 : index
    %c0_27 = arith.constant 0 : index
    %14 = vector.load %arg1[%c0_24, %c3_25, %c1_26, %c0_27] : memref<1x4x33x16xf32, #tpu.memory_space<vmem>>, vector<1x1x20x16xf32>
    %15 = vector.shape_cast %14 : vector<1x1x20x16xf32> to vector<20x16xf32>
    %c0_28 = arith.constant 0 : index
    %c0_29 = arith.constant 0 : index
    %c5 = arith.constant 5 : index
    %c0_30 = arith.constant 0 : index
    %16 = vector.load %arg1[%c0_28, %c0_29, %c5, %c0_30] : memref<1x4x33x16xf32, #tpu.memory_space<vmem>>, vector<1x1x20x16xf32>
    %17 = vector.shape_cast %16 : vector<1x1x20x16xf32> to vector<20x16xf32>
    %c0_31 = arith.constant 0 : index
    %c1_32 = arith.constant 1 : index
    %c5_33 = arith.constant 5 : index
    %c0_34 = arith.constant 0 : index
    %18 = vector.load %arg1[%c0_31, %c1_32, %c5_33, %c0_34] : memref<1x4x33x16xf32, #tpu.memory_space<vmem>>, vector<1x1x20x16xf32>
    %19 = vector.shape_cast %18 : vector<1x1x20x16xf32> to vector<20x16xf32>
    %c0_35 = arith.constant 0 : index
    %c0_36 = arith.constant 0 : index
    %c6 = arith.constant 6 : index
    %c0_37 = arith.constant 0 : index
    %20 = vector.load %arg1[%c0_35, %c0_36, %c6, %c0_37] : memref<1x4x33x16xf32, #tpu.memory_space<vmem>>, vector<1x1x20x16xf32>
    %21 = vector.shape_cast %20 : vector<1x1x20x16xf32> to vector<20x16xf32>
    %c0_38 = arith.constant 0 : index
    %c1_39 = arith.constant 1 : index
    %c6_40 = arith.constant 6 : index
    %c0_41 = arith.constant 0 : index
    %22 = vector.load %arg1[%c0_38, %c1_39, %c6_40, %c0_41] : memref<1x4x33x16xf32, #tpu.memory_space<vmem>>, vector<1x1x20x16xf32>
    %23 = vector.shape_cast %22 : vector<1x1x20x16xf32> to vector<20x16xf32>
    %c0_42 = arith.constant 0 : index
    %c2_43 = arith.constant 2 : index
    %c5_44 = arith.constant 5 : index
    %c0_45 = arith.constant 0 : index
    %24 = vector.load %arg1[%c0_42, %c2_43, %c5_44, %c0_45] : memref<1x4x33x16xf32, #tpu.memory_space<vmem>>, vector<1x1x20x16xf32>
    %25 = vector.shape_cast %24 : vector<1x1x20x16xf32> to vector<20x16xf32>
    %c0_46 = arith.constant 0 : index
    %c3_47 = arith.constant 3 : index
    %c5_48 = arith.constant 5 : index
    %c0_49 = arith.constant 0 : index
    %26 = vector.load %arg1[%c0_46, %c3_47, %c5_48, %c0_49] : memref<1x4x33x16xf32, #tpu.memory_space<vmem>>, vector<1x1x20x16xf32>
    %27 = vector.shape_cast %26 : vector<1x1x20x16xf32> to vector<20x16xf32>
    %c0_50 = arith.constant 0 : index
    %c2_51 = arith.constant 2 : index
    %c6_52 = arith.constant 6 : index
    %c0_53 = arith.constant 0 : index
    %28 = vector.load %arg1[%c0_50, %c2_51, %c6_52, %c0_53] : memref<1x4x33x16xf32, #tpu.memory_space<vmem>>, vector<1x1x20x16xf32>
    %29 = vector.shape_cast %28 : vector<1x1x20x16xf32> to vector<20x16xf32>
    %c0_54 = arith.constant 0 : index
    %c3_55 = arith.constant 3 : index
    %c6_56 = arith.constant 6 : index
    %c0_57 = arith.constant 0 : index
    %30 = vector.load %arg1[%c0_54, %c3_55, %c6_56, %c0_57] : memref<1x4x33x16xf32, #tpu.memory_space<vmem>>, vector<1x1x20x16xf32>
    %31 = vector.shape_cast %30 : vector<1x1x20x16xf32> to vector<20x16xf32>
    %32 = tpu.concatenate %1, %3, %5, %7, %9, %11, %13, %15, %17, %19, %21, %23, %25, %27, %29, %31 in 1 : vector<20x16xf32>, vector<20x16xf32>, vector<20x16xf32>, vector<20x16xf32>, vector<20x16xf32>, vector<20x16xf32>, vector<20x16xf32>, vector<20x16xf32>, vector<20x16xf32>, vector<20x16xf32>, vector<20x16xf32>, vector<20x16xf32>, vector<20x16xf32>, vector<20x16xf32>, vector<20x16xf32>, vector<20x16xf32> -> vector<20x256xf32>
    %33 = arith.truncf %32 : vector<20x256xf32> to vector<20x256xbf16>
    %c0_58 = arith.constant 0 : index
    %c0_59 = arith.constant 0 : index
    %34 = vector.load %arg2[%c0_58, %c0_59] : memref<256x32xbf16, #tpu.memory_space<vmem>>, vector<256x32xbf16>
    %cst = arith.constant dense<0.000000e+00> : vector<20x32xf32>
    %35 = tpu.matmul %33, %34, %cst {dimension_numbers = #tpu.dot_dimension_numbers<[1], [0], [0], [1], [0, 0, 1, 1], [], []>} : vector<20x256xbf16>, vector<256x32xbf16>, vector<20x32xf32> -> vector<20x32xf32>
    %cst_60 = arith.constant 0.000000e+00 : f32
    %36 = vector.broadcast %cst_60 : f32 to vector<20x32xf32>
    %37 = arith.cmpf ogt, %35, %36 : vector<20x32xf32>
    %cst_61 = arith.constant 2.000000e-01 : f32
    %38 = vector.broadcast %cst_61 : f32 to vector<20x32xf32>
    %39 = arith.mulf %38, %35 : vector<20x32xf32>
    %40 = arith.select %37, %35, %39 : vector<20x32xi1>, vector<20x32xf32>
    %c0_62 = arith.constant 0 : index
    %c0_63 = arith.constant 0 : index
    %c0_64 = arith.constant 0 : index
    %41 = vector.load %arg4[%c0_62, %c0_63, %c0_64] : memref<1x20x32xf32, #tpu.memory_space<vmem>>, vector<1x20x32xf32>
    %42 = vector.shape_cast %41 : vector<1x20x32xf32> to vector<20x32xf32>
    %43 = vector.shape_cast %40 : vector<20x32xf32> to vector<1x20x32xf32>
    tpu.vector_store %arg4[%c0_62, %c0_63, %c0_64], %43 {strides = array<i32>} : memref<1x20x32xf32, #tpu.memory_space<vmem>>, vector<1x20x32xf32>,
    %c0_65 = arith.constant 0 : index
    %c0_66 = arith.constant 0 : index
    %44 = vector.load %arg3[%c0_65, %c0_66] : memref<20x1xf32, #tpu.memory_space<vmem>>, vector<20x1xf32>
    %45 = vector.broadcast %44 : vector<20x1xf32> to vector<20x32xf32>
    %46 = arith.mulf %40, %45 : vector<20x32xf32>
    %cst_67 = arith.constant dense<0.000000e+00> : vector<32xf32>
    %47 = vector.multi_reduction <add>, %46, %cst_67 [0] : vector<20x32xf32> to vector<32xf32>
    %48 = vector.shape_cast %47 : vector<32xf32> to vector<1x32xf32>
    %c0_68 = arith.constant 0 : index
    %c0_69 = arith.constant 0 : index
    %c0_70 = arith.constant 0 : index
    %49 = vector.load %arg5[%c0_68, %c0_69, %c0_70] : memref<1x2x32xf32, #tpu.memory_space<vmem>>, vector<1x1x32xf32>
    %50 = vector.shape_cast %49 : vector<1x1x32xf32> to vector<1x32xf32>
    %51 = vector.shape_cast %48 : vector<1x32xf32> to vector<1x1x32xf32>
    tpu.vector_store %arg5[%c0_68, %c0_69, %c0_70], %51 {strides = array<i32>} : memref<1x2x32xf32, #tpu.memory_space<vmem>>, vector<1x1x32xf32>,
    %52 = arith.mulf %46, %46 : vector<20x32xf32>
    %cst_71 = arith.constant dense<0.000000e+00> : vector<32xf32>
    %53 = vector.multi_reduction <add>, %52, %cst_71 [0] : vector<20x32xf32> to vector<32xf32>
    %54 = vector.shape_cast %53 : vector<32xf32> to vector<1x32xf32>
    %c0_72 = arith.constant 0 : index
    %c1_73 = arith.constant 1 : index
    %c0_74 = arith.constant 0 : index
    %55 = vector.load %arg5[%c0_72, %c1_73, %c0_74] : memref<1x2x32xf32, #tpu.memory_space<vmem>>, vector<1x1x32xf32>
    %56 = vector.shape_cast %55 : vector<1x1x32xf32> to vector<1x32xf32>
    %57 = vector.shape_cast %54 : vector<1x32xf32> to vector<1x1x32xf32>
    tpu.vector_store %arg5[%c0_72, %c1_73, %c0_74], %57 {strides = array<i32>} : memref<1x2x32xf32, #tpu.memory_space<vmem>>, vector<1x1x32xf32>,
    return
  }
  func.func @transform_0(%arg0: i32) -> (i32, i32, i32, i32) {
    %c0_i32 = arith.constant 0 : i32
    %c0_i32_0 = arith.constant 0 : i32
    %c0_i32_1 = arith.constant 0 : i32
    %c0_i32_2 = arith.constant 0 : i32
    return %arg0, %c0_i32, %c0_i32_0, %c0_i32_1 : i32, i32, i32, i32
  }
  func.func @transform_1(%arg0: i32) -> (i32, i32) {
    %c0_i32 = arith.constant 0 : i32
    %c0_i32_0 = arith.constant 0 : i32
    %c0_i32_1 = arith.constant 0 : i32
    return %c0_i32, %c0_i32_0 : i32, i32
  }
  func.func @transform_2(%arg0: i32) -> (i32, i32) {
    %c0_i32 = arith.constant 0 : i32
    %c0_i32_0 = arith.constant 0 : i32
    %c0_i32_1 = arith.constant 0 : i32
    return %c0_i32, %c0_i32_0 : i32, i32
  }
  func.func @transform_3(%arg0: i32) -> (i32, i32, i32) {
    %c0_i32 = arith.constant 0 : i32
    %c0_i32_0 = arith.constant 0 : i32
    %c0_i32_1 = arith.constant 0 : i32
    return %arg0, %c0_i32, %c0_i32_0 : i32, i32, i32
  }
  func.func @transform_4(%arg0: i32) -> (i32, i32, i32) {
    %c0_i32 = arith.constant 0 : i32
    %c0_i32_0 = arith.constant 0 : i32
    %c0_i32_1 = arith.constant 0 : i32
    return %arg0, %c0_i32, %c0_i32_0 : i32, i32, i32
  }
}

module attributes {stable_mosaic.version = 11 : i64} {
  func.func @kernel(%arg0: i32, %arg1: memref<1x1x44x32xf32, #tpu.memory_space<vmem>>, %arg2: memref<512x64xbf16, #tpu.memory_space<vmem>>, %arg3: memref<18x1xf32, #tpu.memory_space<vmem>>, %arg4: memref<1x18x64xf32, #tpu.memory_space<vmem>>, %arg5: memref<1x2x64xf32, #tpu.memory_space<vmem>>) attributes {dimension_semantics = [#tpu.dimension_semantics<parallel>], iteration_bounds = array<i64: 2>, scalar_prefetch = 0 : i64, scratch_operands = 0 : i64, tpu.core_type = #tpu.core_type<tc>, window_params = [{transform_indices = @transform_0, window_bounds = array<i64: 1, 1, 44, 32>}, {pipeline_mode = #tpu.pipeline_mode<synchronous>, transform_indices = @transform_1, window_bounds = array<i64: 512, 64>}, {pipeline_mode = #tpu.pipeline_mode<synchronous>, transform_indices = @transform_2, window_bounds = array<i64: 18, 1>}, {transform_indices = @transform_3, window_bounds = array<i64: 1, 18, 64>}, {transform_indices = @transform_4, window_bounds = array<i64: 1, 2, 64>}]} {
    %c0 = arith.constant 0 : index
    %c0_0 = arith.constant 0 : index
    %c0_1 = arith.constant 0 : index
    %c0_2 = arith.constant 0 : index
    %0 = vector.load %arg1[%c0, %c0_0, %c0_1, %c0_2] : memref<1x1x44x32xf32, #tpu.memory_space<vmem>>, vector<1x1x18x32xf32>
    %1 = vector.shape_cast %0 : vector<1x1x18x32xf32> to vector<18x32xf32>
    %c0_3 = arith.constant 0 : index
    %c0_4 = arith.constant 0 : index
    %c1 = arith.constant 1 : index
    %c0_5 = arith.constant 0 : index
    %2 = vector.load %arg1[%c0_3, %c0_4, %c1, %c0_5] : memref<1x1x44x32xf32, #tpu.memory_space<vmem>>, vector<1x1x18x32xf32>
    %3 = vector.shape_cast %2 : vector<1x1x18x32xf32> to vector<18x32xf32>
    %c0_6 = arith.constant 0 : index
    %c0_7 = arith.constant 0 : index
    %c2 = arith.constant 2 : index
    %c0_8 = arith.constant 0 : index
    %4 = vector.load %arg1[%c0_6, %c0_7, %c2, %c0_8] : memref<1x1x44x32xf32, #tpu.memory_space<vmem>>, vector<1x1x18x32xf32>
    %5 = vector.shape_cast %4 : vector<1x1x18x32xf32> to vector<18x32xf32>
    %c0_9 = arith.constant 0 : index
    %c0_10 = arith.constant 0 : index
    %c3 = arith.constant 3 : index
    %c0_11 = arith.constant 0 : index
    %6 = vector.load %arg1[%c0_9, %c0_10, %c3, %c0_11] : memref<1x1x44x32xf32, #tpu.memory_space<vmem>>, vector<1x1x18x32xf32>
    %7 = vector.shape_cast %6 : vector<1x1x18x32xf32> to vector<18x32xf32>
    %c0_12 = arith.constant 0 : index
    %c0_13 = arith.constant 0 : index
    %c6 = arith.constant 6 : index
    %c0_14 = arith.constant 0 : index
    %8 = vector.load %arg1[%c0_12, %c0_13, %c6, %c0_14] : memref<1x1x44x32xf32, #tpu.memory_space<vmem>>, vector<1x1x18x32xf32>
    %9 = vector.shape_cast %8 : vector<1x1x18x32xf32> to vector<18x32xf32>
    %c0_15 = arith.constant 0 : index
    %c0_16 = arith.constant 0 : index
    %c7 = arith.constant 7 : index
    %c0_17 = arith.constant 0 : index
    %10 = vector.load %arg1[%c0_15, %c0_16, %c7, %c0_17] : memref<1x1x44x32xf32, #tpu.memory_space<vmem>>, vector<1x1x18x32xf32>
    %11 = vector.shape_cast %10 : vector<1x1x18x32xf32> to vector<18x32xf32>
    %c0_18 = arith.constant 0 : index
    %c0_19 = arith.constant 0 : index
    %c8 = arith.constant 8 : index
    %c0_20 = arith.constant 0 : index
    %12 = vector.load %arg1[%c0_18, %c0_19, %c8, %c0_20] : memref<1x1x44x32xf32, #tpu.memory_space<vmem>>, vector<1x1x18x32xf32>
    %13 = vector.shape_cast %12 : vector<1x1x18x32xf32> to vector<18x32xf32>
    %c0_21 = arith.constant 0 : index
    %c0_22 = arith.constant 0 : index
    %c9 = arith.constant 9 : index
    %c0_23 = arith.constant 0 : index
    %14 = vector.load %arg1[%c0_21, %c0_22, %c9, %c0_23] : memref<1x1x44x32xf32, #tpu.memory_space<vmem>>, vector<1x1x18x32xf32>
    %15 = vector.shape_cast %14 : vector<1x1x18x32xf32> to vector<18x32xf32>
    %c0_24 = arith.constant 0 : index
    %c0_25 = arith.constant 0 : index
    %c12 = arith.constant 12 : index
    %c0_26 = arith.constant 0 : index
    %16 = vector.load %arg1[%c0_24, %c0_25, %c12, %c0_26] : memref<1x1x44x32xf32, #tpu.memory_space<vmem>>, vector<1x1x18x32xf32>
    %17 = vector.shape_cast %16 : vector<1x1x18x32xf32> to vector<18x32xf32>
    %c0_27 = arith.constant 0 : index
    %c0_28 = arith.constant 0 : index
    %c13 = arith.constant 13 : index
    %c0_29 = arith.constant 0 : index
    %18 = vector.load %arg1[%c0_27, %c0_28, %c13, %c0_29] : memref<1x1x44x32xf32, #tpu.memory_space<vmem>>, vector<1x1x18x32xf32>
    %19 = vector.shape_cast %18 : vector<1x1x18x32xf32> to vector<18x32xf32>
    %c0_30 = arith.constant 0 : index
    %c0_31 = arith.constant 0 : index
    %c14 = arith.constant 14 : index
    %c0_32 = arith.constant 0 : index
    %20 = vector.load %arg1[%c0_30, %c0_31, %c14, %c0_32] : memref<1x1x44x32xf32, #tpu.memory_space<vmem>>, vector<1x1x18x32xf32>
    %21 = vector.shape_cast %20 : vector<1x1x18x32xf32> to vector<18x32xf32>
    %c0_33 = arith.constant 0 : index
    %c0_34 = arith.constant 0 : index
    %c15 = arith.constant 15 : index
    %c0_35 = arith.constant 0 : index
    %22 = vector.load %arg1[%c0_33, %c0_34, %c15, %c0_35] : memref<1x1x44x32xf32, #tpu.memory_space<vmem>>, vector<1x1x18x32xf32>
    %23 = vector.shape_cast %22 : vector<1x1x18x32xf32> to vector<18x32xf32>
    %c0_36 = arith.constant 0 : index
    %c0_37 = arith.constant 0 : index
    %c18 = arith.constant 18 : index
    %c0_38 = arith.constant 0 : index
    %24 = vector.load %arg1[%c0_36, %c0_37, %c18, %c0_38] : memref<1x1x44x32xf32, #tpu.memory_space<vmem>>, vector<1x1x18x32xf32>
    %25 = vector.shape_cast %24 : vector<1x1x18x32xf32> to vector<18x32xf32>
    %c0_39 = arith.constant 0 : index
    %c0_40 = arith.constant 0 : index
    %c19 = arith.constant 19 : index
    %c0_41 = arith.constant 0 : index
    %26 = vector.load %arg1[%c0_39, %c0_40, %c19, %c0_41] : memref<1x1x44x32xf32, #tpu.memory_space<vmem>>, vector<1x1x18x32xf32>
    %27 = vector.shape_cast %26 : vector<1x1x18x32xf32> to vector<18x32xf32>
    %c0_42 = arith.constant 0 : index
    %c0_43 = arith.constant 0 : index
    %c20 = arith.constant 20 : index
    %c0_44 = arith.constant 0 : index
    %28 = vector.load %arg1[%c0_42, %c0_43, %c20, %c0_44] : memref<1x1x44x32xf32, #tpu.memory_space<vmem>>, vector<1x1x18x32xf32>
    %29 = vector.shape_cast %28 : vector<1x1x18x32xf32> to vector<18x32xf32>
    %c0_45 = arith.constant 0 : index
    %c0_46 = arith.constant 0 : index
    %c21 = arith.constant 21 : index
    %c0_47 = arith.constant 0 : index
    %30 = vector.load %arg1[%c0_45, %c0_46, %c21, %c0_47] : memref<1x1x44x32xf32, #tpu.memory_space<vmem>>, vector<1x1x18x32xf32>
    %31 = vector.shape_cast %30 : vector<1x1x18x32xf32> to vector<18x32xf32>
    %32 = tpu.concatenate %1, %3, %5, %7, %9, %11, %13, %15, %17, %19, %21, %23, %25, %27, %29, %31 in 1 : vector<18x32xf32>, vector<18x32xf32>, vector<18x32xf32>, vector<18x32xf32>, vector<18x32xf32>, vector<18x32xf32>, vector<18x32xf32>, vector<18x32xf32>, vector<18x32xf32>, vector<18x32xf32>, vector<18x32xf32>, vector<18x32xf32>, vector<18x32xf32>, vector<18x32xf32>, vector<18x32xf32>, vector<18x32xf32> -> vector<18x512xf32>
    %33 = arith.truncf %32 : vector<18x512xf32> to vector<18x512xbf16>
    %c0_48 = arith.constant 0 : index
    %c0_49 = arith.constant 0 : index
    %34 = vector.load %arg2[%c0_48, %c0_49] : memref<512x64xbf16, #tpu.memory_space<vmem>>, vector<512x64xbf16>
    %cst = arith.constant dense<0.000000e+00> : vector<18x64xf32>
    %35 = tpu.matmul %33, %34, %cst {dimension_numbers = #tpu.dot_dimension_numbers<[1], [0], [0], [1], [0, 0, 1, 1], [], []>} : vector<18x512xbf16>, vector<512x64xbf16>, vector<18x64xf32> -> vector<18x64xf32>
    %cst_50 = arith.constant 0.000000e+00 : f32
    %36 = vector.broadcast %cst_50 : f32 to vector<18x64xf32>
    %37 = arith.cmpf ogt, %35, %36 : vector<18x64xf32>
    %cst_51 = arith.constant 2.000000e-01 : f32
    %38 = vector.broadcast %cst_51 : f32 to vector<18x64xf32>
    %39 = arith.mulf %38, %35 : vector<18x64xf32>
    %40 = arith.select %37, %35, %39 : vector<18x64xi1>, vector<18x64xf32>
    %c0_52 = arith.constant 0 : index
    %c0_53 = arith.constant 0 : index
    %c0_54 = arith.constant 0 : index
    %41 = vector.load %arg4[%c0_52, %c0_53, %c0_54] : memref<1x18x64xf32, #tpu.memory_space<vmem>>, vector<1x18x64xf32>
    %42 = vector.shape_cast %41 : vector<1x18x64xf32> to vector<18x64xf32>
    %43 = vector.shape_cast %40 : vector<18x64xf32> to vector<1x18x64xf32>
    tpu.vector_store %arg4[%c0_52, %c0_53, %c0_54], %43 {strides = array<i32>} : memref<1x18x64xf32, #tpu.memory_space<vmem>>, vector<1x18x64xf32>,
    %c0_55 = arith.constant 0 : index
    %c0_56 = arith.constant 0 : index
    %44 = vector.load %arg3[%c0_55, %c0_56] : memref<18x1xf32, #tpu.memory_space<vmem>>, vector<18x1xf32>
    %45 = vector.broadcast %44 : vector<18x1xf32> to vector<18x64xf32>
    %46 = arith.mulf %40, %45 : vector<18x64xf32>
    %cst_57 = arith.constant dense<0.000000e+00> : vector<64xf32>
    %47 = vector.multi_reduction <add>, %46, %cst_57 [0] : vector<18x64xf32> to vector<64xf32>
    %48 = vector.shape_cast %47 : vector<64xf32> to vector<1x64xf32>
    %c0_58 = arith.constant 0 : index
    %c0_59 = arith.constant 0 : index
    %c0_60 = arith.constant 0 : index
    %49 = vector.load %arg5[%c0_58, %c0_59, %c0_60] : memref<1x2x64xf32, #tpu.memory_space<vmem>>, vector<1x1x64xf32>
    %50 = vector.shape_cast %49 : vector<1x1x64xf32> to vector<1x64xf32>
    %51 = vector.shape_cast %48 : vector<1x64xf32> to vector<1x1x64xf32>
    tpu.vector_store %arg5[%c0_58, %c0_59, %c0_60], %51 {strides = array<i32>} : memref<1x2x64xf32, #tpu.memory_space<vmem>>, vector<1x1x64xf32>,
    %52 = arith.mulf %46, %46 : vector<18x64xf32>
    %cst_61 = arith.constant dense<0.000000e+00> : vector<64xf32>
    %53 = vector.multi_reduction <add>, %52, %cst_61 [0] : vector<18x64xf32> to vector<64xf32>
    %54 = vector.shape_cast %53 : vector<64xf32> to vector<1x64xf32>
    %c0_62 = arith.constant 0 : index
    %c1_63 = arith.constant 1 : index
    %c0_64 = arith.constant 0 : index
    %55 = vector.load %arg5[%c0_62, %c1_63, %c0_64] : memref<1x2x64xf32, #tpu.memory_space<vmem>>, vector<1x1x64xf32>
    %56 = vector.shape_cast %55 : vector<1x1x64xf32> to vector<1x64xf32>
    %57 = vector.shape_cast %54 : vector<1x64xf32> to vector<1x1x64xf32>
    tpu.vector_store %arg5[%c0_62, %c1_63, %c0_64], %57 {strides = array<i32>} : memref<1x2x64xf32, #tpu.memory_space<vmem>>, vector<1x1x64xf32>,
    return
  }
  func.func @transform_0(%arg0: i32) -> (i32, i32, i32, i32) {
    %c0_i32 = arith.constant 0 : i32
    %c0_i32_0 = arith.constant 0 : i32
    %c0_i32_1 = arith.constant 0 : i32
    %c0_i32_2 = arith.constant 0 : i32
    return %arg0, %c0_i32, %c0_i32_0, %c0_i32_1 : i32, i32, i32, i32
  }
  func.func @transform_1(%arg0: i32) -> (i32, i32) {
    %c0_i32 = arith.constant 0 : i32
    %c0_i32_0 = arith.constant 0 : i32
    %c0_i32_1 = arith.constant 0 : i32
    return %c0_i32, %c0_i32_0 : i32, i32
  }
  func.func @transform_2(%arg0: i32) -> (i32, i32) {
    %c0_i32 = arith.constant 0 : i32
    %c0_i32_0 = arith.constant 0 : i32
    %c0_i32_1 = arith.constant 0 : i32
    return %c0_i32, %c0_i32_0 : i32, i32
  }
  func.func @transform_3(%arg0: i32) -> (i32, i32, i32) {
    %c0_i32 = arith.constant 0 : i32
    %c0_i32_0 = arith.constant 0 : i32
    %c0_i32_1 = arith.constant 0 : i32
    return %arg0, %c0_i32, %c0_i32_0 : i32, i32, i32
  }
  func.func @transform_4(%arg0: i32) -> (i32, i32, i32) {
    %c0_i32 = arith.constant 0 : i32
    %c0_i32_0 = arith.constant 0 : i32
    %c0_i32_1 = arith.constant 0 : i32
    return %arg0, %c0_i32, %c0_i32_0 : i32, i32, i32
  }
}

module attributes {stable_mosaic.version = 11 : i64} {
  func.func @kernel(%arg0: i32, %arg1: memref<1x1x33x64xf32, #tpu.memory_space<vmem>>, %arg2: memref<1024x1xbf16, #tpu.memory_space<vmem>>, %arg3: memref<1x1xf32, #tpu.memory_space<vmem>>, %arg4: memref<1x10x1xf32, #tpu.memory_space<vmem>>) attributes {dimension_semantics = [#tpu.dimension_semantics<parallel>], iteration_bounds = array<i64: 2>, scalar_prefetch = 0 : i64, scratch_operands = 0 : i64, tpu.core_type = #tpu.core_type<tc>, window_params = [{transform_indices = @transform_0, window_bounds = array<i64: 1, 1, 33, 64>}, {pipeline_mode = #tpu.pipeline_mode<synchronous>, transform_indices = @transform_1, window_bounds = array<i64: 1024, 1>}, {pipeline_mode = #tpu.pipeline_mode<synchronous>, transform_indices = @transform_2, window_bounds = array<i64: 1, 1>}, {transform_indices = @transform_3, window_bounds = array<i64: 1, 10, 1>}]} {
    %c0 = arith.constant 0 : index
    %c0_0 = arith.constant 0 : index
    %c0_1 = arith.constant 0 : index
    %c0_2 = arith.constant 0 : index
    %0 = vector.load %arg1[%c0, %c0_0, %c0_1, %c0_2] : memref<1x1x33x64xf32, #tpu.memory_space<vmem>>, vector<1x1x10x64xf32>
    %1 = vector.shape_cast %0 : vector<1x1x10x64xf32> to vector<10x64xf32>
    %c0_3 = arith.constant 0 : index
    %c0_4 = arith.constant 0 : index
    %c1 = arith.constant 1 : index
    %c0_5 = arith.constant 0 : index
    %2 = vector.load %arg1[%c0_3, %c0_4, %c1, %c0_5] : memref<1x1x33x64xf32, #tpu.memory_space<vmem>>, vector<1x1x10x64xf32>
    %3 = vector.shape_cast %2 : vector<1x1x10x64xf32> to vector<10x64xf32>
    %c0_6 = arith.constant 0 : index
    %c0_7 = arith.constant 0 : index
    %c2 = arith.constant 2 : index
    %c0_8 = arith.constant 0 : index
    %4 = vector.load %arg1[%c0_6, %c0_7, %c2, %c0_8] : memref<1x1x33x64xf32, #tpu.memory_space<vmem>>, vector<1x1x10x64xf32>
    %5 = vector.shape_cast %4 : vector<1x1x10x64xf32> to vector<10x64xf32>
    %c0_9 = arith.constant 0 : index
    %c0_10 = arith.constant 0 : index
    %c3 = arith.constant 3 : index
    %c0_11 = arith.constant 0 : index
    %6 = vector.load %arg1[%c0_9, %c0_10, %c3, %c0_11] : memref<1x1x33x64xf32, #tpu.memory_space<vmem>>, vector<1x1x10x64xf32>
    %7 = vector.shape_cast %6 : vector<1x1x10x64xf32> to vector<10x64xf32>
    %c0_12 = arith.constant 0 : index
    %c0_13 = arith.constant 0 : index
    %c5 = arith.constant 5 : index
    %c0_14 = arith.constant 0 : index
    %8 = vector.load %arg1[%c0_12, %c0_13, %c5, %c0_14] : memref<1x1x33x64xf32, #tpu.memory_space<vmem>>, vector<1x1x10x64xf32>
    %9 = vector.shape_cast %8 : vector<1x1x10x64xf32> to vector<10x64xf32>
    %c0_15 = arith.constant 0 : index
    %c0_16 = arith.constant 0 : index
    %c6 = arith.constant 6 : index
    %c0_17 = arith.constant 0 : index
    %10 = vector.load %arg1[%c0_15, %c0_16, %c6, %c0_17] : memref<1x1x33x64xf32, #tpu.memory_space<vmem>>, vector<1x1x10x64xf32>
    %11 = vector.shape_cast %10 : vector<1x1x10x64xf32> to vector<10x64xf32>
    %c0_18 = arith.constant 0 : index
    %c0_19 = arith.constant 0 : index
    %c7 = arith.constant 7 : index
    %c0_20 = arith.constant 0 : index
    %12 = vector.load %arg1[%c0_18, %c0_19, %c7, %c0_20] : memref<1x1x33x64xf32, #tpu.memory_space<vmem>>, vector<1x1x10x64xf32>
    %13 = vector.shape_cast %12 : vector<1x1x10x64xf32> to vector<10x64xf32>
    %c0_21 = arith.constant 0 : index
    %c0_22 = arith.constant 0 : index
    %c8 = arith.constant 8 : index
    %c0_23 = arith.constant 0 : index
    %14 = vector.load %arg1[%c0_21, %c0_22, %c8, %c0_23] : memref<1x1x33x64xf32, #tpu.memory_space<vmem>>, vector<1x1x10x64xf32>
    %15 = vector.shape_cast %14 : vector<1x1x10x64xf32> to vector<10x64xf32>
    %c0_24 = arith.constant 0 : index
    %c0_25 = arith.constant 0 : index
    %c10 = arith.constant 10 : index
    %c0_26 = arith.constant 0 : index
    %16 = vector.load %arg1[%c0_24, %c0_25, %c10, %c0_26] : memref<1x1x33x64xf32, #tpu.memory_space<vmem>>, vector<1x1x10x64xf32>
    %17 = vector.shape_cast %16 : vector<1x1x10x64xf32> to vector<10x64xf32>
    %c0_27 = arith.constant 0 : index
    %c0_28 = arith.constant 0 : index
    %c11 = arith.constant 11 : index
    %c0_29 = arith.constant 0 : index
    %18 = vector.load %arg1[%c0_27, %c0_28, %c11, %c0_29] : memref<1x1x33x64xf32, #tpu.memory_space<vmem>>, vector<1x1x10x64xf32>
    %19 = vector.shape_cast %18 : vector<1x1x10x64xf32> to vector<10x64xf32>
    %c0_30 = arith.constant 0 : index
    %c0_31 = arith.constant 0 : index
    %c12 = arith.constant 12 : index
    %c0_32 = arith.constant 0 : index
    %20 = vector.load %arg1[%c0_30, %c0_31, %c12, %c0_32] : memref<1x1x33x64xf32, #tpu.memory_space<vmem>>, vector<1x1x10x64xf32>
    %21 = vector.shape_cast %20 : vector<1x1x10x64xf32> to vector<10x64xf32>
    %c0_33 = arith.constant 0 : index
    %c0_34 = arith.constant 0 : index
    %c13 = arith.constant 13 : index
    %c0_35 = arith.constant 0 : index
    %22 = vector.load %arg1[%c0_33, %c0_34, %c13, %c0_35] : memref<1x1x33x64xf32, #tpu.memory_space<vmem>>, vector<1x1x10x64xf32>
    %23 = vector.shape_cast %22 : vector<1x1x10x64xf32> to vector<10x64xf32>
    %c0_36 = arith.constant 0 : index
    %c0_37 = arith.constant 0 : index
    %c15 = arith.constant 15 : index
    %c0_38 = arith.constant 0 : index
    %24 = vector.load %arg1[%c0_36, %c0_37, %c15, %c0_38] : memref<1x1x33x64xf32, #tpu.memory_space<vmem>>, vector<1x1x10x64xf32>
    %25 = vector.shape_cast %24 : vector<1x1x10x64xf32> to vector<10x64xf32>
    %c0_39 = arith.constant 0 : index
    %c0_40 = arith.constant 0 : index
    %c16 = arith.constant 16 : index
    %c0_41 = arith.constant 0 : index
    %26 = vector.load %arg1[%c0_39, %c0_40, %c16, %c0_41] : memref<1x1x33x64xf32, #tpu.memory_space<vmem>>, vector<1x1x10x64xf32>
    %27 = vector.shape_cast %26 : vector<1x1x10x64xf32> to vector<10x64xf32>
    %c0_42 = arith.constant 0 : index
    %c0_43 = arith.constant 0 : index
    %c17 = arith.constant 17 : index
    %c0_44 = arith.constant 0 : index
    %28 = vector.load %arg1[%c0_42, %c0_43, %c17, %c0_44] : memref<1x1x33x64xf32, #tpu.memory_space<vmem>>, vector<1x1x10x64xf32>
    %29 = vector.shape_cast %28 : vector<1x1x10x64xf32> to vector<10x64xf32>
    %c0_45 = arith.constant 0 : index
    %c0_46 = arith.constant 0 : index
    %c18 = arith.constant 18 : index
    %c0_47 = arith.constant 0 : index
    %30 = vector.load %arg1[%c0_45, %c0_46, %c18, %c0_47] : memref<1x1x33x64xf32, #tpu.memory_space<vmem>>, vector<1x1x10x64xf32>
    %31 = vector.shape_cast %30 : vector<1x1x10x64xf32> to vector<10x64xf32>
    %32 = tpu.concatenate %1, %3, %5, %7, %9, %11, %13, %15, %17, %19, %21, %23, %25, %27, %29, %31 in 1 : vector<10x64xf32>, vector<10x64xf32>, vector<10x64xf32>, vector<10x64xf32>, vector<10x64xf32>, vector<10x64xf32>, vector<10x64xf32>, vector<10x64xf32>, vector<10x64xf32>, vector<10x64xf32>, vector<10x64xf32>, vector<10x64xf32>, vector<10x64xf32>, vector<10x64xf32>, vector<10x64xf32>, vector<10x64xf32> -> vector<10x1024xf32>
    %33 = arith.truncf %32 : vector<10x1024xf32> to vector<10x1024xbf16>
    %c0_48 = arith.constant 0 : index
    %c0_49 = arith.constant 0 : index
    %34 = vector.load %arg2[%c0_48, %c0_49] : memref<1024x1xbf16, #tpu.memory_space<vmem>>, vector<1024x1xbf16>
    %cst = arith.constant dense<0.000000e+00> : vector<10x1xf32>
    %35 = tpu.matmul %33, %34, %cst {dimension_numbers = #tpu.dot_dimension_numbers<[1], [0], [0], [1], [0, 0, 1, 1], [], []>} : vector<10x1024xbf16>, vector<1024x1xbf16>, vector<10x1xf32> -> vector<10x1xf32>
    %c0_50 = arith.constant 0 : index
    %c0_51 = arith.constant 0 : index
    %36 = vector.load %arg3[%c0_50, %c0_51] : memref<1x1xf32, #tpu.memory_space<vmem>>, vector<1x1xf32>
    %37 = vector.broadcast %36 : vector<1x1xf32> to vector<10x1xf32>
    %38 = arith.addf %35, %37 : vector<10x1xf32>
    %39 = arith.negf %38 : vector<10x1xf32>
    %40 = math.exp %39 : vector<10x1xf32>
    %cst_52 = arith.constant 1.000000e+00 : f32
    %41 = vector.broadcast %cst_52 : f32 to vector<10x1xf32>
    %42 = arith.addf %41, %40 : vector<10x1xf32>
    %43 = arith.divf %41, %42 : vector<10x1xf32>
    %c0_53 = arith.constant 0 : index
    %c0_54 = arith.constant 0 : index
    %c0_55 = arith.constant 0 : index
    %44 = vector.load %arg4[%c0_53, %c0_54, %c0_55] : memref<1x10x1xf32, #tpu.memory_space<vmem>>, vector<1x10x1xf32>
    %45 = vector.shape_cast %44 : vector<1x10x1xf32> to vector<10x1xf32>
    %46 = vector.shape_cast %43 : vector<10x1xf32> to vector<1x10x1xf32>
    tpu.vector_store %arg4[%c0_53, %c0_54, %c0_55], %46 {strides = array<i32>} : memref<1x10x1xf32, #tpu.memory_space<vmem>>, vector<1x10x1xf32>,
    return
  }
  func.func @transform_0(%arg0: i32) -> (i32, i32, i32, i32) {
    %c0_i32 = arith.constant 0 : i32
    %c0_i32_0 = arith.constant 0 : i32
    %c0_i32_1 = arith.constant 0 : i32
    %c0_i32_2 = arith.constant 0 : i32
    return %arg0, %c0_i32, %c0_i32_0, %c0_i32_1 : i32, i32, i32, i32
  }
  func.func @transform_1(%arg0: i32) -> (i32, i32) {
    %c0_i32 = arith.constant 0 : i32
    %c0_i32_0 = arith.constant 0 : i32
    %c0_i32_1 = arith.constant 0 : i32
    return %c0_i32, %c0_i32_0 : i32, i32
  }
  func.func @transform_2(%arg0: i32) -> (i32, i32) {
    %c0_i32 = arith.constant 0 : i32
    %c0_i32_0 = arith.constant 0 : i32
    %c0_i32_1 = arith.constant 0 : i32
    return %c0_i32, %c0_i32_0 : i32, i32
  }
  func.func @transform_3(%arg0: i32) -> (i32, i32, i32) {
    %c0_i32 = arith.constant 0 : i32
    %c0_i32_0 = arith.constant 0 : i32
    %c0_i32_1 = arith.constant 0 : i32
    return %arg0, %c0_i32, %c0_i32_0 : i32, i32, i32
  }
}

</mosaic_0001>

<llo_original>
// kernel: discriminator_forward.5
$region0: #{discriminator_forward.5}
  #allocation0 [shape = 'u32[]', space=smem, size = 0x4, offset = 0x4, fixed_abs, tag = 'smem constant byte address 0x4 - core index']
  #allocation1 [shape = 'u32[144,128]{1,0:T(1,128)}', space=vmem, size = 0x12000, scoped, tag = 'internal scratch']
  %s0 = inlined_call_operand.vmem [shape: f32[2,4,297,8], index: 0, kind: input, shape index: {}]
  %s1 = inlined_call_operand.vmem [shape: bf16[128,8], index: 1, kind: input, shape index: {}]
  %s2 = inlined_call_operand.vmem [shape: f32[1,8], index: 2, kind: input, shape index: {}]
  %s3 = inlined_call_operand.vmem [shape: f32[2,272,8], index: 3, kind: output, shape index: {}]
  %s4 = sld [smem:[#allocation0]]
  $region45: #{discriminator_forward.5} parent=0
    _
  %s6 = ssub.s32 1, %s4
  %s7 = scalar_select 0, %s6, %s4
  loop: start=0, step=1, limit=4
  $region2: #{discriminator_forward.5} parent=0 // loop_pre_header
    _
  $region3: #{discriminator_forward.5} parent=0 // loop_header
    %s9 = sphi 0, %s13
    %p10 = scmp.ge.s32.totalorder %s9, 4
    %s19 = sphi 0, %s21
    %s22 = sphi 0, %s19
    %s23 = sphi 0, %s22
    %s39 = sphi 0, %s23
    %s43 = sphi 0, %s43
    %s45 = sphi 0, %s43
    %s46 = sphi 0, %s45
    %s60 = sphi 0, %s46
    %s64 = sphi 0, %s64
    %s66 = sphi 0, %s64
    %s67 = sphi 0, %s66
    %s81 = sphi 0, %s67
    %s87 = sphi 0, %s89
    %s90 = sphi 0, %s87
    %s91 = sphi 0, %s90
    %s107 = sphi 0, %s91
  $region4: #{discriminator_forward.5} parent=0 // loop_header_branch
    %12 = sbr.rel (%p10) target = $region8
  $region5: #{discriminator_forward.5} parent=0 // loop_body
    %s14 = ssub.s32 %s9, 1
    %s15 = ssub.s32 %s9, 2
    %s16 = sadd.s32 %s9, 1
    %s17 = ssub.s32 %s9, %s16
    %p18 = scmp.eq.s32.totalorder %s17, 0
    %s20 = sadd.s32 %s19, 1
    %s21 = scalar_select %p18, %s19, %s20
    %p24 = pneg %p18
    %p25 = scmp.eq.s32.totalorder %s9, 1
    %p26 = por %p24, %p25
    %p27 = scmp.ne.s32.totalorder %s19, %s22
    %p28 = scmp.eq.s32.totalorder %s9, 0
    %p29 = por %p27, %p28
    %p30 = scmp.ne.s32.totalorder %s19, %s22
    %p31 = scmp.eq.s32.totalorder %s14, 1
    %p32 = por %p30, %p31
    %p33 = scmp.ne.s32.totalorder %s22, %s23
    %p34 = scmp.eq.s32.totalorder %s14, 0
    %p35 = por %p33, %p34
    %p36 = scmp.ne.s32.totalorder %s22, %s23
    %p37 = scmp.eq.s32.totalorder %s15, 1
    %p38 = por %p36, %p37
    %p40 = scmp.ne.s32.totalorder %s23, %s39
    %p41 = scmp.eq.s32.totalorder %s15, 0
    %p42 = por %p40, %p41
    %s44 = sadd.s32 %s43, 1
    %p47 = scmp.eq.s32.totalorder %s9, 1
    %p48 = scmp.ne.s32.totalorder %s43, %s45
    %p49 = scmp.eq.s32.totalorder %s9, 0
    %p50 = por %p48, %p49
    %p51 = scmp.ne.s32.totalorder %s43, %s45
    %p52 = scmp.eq.s32.totalorder %s14, 1
    %p53 = por %p51, %p52
    %p54 = scmp.ne.s32.totalorder %s45, %s46
    %p55 = scmp.eq.s32.totalorder %s14, 0
    %p56 = por %p54, %p55
    %p57 = scmp.ne.s32.totalorder %s45, %s46
    %p58 = scmp.eq.s32.totalorder %s15, 1
    %p59 = por %p57, %p58
    %p61 = scmp.ne.s32.totalorder %s46, %s60
    %p62 = scmp.eq.s32.totalorder %s15, 0
    %p63 = por %p61, %p62
    %s65 = sadd.s32 %s64, 1
    %p68 = scmp.eq.s32.totalorder %s9, 1
    %p69 = scmp.ne.s32.totalorder %s64, %s66
    %p70 = scmp.eq.s32.totalorder %s9, 0
    %p71 = por %p69, %p70
    %p72 = scmp.ne.s32.totalorder %s64, %s66
    %p73 = scmp.eq.s32.totalorder %s14, 1
    %p74 = por %p72, %p73
    %p75 = scmp.ne.s32.totalorder %s66, %s67
    %p76 = scmp.eq.s32.totalorder %s14, 0
    %p77 = por %p75, %p76
    %p78 = scmp.ne.s32.totalorder %s66, %s67
    %p79 = scmp.eq.s32.totalorder %s15, 1
    %p80 = por %p78, %p79
    %p82 = scmp.ne.s32.totalorder %s67, %s81
    %p83 = scmp.eq.s32.totalorder %s15, 0
    %p84 = por %p82, %p83
    %s85 = ssub.s32 %s9, %s16
    %p86 = scmp.eq.s32.totalorder %s85, 0
    %s88 = sadd.s32 %s87, 1
    %s89 = scalar_select %p86, %s87, %s88
    %p92 = pneg %p86
    %p93 = scmp.eq.s32.totalorder %s9, 1
    %p94 = por %p92, %p93
    %p95 = scmp.ne.s32.totalorder %s87, %s90
    %p96 = scmp.eq.s32.totalorder %s9, 0
    %p97 = por %p95, %p96
    %p98 = scmp.ne.s32.totalorder %s87, %s90
    %p99 = scmp.eq.s32.totalorder %s14, 1
    %p100 = por %p98, %p99
    %p101 = scmp.ne.s32.totalorder %s90, %s91
    %p102 = scmp.eq.s32.totalorder %s14, 0
    %p103 = por %p101, %p102
    %p104 = scmp.ne.s32.totalorder %s90, %s91
    %p105 = scmp.eq.s32.totalorder %s15, 1
    %p106 = por %p104, %p105
    %p108 = scmp.ne.s32.totalorder %s91, %s107
    %p109 = scmp.eq.s32.totalorder %s15, 0
    %p110 = por %p108, %p109
    %p111 = scmp.le.s32.totalorder 1, %s9
    %p112 = scmp.lt.s32.totalorder %s9, 3
    %p113 = pnand %p111, %p112
    %p114 = pneg %p113
    // Predicated region
    $region9: #{discriminator_forward.5} parent=5 // pred_check
      _
    $region10: #{discriminator_forward.5} parent=5 // pred_check_branch
      %116 = sbr.rel (%p113) target = $region12
    $region11: #{discriminator_forward.5} parent=5 // pred_region
      %s117 = ssub.s32 %s9, 1
      // Predicated region
      $region13: #{discriminator_forward.5} parent=11 // pred_check
        %p118 = pneg %p56
      $region14: #{discriminator_forward.5} parent=11 // pred_check_branch
        %120 = sbr.rel (%p118) target = $region16
      $region15: #{discriminator_forward.5} parent=11 // pred_region
        _
      $region16: #{discriminator_forward.5} parent=11 // pred_fallthru
        _
      // Predicated region
      $region17: #{discriminator_forward.5} parent=11 // pred_check
        %p121 = pneg %p77
      $region18: #{discriminator_forward.5} parent=11 // pred_check_branch
        %123 = sbr.rel (%p121) target = $region20
      $region19: #{discriminator_forward.5} parent=11 // pred_region
        _
      $region20: #{discriminator_forward.5} parent=11 // pred_fallthru
        _
    $region12: #{discriminator_forward.5} parent=5 // pred_fallthru
      _
    %p124 = scmp.lt.s32.totalorder %s9, 2
    // Predicated region
    $region21: #{discriminator_forward.5} parent=5 // pred_check
      %p125 = pneg %p124
    $region22: #{discriminator_forward.5} parent=5 // pred_check_branch
      %127 = sbr.rel (%p125) target = $region24
    $region23: #{discriminator_forward.5} parent=5 // pred_region
      // Predicated region
      $region25: #{discriminator_forward.5} parent=23 // pred_check
        %p128 = pneg %p29
      $region26: #{discriminator_forward.5} parent=23 // pred_check_branch
        %130 = sbr.rel (%p128) target = $region28
      $region27: #{discriminator_forward.5} parent=23 // pred_region
        %p131 = scmp.lt.s32.totalorder %s9, 1
        %s132 = scalar_select %p131, %s9, 1
        %s133 = smul.addr %s132, 152
        %s134 = smul.addr %s133, 8
        %s135 = scalar_lea.vmem %s0, %s134
      $region28: #{discriminator_forward.5} parent=23 // pred_fallthru
        _
    $region24: #{discriminator_forward.5} parent=5 // pred_fallthru
      _
    %p136 = scmp.le.s32.totalorder 1, %s9
    %p137 = scmp.lt.s32.totalorder %s9, 3
    %p138 = pnand %p136, %p137
    %p139 = pneg %p138
    // Predicated region
    $region29: #{discriminator_forward.5} parent=5 // pred_check
      _
    $region30: #{discriminator_forward.5} parent=5 // pred_check_branch
      %141 = sbr.rel (%p138) target = $region32
    $region31: #{discriminator_forward.5} parent=5 // pred_region
      %s142 = ssub.s32 %s9, 1
      %p143 = scmp.lt.s32.totalorder %s14, 1
      %s144 = scalar_select %p143, %s14, 1
      %s145 = smul.addr %s144, 152
      %s146 = smul.addr %s145, 8
      %s147 = scalar_lea.vmem %s0, %s146
      %p148 = pneg %p35
      %p149 = pneg %p32
      %p150 = pneg %p56
      %p151 = pneg %p53
      %p152 = pneg %p77
      %p153 = pneg %p74
      %p154 = pneg %p103
      %p155 = pneg %p100
      %p156 = scmp.lt.s32.totalorder %s14, 1
      %s157 = scalar_select %p156, %s14, 1
      %s158 = smul.addr %s157, 34
      %s159 = smul.addr %s158, 8
      %s160 = scalar_lea.vmem %s3, %s159
      %p161 = scmp.lt.s32.totalorder %s14, 1
      %s162 = scalar_select %p161, %s14, 1
      %s163 = smul.addr %s162, 152
      %s164 = smul.addr %s163, 8
      %s165 = scalar_lea.vmem %s0, %s164
      %p166 = scmp.lt.s32.totalorder %s14, 1
      %s167 = scalar_select %p166, %s14, 1
      %s168 = smul.addr %s167, 34
      %s169 = smul.addr %s168, 8
      %s170 = scalar_lea.vmem %s3, %s169
      %v172 = vld [vmem:[%s165] sm:$0xff]
      %v173 = vld [vmem:[%s165 + $0x8] sm:$0xff]
      %v174 = vld [vmem:[%s165 + $0x10] sm:$0xff]
      %v175 = vld [vmem:[%s165 + $0x18] sm:$0xff]
      %v176 = vld [vmem:[%s165 + $0x20] sm:$0xff]
      %v177 = vld [vmem:[%s165 + $0x28] sm:$0xff]
      %v178 = vld [vmem:[%s165 + $0x30] sm:$0xff]
      %v179 = vld [vmem:[%s165 + $0x38] sm:$0xff]
      %v180 = vld [vmem:[%s165 + $0x40] sm:$0xff]
      %v181 = vld [vmem:[%s165 + $0x48] sm:$0xff]
      %v182 = vld [vmem:[%s165 + $0x50] sm:$0xff]
      %v183 = vld [vmem:[%s165 + $0x58] sm:$0xff]
      %v184 = vld [vmem:[%s165 + $0x60] sm:$0xff]
      %v185 = vld [vmem:[%s165 + $0x68] sm:$0xff]
      %v186 = vld [vmem:[%s165 + $0x70] sm:$0xff]
      %v187 = vld [vmem:[%s165 + $0x78] sm:$0xff]
      %v188 = vld [vmem:[%s165 + $0x80] sm:$0xff]
      %v189 = vld [vmem:[%s165 + $0x88] sm:$0xff]
      %v190 = vld [vmem:[%s165 + $0x90] sm:$0xff]
      %v191 = vld [vmem:[%s165 + $0x98] sm:$0xff]
      %v192 = vld [vmem:[%s165 + $0xa0] sm:$0xff]
      %v193 = vld [vmem:[%s165 + $0xa8] sm:$0xff]
      %v194 = vld [vmem:[%s165 + $0xb0] sm:$0xff]
      %v195 = vld [vmem:[%s165 + $0xb8] sm:$0xff]
      %v196 = vld [vmem:[%s165 + $0xc0] sm:$0xff]
      %v197 = vld [vmem:[%s165 + $0xc8] sm:$0xff]
      %v198 = vld [vmem:[%s165 + $0xd0] sm:$0xff]
      %v199 = vld [vmem:[%s165 + $0xd8] sm:$0xff]
      %v200 = vld [vmem:[%s165 + $0xe0] sm:$0xff]
      %v201 = vld [vmem:[%s165 + $0xe8] sm:$0xff]
      %v202 = vld [vmem:[%s165 + $0xf0] sm:$0xff]
      %v203 = vld [vmem:[%s165 + $0xf8] sm:$0xff]
      %v204 = vld [vmem:[%s165 + $0x100] sm:$0xff]
      %v205 = vld [vmem:[%s165 + $0x108] sm:$0xff]
      %s206 = scalar_lea.vmem %s165, 304
      %v207 = vld [vmem:[%s206] sm:$0xff]
      %v208 = vld [vmem:[%s206 + $0x8] sm:$0xff]
      %v209 = vld [vmem:[%s206 + $0x10] sm:$0xff]
      %v210 = vld [vmem:[%s206 + $0x18] sm:$0xff]
      %v211 = vld [vmem:[%s206 + $0x20] sm:$0xff]
      %v212 = vld [vmem:[%s206 + $0x28] sm:$0xff]
      %v213 = vld [vmem:[%s206 + $0x30] sm:$0xff]
      %v214 = vld [vmem:[%s206 + $0x38] sm:$0xff]
      %v215 = vld [vmem:[%s206 + $0x40] sm:$0xff]
      %v216 = vld [vmem:[%s206 + $0x48] sm:$0xff]
      %v217 = vld [vmem:[%s206 + $0x50] sm:$0xff]
      %v218 = vld [vmem:[%s206 + $0x58] sm:$0xff]
      %v219 = vld [vmem:[%s206 + $0x60] sm:$0xff]
      %v220 = vld [vmem:[%s206 + $0x68] sm:$0xff]
      %v221 = vld [vmem:[%s206 + $0x70] sm:$0xff]
      %v222 = vld [vmem:[%s206 + $0x78] sm:$0xff]
      %v223 = vld [vmem:[%s206 + $0x80] sm:$0xff]
      %v224 = vld [vmem:[%s206 + $0x88] sm:$0xff]
      %v225 = vld [vmem:[%s206 + $0x90] sm:$0xff]
      %v226 = vld [vmem:[%s206 + $0x98] sm:$0xff]
      %v227 = vld [vmem:[%s206 + $0xa0] sm:$0xff]
      %v228 = vld [vmem:[%s206 + $0xa8] sm:$0xff]
      %v229 = vld [vmem:[%s206 + $0xb0] sm:$0xff]
      %v230 = vld [vmem:[%s206 + $0xb8] sm:$0xff]
      %v231 = vld [vmem:[%s206 + $0xc0] sm:$0xff]
      %v232 = vld [vmem:[%s206 + $0xc8] sm:$0xff]
      %v233 = vld [vmem:[%s206 + $0xd0] sm:$0xff]
      %v234 = vld [vmem:[%s206 + $0xd8] sm:$0xff]
      %v235 = vld [vmem:[%s206 + $0xe0] sm:$0xff]
      %v236 = vld [vmem:[%s206 + $0xe8] sm:$0xff]
      %v237 = vld [vmem:[%s206 + $0xf0] sm:$0xff]
      %v238 = vld [vmem:[%s206 + $0xf8] sm:$0xff]
      %v239 = vld [vmem:[%s206 + $0x100] sm:$0xff]
      %v240 = vld [vmem:[%s206 + $0x108] sm:$0xff]
      %v241 = vld [vmem:[%s165 + $0x1] sm:$0xff]
      %v242 = vld [vmem:[%s165 + $0x9] sm:$0xff]
      %v243 = vld [vmem:[%s165 + $0x11] sm:$0xff]
      %v244 = vld [vmem:[%s165 + $0x19] sm:$0xff]
      %v245 = vld [vmem:[%s165 + $0x21] sm:$0xff]
      %v246 = vld [vmem:[%s165 + $0x29] sm:$0xff]
      %v247 = vld [vmem:[%s165 + $0x31] sm:$0xff]
      %v248 = vld [vmem:[%s165 + $0x39] sm:$0xff]
      %v249 = vld [vmem:[%s165 + $0x41] sm:$0xff]
      %v250 = vld [vmem:[%s165 + $0x49] sm:$0xff]
      %v251 = vld [vmem:[%s165 + $0x51] sm:$0xff]
      %v252 = vld [vmem:[%s165 + $0x59] sm:$0xff]
      %v253 = vld [vmem:[%s165 + $0x61] sm:$0xff]
      %v254 = vld [vmem:[%s165 + $0x69] sm:$0xff]
      %v255 = vld [vmem:[%s165 + $0x71] sm:$0xff]
      %v256 = vld [vmem:[%s165 + $0x79] sm:$0xff]
      %v257 = vld [vmem:[%s165 + $0x81] sm:$0xff]
      %v258 = vld [vmem:[%s165 + $0x89] sm:$0xff]
      %v259 = vld [vmem:[%s165 + $0x91] sm:$0xff]
      %v260 = vld [vmem:[%s165 + $0x99] sm:$0xff]
      %v261 = vld [vmem:[%s165 + $0xa1] sm:$0xff]
      %v262 = vld [vmem:[%s165 + $0xa9] sm:$0xff]
      %v263 = vld [vmem:[%s165 + $0xb1] sm:$0xff]
      %v264 = vld [vmem:[%s165 + $0xb9] sm:$0xff]
      %v265 = vld [vmem:[%s165 + $0xc1] sm:$0xff]
      %v266 = vld [vmem:[%s165 + $0xc9] sm:$0xff]
      %v267 = vld [vmem:[%s165 + $0xd1] sm:$0xff]
      %v268 = vld [vmem:[%s165 + $0xd9] sm:$0xff]
      %v269 = vld [vmem:[%s165 + $0xe1] sm:$0xff]
      %v270 = vld [vmem:[%s165 + $0xe9] sm:$0xff]
      %v271 = vld [vmem:[%s165 + $0xf1] sm:$0xff]
      %v272 = vld [vmem:[%s165 + $0xf9] sm:$0xff]
      %v273 = vld [vmem:[%s165 + $0x101] sm:$0xff]
      %v274 = vld [vmem:[%s165 + $0x109] sm:$0xff]
      %v275 = vld [vmem:[%s206 + $0x1] sm:$0xff]
      %v276 = vld [vmem:[%s206 + $0x9] sm:$0xff]
      %v277 = vld [vmem:[%s206 + $0x11] sm:$0xff]
      %v278 = vld [vmem:[%s206 + $0x19] sm:$0xff]
      %v279 = vld [vmem:[%s206 + $0x21] sm:$0xff]
      %v280 = vld [vmem:[%s206 + $0x29] sm:$0xff]
      %v281 = vld [vmem:[%s206 + $0x31] sm:$0xff]
      %v282 = vld [vmem:[%s206 + $0x39] sm:$0xff]
      %v283 = vld [vmem:[%s206 + $0x41] sm:$0xff]
      %v284 = vld [vmem:[%s206 + $0x49] sm:$0xff]
      %v285 = vld [vmem:[%s206 + $0x51] sm:$0xff]
      %v286 = vld [vmem:[%s206 + $0x59] sm:$0xff]
      %v287 = vld [vmem:[%s206 + $0x61] sm:$0xff]
      %v288 = vld [vmem:[%s206 + $0x69] sm:$0xff]
      %v289 = vld [vmem:[%s206 + $0x71] sm:$0xff]
      %v290 = vld [vmem:[%s206 + $0x79] sm:$0xff]
      %v291 = vld [vmem:[%s206 + $0x81] sm:$0xff]
      %v292 = vld [vmem:[%s206 + $0x89] sm:$0xff]
      %v293 = vld [vmem:[%s206 + $0x91] sm:$0xff]
      %v294 = vld [vmem:[%s206 + $0x99] sm:$0xff]
      %v295 = vld [vmem:[%s206 + $0xa1] sm:$0xff]
      %v296 = vld [vmem:[%s206 + $0xa9] sm:$0xff]
      %v297 = vld [vmem:[%s206 + $0xb1] sm:$0xff]
      %v298 = vld [vmem:[%s206 + $0xb9] sm:$0xff]
      %v299 = vld [vmem:[%s206 + $0xc1] sm:$0xff]
      %v300 = vld [vmem:[%s206 + $0xc9] sm:$0xff]
      %v301 = vld [vmem:[%s206 + $0xd1] sm:$0xff]
      %v302 = vld [vmem:[%s206 + $0xd9] sm:$0xff]
      %v303 = vld [vmem:[%s206 + $0xe1] sm:$0xff]
      %v304 = vld [vmem:[%s206 + $0xe9] sm:$0xff]
      %v305 = vld [vmem:[%s206 + $0xf1] sm:$0xff]
      %v306 = vld [vmem:[%s206 + $0xf9] sm:$0xff]
      %v307 = vld [vmem:[%s206 + $0x101] sm:$0xff]
      %v308 = vld [vmem:[%s206 + $0x109] sm:$0xff]
      %s309 = scalar_lea.vmem %s165, 608
      %v310 = vld [vmem:[%s309] sm:$0xff]
      %v311 = vld [vmem:[%s309 + $0x8] sm:$0xff]
      %v312 = vld [vmem:[%s309 + $0x10] sm:$0xff]
      %v313 = vld [vmem:[%s309 + $0x18] sm:$0xff]
      %v314 = vld [vmem:[%s309 + $0x20] sm:$0xff]
      %v315 = vld [vmem:[%s309 + $0x28] sm:$0xff]
      %v316 = vld [vmem:[%s309 + $0x30] sm:$0xff]
      %v317 = vld [vmem:[%s309 + $0x38] sm:$0xff]
      %v318 = vld [vmem:[%s309 + $0x40] sm:$0xff]
      %v319 = vld [vmem:[%s309 + $0x48] sm:$0xff]
      %v320 = vld [vmem:[%s309 + $0x50] sm:$0xff]
      %v321 = vld [vmem:[%s309 + $0x58] sm:$0xff]
      %v322 = vld [vmem:[%s309 + $0x60] sm:$0xff]
      %v323 = vld [vmem:[%s309 + $0x68] sm:$0xff]
      %v324 = vld [vmem:[%s309 + $0x70] sm:$0xff]
      %v325 = vld [vmem:[%s309 + $0x78] sm:$0xff]
      %v326 = vld [vmem:[%s309 + $0x80] sm:$0xff]
      %v327 = vld [vmem:[%s309 + $0x88] sm:$0xff]
      %v328 = vld [vmem:[%s309 + $0x90] sm:$0xff]
      %v329 = vld [vmem:[%s309 + $0x98] sm:$0xff]
      %v330 = vld [vmem:[%s309 + $0xa0] sm:$0xff]
      %v331 = vld [vmem:[%s309 + $0xa8] sm:$0xff]
      %v332 = vld [vmem:[%s309 + $0xb0] sm:$0xff]
      %v333 = vld [vmem:[%s309 + $0xb8] sm:$0xff]
      %v334 = vld [vmem:[%s309 + $0xc0] sm:$0xff]
      %v335 = vld [vmem:[%s309 + $0xc8] sm:$0xff]
      %v336 = vld [vmem:[%s309 + $0xd0] sm:$0xff]
      %v337 = vld [vmem:[%s309 + $0xd8] sm:$0xff]
      %v338 = vld [vmem:[%s309 + $0xe0] sm:$0xff]
      %v339 = vld [vmem:[%s309 + $0xe8] sm:$0xff]
      %v340 = vld [vmem:[%s309 + $0xf0] sm:$0xff]
      %v341 = vld [vmem:[%s309 + $0xf8] sm:$0xff]
      %v342 = vld [vmem:[%s309 + $0x100] sm:$0xff]
      %v343 = vld [vmem:[%s309 + $0x108] sm:$0xff]
      %s344 = scalar_lea.vmem %s165, 912
      %v345 = vld [vmem:[%s344] sm:$0xff]
      %v346 = vld [vmem:[%s344 + $0x8] sm:$0xff]
      %v347 = vld [vmem:[%s344 + $0x10] sm:$0xff]
      %v348 = vld [vmem:[%s344 + $0x18] sm:$0xff]
      %v349 = vld [vmem:[%s344 + $0x20] sm:$0xff]
      %v350 = vld [vmem:[%s344 + $0x28] sm:$0xff]
      %v351 = vld [vmem:[%s344 + $0x30] sm:$0xff]
      %v352 = vld [vmem:[%s344 + $0x38] sm:$0xff]
      %v353 = vld [vmem:[%s344 + $0x40] sm:$0xff]
      %v354 = vld [vmem:[%s344 + $0x48] sm:$0xff]
      %v355 = vld [vmem:[%s344 + $0x50] sm:$0xff]
      %v356 = vld [vmem:[%s344 + $0x58] sm:$0xff]
      %v357 = vld [vmem:[%s344 + $0x60] sm:$0xff]
      %v358 = vld [vmem:[%s344 + $0x68] sm:$0xff]
      %v359 = vld [vmem:[%s344 + $0x70] sm:$0xff]
      %v360 = vld [vmem:[%s344 + $0x78] sm:$0xff]
      %v361 = vld [vmem:[%s344 + $0x80] sm:$0xff]
      %v362 = vld [vmem:[%s344 + $0x88] sm:$0xff]
      %v363 = vld [vmem:[%s344 + $0x90] sm:$0xff]
      %v364 = vld [vmem:[%s344 + $0x98] sm:$0xff]
      %v365 = vld [vmem:[%s344 + $0xa0] sm:$0xff]
      %v366 = vld [vmem:[%s344 + $0xa8] sm:$0xff]
      %v367 = vld [vmem:[%s344 + $0xb0] sm:$0xff]
      %v368 = vld [vmem:[%s344 + $0xb8] sm:$0xff]
      %v369 = vld [vmem:[%s344 + $0xc0] sm:$0xff]
      %v370 = vld [vmem:[%s344 + $0xc8] sm:$0xff]
      %v371 = vld [vmem:[%s344 + $0xd0] sm:$0xff]
      %v372 = vld [vmem:[%s344 + $0xd8] sm:$0xff]
      %v373 = vld [vmem:[%s344 + $0xe0] sm:$0xff]
      %v374 = vld [vmem:[%s344 + $0xe8] sm:$0xff]
      %v375 = vld [vmem:[%s344 + $0xf0] sm:$0xff]
      %v376 = vld [vmem:[%s344 + $0xf8] sm:$0xff]
      %v377 = vld [vmem:[%s344 + $0x100] sm:$0xff]
      %v378 = vld [vmem:[%s344 + $0x108] sm:$0xff]
      %v379 = vld [vmem:[%s309 + $0x1] sm:$0xff]
      %v380 = vld [vmem:[%s309 + $0x9] sm:$0xff]
      %v381 = vld [vmem:[%s309 + $0x11] sm:$0xff]
      %v382 = vld [vmem:[%s309 + $0x19] sm:$0xff]
      %v383 = vld [vmem:[%s309 + $0x21] sm:$0xff]
      %v384 = vld [vmem:[%s309 + $0x29] sm:$0xff]
      %v385 = vld [vmem:[%s309 + $0x31] sm:$0xff]
      %v386 = vld [vmem:[%s309 + $0x39] sm:$0xff]
      %v387 = vld [vmem:[%s309 + $0x41] sm:$0xff]
      %v388 = vld [vmem:[%s309 + $0x49] sm:$0xff]
      %v389 = vld [vmem:[%s309 + $0x51] sm:$0xff]
      %v390 = vld [vmem:[%s309 + $0x59] sm:$0xff]
      %v391 = vld [vmem:[%s309 + $0x61] sm:$0xff]
      %v392 = vld [vmem:[%s309 + $0x69] sm:$0xff]
      %v393 = vld [vmem:[%s309 + $0x71] sm:$0xff]
      %v394 = vld [vmem:[%s309 + $0x79] sm:$0xff]
      %v395 = vld [vmem:[%s309 + $0x81] sm:$0xff]
      %v396 = vld [vmem:[%s309 + $0x89] sm:$0xff]
      %v397 = vld [vmem:[%s309 + $0x91] sm:$0xff]
      %v398 = vld [vmem:[%s309 + $0x99] sm:$0xff]
      %v399 = vld [vmem:[%s309 + $0xa1] sm:$0xff]
      %v400 = vld [vmem:[%s309 + $0xa9] sm:$0xff]
      %v401 = vld [vmem:[%s309 + $0xb1] sm:$0xff]
      %v402 = vld [vmem:[%s309 + $0xb9] sm:$0xff]
      %v403 = vld [vmem:[%s309 + $0xc1] sm:$0xff]
      %v404 = vld [vmem:[%s309 + $0xc9] sm:$0xff]
      %v405 = vld [vmem:[%s309 + $0xd1] sm:$0xff]
      %v406 = vld [vmem:[%s309 + $0xd9] sm:$0xff]
      %v407 = vld [vmem:[%s309 + $0xe1] sm:$0xff]
      %v408 = vld [vmem:[%s309 + $0xe9] sm:$0xff]
      %v409 = vld [vmem:[%s309 + $0xf1] sm:$0xff]
      %v410 = vld [vmem:[%s309 + $0xf9] sm:$0xff]
      %v411 = vld [vmem:[%s309 + $0x101] sm:$0xff]
      %v412 = vld [vmem:[%s309 + $0x109] sm:$0xff]
      %v413 = vld [vmem:[%s344 + $0x1] sm:$0xff]
      %v414 = vld [vmem:[%s344 + $0x9] sm:$0xff]
      %v415 = vld [vmem:[%s344 + $0x11] sm:$0xff]
      %v416 = vld [vmem:[%s344 + $0x19] sm:$0xff]
      %v417 = vld [vmem:[%s344 + $0x21] sm:$0xff]
      %v418 = vld [vmem:[%s344 + $0x29] sm:$0xff]
      %v419 = vld [vmem:[%s344 + $0x31] sm:$0xff]
      %v420 = vld [vmem:[%s344 + $0x39] sm:$0xff]
      %v421 = vld [vmem:[%s344 + $0x41] sm:$0xff]
      %v422 = vld [vmem:[%s344 + $0x49] sm:$0xff]
      %v423 = vld [vmem:[%s344 + $0x51] sm:$0xff]
      %v424 = vld [vmem:[%s344 + $0x59] sm:$0xff]
      %v425 = vld [vmem:[%s344 + $0x61] sm:$0xff]
      %v426 = vld [vmem:[%s344 + $0x69] sm:$0xff]
      %v427 = vld [vmem:[%s344 + $0x71] sm:$0xff]
      %v428 = vld [vmem:[%s344 + $0x79] sm:$0xff]
      %v429 = vld [vmem:[%s344 + $0x81] sm:$0xff]
      %v430 = vld [vmem:[%s344 + $0x89] sm:$0xff]
      %v431 = vld [vmem:[%s344 + $0x91] sm:$0xff]
      %v432 = vld [vmem:[%s344 + $0x99] sm:$0xff]
      %v433 = vld [vmem:[%s344 + $0xa1] sm:$0xff]
      %v434 = vld [vmem:[%s344 + $0xa9] sm:$0xff]
      %v435 = vld [vmem:[%s344 + $0xb1] sm:$0xff]
      %v436 = vld [vmem:[%s344 + $0xb9] sm:$0xff]
      %v437 = vld [vmem:[%s344 + $0xc1] sm:$0xff]
      %v438 = vld [vmem:[%s344 + $0xc9] sm:$0xff]
      %v439 = vld [vmem:[%s344 + $0xd1] sm:$0xff]
      %v440 = vld [vmem:[%s344 + $0xd9] sm:$0xff]
      %v441 = vld [vmem:[%s344 + $0xe1] sm:$0xff]
      %v442 = vld [vmem:[%s344 + $0xe9] sm:$0xff]
      %v443 = vld [vmem:[%s344 + $0xf1] sm:$0xff]
      %v444 = vld [vmem:[%s344 + $0xf9] sm:$0xff]
      %v445 = vld [vmem:[%s344 + $0x101] sm:$0xff]
      %v446 = vld [vmem:[%s344 + $0x109] sm:$0xff]
      %v447 = vld [vmem:[%s165 + $0x111] sm:$0xff]
      %v448 = vld [vmem:[%s165 + $0x119] sm:$0xff]
      %v449 = vld [vmem:[%s206 + $0x111] sm:$0xff]
      %v450 = vld [vmem:[%s206 + $0x119] sm:$0xff]
      %v451 = vld [vmem:[%s165 + $0x12] sm:$0xff]
      %v452 = vld [vmem:[%s165 + $0x1a] sm:$0xff]
      %v453 = vld [vmem:[%s165 + $0x22] sm:$0xff]
      %v454 = vld [vmem:[%s165 + $0x2a] sm:$0xff]
      %v455 = vld [vmem:[%s165 + $0x32] sm:$0xff]
      %v456 = vld [vmem:[%s165 + $0x3a] sm:$0xff]
      %v457 = vld [vmem:[%s165 + $0x42] sm:$0xff]
      %v458 = vld [vmem:[%s165 + $0x4a] sm:$0xff]
      %v459 = vld [vmem:[%s165 + $0x52] sm:$0xff]
      %v460 = vld [vmem:[%s165 + $0x5a] sm:$0xff]
      %v461 = vld [vmem:[%s165 + $0x62] sm:$0xff]
      %v462 = vld [vmem:[%s165 + $0x6a] sm:$0xff]
      %v463 = vld [vmem:[%s165 + $0x72] sm:$0xff]
      %v464 = vld [vmem:[%s165 + $0x7a] sm:$0xff]
      %v465 = vld [vmem:[%s165 + $0x82] sm:$0xff]
      %v466 = vld [vmem:[%s165 + $0x8a] sm:$0xff]
      %v467 = vld [vmem:[%s165 + $0x92] sm:$0xff]
      %v468 = vld [vmem:[%s165 + $0x9a] sm:$0xff]
      %v469 = vld [vmem:[%s165 + $0xa2] sm:$0xff]
      %v470 = vld [vmem:[%s165 + $0xaa] sm:$0xff]
      %v471 = vld [vmem:[%s165 + $0xb2] sm:$0xff]
      %v472 = vld [vmem:[%s165 + $0xba] sm:$0xff]
      %v473 = vld [vmem:[%s165 + $0xc2] sm:$0xff]
      %v474 = vld [vmem:[%s165 + $0xca] sm:$0xff]
      %v475 = vld [vmem:[%s165 + $0xd2] sm:$0xff]
      %v476 = vld [vmem:[%s165 + $0xda] sm:$0xff]
      %v477 = vld [vmem:[%s165 + $0xe2] sm:$0xff]
      %v478 = vld [vmem:[%s165 + $0xea] sm:$0xff]
      %v479 = vld [vmem:[%s165 + $0xf2] sm:$0xff]
      %v480 = vld [vmem:[%s165 + $0xfa] sm:$0xff]
      %v481 = vld [vmem:[%s165 + $0x102] sm:$0xff]
      %v482 = vld [vmem:[%s165 + $0x10a] sm:$0xff]
      %v483 = vld [vmem:[%s165 + $0x112] sm:$0xff]
      %v484 = vld [vmem:[%s165 + $0x11a] sm:$0xff]
      %v485 = vld [vmem:[%s206 + $0x12] sm:$0xff]
      %v486 = vld [vmem:[%s206 + $0x1a] sm:$0xff]
      %v487 = vld [vmem:[%s206 + $0x22] sm:$0xff]
      %v488 = vld [vmem:[%s206 + $0x2a] sm:$0xff]
      %v489 = vld [vmem:[%s206 + $0x32] sm:$0xff]
      %v490 = vld [vmem:[%s206 + $0x3a] sm:$0xff]
      %v491 = vld [vmem:[%s206 + $0x42] sm:$0xff]
      %v492 = vld [vmem:[%s206 + $0x4a] sm:$0xff]
      %v493 = vld [vmem:[%s206 + $0x52] sm:$0xff]
      %v494 = vld [vmem:[%s206 + $0x5a] sm:$0xff]
      %v495 = vld [vmem:[%s206 + $0x62] sm:$0xff]
      %v496 = vld [vmem:[%s206 + $0x6a] sm:$0xff]
      %v497 = vld [vmem:[%s206 + $0x72] sm:$0xff]
      %v498 = vld [vmem:[%s206 + $0x7a] sm:$0xff]
      %v499 = vld [vmem:[%s206 + $0x82] sm:$0xff]
      %v500 = vld [vmem:[%s206 + $0x8a] sm:$0xff]
      %v501 = vld [vmem:[%s206 + $0x92] sm:$0xff]
      %v502 = vld [vmem:[%s206 + $0x9a] sm:$0xff]
      %v503 = vld [vmem:[%s206 + $0xa2] sm:$0xff]
      %v504 = vld [vmem:[%s206 + $0xaa] sm:$0xff]
      %v505 = vld [vmem:[%s206 + $0xb2] sm:$0xff]
      %v506 = vld [vmem:[%s206 + $0xba] sm:$0xff]
      %v507 = vld [vmem:[%s206 + $0xc2] sm:$0xff]
      %v508 = vld [vmem:[%s206 + $0xca] sm:$0xff]
      %v509 = vld [vmem:[%s206 + $0xd2] sm:$0xff]
      %v510 = vld [vmem:[%s206 + $0xda] sm:$0xff]
      %v511 = vld [vmem:[%s206 + $0xe2] sm:$0xff]
      %v512 = vld [vmem:[%s206 + $0xea] sm:$0xff]
      %v513 = vld [vmem:[%s206 + $0xf2] sm:$0xff]
      %v514 = vld [vmem:[%s206 + $0xfa] sm:$0xff]
      %v515 = vld [vmem:[%s206 + $0x102] sm:$0xff]
      %v516 = vld [vmem:[%s206 + $0x10a] sm:$0xff]
      %v517 = vld [vmem:[%s206 + $0x112] sm:$0xff]
      %v518 = vld [vmem:[%s206 + $0x11a] sm:$0xff]
      %v519 = vld [vmem:[%s309 + $0x111] sm:$0xff]
      %v520 = vld [vmem:[%s309 + $0x119] sm:$0xff]
      %v521 = vld [vmem:[%s344 + $0x111] sm:$0xff]
      %v522 = vld [vmem:[%s344 + $0x119] sm:$0xff]
      %v523 = vld [vmem:[%s309 + $0x12] sm:$0xff]
      %v524 = vld [vmem:[%s309 + $0x1a] sm:$0xff]
      %v525 = vld [vmem:[%s309 + $0x22] sm:$0xff]
      %v526 = vld [vmem:[%s309 + $0x2a] sm:$0xff]
      %v527 = vld [vmem:[%s309 + $0x32] sm:$0xff]
      %v528 = vld [vmem:[%s309 + $0x3a] sm:$0xff]
      %v529 = vld [vmem:[%s309 + $0x42] sm:$0xff]
      %v530 = vld [vmem:[%s309 + $0x4a] sm:$0xff]
      %v531 = vld [vmem:[%s309 + $0x52] sm:$0xff]
      %v532 = vld [vmem:[%s309 + $0x5a] sm:$0xff]
      %v533 = vld [vmem:[%s309 + $0x62] sm:$0xff]
      %v534 = vld [vmem:[%s309 + $0x6a] sm:$0xff]
      %v535 = vld [vmem:[%s309 + $0x72] sm:$0xff]
      %v536 = vld [vmem:[%s309 + $0x7a] sm:$0xff]
      %v537 = vld [vmem:[%s309 + $0x82] sm:$0xff]
      %v538 = vld [vmem:[%s309 + $0x8a] sm:$0xff]
      %v539 = vld [vmem:[%s309 + $0x92] sm:$0xff]
      %v540 = vld [vmem:[%s309 + $0x9a] sm:$0xff]
      %v541 = vld [vmem:[%s309 + $0xa2] sm:$0xff]
      %v542 = vld [vmem:[%s309 + $0xaa] sm:$0xff]
      %v543 = vld [vmem:[%s309 + $0xb2] sm:$0xff]
      %v544 = vld [vmem:[%s309 + $0xba] sm:$0xff]
      %v545 = vld [vmem:[%s309 + $0xc2] sm:$0xff]
      %v546 = vld [vmem:[%s309 + $0xca] sm:$0xff]
      %v547 = vld [vmem:[%s309 + $0xd2] sm:$0xff]
      %v548 = vld [vmem:[%s309 + $0xda] sm:$0xff]
      %v549 = vld [vmem:[%s309 + $0xe2] sm:$0xff]
      %v550 = vld [vmem:[%s309 + $0xea] sm:$0xff]
      %v551 = vld [vmem:[%s309 + $0xf2] sm:$0xff]
      %v552 = vld [vmem:[%s309 + $0xfa] sm:$0xff]
      %v553 = vld [vmem:[%s309 + $0x102] sm:$0xff]
      %v554 = vld [vmem:[%s309 + $0x10a] sm:$0xff]
      %v555 = vld [vmem:[%s309 + $0x112] sm:$0xff]
      %v556 = vld [vmem:[%s309 + $0x11a] sm:$0xff]
      %v557 = vld [vmem:[%s344 + $0x12] sm:$0xff]
      %v558 = vld [vmem:[%s344 + $0x1a] sm:$0xff]
      %v559 = vld [vmem:[%s344 + $0x22] sm:$0xff]
      %v560 = vld [vmem:[%s344 + $0x2a] sm:$0xff]
      %v561 = vld [vmem:[%s344 + $0x32] sm:$0xff]
      %v562 = vld [vmem:[%s344 + $0x3a] sm:$0xff]
      %v563 = vld [vmem:[%s344 + $0x42] sm:$0xff]
      %v564 = vld [vmem:[%s344 + $0x4a] sm:$0xff]
      %v565 = vld [vmem:[%s344 + $0x52] sm:$0xff]
      %v566 = vld [vmem:[%s344 + $0x5a] sm:$0xff]
      %v567 = vld [vmem:[%s344 + $0x62] sm:$0xff]
      %v568 = vld [vmem:[%s344 + $0x6a] sm:$0xff]
      %v569 = vld [vmem:[%s344 + $0x72] sm:$0xff]
      %v570 = vld [vmem:[%s344 + $0x7a] sm:$0xff]
      %v571 = vld [vmem:[%s344 + $0x82] sm:$0xff]
      %v572 = vld [vmem:[%s344 + $0x8a] sm:$0xff]
      %v573 = vld [vmem:[%s344 + $0x92] sm:$0xff]
      %v574 = vld [vmem:[%s344 + $0x9a] sm:$0xff]
      %v575 = vld [vmem:[%s344 + $0xa2] sm:$0xff]
      %v576 = vld [vmem:[%s344 + $0xaa] sm:$0xff]
      %v577 = vld [vmem:[%s344 + $0xb2] sm:$0xff]
      %v578 = vld [vmem:[%s344 + $0xba] sm:$0xff]
      %v579 = vld [vmem:[%s344 + $0xc2] sm:$0xff]
      %v580 = vld [vmem:[%s344 + $0xca] sm:$0xff]
      %v581 = vld [vmem:[%s344 + $0xd2] sm:$0xff]
      %v582 = vld [vmem:[%s344 + $0xda] sm:$0xff]
      %v583 = vld [vmem:[%s344 + $0xe2] sm:$0xff]
      %v584 = vld [vmem:[%s344 + $0xea] sm:$0xff]
      %v585 = vld [vmem:[%s344 + $0xf2] sm:$0xff]
      %v586 = vld [vmem:[%s344 + $0xfa] sm:$0xff]
      %v587 = vld [vmem:[%s344 + $0x102] sm:$0xff]
      %v588 = vld [vmem:[%s344 + $0x10a] sm:$0xff]
      %v589 = vld [vmem:[%s344 + $0x112] sm:$0xff]
      %v590 = vld [vmem:[%s344 + $0x11a] sm:$0xff]
      %625 = vrot.lane.b32.xlu0 %v207, 8
      %v626 = vpop.permute.xlu0 %625
      %627 = vrot.lane.b32.xlu0 %v208, 8
      %v628 = vpop.permute.xlu0 %627
      %629 = vrot.lane.b32.xlu0 %v209, 8
      %v630 = vpop.permute.xlu0 %629
      %631 = vrot.lane.b32.xlu0 %v210, 8
      %v632 = vpop.permute.xlu0 %631
      %633 = vrot.lane.b32.xlu0 %v211, 8
      %v634 = vpop.permute.xlu0 %633
      %635 = vrot.lane.b32.xlu0 %v212, 8
      %v636 = vpop.permute.xlu0 %635
      %637 = vrot.lane.b32.xlu0 %v213, 8
      %v638 = vpop.permute.xlu0 %637
      %639 = vrot.lane.b32.xlu0 %v214, 8
      %v640 = vpop.permute.xlu0 %639
      %641 = vrot.lane.b32.xlu0 %v215, 8
      %v642 = vpop.permute.xlu0 %641
      %643 = vrot.lane.b32.xlu0 %v216, 8
      %v644 = vpop.permute.xlu0 %643
      %645 = vrot.lane.b32.xlu0 %v217, 8
      %v646 = vpop.permute.xlu0 %645
      %647 = vrot.lane.b32.xlu0 %v218, 8
      %v648 = vpop.permute.xlu0 %647
      %649 = vrot.lane.b32.xlu0 %v219, 8
      %v650 = vpop.permute.xlu0 %649
      %651 = vrot.lane.b32.xlu0 %v220, 8
      %v652 = vpop.permute.xlu0 %651
      %653 = vrot.lane.b32.xlu0 %v221, 8
      %v654 = vpop.permute.xlu0 %653
      %655 = vrot.lane.b32.xlu0 %v222, 8
      %v656 = vpop.permute.xlu0 %655
      %657 = vrot.lane.b32.xlu0 %v223, 8
      %v658 = vpop.permute.xlu0 %657
      %659 = vrot.lane.b32.xlu0 %v224, 8
      %v660 = vpop.permute.xlu0 %659
      %661 = vrot.lane.b32.xlu0 %v225, 8
      %v662 = vpop.permute.xlu0 %661
      %663 = vrot.lane.b32.xlu0 %v226, 8
      %v664 = vpop.permute.xlu0 %663
      %665 = vrot.lane.b32.xlu0 %v227, 8
      %v666 = vpop.permute.xlu0 %665
      %667 = vrot.lane.b32.xlu0 %v228, 8
      %v668 = vpop.permute.xlu0 %667
      %669 = vrot.lane.b32.xlu0 %v229, 8
      %v670 = vpop.permute.xlu0 %669
      %671 = vrot.lane.b32.xlu0 %v230, 8
      %v672 = vpop.permute.xlu0 %671
      %673 = vrot.lane.b32.xlu0 %v231, 8
      %v674 = vpop.permute.xlu0 %673
      %675 = vrot.lane.b32.xlu0 %v232, 8
      %v676 = vpop.permute.xlu0 %675
      %677 = vrot.lane.b32.xlu0 %v233, 8
      %v678 = vpop.permute.xlu0 %677
      %679 = vrot.lane.b32.xlu0 %v234, 8
      %v680 = vpop.permute.xlu0 %679
      %681 = vrot.lane.b32.xlu0 %v235, 8
      %v682 = vpop.permute.xlu0 %681
      %683 = vrot.lane.b32.xlu0 %v236, 8
      %v684 = vpop.permute.xlu0 %683
      %685 = vrot.lane.b32.xlu0 %v237, 8
      %v686 = vpop.permute.xlu0 %685
      %687 = vrot.lane.b32.xlu0 %v238, 8
      %v688 = vpop.permute.xlu0 %687
      %689 = vrot.lane.b32.xlu0 %v239, 8
      %v690 = vpop.permute.xlu0 %689
      %691 = vrot.lane.b32.xlu0 %v240, 8
      %v692 = vpop.permute.xlu0 %691
      %761 = vrot.lane.b32.xlu0 %v241, 16
      %v762 = vpop.permute.xlu0 %761
      %763 = vrot.lane.b32.xlu0 %v242, 16
      %v764 = vpop.permute.xlu0 %763
      %765 = vrot.lane.b32.xlu0 %v243, 16
      %v766 = vpop.permute.xlu0 %765
      %767 = vrot.lane.b32.xlu0 %v244, 16
      %v768 = vpop.permute.xlu0 %767
      %769 = vrot.lane.b32.xlu0 %v245, 16
      %v770 = vpop.permute.xlu0 %769
      %771 = vrot.lane.b32.xlu0 %v246, 16
      %v772 = vpop.permute.xlu0 %771
      %773 = vrot.lane.b32.xlu0 %v247, 16
      %v774 = vpop.permute.xlu0 %773
      %775 = vrot.lane.b32.xlu0 %v248, 16
      %v776 = vpop.permute.xlu0 %775
      %777 = vrot.lane.b32.xlu0 %v249, 16
      %v778 = vpop.permute.xlu0 %777
      %779 = vrot.lane.b32.xlu0 %v250, 16
      %v780 = vpop.permute.xlu0 %779
      %781 = vrot.lane.b32.xlu0 %v251, 16
      %v782 = vpop.permute.xlu0 %781
      %783 = vrot.lane.b32.xlu0 %v252, 16
      %v784 = vpop.permute.xlu0 %783
      %785 = vrot.lane.b32.xlu0 %v253, 16
      %v786 = vpop.permute.xlu0 %785
      %787 = vrot.lane.b32.xlu0 %v254, 16
      %v788 = vpop.permute.xlu0 %787
      %789 = vrot.lane.b32.xlu0 %v255, 16
      %v790 = vpop.permute.xlu0 %789
      %791 = vrot.lane.b32.xlu0 %v256, 16
      %v792 = vpop.permute.xlu0 %791
      %793 = vrot.lane.b32.xlu0 %v257, 16
      %v794 = vpop.permute.xlu0 %793
      %795 = vrot.lane.b32.xlu0 %v258, 16
      %v796 = vpop.permute.xlu0 %795
      %797 = vrot.lane.b32.xlu0 %v259, 16
      %v798 = vpop.permute.xlu0 %797
      %799 = vrot.lane.b32.xlu0 %v260, 16
      %v800 = vpop.permute.xlu0 %799
      %801 = vrot.lane.b32.xlu0 %v261, 16
      %v802 = vpop.permute.xlu0 %801
      %803 = vrot.lane.b32.xlu0 %v262, 16
      %v804 = vpop.permute.xlu0 %803
      %805 = vrot.lane.b32.xlu0 %v263, 16
      %v806 = vpop.permute.xlu0 %805
      %807 = vrot.lane.b32.xlu0 %v264, 16
      %v808 = vpop.permute.xlu0 %807
      %809 = vrot.lane.b32.xlu0 %v265, 16
      %v810 = vpop.permute.xlu0 %809
      %811 = vrot.lane.b32.xlu0 %v266, 16
      %v812 = vpop.permute.xlu0 %811
      %813 = vrot.lane.b32.xlu0 %v267, 16
      %v814 = vpop.permute.xlu0 %813
      %815 = vrot.lane.b32.xlu0 %v268, 16
      %v816 = vpop.permute.xlu0 %815
      %817 = vrot.lane.b32.xlu0 %v269, 16
      %v818 = vpop.permute.xlu0 %817
      %819 = vrot.lane.b32.xlu0 %v270, 16
      %v820 = vpop.permute.xlu0 %819
      %821 = vrot.lane.b32.xlu0 %v271, 16
      %v822 = vpop.permute.xlu0 %821
      %823 = vrot.lane.b32.xlu0 %v272, 16
      %v824 = vpop.permute.xlu0 %823
      %825 = vrot.lane.b32.xlu0 %v273, 16
      %v826 = vpop.permute.xlu0 %825
      %827 = vrot.lane.b32.xlu0 %v274, 16
      %v828 = vpop.permute.xlu0 %827
      %897 = vrot.lane.b32.xlu0 %v275, 24
      %v898 = vpop.permute.xlu0 %897
      %899 = vrot.lane.b32.xlu0 %v276, 24
      %v900 = vpop.permute.xlu0 %899
      %901 = vrot.lane.b32.xlu0 %v277, 24
      %v902 = vpop.permute.xlu0 %901
      %903 = vrot.lane.b32.xlu0 %v278, 24
      %v904 = vpop.permute.xlu0 %903
      %905 = vrot.lane.b32.xlu0 %v279, 24
      %v906 = vpop.permute.xlu0 %905
      %907 = vrot.lane.b32.xlu0 %v280, 24
      %v908 = vpop.permute.xlu0 %907
      %909 = vrot.lane.b32.xlu0 %v281, 24
      %v910 = vpop.permute.xlu0 %909
      %911 = vrot.lane.b32.xlu0 %v282, 24
      %v912 = vpop.permute.xlu0 %911
      %913 = vrot.lane.b32.xlu0 %v283, 24
      %v914 = vpop.permute.xlu0 %913
      %915 = vrot.lane.b32.xlu0 %v284, 24
      %v916 = vpop.permute.xlu0 %915
      %917 = vrot.lane.b32.xlu0 %v285, 24
      %v918 = vpop.permute.xlu0 %917
      %919 = vrot.lane.b32.xlu0 %v286, 24
      %v920 = vpop.permute.xlu0 %919
      %921 = vrot.lane.b32.xlu0 %v287, 24
      %v922 = vpop.permute.xlu0 %921
      %923 = vrot.lane.b32.xlu0 %v288, 24
      %v924 = vpop.permute.xlu0 %923
      %925 = vrot.lane.b32.xlu0 %v289, 24
      %v926 = vpop.permute.xlu0 %925
      %927 = vrot.lane.b32.xlu0 %v290, 24
      %v928 = vpop.permute.xlu0 %927
      %929 = vrot.lane.b32.xlu0 %v291, 24
      %v930 = vpop.permute.xlu0 %929
      %931 = vrot.lane.b32.xlu0 %v292, 24
      %v932 = vpop.permute.xlu0 %931
      %933 = vrot.lane.b32.xlu0 %v293, 24
      %v934 = vpop.permute.xlu0 %933
      %935 = vrot.lane.b32.xlu0 %v294, 24
      %v936 = vpop.permute.xlu0 %935
      %937 = vrot.lane.b32.xlu0 %v295, 24
      %v938 = vpop.permute.xlu0 %937
      %939 = vrot.lane.b32.xlu0 %v296, 24
      %v940 = vpop.permute.xlu0 %939
      %941 = vrot.lane.b32.xlu0 %v297, 24
      %v942 = vpop.permute.xlu0 %941
      %943 = vrot.lane.b32.xlu0 %v298, 24
      %v944 = vpop.permute.xlu0 %943
      %945 = vrot.lane.b32.xlu0 %v299, 24
      %v946 = vpop.permute.xlu0 %945
      %947 = vrot.lane.b32.xlu0 %v300, 24
      %v948 = vpop.permute.xlu0 %947
      %949 = vrot.lane.b32.xlu0 %v301, 24
      %v950 = vpop.permute.xlu0 %949
      %951 = vrot.lane.b32.xlu0 %v302, 24
      %v952 = vpop.permute.xlu0 %951
      %953 = vrot.lane.b32.xlu0 %v303, 24
      %v954 = vpop.permute.xlu0 %953
      %955 = vrot.lane.b32.xlu0 %v304, 24
      %v956 = vpop.permute.xlu0 %955
      %957 = vrot.lane.b32.xlu0 %v305, 24
      %v958 = vpop.permute.xlu0 %957
      %959 = vrot.lane.b32.xlu0 %v306, 24
      %v960 = vpop.permute.xlu0 %959
      %961 = vrot.lane.b32.xlu0 %v307, 24
      %v962 = vpop.permute.xlu0 %961
      %963 = vrot.lane.b32.xlu0 %v308, 24
      %v964 = vpop.permute.xlu0 %963
      %1033 = vrot.lane.b32.xlu0 %v310, 32
      %v1034 = vpop.permute.xlu0 %1033
      %1035 = vrot.lane.b32.xlu0 %v311, 32
      %v1036 = vpop.permute.xlu0 %1035
      %1037 = vrot.lane.b32.xlu0 %v312, 32
      %v1038 = vpop.permute.xlu0 %1037
      %1039 = vrot.lane.b32.xlu0 %v313, 32
      %v1040 = vpop.permute.xlu0 %1039
      %1041 = vrot.lane.b32.xlu0 %v314, 32
      %v1042 = vpop.permute.xlu0 %1041
      %1043 = vrot.lane.b32.xlu0 %v315, 32
      %v1044 = vpop.permute.xlu0 %1043
      %1045 = vrot.lane.b32.xlu0 %v316, 32
      %v1046 = vpop.permute.xlu0 %1045
      %1047 = vrot.lane.b32.xlu0 %v317, 32
      %v1048 = vpop.permute.xlu0 %1047
      %1049 = vrot.lane.b32.xlu0 %v318, 32
      %v1050 = vpop.permute.xlu0 %1049
      %1051 = vrot.lane.b32.xlu0 %v319, 32
      %v1052 = vpop.permute.xlu0 %1051
      %1053 = vrot.lane.b32.xlu0 %v320, 32
      %v1054 = vpop.permute.xlu0 %1053
      %1055 = vrot.lane.b32.xlu0 %v321, 32
      %v1056 = vpop.permute.xlu0 %1055
      %1057 = vrot.lane.b32.xlu0 %v322, 32
      %v1058 = vpop.permute.xlu0 %1057
      %1059 = vrot.lane.b32.xlu0 %v323, 32
      %v1060 = vpop.permute.xlu0 %1059
      %1061 = vrot.lane.b32.xlu0 %v324, 32
      %v1062 = vpop.permute.xlu0 %1061
      %1063 = vrot.lane.b32.xlu0 %v325, 32
      %v1064 = vpop.permute.xlu0 %1063
      %1065 = vrot.lane.b32.xlu0 %v326, 32
      %v1066 = vpop.permute.xlu0 %1065
      %1067 = vrot.lane.b32.xlu0 %v327, 32
      %v1068 = vpop.permute.xlu0 %1067
      %1069 = vrot.lane.b32.xlu0 %v328, 32
      %v1070 = vpop.permute.xlu0 %1069
      %1071 = vrot.lane.b32.xlu0 %v329, 32
      %v1072 = vpop.permute.xlu0 %1071
      %1073 = vrot.lane.b32.xlu0 %v330, 32
      %v1074 = vpop.permute.xlu0 %1073
      %1075 = vrot.lane.b32.xlu0 %v331, 32
      %v1076 = vpop.permute.xlu0 %1075
      %1077 = vrot.lane.b32.xlu0 %v332, 32
      %v1078 = vpop.permute.xlu0 %1077
      %1079 = vrot.lane.b32.xlu0 %v333, 32
      %v1080 = vpop.permute.xlu0 %1079
      %1081 = vrot.lane.b32.xlu0 %v334, 32
      %v1082 = vpop.permute.xlu0 %1081
      %1083 = vrot.lane.b32.xlu0 %v335, 32
      %v1084 = vpop.permute.xlu0 %1083
      %1085 = vrot.lane.b32.xlu0 %v336, 32
      %v1086 = vpop.permute.xlu0 %1085
      %1087 = vrot.lane.b32.xlu0 %v337, 32
      %v1088 = vpop.permute.xlu0 %1087
      %1089 = vrot.lane.b32.xlu0 %v338, 32
      %v1090 = vpop.permute.xlu0 %1089
      %1091 = vrot.lane.b32.xlu0 %v339, 32
      %v1092 = vpop.permute.xlu0 %1091
      %1093 = vrot.lane.b32.xlu0 %v340, 32
      %v1094 = vpop.permute.xlu0 %1093
      %1095 = vrot.lane.b32.xlu0 %v341, 32
      %v1096 = vpop.permute.xlu0 %1095
      %1097 = vrot.lane.b32.xlu0 %v342, 32
      %v1098 = vpop.permute.xlu0 %1097
      %1099 = vrot.lane.b32.xlu0 %v343, 32
      %v1100 = vpop.permute.xlu0 %1099
      %1169 = vrot.lane.b32.xlu0 %v345, 40
      %v1170 = vpop.permute.xlu0 %1169
      %1171 = vrot.lane.b32.xlu0 %v346, 40
      %v1172 = vpop.permute.xlu0 %1171
      %1173 = vrot.lane.b32.xlu0 %v347, 40
      %v1174 = vpop.permute.xlu0 %1173
      %1175 = vrot.lane.b32.xlu0 %v348, 40
      %v1176 = vpop.permute.xlu0 %1175
      %1177 = vrot.lane.b32.xlu0 %v349, 40
      %v1178 = vpop.permute.xlu0 %1177
      %1179 = vrot.lane.b32.xlu0 %v350, 40
      %v1180 = vpop.permute.xlu0 %1179
      %1181 = vrot.lane.b32.xlu0 %v351, 40
      %v1182 = vpop.permute.xlu0 %1181
      %1183 = vrot.lane.b32.xlu0 %v352, 40
      %v1184 = vpop.permute.xlu0 %1183
      %1185 = vrot.lane.b32.xlu0 %v353, 40
      %v1186 = vpop.permute.xlu0 %1185
      %1187 = vrot.lane.b32.xlu0 %v354, 40
      %v1188 = vpop.permute.xlu0 %1187
      %1189 = vrot.lane.b32.xlu0 %v355, 40
      %v1190 = vpop.permute.xlu0 %1189
      %1191 = vrot.lane.b32.xlu0 %v356, 40
      %v1192 = vpop.permute.xlu0 %1191
      %1193 = vrot.lane.b32.xlu0 %v357, 40
      %v1194 = vpop.permute.xlu0 %1193
      %1195 = vrot.lane.b32.xlu0 %v358, 40
      %v1196 = vpop.permute.xlu0 %1195
      %1197 = vrot.lane.b32.xlu0 %v359, 40
      %v1198 = vpop.permute.xlu0 %1197
      %1199 = vrot.lane.b32.xlu0 %v360, 40
      %v1200 = vpop.permute.xlu0 %1199
      %1201 = vrot.lane.b32.xlu0 %v361, 40
      %v1202 = vpop.permute.xlu0 %1201
      %1203 = vrot.lane.b32.xlu0 %v362, 40
      %v1204 = vpop.permute.xlu0 %1203
      %1205 = vrot.lane.b32.xlu0 %v363, 40
      %v1206 = vpop.permute.xlu0 %1205
      %1207 = vrot.lane.b32.xlu0 %v364, 40
      %v1208 = vpop.permute.xlu0 %1207
      %1209 = vrot.lane.b32.xlu0 %v365, 40
      %v1210 = vpop.permute.xlu0 %1209
      %1211 = vrot.lane.b32.xlu0 %v366, 40
      %v1212 = vpop.permute.xlu0 %1211
      %1213 = vrot.lane.b32.xlu0 %v367, 40
      %v1214 = vpop.permute.xlu0 %1213
      %1215 = vrot.lane.b32.xlu0 %v368, 40
      %v1216 = vpop.permute.xlu0 %1215
      %1217 = vrot.lane.b32.xlu0 %v369, 40
      %v1218 = vpop.permute.xlu0 %1217
      %1219 = vrot.lane.b32.xlu0 %v370, 40
      %v1220 = vpop.permute.xlu0 %1219
      %1221 = vrot.lane.b32.xlu0 %v371, 40
      %v1222 = vpop.permute.xlu0 %1221
      %1223 = vrot.lane.b32.xlu0 %v372, 40
      %v1224 = vpop.permute.xlu0 %1223
      %1225 = vrot.lane.b32.xlu0 %v373, 40
      %v1226 = vpop.permute.xlu0 %1225
      %1227 = vrot.lane.b32.xlu0 %v374, 40
      %v1228 = vpop.permute.xlu0 %1227
      %1229 = vrot.lane.b32.xlu0 %v375, 40
      %v1230 = vpop.permute.xlu0 %1229
      %1231 = vrot.lane.b32.xlu0 %v376, 40
      %v1232 = vpop.permute.xlu0 %1231
      %1233 = vrot.lane.b32.xlu0 %v377, 40
      %v1234 = vpop.permute.xlu0 %1233
      %1235 = vrot.lane.b32.xlu0 %v378, 40
      %v1236 = vpop.permute.xlu0 %1235
      %1305 = vrot.lane.b32.xlu0 %v379, 48
      %v1306 = vpop.permute.xlu0 %1305
      %1307 = vrot.lane.b32.xlu0 %v380, 48
      %v1308 = vpop.permute.xlu0 %1307
      %1309 = vrot.lane.b32.xlu0 %v381, 48
      %v1310 = vpop.permute.xlu0 %1309
      %1311 = vrot.lane.b32.xlu0 %v382, 48
      %v1312 = vpop.permute.xlu0 %1311
      %1313 = vrot.lane.b32.xlu0 %v383, 48
      %v1314 = vpop.permute.xlu0 %1313
      %1315 = vrot.lane.b32.xlu0 %v384, 48
      %v1316 = vpop.permute.xlu0 %1315
      %1317 = vrot.lane.b32.xlu0 %v385, 48
      %v1318 = vpop.permute.xlu0 %1317
      %1319 = vrot.lane.b32.xlu0 %v386, 48
      %v1320 = vpop.permute.xlu0 %1319
      %1321 = vrot.lane.b32.xlu0 %v387, 48
      %v1322 = vpop.permute.xlu0 %1321
      %1323 = vrot.lane.b32.xlu0 %v388, 48
      %v1324 = vpop.permute.xlu0 %1323
      %1325 = vrot.lane.b32.xlu0 %v389, 48
      %v1326 = vpop.permute.xlu0 %1325
      %1327 = vrot.lane.b32.xlu0 %v390, 48
      %v1328 = vpop.permute.xlu0 %1327
      %1329 = vrot.lane.b32.xlu0 %v391, 48
      %v1330 = vpop.permute.xlu0 %1329
      %1331 = vrot.lane.b32.xlu0 %v392, 48
      %v1332 = vpop.permute.xlu0 %1331
      %1333 = vrot.lane.b32.xlu0 %v393, 48
      %v1334 = vpop.permute.xlu0 %1333
      %1335 = vrot.lane.b32.xlu0 %v394, 48
      %v1336 = vpop.permute.xlu0 %1335
      %1337 = vrot.lane.b32.xlu0 %v395, 48
      %v1338 = vpop.permute.xlu0 %1337
      %1339 = vrot.lane.b32.xlu0 %v396, 48
      %v1340 = vpop.permute.xlu0 %1339
      %1341 = vrot.lane.b32.xlu0 %v397, 48
      %v1342 = vpop.permute.xlu0 %1341
      %1343 = vrot.lane.b32.xlu0 %v398, 48
      %v1344 = vpop.permute.xlu0 %1343
      %1345 = vrot.lane.b32.xlu0 %v399, 48
      %v1346 = vpop.permute.xlu0 %1345
      %1347 = vrot.lane.b32.xlu0 %v400, 48
      %v1348 = vpop.permute.xlu0 %1347
      %1349 = vrot.lane.b32.xlu0 %v401, 48
      %v1350 = vpop.permute.xlu0 %1349
      %1351 = vrot.lane.b32.xlu0 %v402, 48
      %v1352 = vpop.permute.xlu0 %1351
      %1353 = vrot.lane.b32.xlu0 %v403, 48
      %v1354 = vpop.permute.xlu0 %1353
      %1355 = vrot.lane.b32.xlu0 %v404, 48
      %v1356 = vpop.permute.xlu0 %1355
      %1357 = vrot.lane.b32.xlu0 %v405, 48
      %v1358 = vpop.permute.xlu0 %1357
      %1359 = vrot.lane.b32.xlu0 %v406, 48
      %v1360 = vpop.permute.xlu0 %1359
      %1361 = vrot.lane.b32.xlu0 %v407, 48
      %v1362 = vpop.permute.xlu0 %1361
      %1363 = vrot.lane.b32.xlu0 %v408, 48
      %v1364 = vpop.permute.xlu0 %1363
      %1365 = vrot.lane.b32.xlu0 %v409, 48
      %v1366 = vpop.permute.xlu0 %1365
      %1367 = vrot.lane.b32.xlu0 %v410, 48
      %v1368 = vpop.permute.xlu0 %1367
      %1369 = vrot.lane.b32.xlu0 %v411, 48
      %v1370 = vpop.permute.xlu0 %1369
      %1371 = vrot.lane.b32.xlu0 %v412, 48
      %v1372 = vpop.permute.xlu0 %1371
      %1441 = vrot.lane.b32.xlu0 %v413, 56
      %v1442 = vpop.permute.xlu0 %1441
      %1443 = vrot.lane.b32.xlu0 %v414, 56
      %v1444 = vpop.permute.xlu0 %1443
      %1445 = vrot.lane.b32.xlu0 %v415, 56
      %v1446 = vpop.permute.xlu0 %1445
      %1447 = vrot.lane.b32.xlu0 %v416, 56
      %v1448 = vpop.permute.xlu0 %1447
      %1449 = vrot.lane.b32.xlu0 %v417, 56
      %v1450 = vpop.permute.xlu0 %1449
      %1451 = vrot.lane.b32.xlu0 %v418, 56
      %v1452 = vpop.permute.xlu0 %1451
      %1453 = vrot.lane.b32.xlu0 %v419, 56
      %v1454 = vpop.permute.xlu0 %1453
      %1455 = vrot.lane.b32.xlu0 %v420, 56
      %v1456 = vpop.permute.xlu0 %1455
      %1457 = vrot.lane.b32.xlu0 %v421, 56
      %v1458 = vpop.permute.xlu0 %1457
      %1459 = vrot.lane.b32.xlu0 %v422, 56
      %v1460 = vpop.permute.xlu0 %1459
      %1461 = vrot.lane.b32.xlu0 %v423, 56
      %v1462 = vpop.permute.xlu0 %1461
      %1463 = vrot.lane.b32.xlu0 %v424, 56
      %v1464 = vpop.permute.xlu0 %1463
      %1465 = vrot.lane.b32.xlu0 %v425, 56
      %v1466 = vpop.permute.xlu0 %1465
      %1467 = vrot.lane.b32.xlu0 %v426, 56
      %v1468 = vpop.permute.xlu0 %1467
      %1469 = vrot.lane.b32.xlu0 %v427, 56
      %v1470 = vpop.permute.xlu0 %1469
      %1471 = vrot.lane.b32.xlu0 %v428, 56
      %v1472 = vpop.permute.xlu0 %1471
      %1473 = vrot.lane.b32.xlu0 %v429, 56
      %v1474 = vpop.permute.xlu0 %1473
      %1475 = vrot.lane.b32.xlu0 %v430, 56
      %v1476 = vpop.permute.xlu0 %1475
      %1477 = vrot.lane.b32.xlu0 %v431, 56
      %v1478 = vpop.permute.xlu0 %1477
      %1479 = vrot.lane.b32.xlu0 %v432, 56
      %v1480 = vpop.permute.xlu0 %1479
      %1481 = vrot.lane.b32.xlu0 %v433, 56
      %v1482 = vpop.permute.xlu0 %1481
      %1483 = vrot.lane.b32.xlu0 %v434, 56
      %v1484 = vpop.permute.xlu0 %1483
      %1485 = vrot.lane.b32.xlu0 %v435, 56
      %v1486 = vpop.permute.xlu0 %1485
      %1487 = vrot.lane.b32.xlu0 %v436, 56
      %v1488 = vpop.permute.xlu0 %1487
      %1489 = vrot.lane.b32.xlu0 %v437, 56
      %v1490 = vpop.permute.xlu0 %1489
      %1491 = vrot.lane.b32.xlu0 %v438, 56
      %v1492 = vpop.permute.xlu0 %1491
      %1493 = vrot.lane.b32.xlu0 %v439, 56
      %v1494 = vpop.permute.xlu0 %1493
      %1495 = vrot.lane.b32.xlu0 %v440, 56
      %v1496 = vpop.permute.xlu0 %1495
      %1497 = vrot.lane.b32.xlu0 %v441, 56
      %v1498 = vpop.permute.xlu0 %1497
      %1499 = vrot.lane.b32.xlu0 %v442, 56
      %v1500 = vpop.permute.xlu0 %1499
      %1501 = vrot.lane.b32.xlu0 %v443, 56
      %v1502 = vpop.permute.xlu0 %1501
      %1503 = vrot.lane.b32.xlu0 %v444, 56
      %v1504 = vpop.permute.xlu0 %1503
      %1505 = vrot.lane.b32.xlu0 %v445, 56
      %v1506 = vpop.permute.xlu0 %1505
      %1507 = vrot.lane.b32.xlu0 %v446, 56
      %v1508 = vpop.permute.xlu0 %1507
      %1545 = vrot.lane.b32.xlu0 %v243, 64
      %v1546 = vpop.permute.xlu0 %1545
      %1547 = vrot.lane.b32.xlu0 %v244, 64
      %v1548 = vpop.permute.xlu0 %1547
      %1549 = vrot.lane.b32.xlu0 %v245, 64
      %v1550 = vpop.permute.xlu0 %1549
      %1551 = vrot.lane.b32.xlu0 %v246, 64
      %v1552 = vpop.permute.xlu0 %1551
      %1553 = vrot.lane.b32.xlu0 %v247, 64
      %v1554 = vpop.permute.xlu0 %1553
      %1555 = vrot.lane.b32.xlu0 %v248, 64
      %v1556 = vpop.permute.xlu0 %1555
      %1557 = vrot.lane.b32.xlu0 %v249, 64
      %v1558 = vpop.permute.xlu0 %1557
      %1559 = vrot.lane.b32.xlu0 %v250, 64
      %v1560 = vpop.permute.xlu0 %1559
      %1561 = vrot.lane.b32.xlu0 %v251, 64
      %v1562 = vpop.permute.xlu0 %1561
      %1563 = vrot.lane.b32.xlu0 %v252, 64
      %v1564 = vpop.permute.xlu0 %1563
      %1565 = vrot.lane.b32.xlu0 %v253, 64
      %v1566 = vpop.permute.xlu0 %1565
      %1567 = vrot.lane.b32.xlu0 %v254, 64
      %v1568 = vpop.permute.xlu0 %1567
      %1569 = vrot.lane.b32.xlu0 %v255, 64
      %v1570 = vpop.permute.xlu0 %1569
      %1571 = vrot.lane.b32.xlu0 %v256, 64
      %v1572 = vpop.permute.xlu0 %1571
      %1573 = vrot.lane.b32.xlu0 %v257, 64
      %v1574 = vpop.permute.xlu0 %1573
      %1575 = vrot.lane.b32.xlu0 %v258, 64
      %v1576 = vpop.permute.xlu0 %1575
      %1577 = vrot.lane.b32.xlu0 %v259, 64
      %v1578 = vpop.permute.xlu0 %1577
      %1579 = vrot.lane.b32.xlu0 %v260, 64
      %v1580 = vpop.permute.xlu0 %1579
      %1581 = vrot.lane.b32.xlu0 %v261, 64
      %v1582 = vpop.permute.xlu0 %1581
      %1583 = vrot.lane.b32.xlu0 %v262, 64
      %v1584 = vpop.permute.xlu0 %1583
      %1585 = vrot.lane.b32.xlu0 %v263, 64
      %v1586 = vpop.permute.xlu0 %1585
      %1587 = vrot.lane.b32.xlu0 %v264, 64
      %v1588 = vpop.permute.xlu0 %1587
      %1589 = vrot.lane.b32.xlu0 %v265, 64
      %v1590 = vpop.permute.xlu0 %1589
      %1591 = vrot.lane.b32.xlu0 %v266, 64
      %v1592 = vpop.permute.xlu0 %1591
      %1593 = vrot.lane.b32.xlu0 %v267, 64
      %v1594 = vpop.permute.xlu0 %1593
      %1595 = vrot.lane.b32.xlu0 %v268, 64
      %v1596 = vpop.permute.xlu0 %1595
      %1597 = vrot.lane.b32.xlu0 %v269, 64
      %v1598 = vpop.permute.xlu0 %1597
      %1599 = vrot.lane.b32.xlu0 %v270, 64
      %v1600 = vpop.permute.xlu0 %1599
      %1601 = vrot.lane.b32.xlu0 %v271, 64
      %v1602 = vpop.permute.xlu0 %1601
      %1603 = vrot.lane.b32.xlu0 %v272, 64
      %v1604 = vpop.permute.xlu0 %1603
      %1605 = vrot.lane.b32.xlu0 %v273, 64
      %v1606 = vpop.permute.xlu0 %1605
      %1607 = vrot.lane.b32.xlu0 %v274, 64
      %v1608 = vpop.permute.xlu0 %1607
      %1609 = vrot.lane.b32.xlu0 %v447, 64
      %v1610 = vpop.permute.xlu0 %1609
      %1611 = vrot.lane.b32.xlu0 %v448, 64
      %v1612 = vpop.permute.xlu0 %1611
      %1649 = vrot.lane.b32.xlu0 %v277, 72
      %v1650 = vpop.permute.xlu0 %1649
      %1651 = vrot.lane.b32.xlu0 %v278, 72
      %v1652 = vpop.permute.xlu0 %1651
      %1653 = vrot.lane.b32.xlu0 %v279, 72
      %v1654 = vpop.permute.xlu0 %1653
      %1655 = vrot.lane.b32.xlu0 %v280, 72
      %v1656 = vpop.permute.xlu0 %1655
      %1657 = vrot.lane.b32.xlu0 %v281, 72
      %v1658 = vpop.permute.xlu0 %1657
      %1659 = vrot.lane.b32.xlu0 %v282, 72
      %v1660 = vpop.permute.xlu0 %1659
      %1661 = vrot.lane.b32.xlu0 %v283, 72
      %v1662 = vpop.permute.xlu0 %1661
      %1663 = vrot.lane.b32.xlu0 %v284, 72
      %v1664 = vpop.permute.xlu0 %1663
      %1665 = vrot.lane.b32.xlu0 %v285, 72
      %v1666 = vpop.permute.xlu0 %1665
      %1667 = vrot.lane.b32.xlu0 %v286, 72
      %v1668 = vpop.permute.xlu0 %1667
      %1669 = vrot.lane.b32.xlu0 %v287, 72
      %v1670 = vpop.permute.xlu0 %1669
      %1671 = vrot.lane.b32.xlu0 %v288, 72
      %v1672 = vpop.permute.xlu0 %1671
      %1673 = vrot.lane.b32.xlu0 %v289, 72
      %v1674 = vpop.permute.xlu0 %1673
      %1675 = vrot.lane.b32.xlu0 %v290, 72
      %v1676 = vpop.permute.xlu0 %1675
      %1677 = vrot.lane.b32.xlu0 %v291, 72
      %v1678 = vpop.permute.xlu0 %1677
      %1679 = vrot.lane.b32.xlu0 %v292, 72
      %v1680 = vpop.permute.xlu0 %1679
      %1681 = vrot.lane.b32.xlu0 %v293, 72
      %v1682 = vpop.permute.xlu0 %1681
      %1683 = vrot.lane.b32.xlu0 %v294, 72
      %v1684 = vpop.permute.xlu0 %1683
      %1685 = vrot.lane.b32.xlu0 %v295, 72
      %v1686 = vpop.permute.xlu0 %1685
      %1687 = vrot.lane.b32.xlu0 %v296, 72
      %v1688 = vpop.permute.xlu0 %1687
      %1689 = vrot.lane.b32.xlu0 %v297, 72
      %v1690 = vpop.permute.xlu0 %1689
      %1691 = vrot.lane.b32.xlu0 %v298, 72
      %v1692 = vpop.permute.xlu0 %1691
      %1693 = vrot.lane.b32.xlu0 %v299, 72
      %v1694 = vpop.permute.xlu0 %1693
      %1695 = vrot.lane.b32.xlu0 %v300, 72
      %v1696 = vpop.permute.xlu0 %1695
      %1697 = vrot.lane.b32.xlu0 %v301, 72
      %v1698 = vpop.permute.xlu0 %1697
      %1699 = vrot.lane.b32.xlu0 %v302, 72
      %v1700 = vpop.permute.xlu0 %1699
      %1701 = vrot.lane.b32.xlu0 %v303, 72
      %v1702 = vpop.permute.xlu0 %1701
      %1703 = vrot.lane.b32.xlu0 %v304, 72
      %v1704 = vpop.permute.xlu0 %1703
      %1705 = vrot.lane.b32.xlu0 %v305, 72
      %v1706 = vpop.permute.xlu0 %1705
      %1707 = vrot.lane.b32.xlu0 %v306, 72
      %v1708 = vpop.permute.xlu0 %1707
      %1709 = vrot.lane.b32.xlu0 %v307, 72
      %v1710 = vpop.permute.xlu0 %1709
      %1711 = vrot.lane.b32.xlu0 %v308, 72
      %v1712 = vpop.permute.xlu0 %1711
      %1713 = vrot.lane.b32.xlu0 %v449, 72
      %v1714 = vpop.permute.xlu0 %1713
      %1715 = vrot.lane.b32.xlu0 %v450, 72
      %v1716 = vpop.permute.xlu0 %1715
      %1785 = vrot.lane.b32.xlu0 %v451, 80
      %v1786 = vpop.permute.xlu0 %1785
      %1787 = vrot.lane.b32.xlu0 %v452, 80
      %v1788 = vpop.permute.xlu0 %1787
      %1789 = vrot.lane.b32.xlu0 %v453, 80
      %v1790 = vpop.permute.xlu0 %1789
      %1791 = vrot.lane.b32.xlu0 %v454, 80
      %v1792 = vpop.permute.xlu0 %1791
      %1793 = vrot.lane.b32.xlu0 %v455, 80
      %v1794 = vpop.permute.xlu0 %1793
      %1795 = vrot.lane.b32.xlu0 %v456, 80
      %v1796 = vpop.permute.xlu0 %1795
      %1797 = vrot.lane.b32.xlu0 %v457, 80
      %v1798 = vpop.permute.xlu0 %1797
      %1799 = vrot.lane.b32.xlu0 %v458, 80
      %v1800 = vpop.permute.xlu0 %1799
      %1801 = vrot.lane.b32.xlu0 %v459, 80
      %v1802 = vpop.permute.xlu0 %1801
      %1803 = vrot.lane.b32.xlu0 %v460, 80
      %v1804 = vpop.permute.xlu0 %1803
      %1805 = vrot.lane.b32.xlu0 %v461, 80
      %v1806 = vpop.permute.xlu0 %1805
      %1807 = vrot.lane.b32.xlu0 %v462, 80
      %v1808 = vpop.permute.xlu0 %1807
      %1809 = vrot.lane.b32.xlu0 %v463, 80
      %v1810 = vpop.permute.xlu0 %1809
      %1811 = vrot.lane.b32.xlu0 %v464, 80
      %v1812 = vpop.permute.xlu0 %1811
      %1813 = vrot.lane.b32.xlu0 %v465, 80
      %v1814 = vpop.permute.xlu0 %1813
      %1815 = vrot.lane.b32.xlu0 %v466, 80
      %v1816 = vpop.permute.xlu0 %1815
      %1817 = vrot.lane.b32.xlu0 %v467, 80
      %v1818 = vpop.permute.xlu0 %1817
      %1819 = vrot.lane.b32.xlu0 %v468, 80
      %v1820 = vpop.permute.xlu0 %1819
      %1821 = vrot.lane.b32.xlu0 %v469, 80
      %v1822 = vpop.permute.xlu0 %1821
      %1823 = vrot.lane.b32.xlu0 %v470, 80
      %v1824 = vpop.permute.xlu0 %1823
      %1825 = vrot.lane.b32.xlu0 %v471, 80
      %v1826 = vpop.permute.xlu0 %1825
      %1827 = vrot.lane.b32.xlu0 %v472, 80
      %v1828 = vpop.permute.xlu0 %1827
      %1829 = vrot.lane.b32.xlu0 %v473, 80
      %v1830 = vpop.permute.xlu0 %1829
      %1831 = vrot.lane.b32.xlu0 %v474, 80
      %v1832 = vpop.permute.xlu0 %1831
      %1833 = vrot.lane.b32.xlu0 %v475, 80
      %v1834 = vpop.permute.xlu0 %1833
      %1835 = vrot.lane.b32.xlu0 %v476, 80
      %v1836 = vpop.permute.xlu0 %1835
      %1837 = vrot.lane.b32.xlu0 %v477, 80
      %v1838 = vpop.permute.xlu0 %1837
      %1839 = vrot.lane.b32.xlu0 %v478, 80
      %v1840 = vpop.permute.xlu0 %1839
      %1841 = vrot.lane.b32.xlu0 %v479, 80
      %v1842 = vpop.permute.xlu0 %1841
      %1843 = vrot.lane.b32.xlu0 %v480, 80
      %v1844 = vpop.permute.xlu0 %1843
      %1845 = vrot.lane.b32.xlu0 %v481, 80
      %v1846 = vpop.permute.xlu0 %1845
      %1847 = vrot.lane.b32.xlu0 %v482, 80
      %v1848 = vpop.permute.xlu0 %1847
      %1849 = vrot.lane.b32.xlu0 %v483, 80
      %v1850 = vpop.permute.xlu0 %1849
      %1851 = vrot.lane.b32.xlu0 %v484, 80
      %v1852 = vpop.permute.xlu0 %1851
      %1921 = vrot.lane.b32.xlu0 %v485, 88
      %v1922 = vpop.permute.xlu0 %1921
      %1923 = vrot.lane.b32.xlu0 %v486, 88
      %v1924 = vpop.permute.xlu0 %1923
      %1925 = vrot.lane.b32.xlu0 %v487, 88
      %v1926 = vpop.permute.xlu0 %1925
      %1927 = vrot.lane.b32.xlu0 %v488, 88
      %v1928 = vpop.permute.xlu0 %1927
      %1929 = vrot.lane.b32.xlu0 %v489, 88
      %v1930 = vpop.permute.xlu0 %1929
      %1931 = vrot.lane.b32.xlu0 %v490, 88
      %v1932 = vpop.permute.xlu0 %1931
      %1933 = vrot.lane.b32.xlu0 %v491, 88
      %v1934 = vpop.permute.xlu0 %1933
      %1935 = vrot.lane.b32.xlu0 %v492, 88
      %v1936 = vpop.permute.xlu0 %1935
      %1937 = vrot.lane.b32.xlu0 %v493, 88
      %v1938 = vpop.permute.xlu0 %1937
      %1939 = vrot.lane.b32.xlu0 %v494, 88
      %v1940 = vpop.permute.xlu0 %1939
      %1941 = vrot.lane.b32.xlu0 %v495, 88
      %v1942 = vpop.permute.xlu0 %1941
      %1943 = vrot.lane.b32.xlu0 %v496, 88
      %v1944 = vpop.permute.xlu0 %1943
      %1945 = vrot.lane.b32.xlu0 %v497, 88
      %v1946 = vpop.permute.xlu0 %1945
      %1947 = vrot.lane.b32.xlu0 %v498, 88
      %v1948 = vpop.permute.xlu0 %1947
      %1949 = vrot.lane.b32.xlu0 %v499, 88
      %v1950 = vpop.permute.xlu0 %1949
      %1951 = vrot.lane.b32.xlu0 %v500, 88
      %v1952 = vpop.permute.xlu0 %1951
      %1953 = vrot.lane.b32.xlu0 %v501, 88
      %v1954 = vpop.permute.xlu0 %1953
      %1955 = vrot.lane.b32.xlu0 %v502, 88
      %v1956 = vpop.permute.xlu0 %1955
      %1957 = vrot.lane.b32.xlu0 %v503, 88
      %v1958 = vpop.permute.xlu0 %1957
      %1959 = vrot.lane.b32.xlu0 %v504, 88
      %v1960 = vpop.permute.xlu0 %1959
      %1961 = vrot.lane.b32.xlu0 %v505, 88
      %v1962 = vpop.permute.xlu0 %1961
      %1963 = vrot.lane.b32.xlu0 %v506, 88
      %v1964 = vpop.permute.xlu0 %1963
      %1965 = vrot.lane.b32.xlu0 %v507, 88
      %v1966 = vpop.permute.xlu0 %1965
      %1967 = vrot.lane.b32.xlu0 %v508, 88
      %v1968 = vpop.permute.xlu0 %1967
      %1969 = vrot.lane.b32.xlu0 %v509, 88
      %v1970 = vpop.permute.xlu0 %1969
      %1971 = vrot.lane.b32.xlu0 %v510, 88
      %v1972 = vpop.permute.xlu0 %1971
      %1973 = vrot.lane.b32.xlu0 %v511, 88
      %v1974 = vpop.permute.xlu0 %1973
      %1975 = vrot.lane.b32.xlu0 %v512, 88
      %v1976 = vpop.permute.xlu0 %1975
      %1977 = vrot.lane.b32.xlu0 %v513, 88
      %v1978 = vpop.permute.xlu0 %1977
      %1979 = vrot.lane.b32.xlu0 %v514, 88
      %v1980 = vpop.permute.xlu0 %1979
      %1981 = vrot.lane.b32.xlu0 %v515, 88
      %v1982 = vpop.permute.xlu0 %1981
      %1983 = vrot.lane.b32.xlu0 %v516, 88
      %v1984 = vpop.permute.xlu0 %1983
      %1985 = vrot.lane.b32.xlu0 %v517, 88
      %v1986 = vpop.permute.xlu0 %1985
      %1987 = vrot.lane.b32.xlu0 %v518, 88
      %v1988 = vpop.permute.xlu0 %1987
      %2025 = vrot.lane.b32.xlu0 %v381, 96
      %v2026 = vpop.permute.xlu0 %2025
      %2027 = vrot.lane.b32.xlu0 %v382, 96
      %v2028 = vpop.permute.xlu0 %2027
      %2029 = vrot.lane.b32.xlu0 %v383, 96
      %v2030 = vpop.permute.xlu0 %2029
      %2031 = vrot.lane.b32.xlu0 %v384, 96
      %v2032 = vpop.permute.xlu0 %2031
      %2033 = vrot.lane.b32.xlu0 %v385, 96
      %v2034 = vpop.permute.xlu0 %2033
      %2035 = vrot.lane.b32.xlu0 %v386, 96
      %v2036 = vpop.permute.xlu0 %2035
      %2037 = vrot.lane.b32.xlu0 %v387, 96
      %v2038 = vpop.permute.xlu0 %2037
      %2039 = vrot.lane.b32.xlu0 %v388, 96
      %v2040 = vpop.permute.xlu0 %2039
      %2041 = vrot.lane.b32.xlu0 %v389, 96
      %v2042 = vpop.permute.xlu0 %2041
      %2043 = vrot.lane.b32.xlu0 %v390, 96
      %v2044 = vpop.permute.xlu0 %2043
      %2045 = vrot.lane.b32.xlu0 %v391, 96
      %v2046 = vpop.permute.xlu0 %2045
      %2047 = vrot.lane.b32.xlu0 %v392, 96
      %v2048 = vpop.permute.xlu0 %2047
      %2049 = vrot.lane.b32.xlu0 %v393, 96
      %v2050 = vpop.permute.xlu0 %2049
      %2051 = vrot.lane.b32.xlu0 %v394, 96
      %v2052 = vpop.permute.xlu0 %2051
      %2053 = vrot.lane.b32.xlu0 %v395, 96
      %v2054 = vpop.permute.xlu0 %2053
      %2055 = vrot.lane.b32.xlu0 %v396, 96
      %v2056 = vpop.permute.xlu0 %2055
      %2057 = vrot.lane.b32.xlu0 %v397, 96
      %v2058 = vpop.permute.xlu0 %2057
      %2059 = vrot.lane.b32.xlu0 %v398, 96
      %v2060 = vpop.permute.xlu0 %2059
      %2061 = vrot.lane.b32.xlu0 %v399, 96
      %v2062 = vpop.permute.xlu0 %2061
      %2063 = vrot.lane.b32.xlu0 %v400, 96
      %v2064 = vpop.permute.xlu0 %2063
      %2065 = vrot.lane.b32.xlu0 %v401, 96
      %v2066 = vpop.permute.xlu0 %2065
      %2067 = vrot.lane.b32.xlu0 %v402, 96
      %v2068 = vpop.permute.xlu0 %2067
      %2069 = vrot.lane.b32.xlu0 %v403, 96
      %v2070 = vpop.permute.xlu0 %2069
      %2071 = vrot.lane.b32.xlu0 %v404, 96
      %v2072 = vpop.permute.xlu0 %2071
      %2073 = vrot.lane.b32.xlu0 %v405, 96
      %v2074 = vpop.permute.xlu0 %2073
      %2075 = vrot.lane.b32.xlu0 %v406, 96
      %v2076 = vpop.permute.xlu0 %2075
      %2077 = vrot.lane.b32.xlu0 %v407, 96
      %v2078 = vpop.permute.xlu0 %2077
      %2079 = vrot.lane.b32.xlu0 %v408, 96
      %v2080 = vpop.permute.xlu0 %2079
      %2081 = vrot.lane.b32.xlu0 %v409, 96
      %v2082 = vpop.permute.xlu0 %2081
      %2083 = vrot.lane.b32.xlu0 %v410, 96
      %v2084 = vpop.permute.xlu0 %2083
      %2085 = vrot.lane.b32.xlu0 %v411, 96
      %v2086 = vpop.permute.xlu0 %2085
      %2087 = vrot.lane.b32.xlu0 %v412, 96
      %v2088 = vpop.permute.xlu0 %2087
      %2089 = vrot.lane.b32.xlu0 %v519, 96
      %v2090 = vpop.permute.xlu0 %2089
      %2091 = vrot.lane.b32.xlu0 %v520, 96
      %v2092 = vpop.permute.xlu0 %2091
      %2129 = vrot.lane.b32.xlu0 %v415, 104
      %v2130 = vpop.permute.xlu0 %2129
      %2131 = vrot.lane.b32.xlu0 %v416, 104
      %v2132 = vpop.permute.xlu0 %2131
      %2133 = vrot.lane.b32.xlu0 %v417, 104
      %v2134 = vpop.permute.xlu0 %2133
      %2135 = vrot.lane.b32.xlu0 %v418, 104
      %v2136 = vpop.permute.xlu0 %2135
      %2137 = vrot.lane.b32.xlu0 %v419, 104
      %v2138 = vpop.permute.xlu0 %2137
      %2139 = vrot.lane.b32.xlu0 %v420, 104
      %v2140 = vpop.permute.xlu0 %2139
      %2141 = vrot.lane.b32.xlu0 %v421, 104
      %v2142 = vpop.permute.xlu0 %2141
      %2143 = vrot.lane.b32.xlu0 %v422, 104
      %v2144 = vpop.permute.xlu0 %2143
      %2145 = vrot.lane.b32.xlu0 %v423, 104
      %v2146 = vpop.permute.xlu0 %2145
      %2147 = vrot.lane.b32.xlu0 %v424, 104
      %v2148 = vpop.permute.xlu0 %2147
      %2149 = vrot.lane.b32.xlu0 %v425, 104
      %v2150 = vpop.permute.xlu0 %2149
      %2151 = vrot.lane.b32.xlu0 %v426, 104
      %v2152 = vpop.permute.xlu0 %2151
      %2153 = vrot.lane.b32.xlu0 %v427, 104
      %v2154 = vpop.permute.xlu0 %2153
      %2155 = vrot.lane.b32.xlu0 %v428, 104
      %v2156 = vpop.permute.xlu0 %2155
      %2157 = vrot.lane.b32.xlu0 %v429, 104
      %v2158 = vpop.permute.xlu0 %2157
      %2159 = vrot.lane.b32.xlu0 %v430, 104
      %v2160 = vpop.permute.xlu0 %2159
      %2161 = vrot.lane.b32.xlu0 %v431, 104
      %v2162 = vpop.permute.xlu0 %2161
      %2163 = vrot.lane.b32.xlu0 %v432, 104
      %v2164 = vpop.permute.xlu0 %2163
      %2165 = vrot.lane.b32.xlu0 %v433, 104
      %v2166 = vpop.permute.xlu0 %2165
      %2167 = vrot.lane.b32.xlu0 %v434, 104
      %v2168 = vpop.permute.xlu0 %2167
      %2169 = vrot.lane.b32.xlu0 %v435, 104
      %v2170 = vpop.permute.xlu0 %2169
      %2171 = vrot.lane.b32.xlu0 %v436, 104
      %v2172 = vpop.permute.xlu0 %2171
      %2173 = vrot.lane.b32.xlu0 %v437, 104
      %v2174 = vpop.permute.xlu0 %2173
      %2175 = vrot.lane.b32.xlu0 %v438, 104
      %v2176 = vpop.permute.xlu0 %2175
      %2177 = vrot.lane.b32.xlu0 %v439, 104
      %v2178 = vpop.permute.xlu0 %2177
      %2179 = vrot.lane.b32.xlu0 %v440, 104
      %v2180 = vpop.permute.xlu0 %2179
      %2181 = vrot.lane.b32.xlu0 %v441, 104
      %v2182 = vpop.permute.xlu0 %2181
      %2183 = vrot.lane.b32.xlu0 %v442, 104
      %v2184 = vpop.permute.xlu0 %2183
      %2185 = vrot.lane.b32.xlu0 %v443, 104
      %v2186 = vpop.permute.xlu0 %2185
      %2187 = vrot.lane.b32.xlu0 %v444, 104
      %v2188 = vpop.permute.xlu0 %2187
      %2189 = vrot.lane.b32.xlu0 %v445, 104
      %v2190 = vpop.permute.xlu0 %2189
      %2191 = vrot.lane.b32.xlu0 %v446, 104
      %v2192 = vpop.permute.xlu0 %2191
      %2193 = vrot.lane.b32.xlu0 %v521, 104
      %v2194 = vpop.permute.xlu0 %2193
      %2195 = vrot.lane.b32.xlu0 %v522, 104
      %v2196 = vpop.permute.xlu0 %2195
      %2265 = vrot.lane.b32.xlu0 %v523, 112
      %v2266 = vpop.permute.xlu0 %2265
      %2267 = vrot.lane.b32.xlu0 %v524, 112
      %v2268 = vpop.permute.xlu0 %2267
      %2269 = vrot.lane.b32.xlu0 %v525, 112
      %v2270 = vpop.permute.xlu0 %2269
      %2271 = vrot.lane.b32.xlu0 %v526, 112
      %v2272 = vpop.permute.xlu0 %2271
      %2273 = vrot.lane.b32.xlu0 %v527, 112
      %v2274 = vpop.permute.xlu0 %2273
      %2275 = vrot.lane.b32.xlu0 %v528, 112
      %v2276 = vpop.permute.xlu0 %2275
      %2277 = vrot.lane.b32.xlu0 %v529, 112
      %v2278 = vpop.permute.xlu0 %2277
      %2279 = vrot.lane.b32.xlu0 %v530, 112
      %v2280 = vpop.permute.xlu0 %2279
      %2281 = vrot.lane.b32.xlu0 %v531, 112
      %v2282 = vpop.permute.xlu0 %2281
      %2283 = vrot.lane.b32.xlu0 %v532, 112
      %v2284 = vpop.permute.xlu0 %2283
      %2285 = vrot.lane.b32.xlu0 %v533, 112
      %v2286 = vpop.permute.xlu0 %2285
      %2287 = vrot.lane.b32.xlu0 %v534, 112
      %v2288 = vpop.permute.xlu0 %2287
      %2289 = vrot.lane.b32.xlu0 %v535, 112
      %v2290 = vpop.permute.xlu0 %2289
      %2291 = vrot.lane.b32.xlu0 %v536, 112
      %v2292 = vpop.permute.xlu0 %2291
      %2293 = vrot.lane.b32.xlu0 %v537, 112
      %v2294 = vpop.permute.xlu0 %2293
      %2295 = vrot.lane.b32.xlu0 %v538, 112
      %v2296 = vpop.permute.xlu0 %2295
      %2297 = vrot.lane.b32.xlu0 %v539, 112
      %v2298 = vpop.permute.xlu0 %2297
      %2299 = vrot.lane.b32.xlu0 %v540, 112
      %v2300 = vpop.permute.xlu0 %2299
      %2301 = vrot.lane.b32.xlu0 %v541, 112
      %v2302 = vpop.permute.xlu0 %2301
      %2303 = vrot.lane.b32.xlu0 %v542, 112
      %v2304 = vpop.permute.xlu0 %2303
      %2305 = vrot.lane.b32.xlu0 %v543, 112
      %v2306 = vpop.permute.xlu0 %2305
      %2307 = vrot.lane.b32.xlu0 %v544, 112
      %v2308 = vpop.permute.xlu0 %2307
      %2309 = vrot.lane.b32.xlu0 %v545, 112
      %v2310 = vpop.permute.xlu0 %2309
      %2311 = vrot.lane.b32.xlu0 %v546, 112
      %v2312 = vpop.permute.xlu0 %2311
      %2313 = vrot.lane.b32.xlu0 %v547, 112
      %v2314 = vpop.permute.xlu0 %2313
      %2315 = vrot.lane.b32.xlu0 %v548, 112
      %v2316 = vpop.permute.xlu0 %2315
      %2317 = vrot.lane.b32.xlu0 %v549, 112
      %v2318 = vpop.permute.xlu0 %2317
      %2319 = vrot.lane.b32.xlu0 %v550, 112
      %v2320 = vpop.permute.xlu0 %2319
      %2321 = vrot.lane.b32.xlu0 %v551, 112
      %v2322 = vpop.permute.xlu0 %2321
      %2323 = vrot.lane.b32.xlu0 %v552, 112
      %v2324 = vpop.permute.xlu0 %2323
      %2325 = vrot.lane.b32.xlu0 %v553, 112
      %v2326 = vpop.permute.xlu0 %2325
      %2327 = vrot.lane.b32.xlu0 %v554, 112
      %v2328 = vpop.permute.xlu0 %2327
      %2329 = vrot.lane.b32.xlu0 %v555, 112
      %v2330 = vpop.permute.xlu0 %2329
      %2331 = vrot.lane.b32.xlu0 %v556, 112
      %v2332 = vpop.permute.xlu0 %2331
      %2401 = vrot.lane.b32.xlu0 %v557, 120
      %v2402 = vpop.permute.xlu0 %2401
      %2403 = vrot.lane.b32.xlu0 %v558, 120
      %v2404 = vpop.permute.xlu0 %2403
      %2405 = vrot.lane.b32.xlu0 %v559, 120
      %v2406 = vpop.permute.xlu0 %2405
      %2407 = vrot.lane.b32.xlu0 %v560, 120
      %v2408 = vpop.permute.xlu0 %2407
      %2409 = vrot.lane.b32.xlu0 %v561, 120
      %v2410 = vpop.permute.xlu0 %2409
      %2411 = vrot.lane.b32.xlu0 %v562, 120
      %v2412 = vpop.permute.xlu0 %2411
      %2413 = vrot.lane.b32.xlu0 %v563, 120
      %v2414 = vpop.permute.xlu0 %2413
      %2415 = vrot.lane.b32.xlu0 %v564, 120
      %v2416 = vpop.permute.xlu0 %2415
      %2417 = vrot.lane.b32.xlu0 %v565, 120
      %v2418 = vpop.permute.xlu0 %2417
      %2419 = vrot.lane.b32.xlu0 %v566, 120
      %v2420 = vpop.permute.xlu0 %2419
      %2421 = vrot.lane.b32.xlu0 %v567, 120
      %v2422 = vpop.permute.xlu0 %2421
      %2423 = vrot.lane.b32.xlu0 %v568, 120
      %v2424 = vpop.permute.xlu0 %2423
      %2425 = vrot.lane.b32.xlu0 %v569, 120
      %v2426 = vpop.permute.xlu0 %2425
      %2427 = vrot.lane.b32.xlu0 %v570, 120
      %v2428 = vpop.permute.xlu0 %2427
      %2429 = vrot.lane.b32.xlu0 %v571, 120
      %v2430 = vpop.permute.xlu0 %2429
      %2431 = vrot.lane.b32.xlu0 %v572, 120
      %v2432 = vpop.permute.xlu0 %2431
      %2433 = vrot.lane.b32.xlu0 %v573, 120
      %v2434 = vpop.permute.xlu0 %2433
      %2435 = vrot.lane.b32.xlu0 %v574, 120
      %v2436 = vpop.permute.xlu0 %2435
      %2437 = vrot.lane.b32.xlu0 %v575, 120
      %v2438 = vpop.permute.xlu0 %2437
      %2439 = vrot.lane.b32.xlu0 %v576, 120
      %v2440 = vpop.permute.xlu0 %2439
      %2441 = vrot.lane.b32.xlu0 %v577, 120
      %v2442 = vpop.permute.xlu0 %2441
      %2443 = vrot.lane.b32.xlu0 %v578, 120
      %v2444 = vpop.permute.xlu0 %2443
      %2445 = vrot.lane.b32.xlu0 %v579, 120
      %v2446 = vpop.permute.xlu0 %2445
      %2447 = vrot.lane.b32.xlu0 %v580, 120
      %v2448 = vpop.permute.xlu0 %2447
      %2449 = vrot.lane.b32.xlu0 %v581, 120
      %v2450 = vpop.permute.xlu0 %2449
      %2451 = vrot.lane.b32.xlu0 %v582, 120
      %v2452 = vpop.permute.xlu0 %2451
      %2453 = vrot.lane.b32.xlu0 %v583, 120
      %v2454 = vpop.permute.xlu0 %2453
      %2455 = vrot.lane.b32.xlu0 %v584, 120
      %v2456 = vpop.permute.xlu0 %2455
      %2457 = vrot.lane.b32.xlu0 %v585, 120
      %v2458 = vpop.permute.xlu0 %2457
      %2459 = vrot.lane.b32.xlu0 %v586, 120
      %v2460 = vpop.permute.xlu0 %2459
      %2461 = vrot.lane.b32.xlu0 %v587, 120
      %v2462 = vpop.permute.xlu0 %2461
      %2463 = vrot.lane.b32.xlu0 %v588, 120
      %v2464 = vpop.permute.xlu0 %2463
      %2465 = vrot.lane.b32.xlu0 %v589, 120
      %v2466 = vpop.permute.xlu0 %2465
      %2467 = vrot.lane.b32.xlu0 %v590, 120
      %v2468 = vpop.permute.xlu0 %2467
      %vm2503 = vcmask 64512
      %v2504 = vsel %vm2503, %v172, %v626
      %v2505 = vsel %vm2503, %v173, %v628
      %v2506 = vsel %vm2503, %v174, %v630
      %v2507 = vsel %vm2503, %v175, %v632
      %v2508 = vsel %vm2503, %v176, %v634
      %v2509 = vsel %vm2503, %v177, %v636
      %v2510 = vsel %vm2503, %v178, %v638
      %v2511 = vsel %vm2503, %v179, %v640
      %v2512 = vsel %vm2503, %v180, %v642
      %v2513 = vsel %vm2503, %v181, %v644
      %v2514 = vsel %vm2503, %v182, %v646
      %v2515 = vsel %vm2503, %v183, %v648
      %v2516 = vsel %vm2503, %v184, %v650
      %v2517 = vsel %vm2503, %v185, %v652
      %v2518 = vsel %vm2503, %v186, %v654
      %v2519 = vsel %vm2503, %v187, %v656
      %v2520 = vsel %vm2503, %v188, %v658
      %v2521 = vsel %vm2503, %v189, %v660
      %v2522 = vsel %vm2503, %v190, %v662
      %v2523 = vsel %vm2503, %v191, %v664
      %v2524 = vsel %vm2503, %v192, %v666
      %v2525 = vsel %vm2503, %v193, %v668
      %v2526 = vsel %vm2503, %v194, %v670
      %v2527 = vsel %vm2503, %v195, %v672
      %v2528 = vsel %vm2503, %v196, %v674
      %v2529 = vsel %vm2503, %v197, %v676
      %v2530 = vsel %vm2503, %v198, %v678
      %v2531 = vsel %vm2503, %v199, %v680
      %v2532 = vsel %vm2503, %v200, %v682
      %v2533 = vsel %vm2503, %v201, %v684
      %v2534 = vsel %vm2503, %v202, %v686
      %v2535 = vsel %vm2503, %v203, %v688
      %v2536 = vsel %vm2503, %v204, %v690
      %v2537 = vsel %vm2503, %v205, %v692
      %vm2538 = vcmask 130048
      %v2539 = vsel %vm2538, %v2504, %v762
      %v2540 = vsel %vm2538, %v2505, %v764
      %v2541 = vsel %vm2538, %v2506, %v766
      %v2542 = vsel %vm2538, %v2507, %v768
      %v2543 = vsel %vm2538, %v2508, %v770
      %v2544 = vsel %vm2538, %v2509, %v772
      %v2545 = vsel %vm2538, %v2510, %v774
      %v2546 = vsel %vm2538, %v2511, %v776
      %v2547 = vsel %vm2538, %v2512, %v778
      %v2548 = vsel %vm2538, %v2513, %v780
      %v2549 = vsel %vm2538, %v2514, %v782
      %v2550 = vsel %vm2538, %v2515, %v784
      %v2551 = vsel %vm2538, %v2516, %v786
      %v2552 = vsel %vm2538, %v2517, %v788
      %v2553 = vsel %vm2538, %v2518, %v790
      %v2554 = vsel %vm2538, %v2519, %v792
      %v2555 = vsel %vm2538, %v2520, %v794
      %v2556 = vsel %vm2538, %v2521, %v796
      %v2557 = vsel %vm2538, %v2522, %v798
      %v2558 = vsel %vm2538, %v2523, %v800
      %v2559 = vsel %vm2538, %v2524, %v802
      %v2560 = vsel %vm2538, %v2525, %v804
      %v2561 = vsel %vm2538, %v2526, %v806
      %v2562 = vsel %vm2538, %v2527, %v808
      %v2563 = vsel %vm2538, %v2528, %v810
      %v2564 = vsel %vm2538, %v2529, %v812
      %v2565 = vsel %vm2538, %v2530, %v814
      %v2566 = vsel %vm2538, %v2531, %v816
      %v2567 = vsel %vm2538, %v2532, %v818
      %v2568 = vsel %vm2538, %v2533, %v820
      %v2569 = vsel %vm2538, %v2534, %v822
      %v2570 = vsel %vm2538, %v2535, %v824
      %v2571 = vsel %vm2538, %v2536, %v826
      %v2572 = vsel %vm2538, %v2537, %v828
      %vm2573 = vcmask 195584
      %v2574 = vsel %vm2573, %v2539, %v898
      %v2575 = vsel %vm2573, %v2540, %v900
      %v2576 = vsel %vm2573, %v2541, %v902
      %v2577 = vsel %vm2573, %v2542, %v904
      %v2578 = vsel %vm2573, %v2543, %v906
      %v2579 = vsel %vm2573, %v2544, %v908
      %v2580 = vsel %vm2573, %v2545, %v910
      %v2581 = vsel %vm2573, %v2546, %v912
      %v2582 = vsel %vm2573, %v2547, %v914
      %v2583 = vsel %vm2573, %v2548, %v916
      %v2584 = vsel %vm2573, %v2549, %v918
      %v2585 = vsel %vm2573, %v2550, %v920
      %v2586 = vsel %vm2573, %v2551, %v922
      %v2587 = vsel %vm2573, %v2552, %v924
      %v2588 = vsel %vm2573, %v2553, %v926
      %v2589 = vsel %vm2573, %v2554, %v928
      %v2590 = vsel %vm2573, %v2555, %v930
      %v2591 = vsel %vm2573, %v2556, %v932
      %v2592 = vsel %vm2573, %v2557, %v934
      %v2593 = vsel %vm2573, %v2558, %v936
      %v2594 = vsel %vm2573, %v2559, %v938
      %v2595 = vsel %vm2573, %v2560, %v940
      %v2596 = vsel %vm2573, %v2561, %v942
      %v2597 = vsel %vm2573, %v2562, %v944
      %v2598 = vsel %vm2573, %v2563, %v946
      %v2599 = vsel %vm2573, %v2564, %v948
      %v2600 = vsel %vm2573, %v2565, %v950
      %v2601 = vsel %vm2573, %v2566, %v952
      %v2602 = vsel %vm2573, %v2567, %v954
      %v2603 = vsel %vm2573, %v2568, %v956
      %v2604 = vsel %vm2573, %v2569, %v958
      %v2605 = vsel %vm2573, %v2570, %v960
      %v2606 = vsel %vm2573, %v2571, %v962
      %v2607 = vsel %vm2573, %v2572, %v964
      %vm2608 = vcmask 261120
      %v2609 = vsel %vm2608, %v2574, %v1034
      %v2610 = vsel %vm2608, %v2575, %v1036
      %v2611 = vsel %vm2608, %v2576, %v1038
      %v2612 = vsel %vm2608, %v2577, %v1040
      %v2613 = vsel %vm2608, %v2578, %v1042
      %v2614 = vsel %vm2608, %v2579, %v1044
      %v2615 = vsel %vm2608, %v2580, %v1046
      %v2616 = vsel %vm2608, %v2581, %v1048
      %v2617 = vsel %vm2608, %v2582, %v1050
      %v2618 = vsel %vm2608, %v2583, %v1052
      %v2619 = vsel %vm2608, %v2584, %v1054
      %v2620 = vsel %vm2608, %v2585, %v1056
      %v2621 = vsel %vm2608, %v2586, %v1058
      %v2622 = vsel %vm2608, %v2587, %v1060
      %v2623 = vsel %vm2608, %v2588, %v1062
      %v2624 = vsel %vm2608, %v2589, %v1064
      %v2625 = vsel %vm2608, %v2590, %v1066
      %v2626 = vsel %vm2608, %v2591, %v1068
      %v2627 = vsel %vm2608, %v2592, %v1070
      %v2628 = vsel %vm2608, %v2593, %v1072
      %v2629 = vsel %vm2608, %v2594, %v1074
      %v2630 = vsel %vm2608, %v2595, %v1076
      %v2631 = vsel %vm2608, %v2596, %v1078
      %v2632 = vsel %vm2608, %v2597, %v1080
      %v2633 = vsel %vm2608, %v2598, %v1082
      %v2634 = vsel %vm2608, %v2599, %v1084
      %v2635 = vsel %vm2608, %v2600, %v1086
      %v2636 = vsel %vm2608, %v2601, %v1088
      %v2637 = vsel %vm2608, %v2602, %v1090
      %v2638 = vsel %vm2608, %v2603, %v1092
      %v2639 = vsel %vm2608, %v2604, %v1094
      %v2640 = vsel %vm2608, %v2605, %v1096
      %v2641 = vsel %vm2608, %v2606, %v1098
      %v2642 = vsel %vm2608, %v2607, %v1100
      %vm2643 = vcmask 326656
      %v2644 = vsel %vm2643, %v2609, %v1170
      %v2645 = vsel %vm2643, %v2610, %v1172
      %v2646 = vsel %vm2643, %v2611, %v1174
      %v2647 = vsel %vm2643, %v2612, %v1176
      %v2648 = vsel %vm2643, %v2613, %v1178
      %v2649 = vsel %vm2643, %v2614, %v1180
      %v2650 = vsel %vm2643, %v2615, %v1182
      %v2651 = vsel %vm2643, %v2616, %v1184
      %v2652 = vsel %vm2643, %v2617, %v1186
      %v2653 = vsel %vm2643, %v2618, %v1188
      %v2654 = vsel %vm2643, %v2619, %v1190
      %v2655 = vsel %vm2643, %v2620, %v1192
      %v2656 = vsel %vm2643, %v2621, %v1194
      %v2657 = vsel %vm2643, %v2622, %v1196
      %v2658 = vsel %vm2643, %v2623, %v1198
      %v2659 = vsel %vm2643, %v2624, %v1200
      %v2660 = vsel %vm2643, %v2625, %v1202
      %v2661 = vsel %vm2643, %v2626, %v1204
      %v2662 = vsel %vm2643, %v2627, %v1206
      %v2663 = vsel %vm2643, %v2628, %v1208
      %v2664 = vsel %vm2643, %v2629, %v1210
      %v2665 = vsel %vm2643, %v2630, %v1212
      %v2666 = vsel %vm2643, %v2631, %v1214
      %v2667 = vsel %vm2643, %v2632, %v1216
      %v2668 = vsel %vm2643, %v2633, %v1218
      %v2669 = vsel %vm2643, %v2634, %v1220
      %v2670 = vsel %vm2643, %v2635, %v1222
      %v2671 = vsel %vm2643, %v2636, %v1224
      %v2672 = vsel %vm2643, %v2637, %v1226
      %v2673 = vsel %vm2643, %v2638, %v1228
      %v2674 = vsel %vm2643, %v2639, %v1230
      %v2675 = vsel %vm2643, %v2640, %v1232
      %v2676 = vsel %vm2643, %v2641, %v1234
      %v2677 = vsel %vm2643, %v2642, %v1236
      %vm2678 = vcmask 392192
      %v2679 = vsel %vm2678, %v2644, %v1306
      %v2680 = vsel %vm2678, %v2645, %v1308
      %v2681 = vsel %vm2678, %v2646, %v1310
      %v2682 = vsel %vm2678, %v2647, %v1312
      %v2683 = vsel %vm2678, %v2648, %v1314
      %v2684 = vsel %vm2678, %v2649, %v1316
      %v2685 = vsel %vm2678, %v2650, %v1318
      %v2686 = vsel %vm2678, %v2651, %v1320
      %v2687 = vsel %vm2678, %v2652, %v1322
      %v2688 = vsel %vm2678, %v2653, %v1324
      %v2689 = vsel %vm2678, %v2654, %v1326
      %v2690 = vsel %vm2678, %v2655, %v1328
      %v2691 = vsel %vm2678, %v2656, %v1330
      %v2692 = vsel %vm2678, %v2657, %v1332
      %v2693 = vsel %vm2678, %v2658, %v1334
      %v2694 = vsel %vm2678, %v2659, %v1336
      %v2695 = vsel %vm2678, %v2660, %v1338
      %v2696 = vsel %vm2678, %v2661, %v1340
      %v2697 = vsel %vm2678, %v2662, %v1342
      %v2698 = vsel %vm2678, %v2663, %v1344
      %v2699 = vsel %vm2678, %v2664, %v1346
      %v2700 = vsel %vm2678, %v2665, %v1348
      %v2701 = vsel %vm2678, %v2666, %v1350
      %v2702 = vsel %vm2678, %v2667, %v1352
      %v2703 = vsel %vm2678, %v2668, %v1354
      %v2704 = vsel %vm2678, %v2669, %v1356
      %v2705 = vsel %vm2678, %v2670, %v1358
      %v2706 = vsel %vm2678, %v2671, %v1360
      %v2707 = vsel %vm2678, %v2672, %v1362
      %v2708 = vsel %vm2678, %v2673, %v1364
      %v2709 = vsel %vm2678, %v2674, %v1366
      %v2710 = vsel %vm2678, %v2675, %v1368
      %v2711 = vsel %vm2678, %v2676, %v1370
      %v2712 = vsel %vm2678, %v2677, %v1372
      %vm2713 = vcmask 457728
      %v2714 = vsel %vm2713, %v2679, %v1442
      %v2715 = vsel %vm2713, %v2680, %v1444
      %v2716 = vsel %vm2713, %v2681, %v1446
      %v2717 = vsel %vm2713, %v2682, %v1448
      %v2718 = vsel %vm2713, %v2683, %v1450
      %v2719 = vsel %vm2713, %v2684, %v1452
      %v2720 = vsel %vm2713, %v2685, %v1454
      %v2721 = vsel %vm2713, %v2686, %v1456
      %v2722 = vsel %vm2713, %v2687, %v1458
      %v2723 = vsel %vm2713, %v2688, %v1460
      %v2724 = vsel %vm2713, %v2689, %v1462
      %v2725 = vsel %vm2713, %v2690, %v1464
      %v2726 = vsel %vm2713, %v2691, %v1466
      %v2727 = vsel %vm2713, %v2692, %v1468
      %v2728 = vsel %vm2713, %v2693, %v1470
      %v2729 = vsel %vm2713, %v2694, %v1472
      %v2730 = vsel %vm2713, %v2695, %v1474
      %v2731 = vsel %vm2713, %v2696, %v1476
      %v2732 = vsel %vm2713, %v2697, %v1478
      %v2733 = vsel %vm2713, %v2698, %v1480
      %v2734 = vsel %vm2713, %v2699, %v1482
      %v2735 = vsel %vm2713, %v2700, %v1484
      %v2736 = vsel %vm2713, %v2701, %v1486
      %v2737 = vsel %vm2713, %v2702, %v1488
      %v2738 = vsel %vm2713, %v2703, %v1490
      %v2739 = vsel %vm2713, %v2704, %v1492
      %v2740 = vsel %vm2713, %v2705, %v1494
      %v2741 = vsel %vm2713, %v2706, %v1496
      %v2742 = vsel %vm2713, %v2707, %v1498
      %v2743 = vsel %vm2713, %v2708, %v1500
      %v2744 = vsel %vm2713, %v2709, %v1502
      %v2745 = vsel %vm2713, %v2710, %v1504
      %v2746 = vsel %vm2713, %v2711, %v1506
      %v2747 = vsel %vm2713, %v2712, %v1508
      %vm2748 = vcmask 523264
      %v2749 = vsel %vm2748, %v2714, %v1546
      %v2750 = vsel %vm2748, %v2715, %v1548
      %v2751 = vsel %vm2748, %v2716, %v1550
      %v2752 = vsel %vm2748, %v2717, %v1552
      %v2753 = vsel %vm2748, %v2718, %v1554
      %v2754 = vsel %vm2748, %v2719, %v1556
      %v2755 = vsel %vm2748, %v2720, %v1558
      %v2756 = vsel %vm2748, %v2721, %v1560
      %v2757 = vsel %vm2748, %v2722, %v1562
      %v2758 = vsel %vm2748, %v2723, %v1564
      %v2759 = vsel %vm2748, %v2724, %v1566
      %v2760 = vsel %vm2748, %v2725, %v1568
      %v2761 = vsel %vm2748, %v2726, %v1570
      %v2762 = vsel %vm2748, %v2727, %v1572
      %v2763 = vsel %vm2748, %v2728, %v1574
      %v2764 = vsel %vm2748, %v2729, %v1576
      %v2765 = vsel %vm2748, %v2730, %v1578
      %v2766 = vsel %vm2748, %v2731, %v1580
      %v2767 = vsel %vm2748, %v2732, %v1582
      %v2768 = vsel %vm2748, %v2733, %v1584
      %v2769 = vsel %vm2748, %v2734, %v1586
      %v2770 = vsel %vm2748, %v2735, %v1588
      %v2771 = vsel %vm2748, %v2736, %v1590
      %v2772 = vsel %vm2748, %v2737, %v1592
      %v2773 = vsel %vm2748, %v2738, %v1594
      %v2774 = vsel %vm2748, %v2739, %v1596
      %v2775 = vsel %vm2748, %v2740, %v1598
      %v2776 = vsel %vm2748, %v2741, %v1600
      %v2777 = vsel %vm2748, %v2742, %v1602
      %v2778 = vsel %vm2748, %v2743, %v1604
      %v2779 = vsel %vm2748, %v2744, %v1606
      %v2780 = vsel %vm2748, %v2745, %v1608
      %v2781 = vsel %vm2748, %v2746, %v1610
      %v2782 = vsel %vm2748, %v2747, %v1612
      %vm2783 = vcmask 588800
      %v2784 = vsel %vm2783, %v2749, %v1650
      %v2785 = vsel %vm2783, %v2750, %v1652
      %v2786 = vsel %vm2783, %v2751, %v1654
      %v2787 = vsel %vm2783, %v2752, %v1656
      %v2788 = vsel %vm2783, %v2753, %v1658
      %v2789 = vsel %vm2783, %v2754, %v1660
      %v2790 = vsel %vm2783, %v2755, %v1662
      %v2791 = vsel %vm2783, %v2756, %v1664
      %v2792 = vsel %vm2783, %v2757, %v1666
      %v2793 = vsel %vm2783, %v2758, %v1668
      %v2794 = vsel %vm2783, %v2759, %v1670
      %v2795 = vsel %vm2783, %v2760, %v1672
      %v2796 = vsel %vm2783, %v2761, %v1674
      %v2797 = vsel %vm2783, %v2762, %v1676
      %v2798 = vsel %vm2783, %v2763, %v1678
      %v2799 = vsel %vm2783, %v2764, %v1680
      %v2800 = vsel %vm2783, %v2765, %v1682
      %v2801 = vsel %vm2783, %v2766, %v1684
      %v2802 = vsel %vm2783, %v2767, %v1686
      %v2803 = vsel %vm2783, %v2768, %v1688
      %v2804 = vsel %vm2783, %v2769, %v1690
      %v2805 = vsel %vm2783, %v2770, %v1692
      %v2806 = vsel %vm2783, %v2771, %v1694
      %v2807 = vsel %vm2783, %v2772, %v1696
      %v2808 = vsel %vm2783, %v2773, %v1698
      %v2809 = vsel %vm2783, %v2774, %v1700
      %v2810 = vsel %vm2783, %v2775, %v1702
      %v2811 = vsel %vm2783, %v2776, %v1704
      %v2812 = vsel %vm2783, %v2777, %v1706
      %v2813 = vsel %vm2783, %v2778, %v1708
      %v2814 = vsel %vm2783, %v2779, %v1710
      %v2815 = vsel %vm2783, %v2780, %v1712
      %v2816 = vsel %vm2783, %v2781, %v1714
      %v2817 = vsel %vm2783, %v2782, %v1716
      %vm2818 = vcmask 654336
      %v2819 = vsel %vm2818, %v2784, %v1786
      %v2820 = vsel %vm2818, %v2785, %v1788
      %v2821 = vsel %vm2818, %v2786, %v1790
      %v2822 = vsel %vm2818, %v2787, %v1792
      %v2823 = vsel %vm2818, %v2788, %v1794
      %v2824 = vsel %vm2818, %v2789, %v1796
      %v2825 = vsel %vm2818, %v2790, %v1798
      %v2826 = vsel %vm2818, %v2791, %v1800
      %v2827 = vsel %vm2818, %v2792, %v1802
      %v2828 = vsel %vm2818, %v2793, %v1804
      %v2829 = vsel %vm2818, %v2794, %v1806
      %v2830 = vsel %vm2818, %v2795, %v1808
      %v2831 = vsel %vm2818, %v2796, %v1810
      %v2832 = vsel %vm2818, %v2797, %v1812
      %v2833 = vsel %vm2818, %v2798, %v1814
      %v2834 = vsel %vm2818, %v2799, %v1816
      %v2835 = vsel %vm2818, %v2800, %v1818
      %v2836 = vsel %vm2818, %v2801, %v1820
      %v2837 = vsel %vm2818, %v2802, %v1822
      %v2838 = vsel %vm2818, %v2803, %v1824
      %v2839 = vsel %vm2818, %v2804, %v1826
      %v2840 = vsel %vm2818, %v2805, %v1828
      %v2841 = vsel %vm2818, %v2806, %v1830
      %v2842 = vsel %vm2818, %v2807, %v1832
      %v2843 = vsel %vm2818, %v2808, %v1834
      %v2844 = vsel %vm2818, %v2809, %v1836
      %v2845 = vsel %vm2818, %v2810, %v1838
      %v2846 = vsel %vm2818, %v2811, %v1840
      %v2847 = vsel %vm2818, %v2812, %v1842
      %v2848 = vsel %vm2818, %v2813, %v1844
      %v2849 = vsel %vm2818, %v2814, %v1846
      %v2850 = vsel %vm2818, %v2815, %v1848
      %v2851 = vsel %vm2818, %v2816, %v1850
      %v2852 = vsel %vm2818, %v2817, %v1852
      %vm2853 = vcmask 719872
      %v2854 = vsel %vm2853, %v2819, %v1922
      %v2855 = vsel %vm2853, %v2820, %v1924
      %v2856 = vsel %vm2853, %v2821, %v1926
      %v2857 = vsel %vm2853, %v2822, %v1928
      %v2858 = vsel %vm2853, %v2823, %v1930
      %v2859 = vsel %vm2853, %v2824, %v1932
      %v2860 = vsel %vm2853, %v2825, %v1934
      %v2861 = vsel %vm2853, %v2826, %v1936
      %v2862 = vsel %vm2853, %v2827, %v1938
      %v2863 = vsel %vm2853, %v2828, %v1940
      %v2864 = vsel %vm2853, %v2829, %v1942
      %v2865 = vsel %vm2853, %v2830, %v1944
      %v2866 = vsel %vm2853, %v2831, %v1946
      %v2867 = vsel %vm2853, %v2832, %v1948
      %v2868 = vsel %vm2853, %v2833, %v1950
      %v2869 = vsel %vm2853, %v2834, %v1952
      %v2870 = vsel %vm2853, %v2835, %v1954
      %v2871 = vsel %vm2853, %v2836, %v1956
      %v2872 = vsel %vm2853, %v2837, %v1958
      %v2873 = vsel %vm2853, %v2838, %v1960
      %v2874 = vsel %vm2853, %v2839, %v1962
      %v2875 = vsel %vm2853, %v2840, %v1964
      %v2876 = vsel %vm2853, %v2841, %v1966
      %v2877 = vsel %vm2853, %v2842, %v1968
      %v2878 = vsel %vm2853, %v2843, %v1970
      %v2879 = vsel %vm2853, %v2844, %v1972
      %v2880 = vsel %vm2853, %v2845, %v1974
      %v2881 = vsel %vm2853, %v2846, %v1976
      %v2882 = vsel %vm2853, %v2847, %v1978
      %v2883 = vsel %vm2853, %v2848, %v1980
      %v2884 = vsel %vm2853, %v2849, %v1982
      %v2885 = vsel %vm2853, %v2850, %v1984
      %v2886 = vsel %vm2853, %v2851, %v1986
      %v2887 = vsel %vm2853, %v2852, %v1988
      %vm2888 = vcmask 785408
      %v2889 = vsel %vm2888, %v2854, %v2026
      %v2890 = vsel %vm2888, %v2855, %v2028
      %v2891 = vsel %vm2888, %v2856, %v2030
      %v2892 = vsel %vm2888, %v2857, %v2032
      %v2893 = vsel %vm2888, %v2858, %v2034
      %v2894 = vsel %vm2888, %v2859, %v2036
      %v2895 = vsel %vm2888, %v2860, %v2038
      %v2896 = vsel %vm2888, %v2861, %v2040
      %v2897 = vsel %vm2888, %v2862, %v2042
      %v2898 = vsel %vm2888, %v2863, %v2044
      %v2899 = vsel %vm2888, %v2864, %v2046
      %v2900 = vsel %vm2888, %v2865, %v2048
      %v2901 = vsel %vm2888, %v2866, %v2050
      %v2902 = vsel %vm2888, %v2867, %v2052
      %v2903 = vsel %vm2888, %v2868, %v2054
      %v2904 = vsel %vm2888, %v2869, %v2056
      %v2905 = vsel %vm2888, %v2870, %v2058
      %v2906 = vsel %vm2888, %v2871, %v2060
      %v2907 = vsel %vm2888, %v2872, %v2062
      %v2908 = vsel %vm2888, %v2873, %v2064
      %v2909 = vsel %vm2888, %v2874, %v2066
      %v2910 = vsel %vm2888, %v2875, %v2068
      %v2911 = vsel %vm2888, %v2876, %v2070
      %v2912 = vsel %vm2888, %v2877, %v2072
      %v2913 = vsel %vm2888, %v2878, %v2074
      %v2914 = vsel %vm2888, %v2879, %v2076
      %v2915 = vsel %vm2888, %v2880, %v2078
      %v2916 = vsel %vm2888, %v2881, %v2080
      %v2917 = vsel %vm2888, %v2882, %v2082
      %v2918 = vsel %vm2888, %v2883, %v2084
      %v2919 = vsel %vm2888, %v2884, %v2086
      %v2920 = vsel %vm2888, %v2885, %v2088
      %v2921 = vsel %vm2888, %v2886, %v2090
      %v2922 = vsel %vm2888, %v2887, %v2092
      %vm2923 = vcmask 850944
      %v2924 = vsel %vm2923, %v2889, %v2130
      %v2925 = vsel %vm2923, %v2890, %v2132
      %v2926 = vsel %vm2923, %v2891, %v2134
      %v2927 = vsel %vm2923, %v2892, %v2136
      %v2928 = vsel %vm2923, %v2893, %v2138
      %v2929 = vsel %vm2923, %v2894, %v2140
      %v2930 = vsel %vm2923, %v2895, %v2142
      %v2931 = vsel %vm2923, %v2896, %v2144
      %v2932 = vsel %vm2923, %v2897, %v2146
      %v2933 = vsel %vm2923, %v2898, %v2148
      %v2934 = vsel %vm2923, %v2899, %v2150
      %v2935 = vsel %vm2923, %v2900, %v2152
      %v2936 = vsel %vm2923, %v2901, %v2154
      %v2937 = vsel %vm2923, %v2902, %v2156
      %v2938 = vsel %vm2923, %v2903, %v2158
      %v2939 = vsel %vm2923, %v2904, %v2160
      %v2940 = vsel %vm2923, %v2905, %v2162
      %v2941 = vsel %vm2923, %v2906, %v2164
      %v2942 = vsel %vm2923, %v2907, %v2166
      %v2943 = vsel %vm2923, %v2908, %v2168
      %v2944 = vsel %vm2923, %v2909, %v2170
      %v2945 = vsel %vm2923, %v2910, %v2172
      %v2946 = vsel %vm2923, %v2911, %v2174
      %v2947 = vsel %vm2923, %v2912, %v2176
      %v2948 = vsel %vm2923, %v2913, %v2178
      %v2949 = vsel %vm2923, %v2914, %v2180
      %v2950 = vsel %vm2923, %v2915, %v2182
      %v2951 = vsel %vm2923, %v2916, %v2184
      %v2952 = vsel %vm2923, %v2917, %v2186
      %v2953 = vsel %vm2923, %v2918, %v2188
      %v2954 = vsel %vm2923, %v2919, %v2190
      %v2955 = vsel %vm2923, %v2920, %v2192
      %v2956 = vsel %vm2923, %v2921, %v2194
      %v2957 = vsel %vm2923, %v2922, %v2196
      %vm2958 = vcmask 916480
      %v2959 = vsel %vm2958, %v2924, %v2266
      %v2960 = vsel %vm2958, %v2925, %v2268
      %v2961 = vsel %vm2958, %v2926, %v2270
      %v2962 = vsel %vm2958, %v2927, %v2272
      %v2963 = vsel %vm2958, %v2928, %v2274
      %v2964 = vsel %vm2958, %v2929, %v2276
      %v2965 = vsel %vm2958, %v2930, %v2278
      %v2966 = vsel %vm2958, %v2931, %v2280
      %v2967 = vsel %vm2958, %v2932, %v2282
      %v2968 = vsel %vm2958, %v2933, %v2284
      %v2969 = vsel %vm2958, %v2934, %v2286
      %v2970 = vsel %vm2958, %v2935, %v2288
      %v2971 = vsel %vm2958, %v2936, %v2290
      %v2972 = vsel %vm2958, %v2937, %v2292
      %v2973 = vsel %vm2958, %v2938, %v2294
      %v2974 = vsel %vm2958, %v2939, %v2296
      %v2975 = vsel %vm2958, %v2940, %v2298
      %v2976 = vsel %vm2958, %v2941, %v2300
      %v2977 = vsel %vm2958, %v2942, %v2302
      %v2978 = vsel %vm2958, %v2943, %v2304
      %v2979 = vsel %vm2958, %v2944, %v2306
      %v2980 = vsel %vm2958, %v2945, %v2308
      %v2981 = vsel %vm2958, %v2946, %v2310
      %v2982 = vsel %vm2958, %v2947, %v2312
      %v2983 = vsel %vm2958, %v2948, %v2314
      %v2984 = vsel %vm2958, %v2949, %v2316
      %v2985 = vsel %vm2958, %v2950, %v2318
      %v2986 = vsel %vm2958, %v2951, %v2320
      %v2987 = vsel %vm2958, %v2952, %v2322
      %v2988 = vsel %vm2958, %v2953, %v2324
      %v2989 = vsel %vm2958, %v2954, %v2326
      %v2990 = vsel %vm2958, %v2955, %v2328
      %v2991 = vsel %vm2958, %v2956, %v2330
      %v2992 = vsel %vm2958, %v2957, %v2332
      %vm2993 = vcmask 982016
      %v2994 = vsel %vm2993, %v2959, %v2402
      %v2995 = vsel %vm2993, %v2960, %v2404
      %v2996 = vsel %vm2993, %v2961, %v2406
      %v2997 = vsel %vm2993, %v2962, %v2408
      %v2998 = vsel %vm2993, %v2963, %v2410
      %v2999 = vsel %vm2993, %v2964, %v2412
      %v3000 = vsel %vm2993, %v2965, %v2414
      %v3001 = vsel %vm2993, %v2966, %v2416
      %v3002 = vsel %vm2993, %v2967, %v2418
      %v3003 = vsel %vm2993, %v2968, %v2420
      %v3004 = vsel %vm2993, %v2969, %v2422
      %v3005 = vsel %vm2993, %v2970, %v2424
      %v3006 = vsel %vm2993, %v2971, %v2426
      %v3007 = vsel %vm2993, %v2972, %v2428
      %v3008 = vsel %vm2993, %v2973, %v2430
      %v3009 = vsel %vm2993, %v2974, %v2432
      %v3010 = vsel %vm2993, %v2975, %v2434
      %v3011 = vsel %vm2993, %v2976, %v2436
      %v3012 = vsel %vm2993, %v2977, %v2438
      %v3013 = vsel %vm2993, %v2978, %v2440
      %v3014 = vsel %vm2993, %v2979, %v2442
      %v3015 = vsel %vm2993, %v2980, %v2444
      %v3016 = vsel %vm2993, %v2981, %v2446
      %v3017 = vsel %vm2993, %v2982, %v2448
      %v3018 = vsel %vm2993, %v2983, %v2450
      %v3019 = vsel %vm2993, %v2984, %v2452
      %v3020 = vsel %vm2993, %v2985, %v2454
      %v3021 = vsel %vm2993, %v2986, %v2456
      %v3022 = vsel %vm2993, %v2987, %v2458
      %v3023 = vsel %vm2993, %v2988, %v2460
      %v3024 = vsel %vm2993, %v2989, %v2462
      %v3025 = vsel %vm2993, %v2990, %v2464
      %v3026 = vsel %vm2993, %v2991, %v2466
      %v3027 = vsel %vm2993, %v2992, %v2468
      %v3028 = vpack.c.bf16 %v2995, %v2994
      %v3029 = vpack.c.bf16 %v2997, %v2996
      %v3030 = vpack.c.bf16 %v2999, %v2998
      %v3031 = vpack.c.bf16 %v3001, %v3000
      %v3032 = vpack.c.bf16 %v3003, %v3002
      %v3033 = vpack.c.bf16 %v3005, %v3004
      %v3034 = vpack.c.bf16 %v3007, %v3006
      %v3035 = vpack.c.bf16 %v3009, %v3008
      %v3036 = vpack.c.bf16 %v3011, %v3010
      %v3037 = vpack.c.bf16 %v3013, %v3012
      %v3038 = vpack.c.bf16 %v3015, %v3014
      %v3039 = vpack.c.bf16 %v3017, %v3016
      %v3040 = vpack.c.bf16 %v3019, %v3018
      %v3041 = vpack.c.bf16 %v3021, %v3020
      %v3042 = vpack.c.bf16 %v3023, %v3022
      %v3043 = vpack.c.bf16 %v3025, %v3024
      %v3044 = vpack.c.bf16 %v3027, %v3026
      %v3045 = vld [vmem:[%s1] sm:$0xf]
      %v3046 = vld [vmem:[%s1 + $0x4] sm:$0xf]
      %v3047 = vld [vmem:[%s1 + $0x8] sm:$0xf]
      %v3048 = vld [vmem:[%s1 + $0xc] sm:$0xf]
      %v3049 = vld [vmem:[%s1 + $0x10] sm:$0xf]
      %v3050 = vld [vmem:[%s1 + $0x14] sm:$0xf]
      %v3051 = vld [vmem:[%s1 + $0x18] sm:$0xf]
      %v3052 = vld [vmem:[%s1 + $0x1c] sm:$0xf]
      %v3053 = vld [vmem:[%s1 + $0x20] sm:$0xf]
      %v3054 = vld [vmem:[%s1 + $0x24] sm:$0xf]
      %v3055 = vld [vmem:[%s1 + $0x28] sm:$0xf]
      %v3056 = vld [vmem:[%s1 + $0x2c] sm:$0xf]
      %v3057 = vld [vmem:[%s1 + $0x30] sm:$0xf]
      %v3058 = vld [vmem:[%s1 + $0x34] sm:$0xf]
      %v3059 = vld [vmem:[%s1 + $0x38] sm:$0xf]
      %v3060 = vld [vmem:[%s1 + $0x3c] sm:$0xf]
      %v3061 = vld [vmem:[%s2] sm:$0x1]
      %v3063 = vlaneseq
      %v3064 = vshrl.u32 %v3063, 7
      %v3065 = vsub.s32 0, %v3064
      %v3066 = vrot.slane %v3061, %v3065
      %v3084 = vunpack.c.l.b16 %v3045
      %v3085 = vunpack.c.l.b16 %v3046
      %v3086 = vunpack.c.l.b16 %v3047
      %v3087 = vunpack.c.l.b16 %v3048
      %v3088 = vunpack.c.l.b16 %v3049
      %v3089 = vunpack.c.l.b16 %v3050
      %v3090 = vunpack.c.l.b16 %v3051
      %v3091 = vunpack.c.l.b16 %v3052
      %v3092 = vunpack.c.l.b16 %v3053
      %v3093 = vunpack.c.l.b16 %v3054
      %v3094 = vunpack.c.l.b16 %v3055
      %v3095 = vunpack.c.l.b16 %v3056
      %v3096 = vunpack.c.l.b16 %v3057
      %v3097 = vunpack.c.l.b16 %v3058
      %v3098 = vunpack.c.l.b16 %v3059
      %v3099 = vunpack.c.l.b16 %v3060
      %v3100 = vpack.c.b16 %v3085, %v3084
      %v3101 = vpack.c.b16 %v3087, %v3086
      %v3102 = vpack.c.b16 %v3089, %v3088
      %v3103 = vpack.c.b16 %v3091, %v3090
      %v3104 = vpack.c.b16 %v3093, %v3092
      %v3105 = vpack.c.b16 %v3095, %v3094
      %v3106 = vpack.c.b16 %v3097, %v3096
      %v3107 = vpack.c.b16 %v3099, %v3098
      %3116 = vmatprep.subr.bf16.mxu0 0
      %3117 = vmatpush1.bf16.msra.mxu0 %v3100
      %3118 = vmatprep.subr.bf16.mxu0 0
      %3119 = vmatpush1.bf16.msra.mxu0 %v3101
      %3120 = vmatprep.subr.bf16.mxu0 0
      %3121 = vmatpush1.bf16.msra.mxu0 %v3102
      %3122 = vmatprep.subr.bf16.mxu0 0
      %3123 = vmatpush1.bf16.msra.mxu0 %v3103
      %3124 = vmatprep.subr.bf16.mxu0 0
      %3125 = vmatpush1.bf16.msra.mxu0 %v3104
      %3126 = vmatprep.subr.bf16.mxu0 0
      %3127 = vmatpush1.bf16.msra.mxu0 %v3105
      %3128 = vmatprep.subr.bf16.mxu0 0
      %3129 = vmatpush1.bf16.msra.mxu0 %v3106
      %3130 = vmatprep.subr.bf16.mxu0 0
      %3131 = vmatpush1.bf16.msra.mxu0 %v3107
      %3132 = vmatprep.subr.bf16.mxu0 0
      %3133 = vmatpush1.bf16.msra.mxu0 0
      %3134 = vmatprep.subr.bf16.mxu0 0
      %3135 = vmatpush1.bf16.msra.mxu0 0
      %3136 = vmatprep.subr.bf16.mxu0 0
      %3137 = vmatpush1.bf16.msra.mxu0 0
      %3138 = vmatprep.subr.bf16.mxu0 0
      %3139 = vmatpush1.bf16.msra.mxu0 0
      %3140 = vmatprep.subr.bf16.mxu0 0
      %3141 = vmatpush1.bf16.msra.mxu0 0
      %3142 = vmatprep.subr.bf16.mxu0 0
      %3143 = vmatpush1.bf16.msra.mxu0 0
      %3144 = vmatprep.subr.bf16.mxu0 0
      %3145 = vmatpush1.bf16.msra.mxu0 0
      %3146 = vmatprep.subr.bf16.mxu0 0
      %3147 = vmatpush1.bf16.msra.mxu0 0
      %3148 = vmatprep.mubr.bf16.mxu0 0
      %3149 = vmatmul.mubr.bf16.gmra.mrb[0].mxu0 %v3028
      %v3150 = vpop.f32.mrb[0].mxu0
      %v3151 = vadd.f32 %v3066, %v3150
      %v3152 = vpop.f32.mrb[0].mxu0
      %v3153 = vpop.f32.mrb[0].mxu0
      %v3154 = vadd.f32 %v3066, %v3153
      %v3155 = vpop.f32.mrb[0].mxu0
      %3156 = vmatprep.mubr.bf16.mxu0 0
      %3157 = vmatmul.mubr.bf16.gmra.mrb[0].mxu0 %v3029
      %v3158 = vpop.f32.mrb[0].mxu0
      %v3159 = vadd.f32 %v3066, %v3158
      %v3160 = vpop.f32.mrb[0].mxu0
      %v3161 = vpop.f32.mrb[0].mxu0
      %v3162 = vadd.f32 %v3066, %v3161
      %v3163 = vpop.f32.mrb[0].mxu0
      %3164 = vmatprep.mubr.bf16.mxu0 0
      %3165 = vmatmul.mubr.bf16.gmra.mrb[0].mxu0 %v3030
      %v3166 = vpop.f32.mrb[0].mxu0
      %v3167 = vadd.f32 %v3066, %v3166
      %v3168 = vpop.f32.mrb[0].mxu0
      %v3169 = vpop.f32.mrb[0].mxu0
      %v3170 = vadd.f32 %v3066, %v3169
      %v3171 = vpop.f32.mrb[0].mxu0
      %3172 = vmatprep.mubr.bf16.mxu0 0
      %3173 = vmatmul.mubr.bf16.gmra.mrb[0].mxu0 %v3031
      %v3174 = vpop.f32.mrb[0].mxu0
      %v3175 = vadd.f32 %v3066, %v3174
      %v3176 = vpop.f32.mrb[0].mxu0
      %v3177 = vpop.f32.mrb[0].mxu0
      %v3178 = vadd.f32 %v3066, %v3177
      %v3179 = vpop.f32.mrb[0].mxu0
      %3180 = vmatprep.mubr.bf16.mxu0 0
      %3181 = vmatmul.mubr.bf16.gmra.mrb[0].mxu0 %v3032
      %v3182 = vpop.f32.mrb[0].mxu0
      %v3183 = vadd.f32 %v3066, %v3182
      %v3184 = vpop.f32.mrb[0].mxu0
      %v3185 = vpop.f32.mrb[0].mxu0
      %v3186 = vadd.f32 %v3066, %v3185
      %v3187 = vpop.f32.mrb[0].mxu0
      %3188 = vmatprep.mubr.bf16.mxu0 0
      %3189 = vmatmul.mubr.bf16.gmra.mrb[0].mxu0 %v3033
      %v3190 = vpop.f32.mrb[0].mxu0
      %v3191 = vadd.f32 %v3066, %v3190
      %v3192 = vpop.f32.mrb[0].mxu0
      %v3193 = vpop.f32.mrb[0].mxu0
      %v3194 = vadd.f32 %v3066, %v3193
      %v3195 = vpop.f32.mrb[0].mxu0
      %3196 = vmatprep.mubr.bf16.mxu0 0
      %3197 = vmatmul.mubr.bf16.gmra.mrb[0].mxu0 %v3034
      %v3198 = vpop.f32.mrb[0].mxu0
      %v3199 = vadd.f32 %v3066, %v3198
      %v3200 = vpop.f32.mrb[0].mxu0
      %v3201 = vpop.f32.mrb[0].mxu0
      %v3202 = vadd.f32 %v3066, %v3201
      %v3203 = vpop.f32.mrb[0].mxu0
      %3204 = vmatprep.mubr.bf16.mxu0 0
      %3205 = vmatmul.mubr.bf16.gmra.mrb[0].mxu0 %v3035
      %v3206 = vpop.f32.mrb[0].mxu0
      %v3207 = vadd.f32 %v3066, %v3206
      %v3208 = vpop.f32.mrb[0].mxu0
      %v3209 = vpop.f32.mrb[0].mxu0
      %v3210 = vadd.f32 %v3066, %v3209
      %v3211 = vpop.f32.mrb[0].mxu0
      %3212 = vmatprep.mubr.bf16.mxu0 0
      %3213 = vmatmul.mubr.bf16.gmra.mrb[0].mxu0 %v3036
      %v3214 = vpop.f32.mrb[0].mxu0
      %v3215 = vadd.f32 %v3066, %v3214
      %v3216 = vpop.f32.mrb[0].mxu0
      %v3217 = vpop.f32.mrb[0].mxu0
      %v3218 = vadd.f32 %v3066, %v3217
      %v3219 = vpop.f32.mrb[0].mxu0
      %3220 = vmatprep.mubr.bf16.mxu0 0
      %3221 = vmatmul.mubr.bf16.gmra.mrb[0].mxu0 %v3037
      %v3222 = vpop.f32.mrb[0].mxu0
      %v3223 = vadd.f32 %v3066, %v3222
      %v3224 = vpop.f32.mrb[0].mxu0
      %v3225 = vpop.f32.mrb[0].mxu0
      %v3226 = vadd.f32 %v3066, %v3225
      %v3227 = vpop.f32.mrb[0].mxu0
      %3228 = vmatprep.mubr.bf16.mxu0 0
      %3229 = vmatmul.mubr.bf16.gmra.mrb[0].mxu0 %v3038
      %v3230 = vpop.f32.mrb[0].mxu0
      %v3231 = vadd.f32 %v3066, %v3230
      %v3232 = vpop.f32.mrb[0].mxu0
      %v3233 = vpop.f32.mrb[0].mxu0
      %v3234 = vadd.f32 %v3066, %v3233
      %v3235 = vpop.f32.mrb[0].mxu0
      %3236 = vmatprep.mubr.bf16.mxu0 0
      %3237 = vmatmul.mubr.bf16.gmra.mrb[0].mxu0 %v3039
      %v3238 = vpop.f32.mrb[0].mxu0
      %v3239 = vadd.f32 %v3066, %v3238
      %v3240 = vpop.f32.mrb[0].mxu0
      %v3241 = vpop.f32.mrb[0].mxu0
      %v3242 = vadd.f32 %v3066, %v3241
      %v3243 = vpop.f32.mrb[0].mxu0
      %3244 = vmatprep.mubr.bf16.mxu0 0
      %3245 = vmatmul.mubr.bf16.gmra.mrb[0].mxu0 %v3040
      %v3246 = vpop.f32.mrb[0].mxu0
      %v3247 = vadd.f32 %v3066, %v3246
      %v3248 = vpop.f32.mrb[0].mxu0
      %v3249 = vpop.f32.mrb[0].mxu0
      %v3250 = vadd.f32 %v3066, %v3249
      %v3251 = vpop.f32.mrb[0].mxu0
      %3252 = vmatprep.mubr.bf16.mxu0 0
      %3253 = vmatmul.mubr.bf16.gmra.mrb[0].mxu0 %v3041
      %v3254 = vpop.f32.mrb[0].mxu0
      %v3255 = vadd.f32 %v3066, %v3254
      %v3256 = vpop.f32.mrb[0].mxu0
      %v3257 = vpop.f32.mrb[0].mxu0
      %v3258 = vadd.f32 %v3066, %v3257
      %v3259 = vpop.f32.mrb[0].mxu0
      %3260 = vmatprep.mubr.bf16.mxu0 0
      %3261 = vmatmul.mubr.bf16.gmra.mrb[0].mxu0 %v3042
      %v3262 = vpop.f32.mrb[0].mxu0
      %v3263 = vadd.f32 %v3066, %v3262
      %v3264 = vpop.f32.mrb[0].mxu0
      %v3265 = vpop.f32.mrb[0].mxu0
      %v3266 = vadd.f32 %v3066, %v3265
      %v3267 = vpop.f32.mrb[0].mxu0
      %3268 = vmatprep.mubr.bf16.mxu0 0
      %3269 = vmatmul.mubr.bf16.gmra.mrb[0].mxu0 %v3043
      %v3270 = vpop.f32.mrb[0].mxu0
      %v3271 = vadd.f32 %v3066, %v3270
      %v3272 = vpop.f32.mrb[0].mxu0
      %v3273 = vpop.f32.mrb[0].mxu0
      %v3274 = vadd.f32 %v3066, %v3273
      %v3275 = vpop.f32.mrb[0].mxu0
      %3276 = vmatprep.mubr.bf16.mxu0 0
      %3277 = vmatmul.mubr.bf16.gmra.mrb[0].mxu0 %v3044
      %v3278 = vpop.f32.mrb[0].mxu0
      %v3279 = vadd.f32 %v3066, %v3278
      %v3280 = vpop.f32.mrb[0].mxu0
      %v3281 = vpop.f32.mrb[0].mxu0
      %v3282 = vadd.f32 %v3066, %v3281
      %v3283 = vpop.f32.mrb[0].mxu0
      %3284 = vdwg.mxu0
      %vm3285 = vcmp.gt.f32.partialorder %v3151, 0.0
      %vm3286 = vcmp.gt.f32.partialorder %v3154, 0.0
      %vm3287 = vcmp.gt.f32.partialorder %v3159, 0.0
      %vm3288 = vcmp.gt.f32.partialorder %v3162, 0.0
      %vm3289 = vcmp.gt.f32.partialorder %v3167, 0.0
      %vm3290 = vcmp.gt.f32.partialorder %v3170, 0.0
      %vm3291 = vcmp.gt.f32.partialorder %v3175, 0.0
      %vm3292 = vcmp.gt.f32.partialorder %v3178, 0.0
      %vm3293 = vcmp.gt.f32.partialorder %v3183, 0.0
      %vm3294 = vcmp.gt.f32.partialorder %v3186, 0.0
      %vm3295 = vcmp.gt.f32.partialorder %v3191, 0.0
      %vm3296 = vcmp.gt.f32.partialorder %v3194, 0.0
      %vm3297 = vcmp.gt.f32.partialorder %v3199, 0.0
      %vm3298 = vcmp.gt.f32.partialorder %v3202, 0.0
      %vm3299 = vcmp.gt.f32.partialorder %v3207, 0.0
      %vm3300 = vcmp.gt.f32.partialorder %v3210, 0.0
      %vm3301 = vcmp.gt.f32.partialorder %v3215, 0.0
      %vm3302 = vcmp.gt.f32.partialorder %v3218, 0.0
      %vm3303 = vcmp.gt.f32.partialorder %v3223, 0.0
      %vm3304 = vcmp.gt.f32.partialorder %v3226, 0.0
      %vm3305 = vcmp.gt.f32.partialorder %v3231, 0.0
      %vm3306 = vcmp.gt.f32.partialorder %v3234, 0.0
      %vm3307 = vcmp.gt.f32.partialorder %v3239, 0.0
      %vm3308 = vcmp.gt.f32.partialorder %v3242, 0.0
      %vm3309 = vcmp.gt.f32.partialorder %v3247, 0.0
      %vm3310 = vcmp.gt.f32.partialorder %v3250, 0.0
      %vm3311 = vcmp.gt.f32.partialorder %v3255, 0.0
      %vm3312 = vcmp.gt.f32.partialorder %v3258, 0.0
      %vm3313 = vcmp.gt.f32.partialorder %v3263, 0.0
      %vm3314 = vcmp.gt.f32.partialorder %v3266, 0.0
      %vm3315 = vcmp.gt.f32.partialorder %v3271, 0.0
      %vm3316 = vcmp.gt.f32.partialorder %v3274, 0.0
      %vm3317 = vcmp.gt.f32.partialorder %v3279, 0.0
      %vm3318 = vcmp.gt.f32.partialorder %v3282, 0.0
      %v3319 = vmul.f32 %v3151, 0.2
      %v3320 = vmul.f32 %v3154, 0.2
      %v3321 = vmul.f32 %v3159, 0.2
      %v3322 = vmul.f32 %v3162, 0.2
      %v3323 = vmul.f32 %v3167, 0.2
      %v3324 = vmul.f32 %v3170, 0.2
      %v3325 = vmul.f32 %v3175, 0.2
      %v3326 = vmul.f32 %v3178, 0.2
      %v3327 = vmul.f32 %v3183, 0.2
      %v3328 = vmul.f32 %v3186, 0.2
      %v3329 = vmul.f32 %v3191, 0.2
      %v3330 = vmul.f32 %v3194, 0.2
      %v3331 = vmul.f32 %v3199, 0.2
      %v3332 = vmul.f32 %v3202, 0.2
      %v3333 = vmul.f32 %v3207, 0.2
      %v3334 = vmul.f32 %v3210, 0.2
      %v3335 = vmul.f32 %v3215, 0.2
      %v3336 = vmul.f32 %v3218, 0.2
      %v3337 = vmul.f32 %v3223, 0.2
      %v3338 = vmul.f32 %v3226, 0.2
      %v3339 = vmul.f32 %v3231, 0.2
      %v3340 = vmul.f32 %v3234, 0.2
      %v3341 = vmul.f32 %v3239, 0.2
      %v3342 = vmul.f32 %v3242, 0.2
      %v3343 = vmul.f32 %v3247, 0.2
      %v3344 = vmul.f32 %v3250, 0.2
      %v3345 = vmul.f32 %v3255, 0.2
      %v3346 = vmul.f32 %v3258, 0.2
      %v3347 = vmul.f32 %v3263, 0.2
      %v3348 = vmul.f32 %v3266, 0.2
      %v3349 = vmul.f32 %v3271, 0.2
      %v3350 = vmul.f32 %v3274, 0.2
      %v3351 = vmul.f32 %v3279, 0.2
      %v3352 = vmul.f32 %v3282, 0.2
      %v3353 = vsel %vm3285, %v3151, %v3319
      %v3354 = vsel %vm3286, %v3154, %v3320
      %v3355 = vsel %vm3287, %v3159, %v3321
      %v3356 = vsel %vm3288, %v3162, %v3322
      %v3357 = vsel %vm3289, %v3167, %v3323
      %v3358 = vsel %vm3290, %v3170, %v3324
      %v3359 = vsel %vm3291, %v3175, %v3325
      %v3360 = vsel %vm3292, %v3178, %v3326
      %v3361 = vsel %vm3293, %v3183, %v3327
      %v3362 = vsel %vm3294, %v3186, %v3328
      %v3363 = vsel %vm3295, %v3191, %v3329
      %v3364 = vsel %vm3296, %v3194, %v3330
      %v3365 = vsel %vm3297, %v3199, %v3331
      %v3366 = vsel %vm3298, %v3202, %v3332
      %v3367 = vsel %vm3299, %v3207, %v3333
      %v3368 = vsel %vm3300, %v3210, %v3334
      %v3369 = vsel %vm3301, %v3215, %v3335
      %v3370 = vsel %vm3302, %v3218, %v3336
      %v3371 = vsel %vm3303, %v3223, %v3337
      %v3372 = vsel %vm3304, %v3226, %v3338
      %v3373 = vsel %vm3305, %v3231, %v3339
      %v3374 = vsel %vm3306, %v3234, %v3340
      %v3375 = vsel %vm3307, %v3239, %v3341
      %v3376 = vsel %vm3308, %v3242, %v3342
      %v3377 = vsel %vm3309, %v3247, %v3343
      %v3378 = vsel %vm3310, %v3250, %v3344
      %v3379 = vsel %vm3311, %v3255, %v3345
      %v3380 = vsel %vm3312, %v3258, %v3346
      %v3381 = vsel %vm3313, %v3263, %v3347
      %v3382 = vsel %vm3314, %v3266, %v3348
      %v3383 = vsel %vm3315, %v3271, %v3349
      %v3384 = vsel %vm3316, %v3274, %v3350
      %v3385 = vsel %vm3317, %v3279, %v3351
      %v3386 = vsel %vm3318, %v3282, %v3352
      %3387 = vst.msk [vmem:[%s170] sm:$0xff] %vm2503, %v3353
      %3388 = vst.msk [vmem:[%s170 + $0x8] sm:$0xff] %vm2503, %v3354
      %3389 = vst.msk [vmem:[%s170 + $0x10] sm:$0xff] %vm2503, %v3355
      %3390 = vst.msk [vmem:[%s170 + $0x18] sm:$0xff] %vm2503, %v3356
      %3391 = vst.msk [vmem:[%s170 + $0x20] sm:$0xff] %vm2503, %v3357
      %3392 = vst.msk [vmem:[%s170 + $0x28] sm:$0xff] %vm2503, %v3358
      %3393 = vst.msk [vmem:[%s170 + $0x30] sm:$0xff] %vm2503, %v3359
      %3394 = vst.msk [vmem:[%s170 + $0x38] sm:$0xff] %vm2503, %v3360
      %3395 = vst.msk [vmem:[%s170 + $0x40] sm:$0xff] %vm2503, %v3361
      %3396 = vst.msk [vmem:[%s170 + $0x48] sm:$0xff] %vm2503, %v3362
      %3397 = vst.msk [vmem:[%s170 + $0x50] sm:$0xff] %vm2503, %v3363
      %3398 = vst.msk [vmem:[%s170 + $0x58] sm:$0xff] %vm2503, %v3364
      %3399 = vst.msk [vmem:[%s170 + $0x60] sm:$0xff] %vm2503, %v3365
      %3400 = vst.msk [vmem:[%s170 + $0x68] sm:$0xff] %vm2503, %v3366
      %3401 = vst.msk [vmem:[%s170 + $0x70] sm:$0xff] %vm2503, %v3367
      %3402 = vst.msk [vmem:[%s170 + $0x78] sm:$0xff] %vm2503, %v3368
      %3403 = vst.msk [vmem:[%s170 + $0x80] sm:$0xff] %vm2503, %v3369
      %3404 = vst.msk [vmem:[%s170 + $0x88] sm:$0xff] %vm2503, %v3370
      %3405 = vst.msk [vmem:[%s170 + $0x90] sm:$0xff] %vm2503, %v3371
      %3406 = vst.msk [vmem:[%s170 + $0x98] sm:$0xff] %vm2503, %v3372
      %3407 = vst.msk [vmem:[%s170 + $0xa0] sm:$0xff] %vm2503, %v3373
      %3408 = vst.msk [vmem:[%s170 + $0xa8] sm:$0xff] %vm2503, %v3374
      %3409 = vst.msk [vmem:[%s170 + $0xb0] sm:$0xff] %vm2503, %v3375
      %3410 = vst.msk [vmem:[%s170 + $0xb8] sm:$0xff] %vm2503, %v3376
      %3411 = vst.msk [vmem:[%s170 + $0xc0] sm:$0xff] %vm2503, %v3377
      %3412 = vst.msk [vmem:[%s170 + $0xc8] sm:$0xff] %vm2503, %v3378
      %3413 = vst.msk [vmem:[%s170 + $0xd0] sm:$0xff] %vm2503, %v3379
      %3414 = vst.msk [vmem:[%s170 + $0xd8] sm:$0xff] %vm2503, %v3380
      %3415 = vst.msk [vmem:[%s170 + $0xe0] sm:$0xff] %vm2503, %v3381
      %3416 = vst.msk [vmem:[%s170 + $0xe8] sm:$0xff] %vm2503, %v3382
      %3417 = vst.msk [vmem:[%s170 + $0xf0] sm:$0xff] %vm2503, %v3383
      %3418 = vst.msk [vmem:[%s170 + $0xf8] sm:$0xff] %vm2503, %v3384
      %3419 = vst.msk [vmem:[%s170 + $0x100] sm:$0xff] %vm2503, %v3385
      %3420 = vst.msk [vmem:[%s170 + $0x108] sm:$0xff] %vm2503, %v3386
      %p3421 = scmp.lt.s32.totalorder %s14, 1
      %s3422 = scalar_select %p3421, %s14, 1
      %s3423 = smul.addr %s3422, 34
      %s3424 = smul.addr %s3423, 8
      %s3425 = scalar_lea.vmem %s3, %s3424
      // Predicated region
      $region33: #{discriminator_forward.5} parent=31 // pred_check
        %p3426 = pneg %p100
      $region34: #{discriminator_forward.5} parent=31 // pred_check_branch
        %3428 = sbr.rel (%p3426) target = $region36
      $region35: #{discriminator_forward.5} parent=31 // pred_region
        _
      $region36: #{discriminator_forward.5} parent=31 // pred_fallthru
        _
    $region32: #{discriminator_forward.5} parent=5 // pred_fallthru
      _
    %p3429 = scmp.le.s32.totalorder 2, %s9
    // Predicated region
    $region37: #{discriminator_forward.5} parent=5 // pred_check
      %p3430 = pneg %p3429
    $region38: #{discriminator_forward.5} parent=5 // pred_check_branch
      %3432 = sbr.rel (%p3430) target = $region40
    $region39: #{discriminator_forward.5} parent=5 // pred_region
      %s3433 = ssub.s32 %s9, 2
      // Predicated region
      $region41: #{discriminator_forward.5} parent=39 // pred_check
        %p3434 = pneg %p106
      $region42: #{discriminator_forward.5} parent=39 // pred_check_branch
        %3436 = sbr.rel (%p3434) target = $region44
      $region43: #{discriminator_forward.5} parent=39 // pred_region
        %p3437 = scmp.lt.s32.totalorder %s15, 1
        %s3438 = scalar_select %p3437, %s15, 1
        %s3439 = smul.addr %s3438, 34
        %s3440 = smul.addr %s3439, 8
        %s3441 = scalar_lea.vmem %s3, %s3440
      $region44: #{discriminator_forward.5} parent=39 // pred_fallthru
        _
    $region40: #{discriminator_forward.5} parent=5 // pred_fallthru
      _
  $region6: #{discriminator_forward.5} parent=0 // loop_footer
    %s13 = sadd.s32 1, %s9
  $region7: #{discriminator_forward.5} parent=0 // loop_footer_branch
    %8 = sbr.rel target = $region3
  $region8: #{discriminator_forward.5} parent=0 // loop_exit
    _

// kernel: discriminator_forward.6
$region0: #{discriminator_forward.6}
  #allocation0 [shape = 'u32[]', space=smem, size = 0x4, offset = 0x4, fixed_abs, tag = 'smem constant byte address 0x4 - core index']
  #allocation1 [shape = 'u32[144,128]{1,0:T(1,128)}', space=vmem, size = 0x12000, scoped, tag = 'internal scratch']
  %s0 = inlined_call_operand.vmem [shape: f32[2,4,89,8], index: 0, kind: input, shape index: {}]
  %s1 = inlined_call_operand.vmem [shape: bf16[128,16], index: 1, kind: input, shape index: {}]
  %s2 = inlined_call_operand.vmem [shape: f32[72,1], index: 2, kind: input, shape index: {}]
  %s3 = inlined_call_operand.vmem [shape: f32[2,72,16], index: 3, kind: output, shape index: {0}]
  %s4 = inlined_call_operand.vmem [shape: f32[2,2,16], index: 4, kind: output, shape index: {1}]
  %5 = xla_tuple %s3, %s4
  %s6 = sld [smem:[#allocation0]]
  $region53: #{discriminator_forward.6} parent=0
    _
  %s8 = ssub.s32 1, %s6
  %s9 = scalar_select 0, %s8, %s6
  loop: start=0, step=1, limit=4
  $region2: #{discriminator_forward.6} parent=0 // loop_pre_header
    _
  $region3: #{discriminator_forward.6} parent=0 // loop_header
    %s11 = sphi 0, %s15
    %p12 = scmp.ge.s32.totalorder %s11, 4
    %s21 = sphi 0, %s23
    %s24 = sphi 0, %s21
    %s25 = sphi 0, %s24
    %s41 = sphi 0, %s25
    %s45 = sphi 0, %s45
    %s47 = sphi 0, %s45
    %s48 = sphi 0, %s47
    %s62 = sphi 0, %s48
    %s66 = sphi 0, %s66
    %s68 = sphi 0, %s66
    %s69 = sphi 0, %s68
    %s83 = sphi 0, %s69
    %s89 = sphi 0, %s91
    %s92 = sphi 0, %s89
    %s93 = sphi 0, %s92
    %s109 = sphi 0, %s93
    %s115 = sphi 0, %s117
    %s118 = sphi 0, %s115
    %s119 = sphi 0, %s118
    %s135 = sphi 0, %s119
  $region4: #{discriminator_forward.6} parent=0 // loop_header_branch
    %14 = sbr.rel (%p12) target = $region8
  $region5: #{discriminator_forward.6} parent=0 // loop_body
    %s16 = ssub.s32 %s11, 1
    %s17 = ssub.s32 %s11, 2
    %s18 = sadd.s32 %s11, 1
    %s19 = ssub.s32 %s11, %s18
    %p20 = scmp.eq.s32.totalorder %s19, 0
    %s22 = sadd.s32 %s21, 1
    %s23 = scalar_select %p20, %s21, %s22
    %p26 = pneg %p20
    %p27 = scmp.eq.s32.totalorder %s11, 1
    %p28 = por %p26, %p27
    %p29 = scmp.ne.s32.totalorder %s21, %s24
    %p30 = scmp.eq.s32.totalorder %s11, 0
    %p31 = por %p29, %p30
    %p32 = scmp.ne.s32.totalorder %s21, %s24
    %p33 = scmp.eq.s32.totalorder %s16, 1
    %p34 = por %p32, %p33
    %p35 = scmp.ne.s32.totalorder %s24, %s25
    %p36 = scmp.eq.s32.totalorder %s16, 0
    %p37 = por %p35, %p36
    %p38 = scmp.ne.s32.totalorder %s24, %s25
    %p39 = scmp.eq.s32.totalorder %s17, 1
    %p40 = por %p38, %p39
    %p42 = scmp.ne.s32.totalorder %s25, %s41
    %p43 = scmp.eq.s32.totalorder %s17, 0
    %p44 = por %p42, %p43
    %s46 = sadd.s32 %s45, 1
    %p49 = scmp.eq.s32.totalorder %s11, 1
    %p50 = scmp.ne.s32.totalorder %s45, %s47
    %p51 = scmp.eq.s32.totalorder %s11, 0
    %p52 = por %p50, %p51
    %p53 = scmp.ne.s32.totalorder %s45, %s47
    %p54 = scmp.eq.s32.totalorder %s16, 1
    %p55 = por %p53, %p54
    %p56 = scmp.ne.s32.totalorder %s47, %s48
    %p57 = scmp.eq.s32.totalorder %s16, 0
    %p58 = por %p56, %p57
    %p59 = scmp.ne.s32.totalorder %s47, %s48
    %p60 = scmp.eq.s32.totalorder %s17, 1
    %p61 = por %p59, %p60
    %p63 = scmp.ne.s32.totalorder %s48, %s62
    %p64 = scmp.eq.s32.totalorder %s17, 0
    %p65 = por %p63, %p64
    %s67 = sadd.s32 %s66, 1
    %p70 = scmp.eq.s32.totalorder %s11, 1
    %p71 = scmp.ne.s32.totalorder %s66, %s68
    %p72 = scmp.eq.s32.totalorder %s11, 0
    %p73 = por %p71, %p72
    %p74 = scmp.ne.s32.totalorder %s66, %s68
    %p75 = scmp.eq.s32.totalorder %s16, 1
    %p76 = por %p74, %p75
    %p77 = scmp.ne.s32.totalorder %s68, %s69
    %p78 = scmp.eq.s32.totalorder %s16, 0
    %p79 = por %p77, %p78
    %p80 = scmp.ne.s32.totalorder %s68, %s69
    %p81 = scmp.eq.s32.totalorder %s17, 1
    %p82 = por %p80, %p81
    %p84 = scmp.ne.s32.totalorder %s69, %s83
    %p85 = scmp.eq.s32.totalorder %s17, 0
    %p86 = por %p84, %p85
    %s87 = ssub.s32 %s11, %s18
    %p88 = scmp.eq.s32.totalorder %s87, 0
    %s90 = sadd.s32 %s89, 1
    %s91 = scalar_select %p88, %s89, %s90
    %p94 = pneg %p88
    %p95 = scmp.eq.s32.totalorder %s11, 1
    %p96 = por %p94, %p95
    %p97 = scmp.ne.s32.totalorder %s89, %s92
    %p98 = scmp.eq.s32.totalorder %s11, 0
    %p99 = por %p97, %p98
    %p100 = scmp.ne.s32.totalorder %s89, %s92
    %p101 = scmp.eq.s32.totalorder %s16, 1
    %p102 = por %p100, %p101
    %p103 = scmp.ne.s32.totalorder %s92, %s93
    %p104 = scmp.eq.s32.totalorder %s16, 0
    %p105 = por %p103, %p104
    %p106 = scmp.ne.s32.totalorder %s92, %s93
    %p107 = scmp.eq.s32.totalorder %s17, 1
    %p108 = por %p106, %p107
    %p110 = scmp.ne.s32.totalorder %s93, %s109
    %p111 = scmp.eq.s32.totalorder %s17, 0
    %p112 = por %p110, %p111
    %s113 = ssub.s32 %s11, %s18
    %p114 = scmp.eq.s32.totalorder %s113, 0
    %s116 = sadd.s32 %s115, 1
    %s117 = scalar_select %p114, %s115, %s116
    %p120 = pneg %p114
    %p121 = scmp.eq.s32.totalorder %s11, 1
    %p122 = por %p120, %p121
    %p123 = scmp.ne.s32.totalorder %s115, %s118
    %p124 = scmp.eq.s32.totalorder %s11, 0
    %p125 = por %p123, %p124
    %p126 = scmp.ne.s32.totalorder %s115, %s118
    %p127 = scmp.eq.s32.totalorder %s16, 1
    %p128 = por %p126, %p127
    %p129 = scmp.ne.s32.totalorder %s118, %s119
    %p130 = scmp.eq.s32.totalorder %s16, 0
    %p131 = por %p129, %p130
    %p132 = scmp.ne.s32.totalorder %s118, %s119
    %p133 = scmp.eq.s32.totalorder %s17, 1
    %p134 = por %p132, %p133
    %p136 = scmp.ne.s32.totalorder %s119, %s135
    %p137 = scmp.eq.s32.totalorder %s17, 0
    %p138 = por %p136, %p137
    %p139 = scmp.le.s32.totalorder 1, %s11
    %p140 = scmp.lt.s32.totalorder %s11, 3
    %p141 = pnand %p139, %p140
    %p142 = pneg %p141
    // Predicated region
    $region9: #{discriminator_forward.6} parent=5 // pred_check
      _
    $region10: #{discriminator_forward.6} parent=5 // pred_check_branch
      %144 = sbr.rel (%p141) target = $region12
    $region11: #{discriminator_forward.6} parent=5 // pred_region
      %s145 = ssub.s32 %s11, 1
      // Predicated region
      $region13: #{discriminator_forward.6} parent=11 // pred_check
        %p146 = pneg %p58
      $region14: #{discriminator_forward.6} parent=11 // pred_check_branch
        %148 = sbr.rel (%p146) target = $region16
      $region15: #{discriminator_forward.6} parent=11 // pred_region
        _
      $region16: #{discriminator_forward.6} parent=11 // pred_fallthru
        _
      // Predicated region
      $region17: #{discriminator_forward.6} parent=11 // pred_check
        %p149 = pneg %p79
      $region18: #{discriminator_forward.6} parent=11 // pred_check_branch
        %151 = sbr.rel (%p149) target = $region20
      $region19: #{discriminator_forward.6} parent=11 // pred_region
        _
      $region20: #{discriminator_forward.6} parent=11 // pred_fallthru
        _
    $region12: #{discriminator_forward.6} parent=5 // pred_fallthru
      _
    %p152 = scmp.lt.s32.totalorder %s11, 2
    // Predicated region
    $region21: #{discriminator_forward.6} parent=5 // pred_check
      %p153 = pneg %p152
    $region22: #{discriminator_forward.6} parent=5 // pred_check_branch
      %155 = sbr.rel (%p153) target = $region24
    $region23: #{discriminator_forward.6} parent=5 // pred_region
      // Predicated region
      $region25: #{discriminator_forward.6} parent=23 // pred_check
        %p156 = pneg %p31
      $region26: #{discriminator_forward.6} parent=23 // pred_check_branch
        %158 = sbr.rel (%p156) target = $region28
      $region27: #{discriminator_forward.6} parent=23 // pred_region
        %p159 = scmp.lt.s32.totalorder %s11, 1
        %s160 = scalar_select %p159, %s11, 1
        %s161 = smul.addr %s160, 48
        %s162 = smul.addr %s161, 8
        %s163 = scalar_lea.vmem %s0, %s162
      $region28: #{discriminator_forward.6} parent=23 // pred_fallthru
        _
    $region24: #{discriminator_forward.6} parent=5 // pred_fallthru
      _
    %p164 = scmp.le.s32.totalorder 1, %s11
    %p165 = scmp.lt.s32.totalorder %s11, 3
    %p166 = pnand %p164, %p165
    %p167 = pneg %p166
    // Predicated region
    $region29: #{discriminator_forward.6} parent=5 // pred_check
      _
    $region30: #{discriminator_forward.6} parent=5 // pred_check_branch
      %169 = sbr.rel (%p166) target = $region32
    $region31: #{discriminator_forward.6} parent=5 // pred_region
      %s170 = ssub.s32 %s11, 1
      %p171 = scmp.lt.s32.totalorder %s16, 1
      %s172 = scalar_select %p171, %s16, 1
      %s173 = smul.addr %s172, 48
      %s174 = smul.addr %s173, 8
      %s175 = scalar_lea.vmem %s0, %s174
      %p176 = pneg %p37
      %p177 = pneg %p34
      %p178 = pneg %p58
      %p179 = pneg %p55
      %p180 = pneg %p79
      %p181 = pneg %p76
      %p182 = pneg %p105
      %p183 = pneg %p102
      %p184 = scmp.lt.s32.totalorder %s16, 1
      %s185 = scalar_select %p184, %s16, 1
      %s186 = smul.addr %s185, 9
      %s187 = smul.addr %s186, 8
      %s188 = scalar_lea.vmem %s3, %s187
      %p189 = pneg %p131
      %p190 = pneg %p128
      %p191 = scmp.lt.s32.totalorder %s16, 1
      %s192 = scalar_select %p191, %s16, 1
      %s193 = smul.addr %s192, 2
      %s194 = scalar_lea.vmem %s4, %s193
      %p195 = scmp.lt.s32.totalorder %s16, 1
      %s196 = scalar_select %p195, %s16, 1
      %s197 = smul.addr %s196, 48
      %s198 = smul.addr %s197, 8
      %s199 = scalar_lea.vmem %s0, %s198
      %p200 = scmp.lt.s32.totalorder %s16, 1
      %s201 = scalar_select %p200, %s16, 1
      %s202 = smul.addr %s201, 9
      %s203 = smul.addr %s202, 8
      %s204 = scalar_lea.vmem %s3, %s203
      %p205 = scmp.lt.s32.totalorder %s16, 1
      %s206 = scalar_select %p205, %s16, 1
      %s207 = smul.addr %s206, 2
      %s208 = scalar_lea.vmem %s4, %s207
      %v210 = vld [vmem:[%s199] sm:$0xff]
      %v211 = vld [vmem:[%s199 + $0x8] sm:$0xff]
      %v212 = vld [vmem:[%s199 + $0x10] sm:$0xff]
      %v213 = vld [vmem:[%s199 + $0x18] sm:$0xff]
      %v214 = vld [vmem:[%s199 + $0x20] sm:$0xff]
      %v215 = vld [vmem:[%s199 + $0x28] sm:$0xff]
      %v216 = vld [vmem:[%s199 + $0x30] sm:$0xff]
      %v217 = vld [vmem:[%s199 + $0x38] sm:$0xff]
      %v218 = vld [vmem:[%s199 + $0x40] sm:$0xff]
      %s219 = scalar_lea.vmem %s199, 96
      %v220 = vld [vmem:[%s219] sm:$0xff]
      %v221 = vld [vmem:[%s219 + $0x8] sm:$0xff]
      %v222 = vld [vmem:[%s219 + $0x10] sm:$0xff]
      %v223 = vld [vmem:[%s219 + $0x18] sm:$0xff]
      %v224 = vld [vmem:[%s219 + $0x20] sm:$0xff]
      %v225 = vld [vmem:[%s219 + $0x28] sm:$0xff]
      %v226 = vld [vmem:[%s219 + $0x30] sm:$0xff]
      %v227 = vld [vmem:[%s219 + $0x38] sm:$0xff]
      %v228 = vld [vmem:[%s219 + $0x40] sm:$0xff]
      %v229 = vld [vmem:[%s199 + $0x1] sm:$0xff]
      %v230 = vld [vmem:[%s199 + $0x9] sm:$0xff]
      %v231 = vld [vmem:[%s199 + $0x11] sm:$0xff]
      %v232 = vld [vmem:[%s199 + $0x19] sm:$0xff]
      %v233 = vld [vmem:[%s199 + $0x21] sm:$0xff]
      %v234 = vld [vmem:[%s199 + $0x29] sm:$0xff]
      %v235 = vld [vmem:[%s199 + $0x31] sm:$0xff]
      %v236 = vld [vmem:[%s199 + $0x39] sm:$0xff]
      %v237 = vld [vmem:[%s199 + $0x41] sm:$0xff]
      %v238 = vld [vmem:[%s219 + $0x1] sm:$0xff]
      %v239 = vld [vmem:[%s219 + $0x9] sm:$0xff]
      %v240 = vld [vmem:[%s219 + $0x11] sm:$0xff]
      %v241 = vld [vmem:[%s219 + $0x19] sm:$0xff]
      %v242 = vld [vmem:[%s219 + $0x21] sm:$0xff]
      %v243 = vld [vmem:[%s219 + $0x29] sm:$0xff]
      %v244 = vld [vmem:[%s219 + $0x31] sm:$0xff]
      %v245 = vld [vmem:[%s219 + $0x39] sm:$0xff]
      %v246 = vld [vmem:[%s219 + $0x41] sm:$0xff]
      %s247 = scalar_lea.vmem %s199, 192
      %v248 = vld [vmem:[%s247] sm:$0xff]
      %v249 = vld [vmem:[%s247 + $0x8] sm:$0xff]
      %v250 = vld [vmem:[%s247 + $0x10] sm:$0xff]
      %v251 = vld [vmem:[%s247 + $0x18] sm:$0xff]
      %v252 = vld [vmem:[%s247 + $0x20] sm:$0xff]
      %v253 = vld [vmem:[%s247 + $0x28] sm:$0xff]
      %v254 = vld [vmem:[%s247 + $0x30] sm:$0xff]
      %v255 = vld [vmem:[%s247 + $0x38] sm:$0xff]
      %v256 = vld [vmem:[%s247 + $0x40] sm:$0xff]
      %s257 = scalar_lea.vmem %s199, 288
      %v258 = vld [vmem:[%s257] sm:$0xff]
      %v259 = vld [vmem:[%s257 + $0x8] sm:$0xff]
      %v260 = vld [vmem:[%s257 + $0x10] sm:$0xff]
      %v261 = vld [vmem:[%s257 + $0x18] sm:$0xff]
      %v262 = vld [vmem:[%s257 + $0x20] sm:$0xff]
      %v263 = vld [vmem:[%s257 + $0x28] sm:$0xff]
      %v264 = vld [vmem:[%s257 + $0x30] sm:$0xff]
      %v265 = vld [vmem:[%s257 + $0x38] sm:$0xff]
      %v266 = vld [vmem:[%s257 + $0x40] sm:$0xff]
      %v267 = vld [vmem:[%s247 + $0x1] sm:$0xff]
      %v268 = vld [vmem:[%s247 + $0x9] sm:$0xff]
      %v269 = vld [vmem:[%s247 + $0x11] sm:$0xff]
      %v270 = vld [vmem:[%s247 + $0x19] sm:$0xff]
      %v271 = vld [vmem:[%s247 + $0x21] sm:$0xff]
      %v272 = vld [vmem:[%s247 + $0x29] sm:$0xff]
      %v273 = vld [vmem:[%s247 + $0x31] sm:$0xff]
      %v274 = vld [vmem:[%s247 + $0x39] sm:$0xff]
      %v275 = vld [vmem:[%s247 + $0x41] sm:$0xff]
      %v276 = vld [vmem:[%s257 + $0x1] sm:$0xff]
      %v277 = vld [vmem:[%s257 + $0x9] sm:$0xff]
      %v278 = vld [vmem:[%s257 + $0x11] sm:$0xff]
      %v279 = vld [vmem:[%s257 + $0x19] sm:$0xff]
      %v280 = vld [vmem:[%s257 + $0x21] sm:$0xff]
      %v281 = vld [vmem:[%s257 + $0x29] sm:$0xff]
      %v282 = vld [vmem:[%s257 + $0x31] sm:$0xff]
      %v283 = vld [vmem:[%s257 + $0x39] sm:$0xff]
      %v284 = vld [vmem:[%s257 + $0x41] sm:$0xff]
      %v285 = vld [vmem:[%s199 + $0x49] sm:$0xff]
      %v286 = vld [vmem:[%s219 + $0x49] sm:$0xff]
      %v287 = vld [vmem:[%s199 + $0xa] sm:$0xff]
      %v288 = vld [vmem:[%s199 + $0x12] sm:$0xff]
      %v289 = vld [vmem:[%s199 + $0x1a] sm:$0xff]
      %v290 = vld [vmem:[%s199 + $0x22] sm:$0xff]
      %v291 = vld [vmem:[%s199 + $0x2a] sm:$0xff]
      %v292 = vld [vmem:[%s199 + $0x32] sm:$0xff]
      %v293 = vld [vmem:[%s199 + $0x3a] sm:$0xff]
      %v294 = vld [vmem:[%s199 + $0x42] sm:$0xff]
      %v295 = vld [vmem:[%s199 + $0x4a] sm:$0xff]
      %v296 = vld [vmem:[%s219 + $0xa] sm:$0xff]
      %v297 = vld [vmem:[%s219 + $0x12] sm:$0xff]
      %v298 = vld [vmem:[%s219 + $0x1a] sm:$0xff]
      %v299 = vld [vmem:[%s219 + $0x22] sm:$0xff]
      %v300 = vld [vmem:[%s219 + $0x2a] sm:$0xff]
      %v301 = vld [vmem:[%s219 + $0x32] sm:$0xff]
      %v302 = vld [vmem:[%s219 + $0x3a] sm:$0xff]
      %v303 = vld [vmem:[%s219 + $0x42] sm:$0xff]
      %v304 = vld [vmem:[%s219 + $0x4a] sm:$0xff]
      %v305 = vld [vmem:[%s247 + $0x49] sm:$0xff]
      %v306 = vld [vmem:[%s257 + $0x49] sm:$0xff]
      %v307 = vld [vmem:[%s247 + $0xa] sm:$0xff]
      %v308 = vld [vmem:[%s247 + $0x12] sm:$0xff]
      %v309 = vld [vmem:[%s247 + $0x1a] sm:$0xff]
      %v310 = vld [vmem:[%s247 + $0x22] sm:$0xff]
      %v311 = vld [vmem:[%s247 + $0x2a] sm:$0xff]
      %v312 = vld [vmem:[%s247 + $0x32] sm:$0xff]
      %v313 = vld [vmem:[%s247 + $0x3a] sm:$0xff]
      %v314 = vld [vmem:[%s247 + $0x42] sm:$0xff]
      %v315 = vld [vmem:[%s247 + $0x4a] sm:$0xff]
      %v316 = vld [vmem:[%s257 + $0xa] sm:$0xff]
      %v317 = vld [vmem:[%s257 + $0x12] sm:$0xff]
      %v318 = vld [vmem:[%s257 + $0x1a] sm:$0xff]
      %v319 = vld [vmem:[%s257 + $0x22] sm:$0xff]
      %v320 = vld [vmem:[%s257 + $0x2a] sm:$0xff]
      %v321 = vld [vmem:[%s257 + $0x32] sm:$0xff]
      %v322 = vld [vmem:[%s257 + $0x3a] sm:$0xff]
      %v323 = vld [vmem:[%s257 + $0x42] sm:$0xff]
      %v324 = vld [vmem:[%s257 + $0x4a] sm:$0xff]
      %334 = vrot.lane.b32.xlu0 %v220, 8
      %v335 = vpop.permute.xlu0 %334
      %336 = vrot.lane.b32.xlu0 %v221, 8
      %v337 = vpop.permute.xlu0 %336
      %338 = vrot.lane.b32.xlu0 %v222, 8
      %v339 = vpop.permute.xlu0 %338
      %340 = vrot.lane.b32.xlu0 %v223, 8
      %v341 = vpop.permute.xlu0 %340
      %342 = vrot.lane.b32.xlu0 %v224, 8
      %v343 = vpop.permute.xlu0 %342
      %344 = vrot.lane.b32.xlu0 %v225, 8
      %v345 = vpop.permute.xlu0 %344
      %346 = vrot.lane.b32.xlu0 %v226, 8
      %v347 = vpop.permute.xlu0 %346
      %348 = vrot.lane.b32.xlu0 %v227, 8
      %v349 = vpop.permute.xlu0 %348
      %350 = vrot.lane.b32.xlu0 %v228, 8
      %v351 = vpop.permute.xlu0 %350
      %370 = vrot.lane.b32.xlu0 %v229, 16
      %v371 = vpop.permute.xlu0 %370
      %372 = vrot.lane.b32.xlu0 %v230, 16
      %v373 = vpop.permute.xlu0 %372
      %374 = vrot.lane.b32.xlu0 %v231, 16
      %v375 = vpop.permute.xlu0 %374
      %376 = vrot.lane.b32.xlu0 %v232, 16
      %v377 = vpop.permute.xlu0 %376
      %378 = vrot.lane.b32.xlu0 %v233, 16
      %v379 = vpop.permute.xlu0 %378
      %380 = vrot.lane.b32.xlu0 %v234, 16
      %v381 = vpop.permute.xlu0 %380
      %382 = vrot.lane.b32.xlu0 %v235, 16
      %v383 = vpop.permute.xlu0 %382
      %384 = vrot.lane.b32.xlu0 %v236, 16
      %v385 = vpop.permute.xlu0 %384
      %386 = vrot.lane.b32.xlu0 %v237, 16
      %v387 = vpop.permute.xlu0 %386
      %406 = vrot.lane.b32.xlu0 %v238, 24
      %v407 = vpop.permute.xlu0 %406
      %408 = vrot.lane.b32.xlu0 %v239, 24
      %v409 = vpop.permute.xlu0 %408
      %410 = vrot.lane.b32.xlu0 %v240, 24
      %v411 = vpop.permute.xlu0 %410
      %412 = vrot.lane.b32.xlu0 %v241, 24
      %v413 = vpop.permute.xlu0 %412
      %414 = vrot.lane.b32.xlu0 %v242, 24
      %v415 = vpop.permute.xlu0 %414
      %416 = vrot.lane.b32.xlu0 %v243, 24
      %v417 = vpop.permute.xlu0 %416
      %418 = vrot.lane.b32.xlu0 %v244, 24
      %v419 = vpop.permute.xlu0 %418
      %420 = vrot.lane.b32.xlu0 %v245, 24
      %v421 = vpop.permute.xlu0 %420
      %422 = vrot.lane.b32.xlu0 %v246, 24
      %v423 = vpop.permute.xlu0 %422
      %442 = vrot.lane.b32.xlu0 %v248, 32
      %v443 = vpop.permute.xlu0 %442
      %444 = vrot.lane.b32.xlu0 %v249, 32
      %v445 = vpop.permute.xlu0 %444
      %446 = vrot.lane.b32.xlu0 %v250, 32
      %v447 = vpop.permute.xlu0 %446
      %448 = vrot.lane.b32.xlu0 %v251, 32
      %v449 = vpop.permute.xlu0 %448
      %450 = vrot.lane.b32.xlu0 %v252, 32
      %v451 = vpop.permute.xlu0 %450
      %452 = vrot.lane.b32.xlu0 %v253, 32
      %v453 = vpop.permute.xlu0 %452
      %454 = vrot.lane.b32.xlu0 %v254, 32
      %v455 = vpop.permute.xlu0 %454
      %456 = vrot.lane.b32.xlu0 %v255, 32
      %v457 = vpop.permute.xlu0 %456
      %458 = vrot.lane.b32.xlu0 %v256, 32
      %v459 = vpop.permute.xlu0 %458
      %478 = vrot.lane.b32.xlu0 %v258, 40
      %v479 = vpop.permute.xlu0 %478
      %480 = vrot.lane.b32.xlu0 %v259, 40
      %v481 = vpop.permute.xlu0 %480
      %482 = vrot.lane.b32.xlu0 %v260, 40
      %v483 = vpop.permute.xlu0 %482
      %484 = vrot.lane.b32.xlu0 %v261, 40
      %v485 = vpop.permute.xlu0 %484
      %486 = vrot.lane.b32.xlu0 %v262, 40
      %v487 = vpop.permute.xlu0 %486
      %488 = vrot.lane.b32.xlu0 %v263, 40
      %v489 = vpop.permute.xlu0 %488
      %490 = vrot.lane.b32.xlu0 %v264, 40
      %v491 = vpop.permute.xlu0 %490
      %492 = vrot.lane.b32.xlu0 %v265, 40
      %v493 = vpop.permute.xlu0 %492
      %494 = vrot.lane.b32.xlu0 %v266, 40
      %v495 = vpop.permute.xlu0 %494
      %514 = vrot.lane.b32.xlu0 %v267, 48
      %v515 = vpop.permute.xlu0 %514
      %516 = vrot.lane.b32.xlu0 %v268, 48
      %v517 = vpop.permute.xlu0 %516
      %518 = vrot.lane.b32.xlu0 %v269, 48
      %v519 = vpop.permute.xlu0 %518
      %520 = vrot.lane.b32.xlu0 %v270, 48
      %v521 = vpop.permute.xlu0 %520
      %522 = vrot.lane.b32.xlu0 %v271, 48
      %v523 = vpop.permute.xlu0 %522
      %524 = vrot.lane.b32.xlu0 %v272, 48
      %v525 = vpop.permute.xlu0 %524
      %526 = vrot.lane.b32.xlu0 %v273, 48
      %v527 = vpop.permute.xlu0 %526
      %528 = vrot.lane.b32.xlu0 %v274, 48
      %v529 = vpop.permute.xlu0 %528
      %530 = vrot.lane.b32.xlu0 %v275, 48
      %v531 = vpop.permute.xlu0 %530
      %550 = vrot.lane.b32.xlu0 %v276, 56
      %v551 = vpop.permute.xlu0 %550
      %552 = vrot.lane.b32.xlu0 %v277, 56
      %v553 = vpop.permute.xlu0 %552
      %554 = vrot.lane.b32.xlu0 %v278, 56
      %v555 = vpop.permute.xlu0 %554
      %556 = vrot.lane.b32.xlu0 %v279, 56
      %v557 = vpop.permute.xlu0 %556
      %558 = vrot.lane.b32.xlu0 %v280, 56
      %v559 = vpop.permute.xlu0 %558
      %560 = vrot.lane.b32.xlu0 %v281, 56
      %v561 = vpop.permute.xlu0 %560
      %562 = vrot.lane.b32.xlu0 %v282, 56
      %v563 = vpop.permute.xlu0 %562
      %564 = vrot.lane.b32.xlu0 %v283, 56
      %v565 = vpop.permute.xlu0 %564
      %566 = vrot.lane.b32.xlu0 %v284, 56
      %v567 = vpop.permute.xlu0 %566
      %578 = vrot.lane.b32.xlu0 %v230, 64
      %v579 = vpop.permute.xlu0 %578
      %580 = vrot.lane.b32.xlu0 %v231, 64
      %v581 = vpop.permute.xlu0 %580
      %582 = vrot.lane.b32.xlu0 %v232, 64
      %v583 = vpop.permute.xlu0 %582
      %584 = vrot.lane.b32.xlu0 %v233, 64
      %v585 = vpop.permute.xlu0 %584
      %586 = vrot.lane.b32.xlu0 %v234, 64
      %v587 = vpop.permute.xlu0 %586
      %588 = vrot.lane.b32.xlu0 %v235, 64
      %v589 = vpop.permute.xlu0 %588
      %590 = vrot.lane.b32.xlu0 %v236, 64
      %v591 = vpop.permute.xlu0 %590
      %592 = vrot.lane.b32.xlu0 %v237, 64
      %v593 = vpop.permute.xlu0 %592
      %594 = vrot.lane.b32.xlu0 %v285, 64
      %v595 = vpop.permute.xlu0 %594
      %606 = vrot.lane.b32.xlu0 %v239, 72
      %v607 = vpop.permute.xlu0 %606
      %608 = vrot.lane.b32.xlu0 %v240, 72
      %v609 = vpop.permute.xlu0 %608
      %610 = vrot.lane.b32.xlu0 %v241, 72
      %v611 = vpop.permute.xlu0 %610
      %612 = vrot.lane.b32.xlu0 %v242, 72
      %v613 = vpop.permute.xlu0 %612
      %614 = vrot.lane.b32.xlu0 %v243, 72
      %v615 = vpop.permute.xlu0 %614
      %616 = vrot.lane.b32.xlu0 %v244, 72
      %v617 = vpop.permute.xlu0 %616
      %618 = vrot.lane.b32.xlu0 %v245, 72
      %v619 = vpop.permute.xlu0 %618
      %620 = vrot.lane.b32.xlu0 %v246, 72
      %v621 = vpop.permute.xlu0 %620
      %622 = vrot.lane.b32.xlu0 %v286, 72
      %v623 = vpop.permute.xlu0 %622
      %642 = vrot.lane.b32.xlu0 %v287, 80
      %v643 = vpop.permute.xlu0 %642
      %644 = vrot.lane.b32.xlu0 %v288, 80
      %v645 = vpop.permute.xlu0 %644
      %646 = vrot.lane.b32.xlu0 %v289, 80
      %v647 = vpop.permute.xlu0 %646
      %648 = vrot.lane.b32.xlu0 %v290, 80
      %v649 = vpop.permute.xlu0 %648
      %650 = vrot.lane.b32.xlu0 %v291, 80
      %v651 = vpop.permute.xlu0 %650
      %652 = vrot.lane.b32.xlu0 %v292, 80
      %v653 = vpop.permute.xlu0 %652
      %654 = vrot.lane.b32.xlu0 %v293, 80
      %v655 = vpop.permute.xlu0 %654
      %656 = vrot.lane.b32.xlu0 %v294, 80
      %v657 = vpop.permute.xlu0 %656
      %658 = vrot.lane.b32.xlu0 %v295, 80
      %v659 = vpop.permute.xlu0 %658
      %678 = vrot.lane.b32.xlu0 %v296, 88
      %v679 = vpop.permute.xlu0 %678
      %680 = vrot.lane.b32.xlu0 %v297, 88
      %v681 = vpop.permute.xlu0 %680
      %682 = vrot.lane.b32.xlu0 %v298, 88
      %v683 = vpop.permute.xlu0 %682
      %684 = vrot.lane.b32.xlu0 %v299, 88
      %v685 = vpop.permute.xlu0 %684
      %686 = vrot.lane.b32.xlu0 %v300, 88
      %v687 = vpop.permute.xlu0 %686
      %688 = vrot.lane.b32.xlu0 %v301, 88
      %v689 = vpop.permute.xlu0 %688
      %690 = vrot.lane.b32.xlu0 %v302, 88
      %v691 = vpop.permute.xlu0 %690
      %692 = vrot.lane.b32.xlu0 %v303, 88
      %v693 = vpop.permute.xlu0 %692
      %694 = vrot.lane.b32.xlu0 %v304, 88
      %v695 = vpop.permute.xlu0 %694
      %706 = vrot.lane.b32.xlu0 %v268, 96
      %v707 = vpop.permute.xlu0 %706
      %708 = vrot.lane.b32.xlu0 %v269, 96
      %v709 = vpop.permute.xlu0 %708
      %710 = vrot.lane.b32.xlu0 %v270, 96
      %v711 = vpop.permute.xlu0 %710
      %712 = vrot.lane.b32.xlu0 %v271, 96
      %v713 = vpop.permute.xlu0 %712
      %714 = vrot.lane.b32.xlu0 %v272, 96
      %v715 = vpop.permute.xlu0 %714
      %716 = vrot.lane.b32.xlu0 %v273, 96
      %v717 = vpop.permute.xlu0 %716
      %718 = vrot.lane.b32.xlu0 %v274, 96
      %v719 = vpop.permute.xlu0 %718
      %720 = vrot.lane.b32.xlu0 %v275, 96
      %v721 = vpop.permute.xlu0 %720
      %722 = vrot.lane.b32.xlu0 %v305, 96
      %v723 = vpop.permute.xlu0 %722
      %734 = vrot.lane.b32.xlu0 %v277, 104
      %v735 = vpop.permute.xlu0 %734
      %736 = vrot.lane.b32.xlu0 %v278, 104
      %v737 = vpop.permute.xlu0 %736
      %738 = vrot.lane.b32.xlu0 %v279, 104
      %v739 = vpop.permute.xlu0 %738
      %740 = vrot.lane.b32.xlu0 %v280, 104
      %v741 = vpop.permute.xlu0 %740
      %742 = vrot.lane.b32.xlu0 %v281, 104
      %v743 = vpop.permute.xlu0 %742
      %744 = vrot.lane.b32.xlu0 %v282, 104
      %v745 = vpop.permute.xlu0 %744
      %746 = vrot.lane.b32.xlu0 %v283, 104
      %v747 = vpop.permute.xlu0 %746
      %748 = vrot.lane.b32.xlu0 %v284, 104
      %v749 = vpop.permute.xlu0 %748
      %750 = vrot.lane.b32.xlu0 %v306, 104
      %v751 = vpop.permute.xlu0 %750
      %770 = vrot.lane.b32.xlu0 %v307, 112
      %v771 = vpop.permute.xlu0 %770
      %772 = vrot.lane.b32.xlu0 %v308, 112
      %v773 = vpop.permute.xlu0 %772
      %774 = vrot.lane.b32.xlu0 %v309, 112
      %v775 = vpop.permute.xlu0 %774
      %776 = vrot.lane.b32.xlu0 %v310, 112
      %v777 = vpop.permute.xlu0 %776
      %778 = vrot.lane.b32.xlu0 %v311, 112
      %v779 = vpop.permute.xlu0 %778
      %780 = vrot.lane.b32.xlu0 %v312, 112
      %v781 = vpop.permute.xlu0 %780
      %782 = vrot.lane.b32.xlu0 %v313, 112
      %v783 = vpop.permute.xlu0 %782
      %784 = vrot.lane.b32.xlu0 %v314, 112
      %v785 = vpop.permute.xlu0 %784
      %786 = vrot.lane.b32.xlu0 %v315, 112
      %v787 = vpop.permute.xlu0 %786
      %806 = vrot.lane.b32.xlu0 %v316, 120
      %v807 = vpop.permute.xlu0 %806
      %808 = vrot.lane.b32.xlu0 %v317, 120
      %v809 = vpop.permute.xlu0 %808
      %810 = vrot.lane.b32.xlu0 %v318, 120
      %v811 = vpop.permute.xlu0 %810
      %812 = vrot.lane.b32.xlu0 %v319, 120
      %v813 = vpop.permute.xlu0 %812
      %814 = vrot.lane.b32.xlu0 %v320, 120
      %v815 = vpop.permute.xlu0 %814
      %816 = vrot.lane.b32.xlu0 %v321, 120
      %v817 = vpop.permute.xlu0 %816
      %818 = vrot.lane.b32.xlu0 %v322, 120
      %v819 = vpop.permute.xlu0 %818
      %820 = vrot.lane.b32.xlu0 %v323, 120
      %v821 = vpop.permute.xlu0 %820
      %822 = vrot.lane.b32.xlu0 %v324, 120
      %v823 = vpop.permute.xlu0 %822
      %vm833 = vcmask 64512
      %v834 = vsel %vm833, %v210, %v335
      %v835 = vsel %vm833, %v211, %v337
      %v836 = vsel %vm833, %v212, %v339
      %v837 = vsel %vm833, %v213, %v341
      %v838 = vsel %vm833, %v214, %v343
      %v839 = vsel %vm833, %v215, %v345
      %v840 = vsel %vm833, %v216, %v347
      %v841 = vsel %vm833, %v217, %v349
      %v842 = vsel %vm833, %v218, %v351
      %vm843 = vcmask 130048
      %v844 = vsel %vm843, %v834, %v371
      %v845 = vsel %vm843, %v835, %v373
      %v846 = vsel %vm843, %v836, %v375
      %v847 = vsel %vm843, %v837, %v377
      %v848 = vsel %vm843, %v838, %v379
      %v849 = vsel %vm843, %v839, %v381
      %v850 = vsel %vm843, %v840, %v383
      %v851 = vsel %vm843, %v841, %v385
      %v852 = vsel %vm843, %v842, %v387
      %vm853 = vcmask 195584
      %v854 = vsel %vm853, %v844, %v407
      %v855 = vsel %vm853, %v845, %v409
      %v856 = vsel %vm853, %v846, %v411
      %v857 = vsel %vm853, %v847, %v413
      %v858 = vsel %vm853, %v848, %v415
      %v859 = vsel %vm853, %v849, %v417
      %v860 = vsel %vm853, %v850, %v419
      %v861 = vsel %vm853, %v851, %v421
      %v862 = vsel %vm853, %v852, %v423
      %vm863 = vcmask 261120
      %v864 = vsel %vm863, %v854, %v443
      %v865 = vsel %vm863, %v855, %v445
      %v866 = vsel %vm863, %v856, %v447
      %v867 = vsel %vm863, %v857, %v449
      %v868 = vsel %vm863, %v858, %v451
      %v869 = vsel %vm863, %v859, %v453
      %v870 = vsel %vm863, %v860, %v455
      %v871 = vsel %vm863, %v861, %v457
      %v872 = vsel %vm863, %v862, %v459
      %vm873 = vcmask 326656
      %v874 = vsel %vm873, %v864, %v479
      %v875 = vsel %vm873, %v865, %v481
      %v876 = vsel %vm873, %v866, %v483
      %v877 = vsel %vm873, %v867, %v485
      %v878 = vsel %vm873, %v868, %v487
      %v879 = vsel %vm873, %v869, %v489
      %v880 = vsel %vm873, %v870, %v491
      %v881 = vsel %vm873, %v871, %v493
      %v882 = vsel %vm873, %v872, %v495
      %vm883 = vcmask 392192
      %v884 = vsel %vm883, %v874, %v515
      %v885 = vsel %vm883, %v875, %v517
      %v886 = vsel %vm883, %v876, %v519
      %v887 = vsel %vm883, %v877, %v521
      %v888 = vsel %vm883, %v878, %v523
      %v889 = vsel %vm883, %v879, %v525
      %v890 = vsel %vm883, %v880, %v527
      %v891 = vsel %vm883, %v881, %v529
      %v892 = vsel %vm883, %v882, %v531
      %vm893 = vcmask 457728
      %v894 = vsel %vm893, %v884, %v551
      %v895 = vsel %vm893, %v885, %v553
      %v896 = vsel %vm893, %v886, %v555
      %v897 = vsel %vm893, %v887, %v557
      %v898 = vsel %vm893, %v888, %v559
      %v899 = vsel %vm893, %v889, %v561
      %v900 = vsel %vm893, %v890, %v563
      %v901 = vsel %vm893, %v891, %v565
      %v902 = vsel %vm893, %v892, %v567
      %vm903 = vcmask 523264
      %v904 = vsel %vm903, %v894, %v579
      %v905 = vsel %vm903, %v895, %v581
      %v906 = vsel %vm903, %v896, %v583
      %v907 = vsel %vm903, %v897, %v585
      %v908 = vsel %vm903, %v898, %v587
      %v909 = vsel %vm903, %v899, %v589
      %v910 = vsel %vm903, %v900, %v591
      %v911 = vsel %vm903, %v901, %v593
      %v912 = vsel %vm903, %v902, %v595
      %vm913 = vcmask 588800
      %v914 = vsel %vm913, %v904, %v607
      %v915 = vsel %vm913, %v905, %v609
      %v916 = vsel %vm913, %v906, %v611
      %v917 = vsel %vm913, %v907, %v613
      %v918 = vsel %vm913, %v908, %v615
      %v919 = vsel %vm913, %v909, %v617
      %v920 = vsel %vm913, %v910, %v619
      %v921 = vsel %vm913, %v911, %v621
      %v922 = vsel %vm913, %v912, %v623
      %vm923 = vcmask 654336
      %v924 = vsel %vm923, %v914, %v643
      %v925 = vsel %vm923, %v915, %v645
      %v926 = vsel %vm923, %v916, %v647
      %v927 = vsel %vm923, %v917, %v649
      %v928 = vsel %vm923, %v918, %v651
      %v929 = vsel %vm923, %v919, %v653
      %v930 = vsel %vm923, %v920, %v655
      %v931 = vsel %vm923, %v921, %v657
      %v932 = vsel %vm923, %v922, %v659
      %vm933 = vcmask 719872
      %v934 = vsel %vm933, %v924, %v679
      %v935 = vsel %vm933, %v925, %v681
      %v936 = vsel %vm933, %v926, %v683
      %v937 = vsel %vm933, %v927, %v685
      %v938 = vsel %vm933, %v928, %v687
      %v939 = vsel %vm933, %v929, %v689
      %v940 = vsel %vm933, %v930, %v691
      %v941 = vsel %vm933, %v931, %v693
      %v942 = vsel %vm933, %v932, %v695
      %vm943 = vcmask 785408
      %v944 = vsel %vm943, %v934, %v707
      %v945 = vsel %vm943, %v935, %v709
      %v946 = vsel %vm943, %v936, %v711
      %v947 = vsel %vm943, %v937, %v713
      %v948 = vsel %vm943, %v938, %v715
      %v949 = vsel %vm943, %v939, %v717
      %v950 = vsel %vm943, %v940, %v719
      %v951 = vsel %vm943, %v941, %v721
      %v952 = vsel %vm943, %v942, %v723
      %vm953 = vcmask 850944
      %v954 = vsel %vm953, %v944, %v735
      %v955 = vsel %vm953, %v945, %v737
      %v956 = vsel %vm953, %v946, %v739
      %v957 = vsel %vm953, %v947, %v741
      %v958 = vsel %vm953, %v948, %v743
      %v959 = vsel %vm953, %v949, %v745
      %v960 = vsel %vm953, %v950, %v747
      %v961 = vsel %vm953, %v951, %v749
      %v962 = vsel %vm953, %v952, %v751
      %vm963 = vcmask 916480
      %v964 = vsel %vm963, %v954, %v771
      %v965 = vsel %vm963, %v955, %v773
      %v966 = vsel %vm963, %v956, %v775
      %v967 = vsel %vm963, %v957, %v777
      %v968 = vsel %vm963, %v958, %v779
      %v969 = vsel %vm963, %v959, %v781
      %v970 = vsel %vm963, %v960, %v783
      %v971 = vsel %vm963, %v961, %v785
      %v972 = vsel %vm963, %v962, %v787
      %vm973 = vcmask 982016
      %v974 = vsel %vm973, %v964, %v807
      %v975 = vsel %vm973, %v965, %v809
      %v976 = vsel %vm973, %v966, %v811
      %v977 = vsel %vm973, %v967, %v813
      %v978 = vsel %vm973, %v968, %v815
      %v979 = vsel %vm973, %v969, %v817
      %v980 = vsel %vm973, %v970, %v819
      %v981 = vsel %vm973, %v971, %v821
      %v982 = vsel %vm973, %v972, %v823
      %v983 = vpack.c.bf16 %v975, %v974
      %v984 = vpack.c.bf16 %v977, %v976
      %v985 = vpack.c.bf16 %v979, %v978
      %v986 = vpack.c.bf16 %v981, %v980
      %v987 = vpack.c.bf16 %v982, %v982
      %v988 = vld [vmem:[%s1] sm:$0xf]
      %v989 = vld [vmem:[%s1 + $0x4] sm:$0xf]
      %v990 = vld [vmem:[%s1 + $0x8] sm:$0xf]
      %v991 = vld [vmem:[%s1 + $0xc] sm:$0xf]
      %v992 = vld [vmem:[%s1 + $0x10] sm:$0xf]
      %v993 = vld [vmem:[%s1 + $0x14] sm:$0xf]
      %v994 = vld [vmem:[%s1 + $0x18] sm:$0xf]
      %v995 = vld [vmem:[%s1 + $0x1c] sm:$0xf]
      %v996 = vld [vmem:[%s1 + $0x20] sm:$0xf]
      %v997 = vld [vmem:[%s1 + $0x24] sm:$0xf]
      %v998 = vld [vmem:[%s1 + $0x28] sm:$0xf]
      %v999 = vld [vmem:[%s1 + $0x2c] sm:$0xf]
      %v1000 = vld [vmem:[%s1 + $0x30] sm:$0xf]
      %v1001 = vld [vmem:[%s1 + $0x34] sm:$0xf]
      %v1002 = vld [vmem:[%s1 + $0x38] sm:$0xf]
      %v1003 = vld [vmem:[%s1 + $0x3c] sm:$0xf]
      %v1020 = vunpack.c.l.b16 %v988
      %v1021 = vunpack.c.l.b16 %v989
      %v1022 = vunpack.c.l.b16 %v990
      %v1023 = vunpack.c.l.b16 %v991
      %v1024 = vunpack.c.l.b16 %v992
      %v1025 = vunpack.c.l.b16 %v993
      %v1026 = vunpack.c.l.b16 %v994
      %v1027 = vunpack.c.l.b16 %v995
      %v1028 = vunpack.c.l.b16 %v996
      %v1029 = vunpack.c.l.b16 %v997
      %v1030 = vunpack.c.l.b16 %v998
      %v1031 = vunpack.c.l.b16 %v999
      %v1032 = vunpack.c.l.b16 %v1000
      %v1033 = vunpack.c.l.b16 %v1001
      %v1034 = vunpack.c.l.b16 %v1002
      %v1035 = vunpack.c.l.b16 %v1003
      %v1036 = vpack.c.b16 %v1021, %v1020
      %v1037 = vpack.c.b16 %v1023, %v1022
      %v1038 = vpack.c.b16 %v1025, %v1024
      %v1039 = vpack.c.b16 %v1027, %v1026
      %v1040 = vpack.c.b16 %v1029, %v1028
      %v1041 = vpack.c.b16 %v1031, %v1030
      %v1042 = vpack.c.b16 %v1033, %v1032
      %v1043 = vpack.c.b16 %v1035, %v1034
      %1052 = vmatprep.subr.bf16.mxu0 0
      %1053 = vmatpush1.bf16.msra.mxu0 %v1036
      %1054 = vmatprep.subr.bf16.mxu0 0
      %1055 = vmatpush1.bf16.msra.mxu0 %v1037
      %1056 = vmatprep.subr.bf16.mxu0 0
      %1057 = vmatpush1.bf16.msra.mxu0 %v1038
      %1058 = vmatprep.subr.bf16.mxu0 0
      %1059 = vmatpush1.bf16.msra.mxu0 %v1039
      %1060 = vmatprep.subr.bf16.mxu0 0
      %1061 = vmatpush1.bf16.msra.mxu0 %v1040
      %1062 = vmatprep.subr.bf16.mxu0 0
      %1063 = vmatpush1.bf16.msra.mxu0 %v1041
      %1064 = vmatprep.subr.bf16.mxu0 0
      %1065 = vmatpush1.bf16.msra.mxu0 %v1042
      %1066 = vmatprep.subr.bf16.mxu0 0
      %1067 = vmatpush1.bf16.msra.mxu0 %v1043
      %1068 = vmatprep.subr.bf16.mxu0 0
      %1069 = vmatpush1.bf16.msra.mxu0 0
      %1070 = vmatprep.subr.bf16.mxu0 0
      %1071 = vmatpush1.bf16.msra.mxu0 0
      %1072 = vmatprep.subr.bf16.mxu0 0
      %1073 = vmatpush1.bf16.msra.mxu0 0
      %1074 = vmatprep.subr.bf16.mxu0 0
      %1075 = vmatpush1.bf16.msra.mxu0 0
      %1076 = vmatprep.subr.bf16.mxu0 0
      %1077 = vmatpush1.bf16.msra.mxu0 0
      %1078 = vmatprep.subr.bf16.mxu0 0
      %1079 = vmatpush1.bf16.msra.mxu0 0
      %1080 = vmatprep.subr.bf16.mxu0 0
      %1081 = vmatpush1.bf16.msra.mxu0 0
      %1082 = vmatprep.subr.bf16.mxu0 0
      %1083 = vmatpush1.bf16.msra.mxu0 0
      %1084 = vmatprep.mubr.bf16.mxu0 0
      %1085 = vmatmul.mubr.bf16.gmra.mrb[0].mxu0 %v983
      %v1086 = vpop.f32.mrb[0].mxu0
      %v1087 = vadd.f32 0.0, %v1086
      %v1088 = vpop.f32.mrb[0].mxu0
      %v1089 = vpop.f32.mrb[0].mxu0
      %v1090 = vadd.f32 0.0, %v1089
      %v1091 = vpop.f32.mrb[0].mxu0
      %1092 = vmatprep.mubr.bf16.mxu0 0
      %1093 = vmatmul.mubr.bf16.gmra.mrb[0].mxu0 %v984
      %v1094 = vpop.f32.mrb[0].mxu0
      %v1095 = vadd.f32 0.0, %v1094
      %v1096 = vpop.f32.mrb[0].mxu0
      %v1097 = vpop.f32.mrb[0].mxu0
      %v1098 = vadd.f32 0.0, %v1097
      %v1099 = vpop.f32.mrb[0].mxu0
      %1100 = vmatprep.mubr.bf16.mxu0 0
      %1101 = vmatmul.mubr.bf16.gmra.mrb[0].mxu0 %v985
      %v1102 = vpop.f32.mrb[0].mxu0
      %v1103 = vadd.f32 0.0, %v1102
      %v1104 = vpop.f32.mrb[0].mxu0
      %v1105 = vpop.f32.mrb[0].mxu0
      %v1106 = vadd.f32 0.0, %v1105
      %v1107 = vpop.f32.mrb[0].mxu0
      %1108 = vmatprep.mubr.bf16.mxu0 0
      %1109 = vmatmul.mubr.bf16.gmra.mrb[0].mxu0 %v986
      %v1110 = vpop.f32.mrb[0].mxu0
      %v1111 = vadd.f32 0.0, %v1110
      %v1112 = vpop.f32.mrb[0].mxu0
      %v1113 = vpop.f32.mrb[0].mxu0
      %v1114 = vadd.f32 0.0, %v1113
      %v1115 = vpop.f32.mrb[0].mxu0
      %1116 = vmatprep.mubr.bf16.mxu0 0
      %1117 = vmatmul.mubr.bf16.gmra.mrb[0].mxu0 %v987
      %v1118 = vpop.f32.mrb[0].mxu0
      %v1119 = vadd.f32 0.0, %v1118
      %v1120 = vpop.f32.mrb[0].mxu0
      %v1121 = vpop.f32.mrb[0].mxu0
      %v1122 = vpop.f32.mrb[0].mxu0
      %1123 = vdwg.mxu0
      %vm1124 = vcmp.gt.f32.partialorder %v1087, 0.0
      %vm1125 = vcmp.gt.f32.partialorder %v1090, 0.0
      %vm1126 = vcmp.gt.f32.partialorder %v1095, 0.0
      %vm1127 = vcmp.gt.f32.partialorder %v1098, 0.0
      %vm1128 = vcmp.gt.f32.partialorder %v1103, 0.0
      %vm1129 = vcmp.gt.f32.partialorder %v1106, 0.0
      %vm1130 = vcmp.gt.f32.partialorder %v1111, 0.0
      %vm1131 = vcmp.gt.f32.partialorder %v1114, 0.0
      %vm1132 = vcmp.gt.f32.partialorder %v1119, 0.0
      %v1133 = vmul.f32 %v1087, 0.2
      %v1134 = vmul.f32 %v1090, 0.2
      %v1135 = vmul.f32 %v1095, 0.2
      %v1136 = vmul.f32 %v1098, 0.2
      %v1137 = vmul.f32 %v1103, 0.2
      %v1138 = vmul.f32 %v1106, 0.2
      %v1139 = vmul.f32 %v1111, 0.2
      %v1140 = vmul.f32 %v1114, 0.2
      %v1141 = vmul.f32 %v1119, 0.2
      %v1142 = vsel %vm1124, %v1087, %v1133
      %v1143 = vsel %vm1125, %v1090, %v1134
      %v1144 = vsel %vm1126, %v1095, %v1135
      %v1145 = vsel %vm1127, %v1098, %v1136
      %v1146 = vsel %vm1128, %v1103, %v1137
      %v1147 = vsel %vm1129, %v1106, %v1138
      %v1148 = vsel %vm1130, %v1111, %v1139
      %v1149 = vsel %vm1131, %v1114, %v1140
      %v1150 = vsel %vm1132, %v1119, %v1141
      %1151 = vst.msk [vmem:[%s204] sm:$0xff] %vm843, %v1142
      %1152 = vst.msk [vmem:[%s204 + $0x8] sm:$0xff] %vm843, %v1143
      %1153 = vst.msk [vmem:[%s204 + $0x10] sm:$0xff] %vm843, %v1144
      %1154 = vst.msk [vmem:[%s204 + $0x18] sm:$0xff] %vm843, %v1145
      %1155 = vst.msk [vmem:[%s204 + $0x20] sm:$0xff] %vm843, %v1146
      %1156 = vst.msk [vmem:[%s204 + $0x28] sm:$0xff] %vm843, %v1147
      %1157 = vst.msk [vmem:[%s204 + $0x30] sm:$0xff] %vm843, %v1148
      %1158 = vst.msk [vmem:[%s204 + $0x38] sm:$0xff] %vm843, %v1149
      %1159 = vst.msk [vmem:[%s204 + $0x40] sm:$0xff] %vm843, %v1150
      %v1160 = vld [vmem:[%s2] sm:$0xff]
      %v1161 = vld [vmem:[%s2 + $0x8] sm:$0xff]
      %v1162 = vld [vmem:[%s2 + $0x10] sm:$0xff]
      %v1163 = vld [vmem:[%s2 + $0x18] sm:$0xff]
      %v1164 = vld [vmem:[%s2 + $0x20] sm:$0xff]
      %v1165 = vld [vmem:[%s2 + $0x28] sm:$0xff]
      %v1166 = vld [vmem:[%s2 + $0x30] sm:$0xff]
      %v1167 = vld [vmem:[%s2 + $0x38] sm:$0xff]
      %v1168 = vld [vmem:[%s2 + $0x40] sm:$0xff]
      %1170 = vset.pattern.permute.xlu0 0
      %1171 = vperm.xlu0 %1170, %v1160
      %v1172 = vpop.permute.xlu0 %1171
      %1175 = vset.pattern.permute.xlu0 0
      %1176 = vperm.xlu0 %1175, %v1161
      %v1177 = vpop.permute.xlu0 %1176
      %1180 = vset.pattern.permute.xlu0 0
      %1181 = vperm.xlu0 %1180, %v1162
      %v1182 = vpop.permute.xlu0 %1181
      %1185 = vset.pattern.permute.xlu0 0
      %1186 = vperm.xlu0 %1185, %v1163
      %v1187 = vpop.permute.xlu0 %1186
      %1190 = vset.pattern.permute.xlu0 0
      %1191 = vperm.xlu0 %1190, %v1164
      %v1192 = vpop.permute.xlu0 %1191
      %1195 = vset.pattern.permute.xlu0 0
      %1196 = vperm.xlu0 %1195, %v1165
      %v1197 = vpop.permute.xlu0 %1196
      %1200 = vset.pattern.permute.xlu0 0
      %1201 = vperm.xlu0 %1200, %v1166
      %v1202 = vpop.permute.xlu0 %1201
      %1205 = vset.pattern.permute.xlu0 0
      %1206 = vperm.xlu0 %1205, %v1167
      %v1207 = vpop.permute.xlu0 %1206
      %1210 = vset.pattern.permute.xlu0 0
      %1211 = vperm.xlu0 %1210, %v1168
      %v1212 = vpop.permute.xlu0 %1211
      %v1214 = vmul.f32 %v1142, %v1172
      %v1215 = vmul.f32 %v1143, %v1177
      %v1216 = vmul.f32 %v1144, %v1182
      %v1217 = vmul.f32 %v1145, %v1187
      %v1218 = vmul.f32 %v1146, %v1192
      %v1219 = vmul.f32 %v1147, %v1197
      %v1220 = vmul.f32 %v1148, %v1202
      %v1221 = vmul.f32 %v1149, %v1207
      %v1222 = vmul.f32 %v1150, %v1212
      %v1223 = vsel %vm843, %v1214, 0.0
      %v1224 = vsel %vm843, %v1215, 0.0
      %v1225 = vadd.f32 %v1223, %v1224
      %v1226 = vsel %vm843, %v1216, 0.0
      %v1227 = vadd.f32 %v1225, %v1226
      %v1228 = vsel %vm843, %v1217, 0.0
      %v1229 = vadd.f32 %v1227, %v1228
      %v1230 = vsel %vm843, %v1218, 0.0
      %v1231 = vadd.f32 %v1229, %v1230
      %v1232 = vsel %vm843, %v1219, 0.0
      %v1233 = vadd.f32 %v1231, %v1232
      %v1234 = vsel %vm843, %v1220, 0.0
      %v1235 = vadd.f32 %v1233, %v1234
      %v1236 = vsel %vm843, %v1221, 0.0
      %v1237 = vadd.f32 %v1235, %v1236
      %v1238 = vsel %vm843, %v1222, 0.0
      %v1239 = vadd.f32 %v1237, %v1238
      %v1240 = vrot.slane %v1239, 4
      %v1241 = vadd.f32 %v1239, %v1240
      %v1242 = vrot.slane %v1241, 2
      %v1243 = vadd.f32 %v1241, %v1242
      %v1244 = vrot.slane %v1243, 1
      %v1245 = vadd.f32 %v1243, %v1244
      %vm1246 = vcmask 122880
      %1247 = vst.msk [vmem:[%s208] sm:$0x1] %vm1246, %v1245
      %v1248 = vmul.f32 %v1214, %v1214
      %v1249 = vmul.f32 %v1215, %v1215
      %v1250 = vmul.f32 %v1216, %v1216
      %v1251 = vmul.f32 %v1217, %v1217
      %v1252 = vmul.f32 %v1218, %v1218
      %v1253 = vmul.f32 %v1219, %v1219
      %v1254 = vmul.f32 %v1220, %v1220
      %v1255 = vmul.f32 %v1221, %v1221
      %v1256 = vmul.f32 %v1222, %v1222
      %v1257 = vsel %vm843, %v1248, 0.0
      %v1258 = vsel %vm843, %v1249, 0.0
      %v1259 = vadd.f32 %v1257, %v1258
      %v1260 = vsel %vm843, %v1250, 0.0
      %v1261 = vadd.f32 %v1259, %v1260
      %v1262 = vsel %vm843, %v1251, 0.0
      %v1263 = vadd.f32 %v1261, %v1262
      %v1264 = vsel %vm843, %v1252, 0.0
      %v1265 = vadd.f32 %v1263, %v1264
      %v1266 = vsel %vm843, %v1253, 0.0
      %v1267 = vadd.f32 %v1265, %v1266
      %v1268 = vsel %vm843, %v1254, 0.0
      %v1269 = vadd.f32 %v1267, %v1268
      %v1270 = vsel %vm843, %v1255, 0.0
      %v1271 = vadd.f32 %v1269, %v1270
      %v1272 = vsel %vm843, %v1256, 0.0
      %v1273 = vadd.f32 %v1271, %v1272
      %v1274 = vrot.slane %v1273, 4
      %v1275 = vadd.f32 %v1273, %v1274
      %v1276 = vrot.slane %v1275, 2
      %v1277 = vadd.f32 %v1275, %v1276
      %v1278 = vrot.slane %v1277, 1
      %v1279 = vadd.f32 %v1277, %v1278
      %1280 = vst.msk [vmem:[%s208 + $0x1] sm:$0x1] %vm1246, %v1279
      %p1281 = scmp.lt.s32.totalorder %s16, 1
      %s1282 = scalar_select %p1281, %s16, 1
      %s1283 = smul.addr %s1282, 9
      %s1284 = smul.addr %s1283, 8
      %s1285 = scalar_lea.vmem %s3, %s1284
      %p1286 = scmp.lt.s32.totalorder %s16, 1
      %s1287 = scalar_select %p1286, %s16, 1
      %s1288 = smul.addr %s1287, 2
      %s1289 = scalar_lea.vmem %s4, %s1288
      // Predicated region
      $region33: #{discriminator_forward.6} parent=31 // pred_check
        %p1290 = pneg %p102
      $region34: #{discriminator_forward.6} parent=31 // pred_check_branch
        %1292 = sbr.rel (%p1290) target = $region36
      $region35: #{discriminator_forward.6} parent=31 // pred_region
        _
      $region36: #{discriminator_forward.6} parent=31 // pred_fallthru
        _
      // Predicated region
      $region37: #{discriminator_forward.6} parent=31 // pred_check
        %p1293 = pneg %p128
      $region38: #{discriminator_forward.6} parent=31 // pred_check_branch
        %1295 = sbr.rel (%p1293) target = $region40
      $region39: #{discriminator_forward.6} parent=31 // pred_region
        _
      $region40: #{discriminator_forward.6} parent=31 // pred_fallthru
        _
    $region32: #{discriminator_forward.6} parent=5 // pred_fallthru
      _
    %p1296 = scmp.le.s32.totalorder 2, %s11
    // Predicated region
    $region41: #{discriminator_forward.6} parent=5 // pred_check
      %p1297 = pneg %p1296
    $region42: #{discriminator_forward.6} parent=5 // pred_check_branch
      %1299 = sbr.rel (%p1297) target = $region44
    $region43: #{discriminator_forward.6} parent=5 // pred_region
      %s1300 = ssub.s32 %s11, 2
      // Predicated region
      $region45: #{discriminator_forward.6} parent=43 // pred_check
        %p1301 = pneg %p108
      $region46: #{discriminator_forward.6} parent=43 // pred_check_branch
        %1303 = sbr.rel (%p1301) target = $region48
      $region47: #{discriminator_forward.6} parent=43 // pred_region
        %p1304 = scmp.lt.s32.totalorder %s17, 1
        %s1305 = scalar_select %p1304, %s17, 1
        %s1306 = smul.addr %s1305, 9
        %s1307 = smul.addr %s1306, 8
        %s1308 = scalar_lea.vmem %s3, %s1307
      $region48: #{discriminator_forward.6} parent=43 // pred_fallthru
        _
      // Predicated region
      $region49: #{discriminator_forward.6} parent=43 // pred_check
        %p1309 = pneg %p134
      $region50: #{discriminator_forward.6} parent=43 // pred_check_branch
        %1311 = sbr.rel (%p1309) target = $region52
      $region51: #{discriminator_forward.6} parent=43 // pred_region
        %p1312 = scmp.lt.s32.totalorder %s17, 1
        %s1313 = scalar_select %p1312, %s17, 1
        %s1314 = smul.addr %s1313, 2
        %s1315 = scalar_lea.vmem %s4, %s1314
      $region52: #{discriminator_forward.6} parent=43 // pred_fallthru
        _
    $region44: #{discriminator_forward.6} parent=5 // pred_fallthru
      _
  $region6: #{discriminator_forward.6} parent=0 // loop_footer
    %s15 = sadd.s32 1, %s11
  $region7: #{discriminator_forward.6} parent=0 // loop_footer_branch
    %10 = sbr.rel target = $region3
  $region8: #{discriminator_forward.6} parent=0 // loop_exit
    _

// kernel: discriminator_forward.7
$region0: #{discriminator_forward.7}
  #allocation0 [shape = 'u32[]', space=smem, size = 0x4, offset = 0x4, fixed_abs, tag = 'smem constant byte address 0x4 - core index']
  #allocation1 [shape = 'u32[144,128]{1,0:T(1,128)}', space=vmem, size = 0x12000, scoped, tag = 'internal scratch']
  %s0 = inlined_call_operand.vmem [shape: f32[2,4,33,16], index: 0, kind: input, shape index: {}]
  %s1 = inlined_call_operand.vmem [shape: bf16[256,32], index: 1, kind: input, shape index: {}]
  %s2 = inlined_call_operand.vmem [shape: f32[20,1], index: 2, kind: input, shape index: {}]
  %s3 = inlined_call_operand.vmem [shape: f32[2,20,32], index: 3, kind: output, shape index: {0}]
  %s4 = inlined_call_operand.vmem [shape: f32[2,2,32], index: 4, kind: output, shape index: {1}]
  %5 = xla_tuple %s3, %s4
  %s6 = sld [smem:[#allocation0]]
  $region53: #{discriminator_forward.7} parent=0
    _
  %s8 = ssub.s32 1, %s6
  %s9 = scalar_select 0, %s8, %s6
  loop: start=0, step=1, limit=4
  $region2: #{discriminator_forward.7} parent=0 // loop_pre_header
    _
  $region3: #{discriminator_forward.7} parent=0 // loop_header
    %s11 = sphi 0, %s15
    %p12 = scmp.ge.s32.totalorder %s11, 4
    %s21 = sphi 0, %s23
    %s24 = sphi 0, %s21
    %s25 = sphi 0, %s24
    %s41 = sphi 0, %s25
    %s45 = sphi 0, %s45
    %s47 = sphi 0, %s45
    %s48 = sphi 0, %s47
    %s62 = sphi 0, %s48
    %s66 = sphi 0, %s66
    %s68 = sphi 0, %s66
    %s69 = sphi 0, %s68
    %s83 = sphi 0, %s69
    %s89 = sphi 0, %s91
    %s92 = sphi 0, %s89
    %s93 = sphi 0, %s92
    %s109 = sphi 0, %s93
    %s115 = sphi 0, %s117
    %s118 = sphi 0, %s115
    %s119 = sphi 0, %s118
    %s135 = sphi 0, %s119
  $region4: #{discriminator_forward.7} parent=0 // loop_header_branch
    %14 = sbr.rel (%p12) target = $region8
  $region5: #{discriminator_forward.7} parent=0 // loop_body
    %s16 = ssub.s32 %s11, 1
    %s17 = ssub.s32 %s11, 2
    %s18 = sadd.s32 %s11, 1
    %s19 = ssub.s32 %s11, %s18
    %p20 = scmp.eq.s32.totalorder %s19, 0
    %s22 = sadd.s32 %s21, 1
    %s23 = scalar_select %p20, %s21, %s22
    %p26 = pneg %p20
    %p27 = scmp.eq.s32.totalorder %s11, 1
    %p28 = por %p26, %p27
    %p29 = scmp.ne.s32.totalorder %s21, %s24
    %p30 = scmp.eq.s32.totalorder %s11, 0
    %p31 = por %p29, %p30
    %p32 = scmp.ne.s32.totalorder %s21, %s24
    %p33 = scmp.eq.s32.totalorder %s16, 1
    %p34 = por %p32, %p33
    %p35 = scmp.ne.s32.totalorder %s24, %s25
    %p36 = scmp.eq.s32.totalorder %s16, 0
    %p37 = por %p35, %p36
    %p38 = scmp.ne.s32.totalorder %s24, %s25
    %p39 = scmp.eq.s32.totalorder %s17, 1
    %p40 = por %p38, %p39
    %p42 = scmp.ne.s32.totalorder %s25, %s41
    %p43 = scmp.eq.s32.totalorder %s17, 0
    %p44 = por %p42, %p43
    %s46 = sadd.s32 %s45, 1
    %p49 = scmp.eq.s32.totalorder %s11, 1
    %p50 = scmp.ne.s32.totalorder %s45, %s47
    %p51 = scmp.eq.s32.totalorder %s11, 0
    %p52 = por %p50, %p51
    %p53 = scmp.ne.s32.totalorder %s45, %s47
    %p54 = scmp.eq.s32.totalorder %s16, 1
    %p55 = por %p53, %p54
    %p56 = scmp.ne.s32.totalorder %s47, %s48
    %p57 = scmp.eq.s32.totalorder %s16, 0
    %p58 = por %p56, %p57
    %p59 = scmp.ne.s32.totalorder %s47, %s48
    %p60 = scmp.eq.s32.totalorder %s17, 1
    %p61 = por %p59, %p60
    %p63 = scmp.ne.s32.totalorder %s48, %s62
    %p64 = scmp.eq.s32.totalorder %s17, 0
    %p65 = por %p63, %p64
    %s67 = sadd.s32 %s66, 1
    %p70 = scmp.eq.s32.totalorder %s11, 1
    %p71 = scmp.ne.s32.totalorder %s66, %s68
    %p72 = scmp.eq.s32.totalorder %s11, 0
    %p73 = por %p71, %p72
    %p74 = scmp.ne.s32.totalorder %s66, %s68
    %p75 = scmp.eq.s32.totalorder %s16, 1
    %p76 = por %p74, %p75
    %p77 = scmp.ne.s32.totalorder %s68, %s69
    %p78 = scmp.eq.s32.totalorder %s16, 0
    %p79 = por %p77, %p78
    %p80 = scmp.ne.s32.totalorder %s68, %s69
    %p81 = scmp.eq.s32.totalorder %s17, 1
    %p82 = por %p80, %p81
    %p84 = scmp.ne.s32.totalorder %s69, %s83
    %p85 = scmp.eq.s32.totalorder %s17, 0
    %p86 = por %p84, %p85
    %s87 = ssub.s32 %s11, %s18
    %p88 = scmp.eq.s32.totalorder %s87, 0
    %s90 = sadd.s32 %s89, 1
    %s91 = scalar_select %p88, %s89, %s90
    %p94 = pneg %p88
    %p95 = scmp.eq.s32.totalorder %s11, 1
    %p96 = por %p94, %p95
    %p97 = scmp.ne.s32.totalorder %s89, %s92
    %p98 = scmp.eq.s32.totalorder %s11, 0
    %p99 = por %p97, %p98
    %p100 = scmp.ne.s32.totalorder %s89, %s92
    %p101 = scmp.eq.s32.totalorder %s16, 1
    %p102 = por %p100, %p101
    %p103 = scmp.ne.s32.totalorder %s92, %s93
    %p104 = scmp.eq.s32.totalorder %s16, 0
    %p105 = por %p103, %p104
    %p106 = scmp.ne.s32.totalorder %s92, %s93
    %p107 = scmp.eq.s32.totalorder %s17, 1
    %p108 = por %p106, %p107
    %p110 = scmp.ne.s32.totalorder %s93, %s109
    %p111 = scmp.eq.s32.totalorder %s17, 0
    %p112 = por %p110, %p111
    %s113 = ssub.s32 %s11, %s18
    %p114 = scmp.eq.s32.totalorder %s113, 0
    %s116 = sadd.s32 %s115, 1
    %s117 = scalar_select %p114, %s115, %s116
    %p120 = pneg %p114
    %p121 = scmp.eq.s32.totalorder %s11, 1
    %p122 = por %p120, %p121
    %p123 = scmp.ne.s32.totalorder %s115, %s118
    %p124 = scmp.eq.s32.totalorder %s11, 0
    %p125 = por %p123, %p124
    %p126 = scmp.ne.s32.totalorder %s115, %s118
    %p127 = scmp.eq.s32.totalorder %s16, 1
    %p128 = por %p126, %p127
    %p129 = scmp.ne.s32.totalorder %s118, %s119
    %p130 = scmp.eq.s32.totalorder %s16, 0
    %p131 = por %p129, %p130
    %p132 = scmp.ne.s32.totalorder %s118, %s119
    %p133 = scmp.eq.s32.totalorder %s17, 1
    %p134 = por %p132, %p133
    %p136 = scmp.ne.s32.totalorder %s119, %s135
    %p137 = scmp.eq.s32.totalorder %s17, 0
    %p138 = por %p136, %p137
    %p139 = scmp.le.s32.totalorder 1, %s11
    %p140 = scmp.lt.s32.totalorder %s11, 3
    %p141 = pnand %p139, %p140
    %p142 = pneg %p141
    // Predicated region
    $region9: #{discriminator_forward.7} parent=5 // pred_check
      _
    $region10: #{discriminator_forward.7} parent=5 // pred_check_branch
      %144 = sbr.rel (%p141) target = $region12
    $region11: #{discriminator_forward.7} parent=5 // pred_region
      %s145 = ssub.s32 %s11, 1
      // Predicated region
      $region13: #{discriminator_forward.7} parent=11 // pred_check
        %p146 = pneg %p58
      $region14: #{discriminator_forward.7} parent=11 // pred_check_branch
        %148 = sbr.rel (%p146) target = $region16
      $region15: #{discriminator_forward.7} parent=11 // pred_region
        _
      $region16: #{discriminator_forward.7} parent=11 // pred_fallthru
        _
      // Predicated region
      $region17: #{discriminator_forward.7} parent=11 // pred_check
        %p149 = pneg %p79
      $region18: #{discriminator_forward.7} parent=11 // pred_check_branch
        %151 = sbr.rel (%p149) target = $region20
      $region19: #{discriminator_forward.7} parent=11 // pred_region
        _
      $region20: #{discriminator_forward.7} parent=11 // pred_fallthru
        _
    $region12: #{discriminator_forward.7} parent=5 // pred_fallthru
      _
    %p152 = scmp.lt.s32.totalorder %s11, 2
    // Predicated region
    $region21: #{discriminator_forward.7} parent=5 // pred_check
      %p153 = pneg %p152
    $region22: #{discriminator_forward.7} parent=5 // pred_check_branch
      %155 = sbr.rel (%p153) target = $region24
    $region23: #{discriminator_forward.7} parent=5 // pred_region
      // Predicated region
      $region25: #{discriminator_forward.7} parent=23 // pred_check
        %p156 = pneg %p31
      $region26: #{discriminator_forward.7} parent=23 // pred_check_branch
        %158 = sbr.rel (%p156) target = $region28
      $region27: #{discriminator_forward.7} parent=23 // pred_region
        %p159 = scmp.lt.s32.totalorder %s11, 1
        %s160 = scalar_select %p159, %s11, 1
        %s161 = smul.addr %s160, 20
        %s162 = smul.addr %s161, 8
        %s163 = scalar_lea.vmem %s0, %s162
      $region28: #{discriminator_forward.7} parent=23 // pred_fallthru
        _
    $region24: #{discriminator_forward.7} parent=5 // pred_fallthru
      _
    %p164 = scmp.le.s32.totalorder 1, %s11
    %p165 = scmp.lt.s32.totalorder %s11, 3
    %p166 = pnand %p164, %p165
    %p167 = pneg %p166
    // Predicated region
    $region29: #{discriminator_forward.7} parent=5 // pred_check
      _
    $region30: #{discriminator_forward.7} parent=5 // pred_check_branch
      %169 = sbr.rel (%p166) target = $region32
    $region31: #{discriminator_forward.7} parent=5 // pred_region
      %s170 = ssub.s32 %s11, 1
      %p171 = scmp.lt.s32.totalorder %s16, 1
      %s172 = scalar_select %p171, %s16, 1
      %s173 = smul.addr %s172, 20
      %s174 = smul.addr %s173, 8
      %s175 = scalar_lea.vmem %s0, %s174
      %p176 = pneg %p37
      %p177 = pneg %p34
      %p178 = pneg %p58
      %p179 = pneg %p55
      %p180 = pneg %p79
      %p181 = pneg %p76
      %p182 = pneg %p105
      %p183 = pneg %p102
      %p184 = scmp.lt.s32.totalorder %s16, 1
      %s185 = scalar_select %p184, %s16, 1
      %s186 = smul.addr %s185, 3
      %s187 = smul.addr %s186, 8
      %s188 = scalar_lea.vmem %s3, %s187
      %p189 = pneg %p131
      %p190 = pneg %p128
      %p191 = scmp.lt.s32.totalorder %s16, 1
      %s192 = scalar_select %p191, %s16, 1
      %s193 = smul.addr %s192, 2
      %s194 = scalar_lea.vmem %s4, %s193
      %p195 = scmp.lt.s32.totalorder %s16, 1
      %s196 = scalar_select %p195, %s16, 1
      %s197 = smul.addr %s196, 20
      %s198 = smul.addr %s197, 8
      %s199 = scalar_lea.vmem %s0, %s198
      %p200 = scmp.lt.s32.totalorder %s16, 1
      %s201 = scalar_select %p200, %s16, 1
      %s202 = smul.addr %s201, 3
      %s203 = smul.addr %s202, 8
      %s204 = scalar_lea.vmem %s3, %s203
      %p205 = scmp.lt.s32.totalorder %s16, 1
      %s206 = scalar_select %p205, %s16, 1
      %s207 = smul.addr %s206, 2
      %s208 = scalar_lea.vmem %s4, %s207
      %v210 = vld [vmem:[%s199] sm:$0xff]
      %v211 = vld [vmem:[%s199 + $0x8] sm:$0xff]
      %v212 = vld [vmem:[%s199 + $0x10] sm:$0xf]
      %s213 = scalar_lea.vmem %s199, 40
      %v214 = vld [vmem:[%s213] sm:$0xff]
      %v215 = vld [vmem:[%s213 + $0x8] sm:$0xff]
      %v216 = vld [vmem:[%s213 + $0x10] sm:$0xf]
      %v217 = vld [vmem:[%s199 + $0x1] sm:$0xff]
      %v218 = vld [vmem:[%s199 + $0x9] sm:$0xff]
      %v219 = vld [vmem:[%s199 + $0x11] sm:$0xf]
      %v220 = vld [vmem:[%s213 + $0x1] sm:$0xff]
      %v221 = vld [vmem:[%s213 + $0x9] sm:$0xff]
      %v222 = vld [vmem:[%s213 + $0x11] sm:$0xf]
      %s223 = scalar_lea.vmem %s199, 80
      %v224 = vld [vmem:[%s223] sm:$0xff]
      %v225 = vld [vmem:[%s223 + $0x8] sm:$0xff]
      %v226 = vld [vmem:[%s223 + $0x10] sm:$0xf]
      %s227 = scalar_lea.vmem %s199, 120
      %v228 = vld [vmem:[%s227] sm:$0xff]
      %v229 = vld [vmem:[%s227 + $0x8] sm:$0xff]
      %v230 = vld [vmem:[%s227 + $0x10] sm:$0xf]
      %v231 = vld [vmem:[%s223 + $0x1] sm:$0xff]
      %v232 = vld [vmem:[%s223 + $0x9] sm:$0xff]
      %v233 = vld [vmem:[%s223 + $0x11] sm:$0xf]
      %v234 = vld [vmem:[%s227 + $0x1] sm:$0xff]
      %v235 = vld [vmem:[%s227 + $0x9] sm:$0xff]
      %v236 = vld [vmem:[%s227 + $0x11] sm:$0xf]
      %v237 = vld [vmem:[%s199 + $0x5] sm:$0xff]
      %v238 = vld [vmem:[%s199 + $0xd] sm:$0xff]
      %v239 = vld [vmem:[%s199 + $0x15] sm:$0xf]
      %v240 = vld [vmem:[%s213 + $0x5] sm:$0xff]
      %v241 = vld [vmem:[%s213 + $0xd] sm:$0xff]
      %v242 = vld [vmem:[%s213 + $0x15] sm:$0xf]
      %v243 = vld [vmem:[%s199 + $0x6] sm:$0xff]
      %v244 = vld [vmem:[%s199 + $0xe] sm:$0xff]
      %v245 = vld [vmem:[%s199 + $0x16] sm:$0xf]
      %v246 = vld [vmem:[%s213 + $0x6] sm:$0xff]
      %v247 = vld [vmem:[%s213 + $0xe] sm:$0xff]
      %v248 = vld [vmem:[%s213 + $0x16] sm:$0xf]
      %v249 = vld [vmem:[%s223 + $0x5] sm:$0xff]
      %v250 = vld [vmem:[%s223 + $0xd] sm:$0xff]
      %v251 = vld [vmem:[%s223 + $0x15] sm:$0xf]
      %v252 = vld [vmem:[%s227 + $0x5] sm:$0xff]
      %v253 = vld [vmem:[%s227 + $0xd] sm:$0xff]
      %v254 = vld [vmem:[%s227 + $0x15] sm:$0xf]
      %v255 = vld [vmem:[%s223 + $0x6] sm:$0xff]
      %v256 = vld [vmem:[%s223 + $0xe] sm:$0xff]
      %v257 = vld [vmem:[%s223 + $0x16] sm:$0xf]
      %v258 = vld [vmem:[%s227 + $0x6] sm:$0xff]
      %v259 = vld [vmem:[%s227 + $0xe] sm:$0xff]
      %v260 = vld [vmem:[%s227 + $0x16] sm:$0xf]
      %264 = vrot.lane.b32.xlu0 %v214, 16
      %v265 = vpop.permute.xlu0 %264
      %266 = vrot.lane.b32.xlu0 %v215, 16
      %v267 = vpop.permute.xlu0 %266
      %268 = vrot.lane.b32.xlu0 %v216, 16
      %v269 = vpop.permute.xlu0 %268
      %276 = vrot.lane.b32.xlu0 %v217, 32
      %v277 = vpop.permute.xlu0 %276
      %278 = vrot.lane.b32.xlu0 %v218, 32
      %v279 = vpop.permute.xlu0 %278
      %280 = vrot.lane.b32.xlu0 %v219, 32
      %v281 = vpop.permute.xlu0 %280
      %288 = vrot.lane.b32.xlu0 %v220, 48
      %v289 = vpop.permute.xlu0 %288
      %290 = vrot.lane.b32.xlu0 %v221, 48
      %v291 = vpop.permute.xlu0 %290
      %292 = vrot.lane.b32.xlu0 %v222, 48
      %v293 = vpop.permute.xlu0 %292
      %300 = vrot.lane.b32.xlu0 %v224, 64
      %v301 = vpop.permute.xlu0 %300
      %302 = vrot.lane.b32.xlu0 %v225, 64
      %v303 = vpop.permute.xlu0 %302
      %304 = vrot.lane.b32.xlu0 %v226, 64
      %v305 = vpop.permute.xlu0 %304
      %312 = vrot.lane.b32.xlu0 %v228, 80
      %v313 = vpop.permute.xlu0 %312
      %314 = vrot.lane.b32.xlu0 %v229, 80
      %v315 = vpop.permute.xlu0 %314
      %316 = vrot.lane.b32.xlu0 %v230, 80
      %v317 = vpop.permute.xlu0 %316
      %324 = vrot.lane.b32.xlu0 %v231, 96
      %v325 = vpop.permute.xlu0 %324
      %326 = vrot.lane.b32.xlu0 %v232, 96
      %v327 = vpop.permute.xlu0 %326
      %328 = vrot.lane.b32.xlu0 %v233, 96
      %v329 = vpop.permute.xlu0 %328
      %336 = vrot.lane.b32.xlu0 %v234, 112
      %v337 = vpop.permute.xlu0 %336
      %338 = vrot.lane.b32.xlu0 %v235, 112
      %v339 = vpop.permute.xlu0 %338
      %340 = vrot.lane.b32.xlu0 %v236, 112
      %v341 = vpop.permute.xlu0 %340
      %348 = vrot.lane.b32.xlu0 %v240, 16
      %v349 = vpop.permute.xlu0 %348
      %350 = vrot.lane.b32.xlu0 %v241, 16
      %v351 = vpop.permute.xlu0 %350
      %352 = vrot.lane.b32.xlu0 %v242, 16
      %v353 = vpop.permute.xlu0 %352
      %360 = vrot.lane.b32.xlu0 %v243, 32
      %v361 = vpop.permute.xlu0 %360
      %362 = vrot.lane.b32.xlu0 %v244, 32
      %v363 = vpop.permute.xlu0 %362
      %364 = vrot.lane.b32.xlu0 %v245, 32
      %v365 = vpop.permute.xlu0 %364
      %372 = vrot.lane.b32.xlu0 %v246, 48
      %v373 = vpop.permute.xlu0 %372
      %374 = vrot.lane.b32.xlu0 %v247, 48
      %v375 = vpop.permute.xlu0 %374
      %376 = vrot.lane.b32.xlu0 %v248, 48
      %v377 = vpop.permute.xlu0 %376
      %384 = vrot.lane.b32.xlu0 %v249, 64
      %v385 = vpop.permute.xlu0 %384
      %386 = vrot.lane.b32.xlu0 %v250, 64
      %v387 = vpop.permute.xlu0 %386
      %388 = vrot.lane.b32.xlu0 %v251, 64
      %v389 = vpop.permute.xlu0 %388
      %396 = vrot.lane.b32.xlu0 %v252, 80
      %v397 = vpop.permute.xlu0 %396
      %398 = vrot.lane.b32.xlu0 %v253, 80
      %v399 = vpop.permute.xlu0 %398
      %400 = vrot.lane.b32.xlu0 %v254, 80
      %v401 = vpop.permute.xlu0 %400
      %408 = vrot.lane.b32.xlu0 %v255, 96
      %v409 = vpop.permute.xlu0 %408
      %410 = vrot.lane.b32.xlu0 %v256, 96
      %v411 = vpop.permute.xlu0 %410
      %412 = vrot.lane.b32.xlu0 %v257, 96
      %v413 = vpop.permute.xlu0 %412
      %420 = vrot.lane.b32.xlu0 %v258, 112
      %v421 = vpop.permute.xlu0 %420
      %422 = vrot.lane.b32.xlu0 %v259, 112
      %v423 = vpop.permute.xlu0 %422
      %424 = vrot.lane.b32.xlu0 %v260, 112
      %v425 = vpop.permute.xlu0 %424
      %vm429 = vcmask 130048
      %v430 = vsel %vm429, %v210, %v265
      %v431 = vsel %vm429, %v211, %v267
      %v432 = vsel %vm429, %v212, %v269
      %vm433 = vcmask 261120
      %v434 = vsel %vm433, %v430, %v277
      %v435 = vsel %vm433, %v431, %v279
      %v436 = vsel %vm433, %v432, %v281
      %vm437 = vcmask 392192
      %v438 = vsel %vm437, %v434, %v289
      %v439 = vsel %vm437, %v435, %v291
      %v440 = vsel %vm437, %v436, %v293
      %vm441 = vcmask 523264
      %v442 = vsel %vm441, %v438, %v301
      %v443 = vsel %vm441, %v439, %v303
      %v444 = vsel %vm441, %v440, %v305
      %vm445 = vcmask 654336
      %v446 = vsel %vm445, %v442, %v313
      %v447 = vsel %vm445, %v443, %v315
      %v448 = vsel %vm445, %v444, %v317
      %vm449 = vcmask 785408
      %v450 = vsel %vm449, %v446, %v325
      %v451 = vsel %vm449, %v447, %v327
      %v452 = vsel %vm449, %v448, %v329
      %vm453 = vcmask 916480
      %v454 = vsel %vm453, %v450, %v337
      %v455 = vsel %vm453, %v451, %v339
      %v456 = vsel %vm453, %v452, %v341
      %v457 = vsel %vm429, %v237, %v349
      %v458 = vsel %vm429, %v238, %v351
      %v459 = vsel %vm429, %v239, %v353
      %v460 = vsel %vm433, %v457, %v361
      %v461 = vsel %vm433, %v458, %v363
      %v462 = vsel %vm433, %v459, %v365
      %v463 = vsel %vm437, %v460, %v373
      %v464 = vsel %vm437, %v461, %v375
      %v465 = vsel %vm437, %v462, %v377
      %v466 = vsel %vm441, %v463, %v385
      %v467 = vsel %vm441, %v464, %v387
      %v468 = vsel %vm441, %v465, %v389
      %v469 = vsel %vm445, %v466, %v397
      %v470 = vsel %vm445, %v467, %v399
      %v471 = vsel %vm445, %v468, %v401
      %v472 = vsel %vm449, %v469, %v409
      %v473 = vsel %vm449, %v470, %v411
      %v474 = vsel %vm449, %v471, %v413
      %v475 = vsel %vm453, %v472, %v421
      %v476 = vsel %vm453, %v473, %v423
      %v477 = vsel %vm453, %v474, %v425
      %v478 = vpack.c.bf16 %v455, %v454
      %v479 = vpack.c.bf16 %v476, %v475
      %v480 = vpack.c.bf16 %v456, %v456
      %v481 = vpack.c.bf16 %v477, %v477
      %v482 = vld [vmem:[%s1] sm:$0xf]
      %v483 = vld [vmem:[%s1 + $0x4] sm:$0xf]
      %v484 = vld [vmem:[%s1 + $0x8] sm:$0xf]
      %v485 = vld [vmem:[%s1 + $0xc] sm:$0xf]
      %v486 = vld [vmem:[%s1 + $0x10] sm:$0xf]
      %v487 = vld [vmem:[%s1 + $0x14] sm:$0xf]
      %v488 = vld [vmem:[%s1 + $0x18] sm:$0xf]
      %v489 = vld [vmem:[%s1 + $0x1c] sm:$0xf]
      %v490 = vld [vmem:[%s1 + $0x20] sm:$0xf]
      %v491 = vld [vmem:[%s1 + $0x24] sm:$0xf]
      %v492 = vld [vmem:[%s1 + $0x28] sm:$0xf]
      %v493 = vld [vmem:[%s1 + $0x2c] sm:$0xf]
      %v494 = vld [vmem:[%s1 + $0x30] sm:$0xf]
      %v495 = vld [vmem:[%s1 + $0x34] sm:$0xf]
      %v496 = vld [vmem:[%s1 + $0x38] sm:$0xf]
      %v497 = vld [vmem:[%s1 + $0x3c] sm:$0xf]
      %v498 = vld [vmem:[%s1 + $0x40] sm:$0xf]
      %v499 = vld [vmem:[%s1 + $0x44] sm:$0xf]
      %v500 = vld [vmem:[%s1 + $0x48] sm:$0xf]
      %v501 = vld [vmem:[%s1 + $0x4c] sm:$0xf]
      %v502 = vld [vmem:[%s1 + $0x50] sm:$0xf]
      %v503 = vld [vmem:[%s1 + $0x54] sm:$0xf]
      %v504 = vld [vmem:[%s1 + $0x58] sm:$0xf]
      %v505 = vld [vmem:[%s1 + $0x5c] sm:$0xf]
      %v506 = vld [vmem:[%s1 + $0x60] sm:$0xf]
      %v507 = vld [vmem:[%s1 + $0x64] sm:$0xf]
      %v508 = vld [vmem:[%s1 + $0x68] sm:$0xf]
      %v509 = vld [vmem:[%s1 + $0x6c] sm:$0xf]
      %v510 = vld [vmem:[%s1 + $0x70] sm:$0xf]
      %v511 = vld [vmem:[%s1 + $0x74] sm:$0xf]
      %v512 = vld [vmem:[%s1 + $0x78] sm:$0xf]
      %v513 = vld [vmem:[%s1 + $0x7c] sm:$0xf]
      %v546 = vunpack.c.l.b16 %v482
      %v547 = vunpack.c.l.b16 %v483
      %v548 = vunpack.c.l.b16 %v484
      %v549 = vunpack.c.l.b16 %v485
      %v550 = vunpack.c.l.b16 %v486
      %v551 = vunpack.c.l.b16 %v487
      %v552 = vunpack.c.l.b16 %v488
      %v553 = vunpack.c.l.b16 %v489
      %v554 = vunpack.c.l.b16 %v490
      %v555 = vunpack.c.l.b16 %v491
      %v556 = vunpack.c.l.b16 %v492
      %v557 = vunpack.c.l.b16 %v493
      %v558 = vunpack.c.l.b16 %v494
      %v559 = vunpack.c.l.b16 %v495
      %v560 = vunpack.c.l.b16 %v496
      %v561 = vunpack.c.l.b16 %v497
      %v562 = vunpack.c.l.b16 %v498
      %v563 = vunpack.c.l.b16 %v499
      %v564 = vunpack.c.l.b16 %v500
      %v565 = vunpack.c.l.b16 %v501
      %v566 = vunpack.c.l.b16 %v502
      %v567 = vunpack.c.l.b16 %v503
      %v568 = vunpack.c.l.b16 %v504
      %v569 = vunpack.c.l.b16 %v505
      %v570 = vunpack.c.l.b16 %v506
      %v571 = vunpack.c.l.b16 %v507
      %v572 = vunpack.c.l.b16 %v508
      %v573 = vunpack.c.l.b16 %v509
      %v574 = vunpack.c.l.b16 %v510
      %v575 = vunpack.c.l.b16 %v511
      %v576 = vunpack.c.l.b16 %v512
      %v577 = vunpack.c.l.b16 %v513
      %v578 = vpack.c.b16 %v547, %v546
      %v579 = vpack.c.b16 %v549, %v548
      %v580 = vpack.c.b16 %v551, %v550
      %v581 = vpack.c.b16 %v553, %v552
      %v582 = vpack.c.b16 %v555, %v554
      %v583 = vpack.c.b16 %v557, %v556
      %v584 = vpack.c.b16 %v559, %v558
      %v585 = vpack.c.b16 %v561, %v560
      %v586 = vpack.c.b16 %v563, %v562
      %v587 = vpack.c.b16 %v565, %v564
      %v588 = vpack.c.b16 %v567, %v566
      %v589 = vpack.c.b16 %v569, %v568
      %v590 = vpack.c.b16 %v571, %v570
      %v591 = vpack.c.b16 %v573, %v572
      %v592 = vpack.c.b16 %v575, %v574
      %v593 = vpack.c.b16 %v577, %v576
      %610 = vmatprep.subr.bf16.mxu0 0
      %611 = vmatpush1.bf16.msra.mxu0 %v578
      %612 = vmatprep.subr.bf16.mxu0 0
      %613 = vmatpush1.bf16.msra.mxu0 %v579
      %614 = vmatprep.subr.bf16.mxu0 0
      %615 = vmatpush1.bf16.msra.mxu0 %v580
      %616 = vmatprep.subr.bf16.mxu0 0
      %617 = vmatpush1.bf16.msra.mxu0 %v581
      %618 = vmatprep.subr.bf16.mxu0 0
      %619 = vmatpush1.bf16.msra.mxu0 %v582
      %620 = vmatprep.subr.bf16.mxu0 0
      %621 = vmatpush1.bf16.msra.mxu0 %v583
      %622 = vmatprep.subr.bf16.mxu0 0
      %623 = vmatpush1.bf16.msra.mxu0 %v584
      %624 = vmatprep.subr.bf16.mxu0 0
      %625 = vmatpush1.bf16.msra.mxu0 %v585
      %626 = vmatprep.subr.bf16.mxu0 0
      %627 = vmatpush1.bf16.msra.mxu0 %v586
      %628 = vmatprep.subr.bf16.mxu0 0
      %629 = vmatpush1.bf16.msra.mxu0 %v587
      %630 = vmatprep.subr.bf16.mxu0 0
      %631 = vmatpush1.bf16.msra.mxu0 %v588
      %632 = vmatprep.subr.bf16.mxu0 0
      %633 = vmatpush1.bf16.msra.mxu0 %v589
      %634 = vmatprep.subr.bf16.mxu0 0
      %635 = vmatpush1.bf16.msra.mxu0 %v590
      %636 = vmatprep.subr.bf16.mxu0 0
      %637 = vmatpush1.bf16.msra.mxu0 %v591
      %638 = vmatprep.subr.bf16.mxu0 0
      %639 = vmatpush1.bf16.msra.mxu0 %v592
      %640 = vmatprep.subr.bf16.mxu0 0
      %641 = vmatpush1.bf16.msra.mxu0 %v593
      %642 = vmatprep.mubr.bf16.mxu0 %v479
      %643 = vmatmul.mubr.bf16.gmra.mrb[0].mxu0 %v478
      %v644 = vpop.f32.mrb[0].mxu0
      %v645 = vadd.f32 0.0, %v644
      %v646 = vpop.f32.mrb[0].mxu0
      %v647 = vpop.f32.mrb[0].mxu0
      %v648 = vadd.f32 0.0, %v647
      %v649 = vpop.f32.mrb[0].mxu0
      %650 = vmatprep.mubr.bf16.mxu0 %v481
      %651 = vmatmul.mubr.bf16.gmra.mrb[0].mxu0 %v480
      %v652 = vpop.f32.mrb[0].mxu0
      %v653 = vadd.f32 0.0, %v652
      %v654 = vpop.f32.mrb[0].mxu0
      %v655 = vpop.f32.mrb[0].mxu0
      %v656 = vpop.f32.mrb[0].mxu0
      %657 = vdwg.mxu0
      %vm658 = vcmp.gt.f32.partialorder %v645, 0.0
      %vm659 = vcmp.gt.f32.partialorder %v648, 0.0
      %vm660 = vcmp.gt.f32.partialorder %v653, 0.0
      %v661 = vmul.f32 %v645, 0.2
      %v662 = vmul.f32 %v648, 0.2
      %v663 = vmul.f32 %v653, 0.2
      %v664 = vsel %vm658, %v645, %v661
      %v665 = vsel %vm659, %v648, %v662
      %v666 = vsel %vm660, %v653, %v663
      %667 = vst.msk [vmem:[%s204] sm:$0xff] %vm433, %v664
      %668 = vst.msk [vmem:[%s204 + $0x8] sm:$0xff] %vm433, %v665
      %vm669 = vcmask 257024
      %670 = vst.msk [vmem:[%s204 + $0x10] sm:$0xf] %vm669, %v666
      %v671 = vld [vmem:[%s2] sm:$0xff]
      %v672 = vld [vmem:[%s2 + $0x8] sm:$0xff]
      %v673 = vld [vmem:[%s2 + $0x10] sm:$0xf]
      %675 = vset.pattern.permute.xlu0 0
      %676 = vperm.xlu0 %675, %v671
      %v677 = vpop.permute.xlu0 %676
      %680 = vset.pattern.permute.xlu0 0
      %681 = vperm.xlu0 %680, %v672
      %v682 = vpop.permute.xlu0 %681
      %685 = vset.pattern.permute.xlu0 0
      %686 = vperm.xlu0 %685, %v673
      %v687 = vpop.permute.xlu0 %686
      %v689 = vmul.f32 %v664, %v677
      %v690 = vmul.f32 %v665, %v682
      %v691 = vmul.f32 %v666, %v687
      %v692 = vsel %vm433, %v689, 0.0
      %v693 = vsel %vm433, %v690, 0.0
      %v694 = vadd.f32 %v692, %v693
      %v695 = vsel %vm669, %v691, 0.0
      %v696 = vadd.f32 %v694, %v695
      %v697 = vrot.slane %v696, 4
      %v698 = vadd.f32 %v696, %v697
      %v699 = vrot.slane %v698, 2
      %v700 = vadd.f32 %v698, %v699
      %v701 = vrot.slane %v700, 1
      %v702 = vadd.f32 %v700, %v701
      %vm703 = vcmask 253952
      %704 = vst.msk [vmem:[%s208] sm:$0x1] %vm703, %v702
      %v705 = vmul.f32 %v689, %v689
      %v706 = vmul.f32 %v690, %v690
      %v707 = vmul.f32 %v691, %v691
      %v708 = vsel %vm433, %v705, 0.0
      %v709 = vsel %vm433, %v706, 0.0
      %v710 = vadd.f32 %v708, %v709
      %v711 = vsel %vm669, %v707, 0.0
      %v712 = vadd.f32 %v710, %v711
      %v713 = vrot.slane %v712, 4
      %v714 = vadd.f32 %v712, %v713
      %v715 = vrot.slane %v714, 2
      %v716 = vadd.f32 %v714, %v715
      %v717 = vrot.slane %v716, 1
      %v718 = vadd.f32 %v716, %v717
      %719 = vst.msk [vmem:[%s208 + $0x1] sm:$0x1] %vm703, %v718
      %p720 = scmp.lt.s32.totalorder %s16, 1
      %s721 = scalar_select %p720, %s16, 1
      %s722 = smul.addr %s721, 3
      %s723 = smul.addr %s722, 8
      %s724 = scalar_lea.vmem %s3, %s723
      %p725 = scmp.lt.s32.totalorder %s16, 1
      %s726 = scalar_select %p725, %s16, 1
      %s727 = smul.addr %s726, 2
      %s728 = scalar_lea.vmem %s4, %s727
      // Predicated region
      $region33: #{discriminator_forward.7} parent=31 // pred_check
        %p729 = pneg %p102
      $region34: #{discriminator_forward.7} parent=31 // pred_check_branch
        %731 = sbr.rel (%p729) target = $region36
      $region35: #{discriminator_forward.7} parent=31 // pred_region
        _
      $region36: #{discriminator_forward.7} parent=31 // pred_fallthru
        _
      // Predicated region
      $region37: #{discriminator_forward.7} parent=31 // pred_check
        %p732 = pneg %p128
      $region38: #{discriminator_forward.7} parent=31 // pred_check_branch
        %734 = sbr.rel (%p732) target = $region40
      $region39: #{discriminator_forward.7} parent=31 // pred_region
        _
      $region40: #{discriminator_forward.7} parent=31 // pred_fallthru
        _
    $region32: #{discriminator_forward.7} parent=5 // pred_fallthru
      _
    %p735 = scmp.le.s32.totalorder 2, %s11
    // Predicated region
    $region41: #{discriminator_forward.7} parent=5 // pred_check
      %p736 = pneg %p735
    $region42: #{discriminator_forward.7} parent=5 // pred_check_branch
      %738 = sbr.rel (%p736) target = $region44
    $region43: #{discriminator_forward.7} parent=5 // pred_region
      %s739 = ssub.s32 %s11, 2
      // Predicated region
      $region45: #{discriminator_forward.7} parent=43 // pred_check
        %p740 = pneg %p108
      $region46: #{discriminator_forward.7} parent=43 // pred_check_branch
        %742 = sbr.rel (%p740) target = $region48
      $region47: #{discriminator_forward.7} parent=43 // pred_region
        %p743 = scmp.lt.s32.totalorder %s17, 1
        %s744 = scalar_select %p743, %s17, 1
        %s745 = smul.addr %s744, 3
        %s746 = smul.addr %s745, 8
        %s747 = scalar_lea.vmem %s3, %s746
      $region48: #{discriminator_forward.7} parent=43 // pred_fallthru
        _
      // Predicated region
      $region49: #{discriminator_forward.7} parent=43 // pred_check
        %p748 = pneg %p134
      $region50: #{discriminator_forward.7} parent=43 // pred_check_branch
        %750 = sbr.rel (%p748) target = $region52
      $region51: #{discriminator_forward.7} parent=43 // pred_region
        %p751 = scmp.lt.s32.totalorder %s17, 1
        %s752 = scalar_select %p751, %s17, 1
        %s753 = smul.addr %s752, 2
        %s754 = scalar_lea.vmem %s4, %s753
      $region52: #{discriminator_forward.7} parent=43 // pred_fallthru
        _
    $region44: #{discriminator_forward.7} parent=5 // pred_fallthru
      _
  $region6: #{discriminator_forward.7} parent=0 // loop_footer
    %s15 = sadd.s32 1, %s11
  $region7: #{discriminator_forward.7} parent=0 // loop_footer_branch
    %10 = sbr.rel target = $region3
  $region8: #{discriminator_forward.7} parent=0 // loop_exit
    _

// kernel: discriminator_forward.9
$region0: #{discriminator_forward.9}
  #allocation0 [shape = 'u32[]', space=smem, size = 0x4, offset = 0x4, fixed_abs, tag = 'smem constant byte address 0x4 - core index']
  #allocation1 [shape = 'u32[144,128]{1,0:T(1,128)}', space=vmem, size = 0x12000, scoped, tag = 'internal scratch']
  #allocation2 [shape = 'f32[1,1]{1,0:T(1,128)S(1)}', space=vmem, size = 0x200, scoped, tag = 'scoped memory for discriminator_forward.9']
  %s0 = inlined_call_operand.vmem [shape: f32[2,1,33,64], index: 0, kind: input, shape index: {}]
  %s1 = inlined_call_operand.vmem [shape: bf16[1024,1], index: 1, kind: input, shape index: {}]
  %s2 = inlined_call_operand.<no memory space> [shape: f32[1,1], index: 2, kind: input, shape index: {}]
  %s3 = inlined_call_operand.vmem [shape: f32[2,10,1], index: 3, kind: output, shape index: {}]
  %s4 = sld [smem:[#allocation0]]
  $region45: #{discriminator_forward.9} parent=0
    _
  %s6 = ssub.s32 1, %s4
  %s7 = scalar_select 0, %s6, %s4
  %v8 = vstv %s2
  %9 = vst [vmem:[#allocation2] sm:$0x1] %v8
  loop: start=0, step=1, limit=4
  $region2: #{discriminator_forward.9} parent=0 // loop_pre_header
    _
  $region3: #{discriminator_forward.9} parent=0 // loop_header
    %s11 = sphi 0, %s15
    %p12 = scmp.ge.s32.totalorder %s11, 4
    %s21 = sphi 0, %s23
    %s24 = sphi 0, %s21
    %s25 = sphi 0, %s24
    %s41 = sphi 0, %s25
    %s45 = sphi 0, %s45
    %s47 = sphi 0, %s45
    %s48 = sphi 0, %s47
    %s62 = sphi 0, %s48
    %s66 = sphi 0, %s66
    %s68 = sphi 0, %s66
    %s69 = sphi 0, %s68
    %s83 = sphi 0, %s69
    %s89 = sphi 0, %s91
    %s92 = sphi 0, %s89
    %s93 = sphi 0, %s92
    %s109 = sphi 0, %s93
  $region4: #{discriminator_forward.9} parent=0 // loop_header_branch
    %14 = sbr.rel (%p12) target = $region8
  $region5: #{discriminator_forward.9} parent=0 // loop_body
    %s16 = ssub.s32 %s11, 1
    %s17 = ssub.s32 %s11, 2
    %s18 = sadd.s32 %s11, 1
    %s19 = ssub.s32 %s11, %s18
    %p20 = scmp.eq.s32.totalorder %s19, 0
    %s22 = sadd.s32 %s21, 1
    %s23 = scalar_select %p20, %s21, %s22
    %p26 = pneg %p20
    %p27 = scmp.eq.s32.totalorder %s11, 1
    %p28 = por %p26, %p27
    %p29 = scmp.ne.s32.totalorder %s21, %s24
    %p30 = scmp.eq.s32.totalorder %s11, 0
    %p31 = por %p29, %p30
    %p32 = scmp.ne.s32.totalorder %s21, %s24
    %p33 = scmp.eq.s32.totalorder %s16, 1
    %p34 = por %p32, %p33
    %p35 = scmp.ne.s32.totalorder %s24, %s25
    %p36 = scmp.eq.s32.totalorder %s16, 0
    %p37 = por %p35, %p36
    %p38 = scmp.ne.s32.totalorder %s24, %s25
    %p39 = scmp.eq.s32.totalorder %s17, 1
    %p40 = por %p38, %p39
    %p42 = scmp.ne.s32.totalorder %s25, %s41
    %p43 = scmp.eq.s32.totalorder %s17, 0
    %p44 = por %p42, %p43
    %s46 = sadd.s32 %s45, 1
    %p49 = scmp.eq.s32.totalorder %s11, 1
    %p50 = scmp.ne.s32.totalorder %s45, %s47
    %p51 = scmp.eq.s32.totalorder %s11, 0
    %p52 = por %p50, %p51
    %p53 = scmp.ne.s32.totalorder %s45, %s47
    %p54 = scmp.eq.s32.totalorder %s16, 1
    %p55 = por %p53, %p54
    %p56 = scmp.ne.s32.totalorder %s47, %s48
    %p57 = scmp.eq.s32.totalorder %s16, 0
    %p58 = por %p56, %p57
    %p59 = scmp.ne.s32.totalorder %s47, %s48
    %p60 = scmp.eq.s32.totalorder %s17, 1
    %p61 = por %p59, %p60
    %p63 = scmp.ne.s32.totalorder %s48, %s62
    %p64 = scmp.eq.s32.totalorder %s17, 0
    %p65 = por %p63, %p64
    %s67 = sadd.s32 %s66, 1
    %p70 = scmp.eq.s32.totalorder %s11, 1
    %p71 = scmp.ne.s32.totalorder %s66, %s68
    %p72 = scmp.eq.s32.totalorder %s11, 0
    %p73 = por %p71, %p72
    %p74 = scmp.ne.s32.totalorder %s66, %s68
    %p75 = scmp.eq.s32.totalorder %s16, 1
    %p76 = por %p74, %p75
    %p77 = scmp.ne.s32.totalorder %s68, %s69
    %p78 = scmp.eq.s32.totalorder %s16, 0
    %p79 = por %p77, %p78
    %p80 = scmp.ne.s32.totalorder %s68, %s69
    %p81 = scmp.eq.s32.totalorder %s17, 1
    %p82 = por %p80, %p81
    %p84 = scmp.ne.s32.totalorder %s69, %s83
    %p85 = scmp.eq.s32.totalorder %s17, 0
    %p86 = por %p84, %p85
    %s87 = ssub.s32 %s11, %s18
    %p88 = scmp.eq.s32.totalorder %s87, 0
    %s90 = sadd.s32 %s89, 1
    %s91 = scalar_select %p88, %s89, %s90
    %p94 = pneg %p88
    %p95 = scmp.eq.s32.totalorder %s11, 1
    %p96 = por %p94, %p95
    %p97 = scmp.ne.s32.totalorder %s89, %s92
    %p98 = scmp.eq.s32.totalorder %s11, 0
    %p99 = por %p97, %p98
    %p100 = scmp.ne.s32.totalorder %s89, %s92
    %p101 = scmp.eq.s32.totalorder %s16, 1
    %p102 = por %p100, %p101
    %p103 = scmp.ne.s32.totalorder %s92, %s93
    %p104 = scmp.eq.s32.totalorder %s16, 0
    %p105 = por %p103, %p104
    %p106 = scmp.ne.s32.totalorder %s92, %s93
    %p107 = scmp.eq.s32.totalorder %s17, 1
    %p108 = por %p106, %p107
    %p110 = scmp.ne.s32.totalorder %s93, %s109
    %p111 = scmp.eq.s32.totalorder %s17, 0
    %p112 = por %p110, %p111
    %p113 = scmp.le.s32.totalorder 1, %s11
    %p114 = scmp.lt.s32.totalorder %s11, 3
    %p115 = pnand %p113, %p114
    %p116 = pneg %p115
    // Predicated region
    $region9: #{discriminator_forward.9} parent=5 // pred_check
      _
    $region10: #{discriminator_forward.9} parent=5 // pred_check_branch
      %118 = sbr.rel (%p115) target = $region12
    $region11: #{discriminator_forward.9} parent=5 // pred_region
      %s119 = ssub.s32 %s11, 1
      // Predicated region
      $region13: #{discriminator_forward.9} parent=11 // pred_check
        %p120 = pneg %p58
      $region14: #{discriminator_forward.9} parent=11 // pred_check_branch
        %122 = sbr.rel (%p120) target = $region16
      $region15: #{discriminator_forward.9} parent=11 // pred_region
        _
      $region16: #{discriminator_forward.9} parent=11 // pred_fallthru
        _
      // Predicated region
      $region17: #{discriminator_forward.9} parent=11 // pred_check
        %p123 = pneg %p79
      $region18: #{discriminator_forward.9} parent=11 // pred_check_branch
        %125 = sbr.rel (%p123) target = $region20
      $region19: #{discriminator_forward.9} parent=11 // pred_region
        _
      $region20: #{discriminator_forward.9} parent=11 // pred_fallthru
        _
    $region12: #{discriminator_forward.9} parent=5 // pred_fallthru
      _
    %p126 = scmp.lt.s32.totalorder %s11, 2
    // Predicated region
    $region21: #{discriminator_forward.9} parent=5 // pred_check
      %p127 = pneg %p126
    $region22: #{discriminator_forward.9} parent=5 // pred_check_branch
      %129 = sbr.rel (%p127) target = $region24
    $region23: #{discriminator_forward.9} parent=5 // pred_region
      // Predicated region
      $region25: #{discriminator_forward.9} parent=23 // pred_check
        %p130 = pneg %p31
      $region26: #{discriminator_forward.9} parent=23 // pred_check_branch
        %132 = sbr.rel (%p130) target = $region28
      $region27: #{discriminator_forward.9} parent=23 // pred_region
        %p133 = scmp.lt.s32.totalorder %s11, 1
        %s134 = scalar_select %p133, %s11, 1
        %s135 = smul.addr %s134, 5
        %s136 = smul.addr %s135, 8
        %s137 = scalar_lea.vmem %s0, %s136
      $region28: #{discriminator_forward.9} parent=23 // pred_fallthru
        _
    $region24: #{discriminator_forward.9} parent=5 // pred_fallthru
      _
    %p138 = scmp.le.s32.totalorder 1, %s11
    %p139 = scmp.lt.s32.totalorder %s11, 3
    %p140 = pnand %p138, %p139
    %p141 = pneg %p140
    // Predicated region
    $region29: #{discriminator_forward.9} parent=5 // pred_check
      _
    $region30: #{discriminator_forward.9} parent=5 // pred_check_branch
      %143 = sbr.rel (%p140) target = $region32
    $region31: #{discriminator_forward.9} parent=5 // pred_region
      %s144 = ssub.s32 %s11, 1
      %p145 = scmp.lt.s32.totalorder %s16, 1
      %s146 = scalar_select %p145, %s16, 1
      %s147 = smul.addr %s146, 5
      %s148 = smul.addr %s147, 8
      %s149 = scalar_lea.vmem %s0, %s148
      %p150 = pneg %p37
      %p151 = pneg %p34
      %p152 = pneg %p58
      %p153 = pneg %p55
      %p154 = pneg %p79
      %p155 = pneg %p76
      %p156 = pneg %p105
      %p157 = pneg %p102
      %p158 = scmp.lt.s32.totalorder %s16, 1
      %s159 = scalar_select %p158, %s16, 1
      %s160 = smul.addr %s159, 2
      %s161 = smul.addr %s160, 8
      %s162 = scalar_lea.vmem %s3, %s161
      %p163 = scmp.lt.s32.totalorder %s16, 1
      %s164 = scalar_select %p163, %s16, 1
      %s165 = smul.addr %s164, 5
      %s166 = smul.addr %s165, 8
      %s167 = scalar_lea.vmem %s0, %s166
      %p168 = scmp.lt.s32.totalorder %s16, 1
      %s169 = scalar_select %p168, %s16, 1
      %s170 = smul.addr %s169, 2
      %s171 = smul.addr %s170, 8
      %s172 = scalar_lea.vmem %s3, %s171
      %v174 = vld [vmem:[%s167] sm:$0xff]
      %v175 = vld [vmem:[%s167 + $0x8] sm:$0x3]
      %v176 = vld [vmem:[%s167 + $0x1] sm:$0xff]
      %v177 = vld [vmem:[%s167 + $0x9] sm:$0x3]
      %v178 = vld [vmem:[%s167 + $0x2] sm:$0xff]
      %v179 = vld [vmem:[%s167 + $0xa] sm:$0x3]
      %v180 = vld [vmem:[%s167 + $0x3] sm:$0xff]
      %v181 = vld [vmem:[%s167 + $0xb] sm:$0x3]
      %v182 = vld [vmem:[%s167 + $0x5] sm:$0xff]
      %v183 = vld [vmem:[%s167 + $0xd] sm:$0x3]
      %v184 = vld [vmem:[%s167 + $0x6] sm:$0xff]
      %v185 = vld [vmem:[%s167 + $0xe] sm:$0x3]
      %v186 = vld [vmem:[%s167 + $0x7] sm:$0xff]
      %v187 = vld [vmem:[%s167 + $0xf] sm:$0x3]
      %v188 = vld [vmem:[%s167 + $0x8] sm:$0xff]
      %v189 = vld [vmem:[%s167 + $0x10] sm:$0x3]
      %v190 = vld [vmem:[%s167 + $0xa] sm:$0xff]
      %v191 = vld [vmem:[%s167 + $0x12] sm:$0x3]
      %v192 = vld [vmem:[%s167 + $0xb] sm:$0xff]
      %v193 = vld [vmem:[%s167 + $0x13] sm:$0x3]
      %v194 = vld [vmem:[%s167 + $0xc] sm:$0xff]
      %v195 = vld [vmem:[%s167 + $0x14] sm:$0x3]
      %v196 = vld [vmem:[%s167 + $0xd] sm:$0xff]
      %v197 = vld [vmem:[%s167 + $0x15] sm:$0x3]
      %v198 = vld [vmem:[%s167 + $0xf] sm:$0xff]
      %v199 = vld [vmem:[%s167 + $0x17] sm:$0x3]
      %v200 = vld [vmem:[%s167 + $0x10] sm:$0xff]
      %v201 = vld [vmem:[%s167 + $0x18] sm:$0x3]
      %v202 = vld [vmem:[%s167 + $0x11] sm:$0xff]
      %v203 = vld [vmem:[%s167 + $0x19] sm:$0x3]
      %v204 = vld [vmem:[%s167 + $0x12] sm:$0xff]
      %v205 = vld [vmem:[%s167 + $0x1a] sm:$0x3]
      %208 = vrot.lane.b32.xlu0 %v176, 64
      %v209 = vpop.permute.xlu0 %208
      %210 = vrot.lane.b32.xlu0 %v177, 64
      %v211 = vpop.permute.xlu0 %210
      %216 = vrot.lane.b32.xlu0 %v180, 64
      %v217 = vpop.permute.xlu0 %216
      %218 = vrot.lane.b32.xlu0 %v181, 64
      %v219 = vpop.permute.xlu0 %218
      %224 = vrot.lane.b32.xlu0 %v184, 64
      %v225 = vpop.permute.xlu0 %224
      %226 = vrot.lane.b32.xlu0 %v185, 64
      %v227 = vpop.permute.xlu0 %226
      %232 = vrot.lane.b32.xlu0 %v188, 64
      %v233 = vpop.permute.xlu0 %232
      %234 = vrot.lane.b32.xlu0 %v189, 64
      %v235 = vpop.permute.xlu0 %234
      %240 = vrot.lane.b32.xlu0 %v192, 64
      %v241 = vpop.permute.xlu0 %240
      %242 = vrot.lane.b32.xlu0 %v193, 64
      %v243 = vpop.permute.xlu0 %242
      %248 = vrot.lane.b32.xlu0 %v196, 64
      %v249 = vpop.permute.xlu0 %248
      %250 = vrot.lane.b32.xlu0 %v197, 64
      %v251 = vpop.permute.xlu0 %250
      %256 = vrot.lane.b32.xlu0 %v200, 64
      %v257 = vpop.permute.xlu0 %256
      %258 = vrot.lane.b32.xlu0 %v201, 64
      %v259 = vpop.permute.xlu0 %258
      %264 = vrot.lane.b32.xlu0 %v204, 64
      %v265 = vpop.permute.xlu0 %264
      %266 = vrot.lane.b32.xlu0 %v205, 64
      %v267 = vpop.permute.xlu0 %266
      %vm270 = vcmask 523264
      %v271 = vsel %vm270, %v174, %v209
      %v272 = vsel %vm270, %v175, %v211
      %v273 = vsel %vm270, %v178, %v217
      %v274 = vsel %vm270, %v179, %v219
      %v275 = vsel %vm270, %v182, %v225
      %v276 = vsel %vm270, %v183, %v227
      %v277 = vsel %vm270, %v186, %v233
      %v278 = vsel %vm270, %v187, %v235
      %v279 = vsel %vm270, %v190, %v241
      %v280 = vsel %vm270, %v191, %v243
      %v281 = vsel %vm270, %v194, %v249
      %v282 = vsel %vm270, %v195, %v251
      %v283 = vsel %vm270, %v198, %v257
      %v284 = vsel %vm270, %v199, %v259
      %v285 = vsel %vm270, %v202, %v265
      %v286 = vsel %vm270, %v203, %v267
      %v287 = vpack.c.bf16 %v272, %v271
      %v288 = vpack.c.bf16 %v274, %v273
      %v289 = vpack.c.bf16 %v276, %v275
      %v290 = vpack.c.bf16 %v278, %v277
      %v291 = vpack.c.bf16 %v280, %v279
      %v292 = vpack.c.bf16 %v282, %v281
      %v293 = vpack.c.bf16 %v284, %v283
      %v294 = vpack.c.bf16 %v286, %v285
      %v295 = vld [vmem:[%s1] sm:$0xf]
      %v296 = vld [vmem:[%s1 + $0x4] sm:$0xf]
      %v297 = vld [vmem:[%s1 + $0x8] sm:$0xf]
      %v298 = vld [vmem:[%s1 + $0xc] sm:$0xf]
      %v299 = vld [vmem:[%s1 + $0x10] sm:$0xf]
      %v300 = vld [vmem:[%s1 + $0x14] sm:$0xf]
      %v301 = vld [vmem:[%s1 + $0x18] sm:$0xf]
      %v302 = vld [vmem:[%s1 + $0x1c] sm:$0xf]
      %v303 = vld [vmem:[%s1 + $0x20] sm:$0xf]
      %v304 = vld [vmem:[%s1 + $0x24] sm:$0xf]
      %v305 = vld [vmem:[%s1 + $0x28] sm:$0xf]
      %v306 = vld [vmem:[%s1 + $0x2c] sm:$0xf]
      %v307 = vld [vmem:[%s1 + $0x30] sm:$0xf]
      %v308 = vld [vmem:[%s1 + $0x34] sm:$0xf]
      %v309 = vld [vmem:[%s1 + $0x38] sm:$0xf]
      %v310 = vld [vmem:[%s1 + $0x3c] sm:$0xf]
      %v311 = vld [vmem:[%s1 + $0x40] sm:$0xf]
      %v312 = vld [vmem:[%s1 + $0x44] sm:$0xf]
      %v313 = vld [vmem:[%s1 + $0x48] sm:$0xf]
      %v314 = vld [vmem:[%s1 + $0x4c] sm:$0xf]
      %v315 = vld [vmem:[%s1 + $0x50] sm:$0xf]
      %v316 = vld [vmem:[%s1 + $0x54] sm:$0xf]
      %v317 = vld [vmem:[%s1 + $0x58] sm:$0xf]
      %v318 = vld [vmem:[%s1 + $0x5c] sm:$0xf]
      %v319 = vld [vmem:[%s1 + $0x60] sm:$0xf]
      %v320 = vld [vmem:[%s1 + $0x64] sm:$0xf]
      %v321 = vld [vmem:[%s1 + $0x68] sm:$0xf]
      %v322 = vld [vmem:[%s1 + $0x6c] sm:$0xf]
      %v323 = vld [vmem:[%s1 + $0x70] sm:$0xf]
      %v324 = vld [vmem:[%s1 + $0x74] sm:$0xf]
      %v325 = vld [vmem:[%s1 + $0x78] sm:$0xf]
      %v326 = vld [vmem:[%s1 + $0x7c] sm:$0xf]
      %v327 = vld [vmem:[%s1 + $0x80] sm:$0xf]
      %v328 = vld [vmem:[%s1 + $0x84] sm:$0xf]
      %v329 = vld [vmem:[%s1 + $0x88] sm:$0xf]
      %v330 = vld [vmem:[%s1 + $0x8c] sm:$0xf]
      %v331 = vld [vmem:[%s1 + $0x90] sm:$0xf]
      %v332 = vld [vmem:[%s1 + $0x94] sm:$0xf]
      %v333 = vld [vmem:[%s1 + $0x98] sm:$0xf]
      %v334 = vld [vmem:[%s1 + $0x9c] sm:$0xf]
      %v335 = vld [vmem:[%s1 + $0xa0] sm:$0xf]
      %v336 = vld [vmem:[%s1 + $0xa4] sm:$0xf]
      %v337 = vld [vmem:[%s1 + $0xa8] sm:$0xf]
      %v338 = vld [vmem:[%s1 + $0xac] sm:$0xf]
      %v339 = vld [vmem:[%s1 + $0xb0] sm:$0xf]
      %v340 = vld [vmem:[%s1 + $0xb4] sm:$0xf]
      %v341 = vld [vmem:[%s1 + $0xb8] sm:$0xf]
      %v342 = vld [vmem:[%s1 + $0xbc] sm:$0xf]
      %v343 = vld [vmem:[%s1 + $0xc0] sm:$0xf]
      %v344 = vld [vmem:[%s1 + $0xc4] sm:$0xf]
      %v345 = vld [vmem:[%s1 + $0xc8] sm:$0xf]
      %v346 = vld [vmem:[%s1 + $0xcc] sm:$0xf]
      %v347 = vld [vmem:[%s1 + $0xd0] sm:$0xf]
      %v348 = vld [vmem:[%s1 + $0xd4] sm:$0xf]
      %v349 = vld [vmem:[%s1 + $0xd8] sm:$0xf]
      %v350 = vld [vmem:[%s1 + $0xdc] sm:$0xf]
      %v351 = vld [vmem:[%s1 + $0xe0] sm:$0xf]
      %v352 = vld [vmem:[%s1 + $0xe4] sm:$0xf]
      %v353 = vld [vmem:[%s1 + $0xe8] sm:$0xf]
      %v354 = vld [vmem:[%s1 + $0xec] sm:$0xf]
      %v355 = vld [vmem:[%s1 + $0xf0] sm:$0xf]
      %v356 = vld [vmem:[%s1 + $0xf4] sm:$0xf]
      %v357 = vld [vmem:[%s1 + $0xf8] sm:$0xf]
      %v358 = vld [vmem:[%s1 + $0xfc] sm:$0xf]
      %v359 = vld [vmem:[%s1 + $0x100] sm:$0xf]
      %v360 = vld [vmem:[%s1 + $0x104] sm:$0xf]
      %v361 = vld [vmem:[%s1 + $0x108] sm:$0xf]
      %v362 = vld [vmem:[%s1 + $0x10c] sm:$0xf]
      %v363 = vld [vmem:[%s1 + $0x110] sm:$0xf]
      %v364 = vld [vmem:[%s1 + $0x114] sm:$0xf]
      %v365 = vld [vmem:[%s1 + $0x118] sm:$0xf]
      %v366 = vld [vmem:[%s1 + $0x11c] sm:$0xf]
      %v367 = vld [vmem:[%s1 + $0x120] sm:$0xf]
      %v368 = vld [vmem:[%s1 + $0x124] sm:$0xf]
      %v369 = vld [vmem:[%s1 + $0x128] sm:$0xf]
      %v370 = vld [vmem:[%s1 + $0x12c] sm:$0xf]
      %v371 = vld [vmem:[%s1 + $0x130] sm:$0xf]
      %v372 = vld [vmem:[%s1 + $0x134] sm:$0xf]
      %v373 = vld [vmem:[%s1 + $0x138] sm:$0xf]
      %v374 = vld [vmem:[%s1 + $0x13c] sm:$0xf]
      %v375 = vld [vmem:[%s1 + $0x140] sm:$0xf]
      %v376 = vld [vmem:[%s1 + $0x144] sm:$0xf]
      %v377 = vld [vmem:[%s1 + $0x148] sm:$0xf]
      %v378 = vld [vmem:[%s1 + $0x14c] sm:$0xf]
      %v379 = vld [vmem:[%s1 + $0x150] sm:$0xf]
      %v380 = vld [vmem:[%s1 + $0x154] sm:$0xf]
      %v381 = vld [vmem:[%s1 + $0x158] sm:$0xf]
      %v382 = vld [vmem:[%s1 + $0x15c] sm:$0xf]
      %v383 = vld [vmem:[%s1 + $0x160] sm:$0xf]
      %v384 = vld [vmem:[%s1 + $0x164] sm:$0xf]
      %v385 = vld [vmem:[%s1 + $0x168] sm:$0xf]
      %v386 = vld [vmem:[%s1 + $0x16c] sm:$0xf]
      %v387 = vld [vmem:[%s1 + $0x170] sm:$0xf]
      %v388 = vld [vmem:[%s1 + $0x174] sm:$0xf]
      %v389 = vld [vmem:[%s1 + $0x178] sm:$0xf]
      %v390 = vld [vmem:[%s1 + $0x17c] sm:$0xf]
      %v391 = vld [vmem:[%s1 + $0x180] sm:$0xf]
      %v392 = vld [vmem:[%s1 + $0x184] sm:$0xf]
      %v393 = vld [vmem:[%s1 + $0x188] sm:$0xf]
      %v394 = vld [vmem:[%s1 + $0x18c] sm:$0xf]
      %v395 = vld [vmem:[%s1 + $0x190] sm:$0xf]
      %v396 = vld [vmem:[%s1 + $0x194] sm:$0xf]
      %v397 = vld [vmem:[%s1 + $0x198] sm:$0xf]
      %v398 = vld [vmem:[%s1 + $0x19c] sm:$0xf]
      %v399 = vld [vmem:[%s1 + $0x1a0] sm:$0xf]
      %v400 = vld [vmem:[%s1 + $0x1a4] sm:$0xf]
      %v401 = vld [vmem:[%s1 + $0x1a8] sm:$0xf]
      %v402 = vld [vmem:[%s1 + $0x1ac] sm:$0xf]
      %v403 = vld [vmem:[%s1 + $0x1b0] sm:$0xf]
      %v404 = vld [vmem:[%s1 + $0x1b4] sm:$0xf]
      %v405 = vld [vmem:[%s1 + $0x1b8] sm:$0xf]
      %v406 = vld [vmem:[%s1 + $0x1bc] sm:$0xf]
      %v407 = vld [vmem:[%s1 + $0x1c0] sm:$0xf]
      %v408 = vld [vmem:[%s1 + $0x1c4] sm:$0xf]
      %v409 = vld [vmem:[%s1 + $0x1c8] sm:$0xf]
      %v410 = vld [vmem:[%s1 + $0x1cc] sm:$0xf]
      %v411 = vld [vmem:[%s1 + $0x1d0] sm:$0xf]
      %v412 = vld [vmem:[%s1 + $0x1d4] sm:$0xf]
      %v413 = vld [vmem:[%s1 + $0x1d8] sm:$0xf]
      %v414 = vld [vmem:[%s1 + $0x1dc] sm:$0xf]
      %v415 = vld [vmem:[%s1 + $0x1e0] sm:$0xf]
      %v416 = vld [vmem:[%s1 + $0x1e4] sm:$0xf]
      %v417 = vld [vmem:[%s1 + $0x1e8] sm:$0xf]
      %v418 = vld [vmem:[%s1 + $0x1ec] sm:$0xf]
      %v419 = vld [vmem:[%s1 + $0x1f0] sm:$0xf]
      %v420 = vld [vmem:[%s1 + $0x1f4] sm:$0xf]
      %v421 = vld [vmem:[%s1 + $0x1f8] sm:$0xf]
      %v422 = vld [vmem:[%s1 + $0x1fc] sm:$0xf]
      %v423 = vld [vmem:[#allocation2] sm:$0x1]
      %v425 = vlaneseq
      %v426 = vshrl.u32 %v425, 7
      %v427 = vsub.s32 0, %v426
      %v428 = vrot.slane %v423, %v427
      %v558 = vunpack.c.l.b16 %v295
      %v559 = vunpack.c.l.b16 %v296
      %v560 = vunpack.c.l.b16 %v297
      %v561 = vunpack.c.l.b16 %v298
      %v562 = vunpack.c.l.b16 %v299
      %v563 = vunpack.c.l.b16 %v300
      %v564 = vunpack.c.l.b16 %v301
      %v565 = vunpack.c.l.b16 %v302
      %v566 = vunpack.c.l.b16 %v303
      %v567 = vunpack.c.l.b16 %v304
      %v568 = vunpack.c.l.b16 %v305
      %v569 = vunpack.c.l.b16 %v306
      %v570 = vunpack.c.l.b16 %v307
      %v571 = vunpack.c.l.b16 %v308
      %v572 = vunpack.c.l.b16 %v309
      %v573 = vunpack.c.l.b16 %v310
      %v574 = vunpack.c.l.b16 %v311
      %v575 = vunpack.c.l.b16 %v312
      %v576 = vunpack.c.l.b16 %v313
      %v577 = vunpack.c.l.b16 %v314
      %v578 = vunpack.c.l.b16 %v315
      %v579 = vunpack.c.l.b16 %v316
      %v580 = vunpack.c.l.b16 %v317
      %v581 = vunpack.c.l.b16 %v318
      %v582 = vunpack.c.l.b16 %v319
      %v583 = vunpack.c.l.b16 %v320
      %v584 = vunpack.c.l.b16 %v321
      %v585 = vunpack.c.l.b16 %v322
      %v586 = vunpack.c.l.b16 %v323
      %v587 = vunpack.c.l.b16 %v324
      %v588 = vunpack.c.l.b16 %v325
      %v589 = vunpack.c.l.b16 %v326
      %v590 = vunpack.c.l.b16 %v327
      %v591 = vunpack.c.l.b16 %v328
      %v592 = vunpack.c.l.b16 %v329
      %v593 = vunpack.c.l.b16 %v330
      %v594 = vunpack.c.l.b16 %v331
      %v595 = vunpack.c.l.b16 %v332
      %v596 = vunpack.c.l.b16 %v333
      %v597 = vunpack.c.l.b16 %v334
      %v598 = vunpack.c.l.b16 %v335
      %v599 = vunpack.c.l.b16 %v336
      %v600 = vunpack.c.l.b16 %v337
      %v601 = vunpack.c.l.b16 %v338
      %v602 = vunpack.c.l.b16 %v339
      %v603 = vunpack.c.l.b16 %v340
      %v604 = vunpack.c.l.b16 %v341
      %v605 = vunpack.c.l.b16 %v342
      %v606 = vunpack.c.l.b16 %v343
      %v607 = vunpack.c.l.b16 %v344
      %v608 = vunpack.c.l.b16 %v345
      %v609 = vunpack.c.l.b16 %v346
      %v610 = vunpack.c.l.b16 %v347
      %v611 = vunpack.c.l.b16 %v348
      %v612 = vunpack.c.l.b16 %v349
      %v613 = vunpack.c.l.b16 %v350
      %v614 = vunpack.c.l.b16 %v351
      %v615 = vunpack.c.l.b16 %v352
      %v616 = vunpack.c.l.b16 %v353
      %v617 = vunpack.c.l.b16 %v354
      %v618 = vunpack.c.l.b16 %v355
      %v619 = vunpack.c.l.b16 %v356
      %v620 = vunpack.c.l.b16 %v357
      %v621 = vunpack.c.l.b16 %v358
      %v622 = vunpack.c.l.b16 %v359
      %v623 = vunpack.c.l.b16 %v360
      %v624 = vunpack.c.l.b16 %v361
      %v625 = vunpack.c.l.b16 %v362
      %v626 = vunpack.c.l.b16 %v363
      %v627 = vunpack.c.l.b16 %v364
      %v628 = vunpack.c.l.b16 %v365
      %v629 = vunpack.c.l.b16 %v366
      %v630 = vunpack.c.l.b16 %v367
      %v631 = vunpack.c.l.b16 %v368
      %v632 = vunpack.c.l.b16 %v369
      %v633 = vunpack.c.l.b16 %v370
      %v634 = vunpack.c.l.b16 %v371
      %v635 = vunpack.c.l.b16 %v372
      %v636 = vunpack.c.l.b16 %v373
      %v637 = vunpack.c.l.b16 %v374
      %v638 = vunpack.c.l.b16 %v375
      %v639 = vunpack.c.l.b16 %v376
      %v640 = vunpack.c.l.b16 %v377
      %v641 = vunpack.c.l.b16 %v378
      %v642 = vunpack.c.l.b16 %v379
      %v643 = vunpack.c.l.b16 %v380
      %v644 = vunpack.c.l.b16 %v381
      %v645 = vunpack.c.l.b16 %v382
      %v646 = vunpack.c.l.b16 %v383
      %v647 = vunpack.c.l.b16 %v384
      %v648 = vunpack.c.l.b16 %v385
      %v649 = vunpack.c.l.b16 %v386
      %v650 = vunpack.c.l.b16 %v387
      %v651 = vunpack.c.l.b16 %v388
      %v652 = vunpack.c.l.b16 %v389
      %v653 = vunpack.c.l.b16 %v390
      %v654 = vunpack.c.l.b16 %v391
      %v655 = vunpack.c.l.b16 %v392
      %v656 = vunpack.c.l.b16 %v393
      %v657 = vunpack.c.l.b16 %v394
      %v658 = vunpack.c.l.b16 %v395
      %v659 = vunpack.c.l.b16 %v396
      %v660 = vunpack.c.l.b16 %v397
      %v661 = vunpack.c.l.b16 %v398
      %v662 = vunpack.c.l.b16 %v399
      %v663 = vunpack.c.l.b16 %v400
      %v664 = vunpack.c.l.b16 %v401
      %v665 = vunpack.c.l.b16 %v402
      %v666 = vunpack.c.l.b16 %v403
      %v667 = vunpack.c.l.b16 %v404
      %v668 = vunpack.c.l.b16 %v405
      %v669 = vunpack.c.l.b16 %v406
      %v670 = vunpack.c.l.b16 %v407
      %v671 = vunpack.c.l.b16 %v408
      %v672 = vunpack.c.l.b16 %v409
      %v673 = vunpack.c.l.b16 %v410
      %v674 = vunpack.c.l.b16 %v411
      %v675 = vunpack.c.l.b16 %v412
      %v676 = vunpack.c.l.b16 %v413
      %v677 = vunpack.c.l.b16 %v414
      %v678 = vunpack.c.l.b16 %v415
      %v679 = vunpack.c.l.b16 %v416
      %v680 = vunpack.c.l.b16 %v417
      %v681 = vunpack.c.l.b16 %v418
      %v682 = vunpack.c.l.b16 %v419
      %v683 = vunpack.c.l.b16 %v420
      %v684 = vunpack.c.l.b16 %v421
      %v685 = vunpack.c.l.b16 %v422
      %v686 = vpack.c.b16 %v559, %v558
      %v687 = vpack.c.b16 %v561, %v560
      %v688 = vpack.c.b16 %v563, %v562
      %v689 = vpack.c.b16 %v565, %v564
      %v690 = vpack.c.b16 %v567, %v566
      %v691 = vpack.c.b16 %v569, %v568
      %v692 = vpack.c.b16 %v571, %v570
      %v693 = vpack.c.b16 %v573, %v572
      %v694 = vpack.c.b16 %v575, %v574
      %v695 = vpack.c.b16 %v577, %v576
      %v696 = vpack.c.b16 %v579, %v578
      %v697 = vpack.c.b16 %v581, %v580
      %v698 = vpack.c.b16 %v583, %v582
      %v699 = vpack.c.b16 %v585, %v584
      %v700 = vpack.c.b16 %v587, %v586
      %v701 = vpack.c.b16 %v589, %v588
      %v702 = vpack.c.b16 %v591, %v590
      %v703 = vpack.c.b16 %v593, %v592
      %v704 = vpack.c.b16 %v595, %v594
      %v705 = vpack.c.b16 %v597, %v596
      %v706 = vpack.c.b16 %v599, %v598
      %v707 = vpack.c.b16 %v601, %v600
      %v708 = vpack.c.b16 %v603, %v602
      %v709 = vpack.c.b16 %v605, %v604
      %v710 = vpack.c.b16 %v607, %v606
      %v711 = vpack.c.b16 %v609, %v608
      %v712 = vpack.c.b16 %v611, %v610
      %v713 = vpack.c.b16 %v613, %v612
      %v714 = vpack.c.b16 %v615, %v614
      %v715 = vpack.c.b16 %v617, %v616
      %v716 = vpack.c.b16 %v619, %v618
      %v717 = vpack.c.b16 %v621, %v620
      %v718 = vpack.c.b16 %v623, %v622
      %v719 = vpack.c.b16 %v625, %v624
      %v720 = vpack.c.b16 %v627, %v626
      %v721 = vpack.c.b16 %v629, %v628
      %v722 = vpack.c.b16 %v631, %v630
      %v723 = vpack.c.b16 %v633, %v632
      %v724 = vpack.c.b16 %v635, %v634
      %v725 = vpack.c.b16 %v637, %v636
      %v726 = vpack.c.b16 %v639, %v638
      %v727 = vpack.c.b16 %v641, %v640
      %v728 = vpack.c.b16 %v643, %v642
      %v729 = vpack.c.b16 %v645, %v644
      %v730 = vpack.c.b16 %v647, %v646
      %v731 = vpack.c.b16 %v649, %v648
      %v732 = vpack.c.b16 %v651, %v650
      %v733 = vpack.c.b16 %v653, %v652
      %v734 = vpack.c.b16 %v655, %v654
      %v735 = vpack.c.b16 %v657, %v656
      %v736 = vpack.c.b16 %v659, %v658
      %v737 = vpack.c.b16 %v661, %v660
      %v738 = vpack.c.b16 %v663, %v662
      %v739 = vpack.c.b16 %v665, %v664
      %v740 = vpack.c.b16 %v667, %v666
      %v741 = vpack.c.b16 %v669, %v668
      %v742 = vpack.c.b16 %v671, %v670
      %v743 = vpack.c.b16 %v673, %v672
      %v744 = vpack.c.b16 %v675, %v674
      %v745 = vpack.c.b16 %v677, %v676
      %v746 = vpack.c.b16 %v679, %v678
      %v747 = vpack.c.b16 %v681, %v680
      %v748 = vpack.c.b16 %v683, %v682
      %v749 = vpack.c.b16 %v685, %v684
      %814 = vmatprep.subr.bf16.mxu0 0
      %815 = vmatpush1.bf16.msra.mxu0 %v686
      %816 = vmatprep.subr.bf16.mxu0 0
      %817 = vmatpush1.bf16.msra.mxu0 %v687
      %818 = vmatprep.subr.bf16.mxu0 0
      %819 = vmatpush1.bf16.msra.mxu0 %v688
      %820 = vmatprep.subr.bf16.mxu0 0
      %821 = vmatpush1.bf16.msra.mxu0 %v689
      %822 = vmatprep.subr.bf16.mxu0 0
      %823 = vmatpush1.bf16.msra.mxu0 %v690
      %824 = vmatprep.subr.bf16.mxu0 0
      %825 = vmatpush1.bf16.msra.mxu0 %v691
      %826 = vmatprep.subr.bf16.mxu0 0
      %827 = vmatpush1.bf16.msra.mxu0 %v692
      %828 = vmatprep.subr.bf16.mxu0 0
      %829 = vmatpush1.bf16.msra.mxu0 %v693
      %830 = vmatprep.subr.bf16.mxu0 0
      %831 = vmatpush1.bf16.msra.mxu0 %v694
      %832 = vmatprep.subr.bf16.mxu0 0
      %833 = vmatpush1.bf16.msra.mxu0 %v695
      %834 = vmatprep.subr.bf16.mxu0 0
      %835 = vmatpush1.bf16.msra.mxu0 %v696
      %836 = vmatprep.subr.bf16.mxu0 0
      %837 = vmatpush1.bf16.msra.mxu0 %v697
      %838 = vmatprep.subr.bf16.mxu0 0
      %839 = vmatpush1.bf16.msra.mxu0 %v698
      %840 = vmatprep.subr.bf16.mxu0 0
      %841 = vmatpush1.bf16.msra.mxu0 %v699
      %842 = vmatprep.subr.bf16.mxu0 0
      %843 = vmatpush1.bf16.msra.mxu0 %v700
      %844 = vmatprep.subr.bf16.mxu0 0
      %845 = vmatpush1.bf16.msra.mxu0 %v701
      %846 = vmatprep.mubr.bf16.mxu0 %v288
      %847 = vmatmul.mubr.bf16.gmra.mrb[0].mxu0 %v287
      %v848 = vpop.f32.mrb[0].mxu0
      %v849 = vadd.f32 %v428, %v848
      %v850 = vpop.f32.mrb[0].mxu0
      %v851 = vpop.f32.mrb[0].mxu0
      %v852 = vadd.f32 %v428, %v851
      %v853 = vpop.f32.mrb[0].mxu0
      %854 = vdwg.mxu0
      %855 = vmatprep.subr.bf16.mxu0 0
      %856 = vmatpush1.bf16.msra.mxu0 %v702
      %857 = vmatprep.subr.bf16.mxu0 0
      %858 = vmatpush1.bf16.msra.mxu0 %v703
      %859 = vmatprep.subr.bf16.mxu0 0
      %860 = vmatpush1.bf16.msra.mxu0 %v704
      %861 = vmatprep.subr.bf16.mxu0 0
      %862 = vmatpush1.bf16.msra.mxu0 %v705
      %863 = vmatprep.subr.bf16.mxu0 0
      %864 = vmatpush1.bf16.msra.mxu0 %v706
      %865 = vmatprep.subr.bf16.mxu0 0
      %866 = vmatpush1.bf16.msra.mxu0 %v707
      %867 = vmatprep.subr.bf16.mxu0 0
      %868 = vmatpush1.bf16.msra.mxu0 %v708
      %869 = vmatprep.subr.bf16.mxu0 0
      %870 = vmatpush1.bf16.msra.mxu0 %v709
      %871 = vmatprep.subr.bf16.mxu0 0
      %872 = vmatpush1.bf16.msra.mxu0 %v710
      %873 = vmatprep.subr.bf16.mxu0 0
      %874 = vmatpush1.bf16.msra.mxu0 %v711
      %875 = vmatprep.subr.bf16.mxu0 0
      %876 = vmatpush1.bf16.msra.mxu0 %v712
      %877 = vmatprep.subr.bf16.mxu0 0
      %878 = vmatpush1.bf16.msra.mxu0 %v713
      %879 = vmatprep.subr.bf16.mxu0 0
      %880 = vmatpush1.bf16.msra.mxu0 %v714
      %881 = vmatprep.subr.bf16.mxu0 0
      %882 = vmatpush1.bf16.msra.mxu0 %v715
      %883 = vmatprep.subr.bf16.mxu0 0
      %884 = vmatpush1.bf16.msra.mxu0 %v716
      %885 = vmatprep.subr.bf16.mxu0 0
      %886 = vmatpush1.bf16.msra.mxu0 %v717
      %887 = vmatprep.mubr.bf16.mxu0 %v290
      %888 = vmatmul.mubr.bf16.gmra.mrb[0].mxu0 %v289
      %v889 = vpop.f32.mrb[0].mxu0
      %v890 = vadd.f32 %v849, %v889
      %v891 = vpop.f32.mrb[0].mxu0
      %v892 = vpop.f32.mrb[0].mxu0
      %v893 = vadd.f32 %v852, %v892
      %v894 = vpop.f32.mrb[0].mxu0
      %895 = vdwg.mxu0
      %896 = vmatprep.subr.bf16.mxu0 0
      %897 = vmatpush1.bf16.msra.mxu0 %v718
      %898 = vmatprep.subr.bf16.mxu0 0
      %899 = vmatpush1.bf16.msra.mxu0 %v719
      %900 = vmatprep.subr.bf16.mxu0 0
      %901 = vmatpush1.bf16.msra.mxu0 %v720
      %902 = vmatprep.subr.bf16.mxu0 0
      %903 = vmatpush1.bf16.msra.mxu0 %v721
      %904 = vmatprep.subr.bf16.mxu0 0
      %905 = vmatpush1.bf16.msra.mxu0 %v722
      %906 = vmatprep.subr.bf16.mxu0 0
      %907 = vmatpush1.bf16.msra.mxu0 %v723
      %908 = vmatprep.subr.bf16.mxu0 0
      %909 = vmatpush1.bf16.msra.mxu0 %v724
      %910 = vmatprep.subr.bf16.mxu0 0
      %911 = vmatpush1.bf16.msra.mxu0 %v725
      %912 = vmatprep.subr.bf16.mxu0 0
      %913 = vmatpush1.bf16.msra.mxu0 %v726
      %914 = vmatprep.subr.bf16.mxu0 0
      %915 = vmatpush1.bf16.msra.mxu0 %v727
      %916 = vmatprep.subr.bf16.mxu0 0
      %917 = vmatpush1.bf16.msra.mxu0 %v728
      %918 = vmatprep.subr.bf16.mxu0 0
      %919 = vmatpush1.bf16.msra.mxu0 %v729
      %920 = vmatprep.subr.bf16.mxu0 0
      %921 = vmatpush1.bf16.msra.mxu0 %v730
      %922 = vmatprep.subr.bf16.mxu0 0
      %923 = vmatpush1.bf16.msra.mxu0 %v731
      %924 = vmatprep.subr.bf16.mxu0 0
      %925 = vmatpush1.bf16.msra.mxu0 %v732
      %926 = vmatprep.subr.bf16.mxu0 0
      %927 = vmatpush1.bf16.msra.mxu0 %v733
      %928 = vmatprep.mubr.bf16.mxu0 %v292
      %929 = vmatmul.mubr.bf16.gmra.mrb[0].mxu0 %v291
      %v930 = vpop.f32.mrb[0].mxu0
      %v931 = vadd.f32 %v890, %v930
      %v932 = vpop.f32.mrb[0].mxu0
      %v933 = vpop.f32.mrb[0].mxu0
      %v934 = vadd.f32 %v893, %v933
      %v935 = vpop.f32.mrb[0].mxu0
      %936 = vdwg.mxu0
      %937 = vmatprep.subr.bf16.mxu0 0
      %938 = vmatpush1.bf16.msra.mxu0 %v734
      %939 = vmatprep.subr.bf16.mxu0 0
      %940 = vmatpush1.bf16.msra.mxu0 %v735
      %941 = vmatprep.subr.bf16.mxu0 0
      %942 = vmatpush1.bf16.msra.mxu0 %v736
      %943 = vmatprep.subr.bf16.mxu0 0
      %944 = vmatpush1.bf16.msra.mxu0 %v737
      %945 = vmatprep.subr.bf16.mxu0 0
      %946 = vmatpush1.bf16.msra.mxu0 %v738
      %947 = vmatprep.subr.bf16.mxu0 0
      %948 = vmatpush1.bf16.msra.mxu0 %v739
      %949 = vmatprep.subr.bf16.mxu0 0
      %950 = vmatpush1.bf16.msra.mxu0 %v740
      %951 = vmatprep.subr.bf16.mxu0 0
      %952 = vmatpush1.bf16.msra.mxu0 %v741
      %953 = vmatprep.subr.bf16.mxu0 0
      %954 = vmatpush1.bf16.msra.mxu0 %v742
      %955 = vmatprep.subr.bf16.mxu0 0
      %956 = vmatpush1.bf16.msra.mxu0 %v743
      %957 = vmatprep.subr.bf16.mxu0 0
      %958 = vmatpush1.bf16.msra.mxu0 %v744
      %959 = vmatprep.subr.bf16.mxu0 0
      %960 = vmatpush1.bf16.msra.mxu0 %v745
      %961 = vmatprep.subr.bf16.mxu0 0
      %962 = vmatpush1.bf16.msra.mxu0 %v746
      %963 = vmatprep.subr.bf16.mxu0 0
      %964 = vmatpush1.bf16.msra.mxu0 %v747
      %965 = vmatprep.subr.bf16.mxu0 0
      %966 = vmatpush1.bf16.msra.mxu0 %v748
      %967 = vmatprep.subr.bf16.mxu0 0
      %968 = vmatpush1.bf16.msra.mxu0 %v749
      %969 = vmatprep.mubr.bf16.mxu0 %v294
      %970 = vmatmul.mubr.bf16.gmra.mrb[0].mxu0 %v293
      %v971 = vpop.f32.mrb[0].mxu0
      %v972 = vadd.f32 %v931, %v971
      %v973 = vpop.f32.mrb[0].mxu0
      %v974 = vpop.f32.mrb[0].mxu0
      %v975 = vadd.f32 %v934, %v974
      %v976 = vpop.f32.mrb[0].mxu0
      %977 = vdwg.mxu0
      %v978 = vxor.u32 %v972, 2147483648
      %v979 = vxor.u32 %v975, 2147483648
      %v980 = vmul.f32 %v978, 1.442695
      %v981 = vpow.pop %v980
      %v982 = vmul.f32 %v979, 1.442695
      %v983 = vpow.pop %v982
      %v984 = vadd.f32 %v981, 1.0
      %v985 = vadd.f32 %v983, 1.0
      %v986 = vrcp.pop %v984
      %v987 = vmul.f32 1.0, %v986
      %v988 = vrcp.pop %v985
      %v989 = vmul.f32 1.0, %v988
      %vm990 = vcmask 7168
      %991 = vst.msk [vmem:[%s172] sm:$0xff] %vm990, %v987
      %vm992 = vcmask 1024
      %993 = vst.msk [vmem:[%s172 + $0x8] sm:$0x3] %vm992, %v989
      %p994 = scmp.lt.s32.totalorder %s16, 1
      %s995 = scalar_select %p994, %s16, 1
      %s996 = smul.addr %s995, 2
      %s997 = smul.addr %s996, 8
      %s998 = scalar_lea.vmem %s3, %s997
      // Predicated region
      $region33: #{discriminator_forward.9} parent=31 // pred_check
        %p999 = pneg %p102
      $region34: #{discriminator_forward.9} parent=31 // pred_check_branch
        %1001 = sbr.rel (%p999) target = $region36
      $region35: #{discriminator_forward.9} parent=31 // pred_region
        _
      $region36: #{discriminator_forward.9} parent=31 // pred_fallthru
        _
    $region32: #{discriminator_forward.9} parent=5 // pred_fallthru
      _
    %p1002 = scmp.le.s32.totalorder 2, %s11
    // Predicated region
    $region37: #{discriminator_forward.9} parent=5 // pred_check
      %p1003 = pneg %p1002
    $region38: #{discriminator_forward.9} parent=5 // pred_check_branch
      %1005 = sbr.rel (%p1003) target = $region40
    $region39: #{discriminator_forward.9} parent=5 // pred_region
      %s1006 = ssub.s32 %s11, 2
      // Predicated region
      $region41: #{discriminator_forward.9} parent=39 // pred_check
        %p1007 = pneg %p108
      $region42: #{discriminator_forward.9} parent=39 // pred_check_branch
        %1009 = sbr.rel (%p1007) target = $region44
      $region43: #{discriminator_forward.9} parent=39 // pred_region
        %p1010 = scmp.lt.s32.totalorder %s17, 1
        %s1011 = scalar_select %p1010, %s17, 1
        %s1012 = smul.addr %s1011, 2
        %s1013 = smul.addr %s1012, 8
        %s1014 = scalar_lea.vmem %s3, %s1013
      $region44: #{discriminator_forward.9} parent=39 // pred_fallthru
        _
    $region40: #{discriminator_forward.9} parent=5 // pred_fallthru
      _
  $region6: #{discriminator_forward.9} parent=0 // loop_footer
    %s15 = sadd.s32 1, %s11
  $region7: #{discriminator_forward.9} parent=0 // loop_footer_branch
    %10 = sbr.rel target = $region3
  $region8: #{discriminator_forward.9} parent=0 // loop_exit
    _

// kernel: discriminator_forward.8
$region0: #{discriminator_forward.8}
  #allocation0 [shape = 'u32[]', space=smem, size = 0x4, offset = 0x4, fixed_abs, tag = 'smem constant byte address 0x4 - core index']
  #allocation1 [shape = 'u32[144,128]{1,0:T(1,128)}', space=vmem, size = 0x12000, scoped, tag = 'internal scratch']
  %s0 = inlined_call_operand.vmem [shape: f32[2,1,44,32], index: 0, kind: input, shape index: {}]
  %s1 = inlined_call_operand.vmem [shape: bf16[512,64], index: 1, kind: input, shape index: {}]
  %s2 = inlined_call_operand.vmem [shape: f32[18,1], index: 2, kind: input, shape index: {}]
  %s3 = inlined_call_operand.vmem [shape: f32[2,18,64], index: 3, kind: output, shape index: {0}]
  %s4 = inlined_call_operand.vmem [shape: f32[2,2,64], index: 4, kind: output, shape index: {1}]
  %5 = xla_tuple %s3, %s4
  %s6 = sld [smem:[#allocation0]]
  $region53: #{discriminator_forward.8} parent=0
    _
  %s8 = ssub.s32 1, %s6
  %s9 = scalar_select 0, %s8, %s6
  loop: start=0, step=1, limit=4
  $region2: #{discriminator_forward.8} parent=0 // loop_pre_header
    _
  $region3: #{discriminator_forward.8} parent=0 // loop_header
    %s11 = sphi 0, %s15
    %p12 = scmp.ge.s32.totalorder %s11, 4
    %s21 = sphi 0, %s23
    %s24 = sphi 0, %s21
    %s25 = sphi 0, %s24
    %s41 = sphi 0, %s25
    %s45 = sphi 0, %s45
    %s47 = sphi 0, %s45
    %s48 = sphi 0, %s47
    %s62 = sphi 0, %s48
    %s66 = sphi 0, %s66
    %s68 = sphi 0, %s66
    %s69 = sphi 0, %s68
    %s83 = sphi 0, %s69
    %s89 = sphi 0, %s91
    %s92 = sphi 0, %s89
    %s93 = sphi 0, %s92
    %s109 = sphi 0, %s93
    %s115 = sphi 0, %s117
    %s118 = sphi 0, %s115
    %s119 = sphi 0, %s118
    %s135 = sphi 0, %s119
  $region4: #{discriminator_forward.8} parent=0 // loop_header_branch
    %14 = sbr.rel (%p12) target = $region8
  $region5: #{discriminator_forward.8} parent=0 // loop_body
    %s16 = ssub.s32 %s11, 1
    %s17 = ssub.s32 %s11, 2
    %s18 = sadd.s32 %s11, 1
    %s19 = ssub.s32 %s11, %s18
    %p20 = scmp.eq.s32.totalorder %s19, 0
    %s22 = sadd.s32 %s21, 1
    %s23 = scalar_select %p20, %s21, %s22
    %p26 = pneg %p20
    %p27 = scmp.eq.s32.totalorder %s11, 1
    %p28 = por %p26, %p27
    %p29 = scmp.ne.s32.totalorder %s21, %s24
    %p30 = scmp.eq.s32.totalorder %s11, 0
    %p31 = por %p29, %p30
    %p32 = scmp.ne.s32.totalorder %s21, %s24
    %p33 = scmp.eq.s32.totalorder %s16, 1
    %p34 = por %p32, %p33
    %p35 = scmp.ne.s32.totalorder %s24, %s25
    %p36 = scmp.eq.s32.totalorder %s16, 0
    %p37 = por %p35, %p36
    %p38 = scmp.ne.s32.totalorder %s24, %s25
    %p39 = scmp.eq.s32.totalorder %s17, 1
    %p40 = por %p38, %p39
    %p42 = scmp.ne.s32.totalorder %s25, %s41
    %p43 = scmp.eq.s32.totalorder %s17, 0
    %p44 = por %p42, %p43
    %s46 = sadd.s32 %s45, 1
    %p49 = scmp.eq.s32.totalorder %s11, 1
    %p50 = scmp.ne.s32.totalorder %s45, %s47
    %p51 = scmp.eq.s32.totalorder %s11, 0
    %p52 = por %p50, %p51
    %p53 = scmp.ne.s32.totalorder %s45, %s47
    %p54 = scmp.eq.s32.totalorder %s16, 1
    %p55 = por %p53, %p54
    %p56 = scmp.ne.s32.totalorder %s47, %s48
    %p57 = scmp.eq.s32.totalorder %s16, 0
    %p58 = por %p56, %p57
    %p59 = scmp.ne.s32.totalorder %s47, %s48
    %p60 = scmp.eq.s32.totalorder %s17, 1
    %p61 = por %p59, %p60
    %p63 = scmp.ne.s32.totalorder %s48, %s62
    %p64 = scmp.eq.s32.totalorder %s17, 0
    %p65 = por %p63, %p64
    %s67 = sadd.s32 %s66, 1
    %p70 = scmp.eq.s32.totalorder %s11, 1
    %p71 = scmp.ne.s32.totalorder %s66, %s68
    %p72 = scmp.eq.s32.totalorder %s11, 0
    %p73 = por %p71, %p72
    %p74 = scmp.ne.s32.totalorder %s66, %s68
    %p75 = scmp.eq.s32.totalorder %s16, 1
    %p76 = por %p74, %p75
    %p77 = scmp.ne.s32.totalorder %s68, %s69
    %p78 = scmp.eq.s32.totalorder %s16, 0
    %p79 = por %p77, %p78
    %p80 = scmp.ne.s32.totalorder %s68, %s69
    %p81 = scmp.eq.s32.totalorder %s17, 1
    %p82 = por %p80, %p81
    %p84 = scmp.ne.s32.totalorder %s69, %s83
    %p85 = scmp.eq.s32.totalorder %s17, 0
    %p86 = por %p84, %p85
    %s87 = ssub.s32 %s11, %s18
    %p88 = scmp.eq.s32.totalorder %s87, 0
    %s90 = sadd.s32 %s89, 1
    %s91 = scalar_select %p88, %s89, %s90
    %p94 = pneg %p88
    %p95 = scmp.eq.s32.totalorder %s11, 1
    %p96 = por %p94, %p95
    %p97 = scmp.ne.s32.totalorder %s89, %s92
    %p98 = scmp.eq.s32.totalorder %s11, 0
    %p99 = por %p97, %p98
    %p100 = scmp.ne.s32.totalorder %s89, %s92
    %p101 = scmp.eq.s32.totalorder %s16, 1
    %p102 = por %p100, %p101
    %p103 = scmp.ne.s32.totalorder %s92, %s93
    %p104 = scmp.eq.s32.totalorder %s16, 0
    %p105 = por %p103, %p104
    %p106 = scmp.ne.s32.totalorder %s92, %s93
    %p107 = scmp.eq.s32.totalorder %s17, 1
    %p108 = por %p106, %p107
    %p110 = scmp.ne.s32.totalorder %s93, %s109
    %p111 = scmp.eq.s32.totalorder %s17, 0
    %p112 = por %p110, %p111
    %s113 = ssub.s32 %s11, %s18
    %p114 = scmp.eq.s32.totalorder %s113, 0
    %s116 = sadd.s32 %s115, 1
    %s117 = scalar_select %p114, %s115, %s116
    %p120 = pneg %p114
    %p121 = scmp.eq.s32.totalorder %s11, 1
    %p122 = por %p120, %p121
    %p123 = scmp.ne.s32.totalorder %s115, %s118
    %p124 = scmp.eq.s32.totalorder %s11, 0
    %p125 = por %p123, %p124
    %p126 = scmp.ne.s32.totalorder %s115, %s118
    %p127 = scmp.eq.s32.totalorder %s16, 1
    %p128 = por %p126, %p127
    %p129 = scmp.ne.s32.totalorder %s118, %s119
    %p130 = scmp.eq.s32.totalorder %s16, 0
    %p131 = por %p129, %p130
    %p132 = scmp.ne.s32.totalorder %s118, %s119
    %p133 = scmp.eq.s32.totalorder %s17, 1
    %p134 = por %p132, %p133
    %p136 = scmp.ne.s32.totalorder %s119, %s135
    %p137 = scmp.eq.s32.totalorder %s17, 0
    %p138 = por %p136, %p137
    %p139 = scmp.le.s32.totalorder 1, %s11
    %p140 = scmp.lt.s32.totalorder %s11, 3
    %p141 = pnand %p139, %p140
    %p142 = pneg %p141
    // Predicated region
    $region9: #{discriminator_forward.8} parent=5 // pred_check
      _
    $region10: #{discriminator_forward.8} parent=5 // pred_check_branch
      %144 = sbr.rel (%p141) target = $region12
    $region11: #{discriminator_forward.8} parent=5 // pred_region
      %s145 = ssub.s32 %s11, 1
      // Predicated region
      $region13: #{discriminator_forward.8} parent=11 // pred_check
        %p146 = pneg %p58
      $region14: #{discriminator_forward.8} parent=11 // pred_check_branch
        %148 = sbr.rel (%p146) target = $region16
      $region15: #{discriminator_forward.8} parent=11 // pred_region
        _
      $region16: #{discriminator_forward.8} parent=11 // pred_fallthru
        _
      // Predicated region
      $region17: #{discriminator_forward.8} parent=11 // pred_check
        %p149 = pneg %p79
      $region18: #{discriminator_forward.8} parent=11 // pred_check_branch
        %151 = sbr.rel (%p149) target = $region20
      $region19: #{discriminator_forward.8} parent=11 // pred_region
        _
      $region20: #{discriminator_forward.8} parent=11 // pred_fallthru
        _
    $region12: #{discriminator_forward.8} parent=5 // pred_fallthru
      _
    %p152 = scmp.lt.s32.totalorder %s11, 2
    // Predicated region
    $region21: #{discriminator_forward.8} parent=5 // pred_check
      %p153 = pneg %p152
    $region22: #{discriminator_forward.8} parent=5 // pred_check_branch
      %155 = sbr.rel (%p153) target = $region24
    $region23: #{discriminator_forward.8} parent=5 // pred_region
      // Predicated region
      $region25: #{discriminator_forward.8} parent=23 // pred_check
        %p156 = pneg %p31
      $region26: #{discriminator_forward.8} parent=23 // pred_check_branch
        %158 = sbr.rel (%p156) target = $region28
      $region27: #{discriminator_forward.8} parent=23 // pred_region
        %p159 = scmp.lt.s32.totalorder %s11, 1
        %s160 = scalar_select %p159, %s11, 1
        %s161 = smul.addr %s160, 6
        %s162 = smul.addr %s161, 8
        %s163 = scalar_lea.vmem %s0, %s162
      $region28: #{discriminator_forward.8} parent=23 // pred_fallthru
        _
    $region24: #{discriminator_forward.8} parent=5 // pred_fallthru
      _
    %p164 = scmp.le.s32.totalorder 1, %s11
    %p165 = scmp.lt.s32.totalorder %s11, 3
    %p166 = pnand %p164, %p165
    %p167 = pneg %p166
    // Predicated region
    $region29: #{discriminator_forward.8} parent=5 // pred_check
      _
    $region30: #{discriminator_forward.8} parent=5 // pred_check_branch
      %169 = sbr.rel (%p166) target = $region32
    $region31: #{discriminator_forward.8} parent=5 // pred_region
      %s170 = ssub.s32 %s11, 1
      %p171 = scmp.lt.s32.totalorder %s16, 1
      %s172 = scalar_select %p171, %s16, 1
      %s173 = smul.addr %s172, 6
      %s174 = smul.addr %s173, 8
      %s175 = scalar_lea.vmem %s0, %s174
      %p176 = pneg %p37
      %p177 = pneg %p34
      %p178 = pneg %p58
      %p179 = pneg %p55
      %p180 = pneg %p79
      %p181 = pneg %p76
      %p182 = pneg %p105
      %p183 = pneg %p102
      %p184 = scmp.lt.s32.totalorder %s16, 1
      %s185 = scalar_select %p184, %s16, 1
      %s186 = smul.addr %s185, 3
      %s187 = smul.addr %s186, 8
      %s188 = scalar_lea.vmem %s3, %s187
      %p189 = pneg %p131
      %p190 = pneg %p128
      %p191 = scmp.lt.s32.totalorder %s16, 1
      %s192 = scalar_select %p191, %s16, 1
      %s193 = smul.addr %s192, 2
      %s194 = scalar_lea.vmem %s4, %s193
      %p195 = scmp.lt.s32.totalorder %s16, 1
      %s196 = scalar_select %p195, %s16, 1
      %s197 = smul.addr %s196, 6
      %s198 = smul.addr %s197, 8
      %s199 = scalar_lea.vmem %s0, %s198
      %p200 = scmp.lt.s32.totalorder %s16, 1
      %s201 = scalar_select %p200, %s16, 1
      %s202 = smul.addr %s201, 3
      %s203 = smul.addr %s202, 8
      %s204 = scalar_lea.vmem %s3, %s203
      %p205 = scmp.lt.s32.totalorder %s16, 1
      %s206 = scalar_select %p205, %s16, 1
      %s207 = smul.addr %s206, 2
      %s208 = scalar_lea.vmem %s4, %s207
      %v210 = vld [vmem:[%s199] sm:$0xff]
      %v211 = vld [vmem:[%s199 + $0x8] sm:$0xff]
      %v212 = vld [vmem:[%s199 + $0x10] sm:$0x3]
      %v213 = vld [vmem:[%s199 + $0x1] sm:$0xff]
      %v214 = vld [vmem:[%s199 + $0x9] sm:$0xff]
      %v215 = vld [vmem:[%s199 + $0x11] sm:$0x3]
      %v216 = vld [vmem:[%s199 + $0x2] sm:$0xff]
      %v217 = vld [vmem:[%s199 + $0xa] sm:$0xff]
      %v218 = vld [vmem:[%s199 + $0x12] sm:$0x3]
      %v219 = vld [vmem:[%s199 + $0x3] sm:$0xff]
      %v220 = vld [vmem:[%s199 + $0xb] sm:$0xff]
      %v221 = vld [vmem:[%s199 + $0x13] sm:$0x3]
      %v222 = vld [vmem:[%s199 + $0x6] sm:$0xff]
      %v223 = vld [vmem:[%s199 + $0xe] sm:$0xff]
      %v224 = vld [vmem:[%s199 + $0x16] sm:$0x3]
      %v225 = vld [vmem:[%s199 + $0x7] sm:$0xff]
      %v226 = vld [vmem:[%s199 + $0xf] sm:$0xff]
      %v227 = vld [vmem:[%s199 + $0x17] sm:$0x3]
      %v228 = vld [vmem:[%s199 + $0x10] sm:$0xff]
      %v229 = vld [vmem:[%s199 + $0x18] sm:$0x3]
      %v230 = vld [vmem:[%s199 + $0x11] sm:$0xff]
      %v231 = vld [vmem:[%s199 + $0x19] sm:$0x3]
      %v232 = vld [vmem:[%s199 + $0xc] sm:$0xff]
      %v233 = vld [vmem:[%s199 + $0x14] sm:$0xff]
      %v234 = vld [vmem:[%s199 + $0x1c] sm:$0x3]
      %v235 = vld [vmem:[%s199 + $0xd] sm:$0xff]
      %v236 = vld [vmem:[%s199 + $0x15] sm:$0xff]
      %v237 = vld [vmem:[%s199 + $0x1d] sm:$0x3]
      %v238 = vld [vmem:[%s199 + $0x16] sm:$0xff]
      %v239 = vld [vmem:[%s199 + $0x1e] sm:$0x3]
      %v240 = vld [vmem:[%s199 + $0x17] sm:$0xff]
      %v241 = vld [vmem:[%s199 + $0x1f] sm:$0x3]
      %v242 = vld [vmem:[%s199 + $0x12] sm:$0xff]
      %v243 = vld [vmem:[%s199 + $0x1a] sm:$0xff]
      %v244 = vld [vmem:[%s199 + $0x22] sm:$0x3]
      %v245 = vld [vmem:[%s199 + $0x13] sm:$0xff]
      %v246 = vld [vmem:[%s199 + $0x1b] sm:$0xff]
      %v247 = vld [vmem:[%s199 + $0x23] sm:$0x3]
      %v248 = vld [vmem:[%s199 + $0x1c] sm:$0xff]
      %v249 = vld [vmem:[%s199 + $0x24] sm:$0x3]
      %v250 = vld [vmem:[%s199 + $0x1d] sm:$0xff]
      %v251 = vld [vmem:[%s199 + $0x25] sm:$0x3]
      %255 = vrot.lane.b32.xlu0 %v213, 32
      %v256 = vpop.permute.xlu0 %255
      %257 = vrot.lane.b32.xlu0 %v214, 32
      %v258 = vpop.permute.xlu0 %257
      %259 = vrot.lane.b32.xlu0 %v215, 32
      %v260 = vpop.permute.xlu0 %259
      %267 = vrot.lane.b32.xlu0 %v216, 64
      %v268 = vpop.permute.xlu0 %267
      %269 = vrot.lane.b32.xlu0 %v217, 64
      %v270 = vpop.permute.xlu0 %269
      %271 = vrot.lane.b32.xlu0 %v218, 64
      %v272 = vpop.permute.xlu0 %271
      %279 = vrot.lane.b32.xlu0 %v219, 96
      %v280 = vpop.permute.xlu0 %279
      %281 = vrot.lane.b32.xlu0 %v220, 96
      %v282 = vpop.permute.xlu0 %281
      %283 = vrot.lane.b32.xlu0 %v221, 96
      %v284 = vpop.permute.xlu0 %283
      %291 = vrot.lane.b32.xlu0 %v225, 32
      %v292 = vpop.permute.xlu0 %291
      %293 = vrot.lane.b32.xlu0 %v226, 32
      %v294 = vpop.permute.xlu0 %293
      %295 = vrot.lane.b32.xlu0 %v227, 32
      %v296 = vpop.permute.xlu0 %295
      %303 = vrot.lane.b32.xlu0 %v211, 64
      %v304 = vpop.permute.xlu0 %303
      %305 = vrot.lane.b32.xlu0 %v228, 64
      %v306 = vpop.permute.xlu0 %305
      %307 = vrot.lane.b32.xlu0 %v229, 64
      %v308 = vpop.permute.xlu0 %307
      %314 = vrot.lane.b32.xlu0 %v214, 96
      %v315 = vpop.permute.xlu0 %314
      %316 = vrot.lane.b32.xlu0 %v230, 96
      %v317 = vpop.permute.xlu0 %316
      %318 = vrot.lane.b32.xlu0 %v231, 96
      %v319 = vpop.permute.xlu0 %318
      %326 = vrot.lane.b32.xlu0 %v235, 32
      %v327 = vpop.permute.xlu0 %326
      %328 = vrot.lane.b32.xlu0 %v236, 32
      %v329 = vpop.permute.xlu0 %328
      %330 = vrot.lane.b32.xlu0 %v237, 32
      %v331 = vpop.permute.xlu0 %330
      %338 = vrot.lane.b32.xlu0 %v223, 64
      %v339 = vpop.permute.xlu0 %338
      %340 = vrot.lane.b32.xlu0 %v238, 64
      %v341 = vpop.permute.xlu0 %340
      %342 = vrot.lane.b32.xlu0 %v239, 64
      %v343 = vpop.permute.xlu0 %342
      %349 = vrot.lane.b32.xlu0 %v226, 96
      %v350 = vpop.permute.xlu0 %349
      %351 = vrot.lane.b32.xlu0 %v240, 96
      %v352 = vpop.permute.xlu0 %351
      %353 = vrot.lane.b32.xlu0 %v241, 96
      %v354 = vpop.permute.xlu0 %353
      %361 = vrot.lane.b32.xlu0 %v245, 32
      %v362 = vpop.permute.xlu0 %361
      %363 = vrot.lane.b32.xlu0 %v246, 32
      %v364 = vpop.permute.xlu0 %363
      %365 = vrot.lane.b32.xlu0 %v247, 32
      %v366 = vpop.permute.xlu0 %365
      %373 = vrot.lane.b32.xlu0 %v233, 64
      %v374 = vpop.permute.xlu0 %373
      %375 = vrot.lane.b32.xlu0 %v248, 64
      %v376 = vpop.permute.xlu0 %375
      %377 = vrot.lane.b32.xlu0 %v249, 64
      %v378 = vpop.permute.xlu0 %377
      %384 = vrot.lane.b32.xlu0 %v236, 96
      %v385 = vpop.permute.xlu0 %384
      %386 = vrot.lane.b32.xlu0 %v250, 96
      %v387 = vpop.permute.xlu0 %386
      %388 = vrot.lane.b32.xlu0 %v251, 96
      %v389 = vpop.permute.xlu0 %388
      %vm393 = vcmask 261120
      %v394 = vsel %vm393, %v210, %v256
      %v395 = vsel %vm393, %v211, %v258
      %v396 = vsel %vm393, %v212, %v260
      %vm397 = vcmask 523264
      %v398 = vsel %vm397, %v394, %v268
      %v399 = vsel %vm397, %v395, %v270
      %v400 = vsel %vm397, %v396, %v272
      %vm401 = vcmask 785408
      %v402 = vsel %vm401, %v398, %v280
      %v403 = vsel %vm401, %v399, %v282
      %v404 = vsel %vm401, %v400, %v284
      %v405 = vsel %vm393, %v222, %v292
      %v406 = vsel %vm393, %v223, %v294
      %v407 = vsel %vm393, %v224, %v296
      %v408 = vsel %vm397, %v405, %v304
      %v409 = vsel %vm397, %v406, %v306
      %v410 = vsel %vm397, %v407, %v308
      %v411 = vsel %vm401, %v408, %v315
      %v412 = vsel %vm401, %v409, %v317
      %v413 = vsel %vm401, %v410, %v319
      %v414 = vsel %vm393, %v232, %v327
      %v415 = vsel %vm393, %v233, %v329
      %v416 = vsel %vm393, %v234, %v331
      %v417 = vsel %vm397, %v414, %v339
      %v418 = vsel %vm397, %v415, %v341
      %v419 = vsel %vm397, %v416, %v343
      %v420 = vsel %vm401, %v417, %v350
      %v421 = vsel %vm401, %v418, %v352
      %v422 = vsel %vm401, %v419, %v354
      %v423 = vsel %vm393, %v242, %v362
      %v424 = vsel %vm393, %v243, %v364
      %v425 = vsel %vm393, %v244, %v366
      %v426 = vsel %vm397, %v423, %v374
      %v427 = vsel %vm397, %v424, %v376
      %v428 = vsel %vm397, %v425, %v378
      %v429 = vsel %vm401, %v426, %v385
      %v430 = vsel %vm401, %v427, %v387
      %v431 = vsel %vm401, %v428, %v389
      %v432 = vpack.c.bf16 %v403, %v402
      %v433 = vpack.c.bf16 %v412, %v411
      %v434 = vpack.c.bf16 %v421, %v420
      %v435 = vpack.c.bf16 %v430, %v429
      %v436 = vpack.c.bf16 %v404, %v404
      %v437 = vpack.c.bf16 %v413, %v413
      %v438 = vpack.c.bf16 %v422, %v422
      %v439 = vpack.c.bf16 %v431, %v431
      %v440 = vld [vmem:[%s1] sm:$0xf]
      %v441 = vld [vmem:[%s1 + $0x4] sm:$0xf]
      %v442 = vld [vmem:[%s1 + $0x8] sm:$0xf]
      %v443 = vld [vmem:[%s1 + $0xc] sm:$0xf]
      %v444 = vld [vmem:[%s1 + $0x10] sm:$0xf]
      %v445 = vld [vmem:[%s1 + $0x14] sm:$0xf]
      %v446 = vld [vmem:[%s1 + $0x18] sm:$0xf]
      %v447 = vld [vmem:[%s1 + $0x1c] sm:$0xf]
      %v448 = vld [vmem:[%s1 + $0x20] sm:$0xf]
      %v449 = vld [vmem:[%s1 + $0x24] sm:$0xf]
      %v450 = vld [vmem:[%s1 + $0x28] sm:$0xf]
      %v451 = vld [vmem:[%s1 + $0x2c] sm:$0xf]
      %v452 = vld [vmem:[%s1 + $0x30] sm:$0xf]
      %v453 = vld [vmem:[%s1 + $0x34] sm:$0xf]
      %v454 = vld [vmem:[%s1 + $0x38] sm:$0xf]
      %v455 = vld [vmem:[%s1 + $0x3c] sm:$0xf]
      %v456 = vld [vmem:[%s1 + $0x40] sm:$0xf]
      %v457 = vld [vmem:[%s1 + $0x44] sm:$0xf]
      %v458 = vld [vmem:[%s1 + $0x48] sm:$0xf]
      %v459 = vld [vmem:[%s1 + $0x4c] sm:$0xf]
      %v460 = vld [vmem:[%s1 + $0x50] sm:$0xf]
      %v461 = vld [vmem:[%s1 + $0x54] sm:$0xf]
      %v462 = vld [vmem:[%s1 + $0x58] sm:$0xf]
      %v463 = vld [vmem:[%s1 + $0x5c] sm:$0xf]
      %v464 = vld [vmem:[%s1 + $0x60] sm:$0xf]
      %v465 = vld [vmem:[%s1 + $0x64] sm:$0xf]
      %v466 = vld [vmem:[%s1 + $0x68] sm:$0xf]
      %v467 = vld [vmem:[%s1 + $0x6c] sm:$0xf]
      %v468 = vld [vmem:[%s1 + $0x70] sm:$0xf]
      %v469 = vld [vmem:[%s1 + $0x74] sm:$0xf]
      %v470 = vld [vmem:[%s1 + $0x78] sm:$0xf]
      %v471 = vld [vmem:[%s1 + $0x7c] sm:$0xf]
      %v472 = vld [vmem:[%s1 + $0x80] sm:$0xf]
      %v473 = vld [vmem:[%s1 + $0x84] sm:$0xf]
      %v474 = vld [vmem:[%s1 + $0x88] sm:$0xf]
      %v475 = vld [vmem:[%s1 + $0x8c] sm:$0xf]
      %v476 = vld [vmem:[%s1 + $0x90] sm:$0xf]
      %v477 = vld [vmem:[%s1 + $0x94] sm:$0xf]
      %v478 = vld [vmem:[%s1 + $0x98] sm:$0xf]
      %v479 = vld [vmem:[%s1 + $0x9c] sm:$0xf]
      %v480 = vld [vmem:[%s1 + $0xa0] sm:$0xf]
      %v481 = vld [vmem:[%s1 + $0xa4] sm:$0xf]
      %v482 = vld [vmem:[%s1 + $0xa8] sm:$0xf]
      %v483 = vld [vmem:[%s1 + $0xac] sm:$0xf]
      %v484 = vld [vmem:[%s1 + $0xb0] sm:$0xf]
      %v485 = vld [vmem:[%s1 + $0xb4] sm:$0xf]
      %v486 = vld [vmem:[%s1 + $0xb8] sm:$0xf]
      %v487 = vld [vmem:[%s1 + $0xbc] sm:$0xf]
      %v488 = vld [vmem:[%s1 + $0xc0] sm:$0xf]
      %v489 = vld [vmem:[%s1 + $0xc4] sm:$0xf]
      %v490 = vld [vmem:[%s1 + $0xc8] sm:$0xf]
      %v491 = vld [vmem:[%s1 + $0xcc] sm:$0xf]
      %v492 = vld [vmem:[%s1 + $0xd0] sm:$0xf]
      %v493 = vld [vmem:[%s1 + $0xd4] sm:$0xf]
      %v494 = vld [vmem:[%s1 + $0xd8] sm:$0xf]
      %v495 = vld [vmem:[%s1 + $0xdc] sm:$0xf]
      %v496 = vld [vmem:[%s1 + $0xe0] sm:$0xf]
      %v497 = vld [vmem:[%s1 + $0xe4] sm:$0xf]
      %v498 = vld [vmem:[%s1 + $0xe8] sm:$0xf]
      %v499 = vld [vmem:[%s1 + $0xec] sm:$0xf]
      %v500 = vld [vmem:[%s1 + $0xf0] sm:$0xf]
      %v501 = vld [vmem:[%s1 + $0xf4] sm:$0xf]
      %v502 = vld [vmem:[%s1 + $0xf8] sm:$0xf]
      %v503 = vld [vmem:[%s1 + $0xfc] sm:$0xf]
      %v568 = vunpack.c.l.b16 %v440
      %v569 = vunpack.c.l.b16 %v441
      %v570 = vunpack.c.l.b16 %v442
      %v571 = vunpack.c.l.b16 %v443
      %v572 = vunpack.c.l.b16 %v444
      %v573 = vunpack.c.l.b16 %v445
      %v574 = vunpack.c.l.b16 %v446
      %v575 = vunpack.c.l.b16 %v447
      %v576 = vunpack.c.l.b16 %v448
      %v577 = vunpack.c.l.b16 %v449
      %v578 = vunpack.c.l.b16 %v450
      %v579 = vunpack.c.l.b16 %v451
      %v580 = vunpack.c.l.b16 %v452
      %v581 = vunpack.c.l.b16 %v453
      %v582 = vunpack.c.l.b16 %v454
      %v583 = vunpack.c.l.b16 %v455
      %v584 = vunpack.c.l.b16 %v456
      %v585 = vunpack.c.l.b16 %v457
      %v586 = vunpack.c.l.b16 %v458
      %v587 = vunpack.c.l.b16 %v459
      %v588 = vunpack.c.l.b16 %v460
      %v589 = vunpack.c.l.b16 %v461
      %v590 = vunpack.c.l.b16 %v462
      %v591 = vunpack.c.l.b16 %v463
      %v592 = vunpack.c.l.b16 %v464
      %v593 = vunpack.c.l.b16 %v465
      %v594 = vunpack.c.l.b16 %v466
      %v595 = vunpack.c.l.b16 %v467
      %v596 = vunpack.c.l.b16 %v468
      %v597 = vunpack.c.l.b16 %v469
      %v598 = vunpack.c.l.b16 %v470
      %v599 = vunpack.c.l.b16 %v471
      %v600 = vunpack.c.l.b16 %v472
      %v601 = vunpack.c.l.b16 %v473
      %v602 = vunpack.c.l.b16 %v474
      %v603 = vunpack.c.l.b16 %v475
      %v604 = vunpack.c.l.b16 %v476
      %v605 = vunpack.c.l.b16 %v477
      %v606 = vunpack.c.l.b16 %v478
      %v607 = vunpack.c.l.b16 %v479
      %v608 = vunpack.c.l.b16 %v480
      %v609 = vunpack.c.l.b16 %v481
      %v610 = vunpack.c.l.b16 %v482
      %v611 = vunpack.c.l.b16 %v483
      %v612 = vunpack.c.l.b16 %v484
      %v613 = vunpack.c.l.b16 %v485
      %v614 = vunpack.c.l.b16 %v486
      %v615 = vunpack.c.l.b16 %v487
      %v616 = vunpack.c.l.b16 %v488
      %v617 = vunpack.c.l.b16 %v489
      %v618 = vunpack.c.l.b16 %v490
      %v619 = vunpack.c.l.b16 %v491
      %v620 = vunpack.c.l.b16 %v492
      %v621 = vunpack.c.l.b16 %v493
      %v622 = vunpack.c.l.b16 %v494
      %v623 = vunpack.c.l.b16 %v495
      %v624 = vunpack.c.l.b16 %v496
      %v625 = vunpack.c.l.b16 %v497
      %v626 = vunpack.c.l.b16 %v498
      %v627 = vunpack.c.l.b16 %v499
      %v628 = vunpack.c.l.b16 %v500
      %v629 = vunpack.c.l.b16 %v501
      %v630 = vunpack.c.l.b16 %v502
      %v631 = vunpack.c.l.b16 %v503
      %v632 = vpack.c.b16 %v569, %v568
      %v633 = vpack.c.b16 %v571, %v570
      %v634 = vpack.c.b16 %v573, %v572
      %v635 = vpack.c.b16 %v575, %v574
      %v636 = vpack.c.b16 %v577, %v576
      %v637 = vpack.c.b16 %v579, %v578
      %v638 = vpack.c.b16 %v581, %v580
      %v639 = vpack.c.b16 %v583, %v582
      %v640 = vpack.c.b16 %v585, %v584
      %v641 = vpack.c.b16 %v587, %v586
      %v642 = vpack.c.b16 %v589, %v588
      %v643 = vpack.c.b16 %v591, %v590
      %v644 = vpack.c.b16 %v593, %v592
      %v645 = vpack.c.b16 %v595, %v594
      %v646 = vpack.c.b16 %v597, %v596
      %v647 = vpack.c.b16 %v599, %v598
      %v648 = vpack.c.b16 %v601, %v600
      %v649 = vpack.c.b16 %v603, %v602
      %v650 = vpack.c.b16 %v605, %v604
      %v651 = vpack.c.b16 %v607, %v606
      %v652 = vpack.c.b16 %v609, %v608
      %v653 = vpack.c.b16 %v611, %v610
      %v654 = vpack.c.b16 %v613, %v612
      %v655 = vpack.c.b16 %v615, %v614
      %v656 = vpack.c.b16 %v617, %v616
      %v657 = vpack.c.b16 %v619, %v618
      %v658 = vpack.c.b16 %v621, %v620
      %v659 = vpack.c.b16 %v623, %v622
      %v660 = vpack.c.b16 %v625, %v624
      %v661 = vpack.c.b16 %v627, %v626
      %v662 = vpack.c.b16 %v629, %v628
      %v663 = vpack.c.b16 %v631, %v630
      %696 = vmatprep.subr.bf16.mxu0 0
      %697 = vmatpush1.bf16.msra.mxu0 %v632
      %698 = vmatprep.subr.bf16.mxu0 0
      %699 = vmatpush1.bf16.msra.mxu0 %v633
      %700 = vmatprep.subr.bf16.mxu0 0
      %701 = vmatpush1.bf16.msra.mxu0 %v634
      %702 = vmatprep.subr.bf16.mxu0 0
      %703 = vmatpush1.bf16.msra.mxu0 %v635
      %704 = vmatprep.subr.bf16.mxu0 0
      %705 = vmatpush1.bf16.msra.mxu0 %v636
      %706 = vmatprep.subr.bf16.mxu0 0
      %707 = vmatpush1.bf16.msra.mxu0 %v637
      %708 = vmatprep.subr.bf16.mxu0 0
      %709 = vmatpush1.bf16.msra.mxu0 %v638
      %710 = vmatprep.subr.bf16.mxu0 0
      %711 = vmatpush1.bf16.msra.mxu0 %v639
      %712 = vmatprep.subr.bf16.mxu0 0
      %713 = vmatpush1.bf16.msra.mxu0 %v640
      %714 = vmatprep.subr.bf16.mxu0 0
      %715 = vmatpush1.bf16.msra.mxu0 %v641
      %716 = vmatprep.subr.bf16.mxu0 0
      %717 = vmatpush1.bf16.msra.mxu0 %v642
      %718 = vmatprep.subr.bf16.mxu0 0
      %719 = vmatpush1.bf16.msra.mxu0 %v643
      %720 = vmatprep.subr.bf16.mxu0 0
      %721 = vmatpush1.bf16.msra.mxu0 %v644
      %722 = vmatprep.subr.bf16.mxu0 0
      %723 = vmatpush1.bf16.msra.mxu0 %v645
      %724 = vmatprep.subr.bf16.mxu0 0
      %725 = vmatpush1.bf16.msra.mxu0 %v646
      %726 = vmatprep.subr.bf16.mxu0 0
      %727 = vmatpush1.bf16.msra.mxu0 %v647
      %728 = vmatprep.mubr.bf16.mxu0 %v433
      %729 = vmatmul.mubr.bf16.gmra.mrb[0].mxu0 %v432
      %v730 = vpop.f32.mrb[0].mxu0
      %v731 = vadd.f32 0.0, %v730
      %v732 = vpop.f32.mrb[0].mxu0
      %v733 = vpop.f32.mrb[0].mxu0
      %v734 = vadd.f32 0.0, %v733
      %v735 = vpop.f32.mrb[0].mxu0
      %736 = vmatprep.mubr.bf16.mxu0 %v437
      %737 = vmatmul.mubr.bf16.gmra.mrb[0].mxu0 %v436
      %v738 = vpop.f32.mrb[0].mxu0
      %v739 = vadd.f32 0.0, %v738
      %v740 = vpop.f32.mrb[0].mxu0
      %v741 = vpop.f32.mrb[0].mxu0
      %v742 = vpop.f32.mrb[0].mxu0
      %743 = vdwg.mxu0
      %744 = vmatprep.subr.bf16.mxu0 0
      %745 = vmatpush1.bf16.msra.mxu0 %v648
      %746 = vmatprep.subr.bf16.mxu0 0
      %747 = vmatpush1.bf16.msra.mxu0 %v649
      %748 = vmatprep.subr.bf16.mxu0 0
      %749 = vmatpush1.bf16.msra.mxu0 %v650
      %750 = vmatprep.subr.bf16.mxu0 0
      %751 = vmatpush1.bf16.msra.mxu0 %v651
      %752 = vmatprep.subr.bf16.mxu0 0
      %753 = vmatpush1.bf16.msra.mxu0 %v652
      %754 = vmatprep.subr.bf16.mxu0 0
      %755 = vmatpush1.bf16.msra.mxu0 %v653
      %756 = vmatprep.subr.bf16.mxu0 0
      %757 = vmatpush1.bf16.msra.mxu0 %v654
      %758 = vmatprep.subr.bf16.mxu0 0
      %759 = vmatpush1.bf16.msra.mxu0 %v655
      %760 = vmatprep.subr.bf16.mxu0 0
      %761 = vmatpush1.bf16.msra.mxu0 %v656
      %762 = vmatprep.subr.bf16.mxu0 0
      %763 = vmatpush1.bf16.msra.mxu0 %v657
      %764 = vmatprep.subr.bf16.mxu0 0
      %765 = vmatpush1.bf16.msra.mxu0 %v658
      %766 = vmatprep.subr.bf16.mxu0 0
      %767 = vmatpush1.bf16.msra.mxu0 %v659
      %768 = vmatprep.subr.bf16.mxu0 0
      %769 = vmatpush1.bf16.msra.mxu0 %v660
      %770 = vmatprep.subr.bf16.mxu0 0
      %771 = vmatpush1.bf16.msra.mxu0 %v661
      %772 = vmatprep.subr.bf16.mxu0 0
      %773 = vmatpush1.bf16.msra.mxu0 %v662
      %774 = vmatprep.subr.bf16.mxu0 0
      %775 = vmatpush1.bf16.msra.mxu0 %v663
      %776 = vmatprep.mubr.bf16.mxu0 %v435
      %777 = vmatmul.mubr.bf16.gmra.mrb[0].mxu0 %v434
      %v778 = vpop.f32.mrb[0].mxu0
      %v779 = vadd.f32 %v731, %v778
      %v780 = vpop.f32.mrb[0].mxu0
      %v781 = vpop.f32.mrb[0].mxu0
      %v782 = vadd.f32 %v734, %v781
      %v783 = vpop.f32.mrb[0].mxu0
      %784 = vmatprep.mubr.bf16.mxu0 %v439
      %785 = vmatmul.mubr.bf16.gmra.mrb[0].mxu0 %v438
      %v786 = vpop.f32.mrb[0].mxu0
      %v787 = vadd.f32 %v739, %v786
      %v788 = vpop.f32.mrb[0].mxu0
      %v789 = vpop.f32.mrb[0].mxu0
      %v790 = vpop.f32.mrb[0].mxu0
      %791 = vdwg.mxu0
      %vm792 = vcmp.gt.f32.partialorder %v779, 0.0
      %vm793 = vcmp.gt.f32.partialorder %v782, 0.0
      %vm794 = vcmp.gt.f32.partialorder %v787, 0.0
      %v795 = vmul.f32 %v779, 0.2
      %v796 = vmul.f32 %v782, 0.2
      %v797 = vmul.f32 %v787, 0.2
      %v798 = vsel %vm792, %v779, %v795
      %v799 = vsel %vm793, %v782, %v796
      %v800 = vsel %vm794, %v787, %v797
      %801 = vst.msk [vmem:[%s204] sm:$0xff] %vm397, %v798
      %802 = vst.msk [vmem:[%s204 + $0x8] sm:$0xff] %vm397, %v799
      %vm803 = vcmask 517120
      %804 = vst.msk [vmem:[%s204 + $0x10] sm:$0x3] %vm803, %v800
      %v805 = vld [vmem:[%s2] sm:$0xff]
      %v806 = vld [vmem:[%s2 + $0x8] sm:$0xff]
      %v807 = vld [vmem:[%s2 + $0x10] sm:$0x3]
      %809 = vset.pattern.permute.xlu0 0
      %810 = vperm.xlu0 %809, %v805
      %v811 = vpop.permute.xlu0 %810
      %814 = vset.pattern.permute.xlu0 0
      %815 = vperm.xlu0 %814, %v806
      %v816 = vpop.permute.xlu0 %815
      %819 = vset.pattern.permute.xlu0 0
      %820 = vperm.xlu0 %819, %v807
      %v821 = vpop.permute.xlu0 %820
      %v823 = vmul.f32 %v798, %v811
      %v824 = vmul.f32 %v799, %v816
      %v825 = vmul.f32 %v800, %v821
      %v826 = vsel %vm397, %v823, 0.0
      %v827 = vsel %vm397, %v824, 0.0
      %v828 = vadd.f32 %v826, %v827
      %v829 = vsel %vm803, %v825, 0.0
      %v830 = vadd.f32 %v828, %v829
      %v831 = vrot.slane %v830, 4
      %v832 = vadd.f32 %v830, %v831
      %v833 = vrot.slane %v832, 2
      %v834 = vadd.f32 %v832, %v833
      %v835 = vrot.slane %v834, 1
      %v836 = vadd.f32 %v834, %v835
      %vm837 = vcmask 516096
      %838 = vst.msk [vmem:[%s208] sm:$0x1] %vm837, %v836
      %v839 = vmul.f32 %v823, %v823
      %v840 = vmul.f32 %v824, %v824
      %v841 = vmul.f32 %v825, %v825
      %v842 = vsel %vm397, %v839, 0.0
      %v843 = vsel %vm397, %v840, 0.0
      %v844 = vadd.f32 %v842, %v843
      %v845 = vsel %vm803, %v841, 0.0
      %v846 = vadd.f32 %v844, %v845
      %v847 = vrot.slane %v846, 4
      %v848 = vadd.f32 %v846, %v847
      %v849 = vrot.slane %v848, 2
      %v850 = vadd.f32 %v848, %v849
      %v851 = vrot.slane %v850, 1
      %v852 = vadd.f32 %v850, %v851
      %853 = vst.msk [vmem:[%s208 + $0x1] sm:$0x1] %vm837, %v852
      %p854 = scmp.lt.s32.totalorder %s16, 1
      %s855 = scalar_select %p854, %s16, 1
      %s856 = smul.addr %s855, 3
      %s857 = smul.addr %s856, 8
      %s858 = scalar_lea.vmem %s3, %s857
      %p859 = scmp.lt.s32.totalorder %s16, 1
      %s860 = scalar_select %p859, %s16, 1
      %s861 = smul.addr %s860, 2
      %s862 = scalar_lea.vmem %s4, %s861
      // Predicated region
      $region33: #{discriminator_forward.8} parent=31 // pred_check
        %p863 = pneg %p102
      $region34: #{discriminator_forward.8} parent=31 // pred_check_branch
        %865 = sbr.rel (%p863) target = $region36
      $region35: #{discriminator_forward.8} parent=31 // pred_region
        _
      $region36: #{discriminator_forward.8} parent=31 // pred_fallthru
        _
      // Predicated region
      $region37: #{discriminator_forward.8} parent=31 // pred_check
        %p866 = pneg %p128
      $region38: #{discriminator_forward.8} parent=31 // pred_check_branch
        %868 = sbr.rel (%p866) target = $region40
      $region39: #{discriminator_forward.8} parent=31 // pred_region
        _
      $region40: #{discriminator_forward.8} parent=31 // pred_fallthru
        _
    $region32: #{discriminator_forward.8} parent=5 // pred_fallthru
      _
    %p869 = scmp.le.s32.totalorder 2, %s11
    // Predicated region
    $region41: #{discriminator_forward.8} parent=5 // pred_check
      %p870 = pneg %p869
    $region42: #{discriminator_forward.8} parent=5 // pred_check_branch
      %872 = sbr.rel (%p870) target = $region44
    $region43: #{discriminator_forward.8} parent=5 // pred_region
      %s873 = ssub.s32 %s11, 2
      // Predicated region
      $region45: #{discriminator_forward.8} parent=43 // pred_check
        %p874 = pneg %p108
      $region46: #{discriminator_forward.8} parent=43 // pred_check_branch
        %876 = sbr.rel (%p874) target = $region48
      $region47: #{discriminator_forward.8} parent=43 // pred_region
        %p877 = scmp.lt.s32.totalorder %s17, 1
        %s878 = scalar_select %p877, %s17, 1
        %s879 = smul.addr %s878, 3
        %s880 = smul.addr %s879, 8
        %s881 = scalar_lea.vmem %s3, %s880
      $region48: #{discriminator_forward.8} parent=43 // pred_fallthru
        _
      // Predicated region
      $region49: #{discriminator_forward.8} parent=43 // pred_check
        %p882 = pneg %p134
      $region50: #{discriminator_forward.8} parent=43 // pred_check_branch
        %884 = sbr.rel (%p882) target = $region52
      $region51: #{discriminator_forward.8} parent=43 // pred_region
        %p885 = scmp.lt.s32.totalorder %s17, 1
        %s886 = scalar_select %p885, %s17, 1
        %s887 = smul.addr %s886, 2
        %s888 = scalar_lea.vmem %s4, %s887
      $region52: #{discriminator_forward.8} parent=43 // pred_fallthru
        _
    $region44: #{discriminator_forward.8} parent=5 // pred_fallthru
      _
  $region6: #{discriminator_forward.8} parent=0 // loop_footer
    %s15 = sadd.s32 1, %s11
  $region7: #{discriminator_forward.8} parent=0 // loop_footer_branch
    %10 = sbr.rel target = $region3
  $region8: #{discriminator_forward.8} parent=0 // loop_exit
    _

</llo_original>
